<compile_context>
chip_gen: v7x
topology: tpu7x:2x2x1
jax: 0.10.0
libtpu: 0.0.40
codegen_flags: <defaults>
</compile_context>

<pallas_src>
import functools

import jax
import jax.numpy as jnp
from jax import lax
from jax.experimental import pallas as pl
from jax.experimental.pallas import tpu as pltpu


# ----------------------------------------------------------------------------
# Fused kernel: one batch tile per grid step.
# ----------------------------------------------------------------------------
def _fused_kernel(x_ref,
                  w1, b1, w2, b2, w3, b3, w4, b4, w5, b5,
                  o_ref,
                  xpad, ha, hb,
                  *, bt, H, W, ch, cdt):
    # x_ref : (bt, H, W*8)     lane-dense f32 input; channels = [p, vx, vy, mask, 0,0,0,0]
    # wN    : (9*cin, cout)    im2col weights, already cast to cdt
    # bN    : (1, cout)        f32 bias
    # o_ref : (bt, H, W*8)     lane-dense f32 output (chans 0:3 are the real ones)
    # xpad  : (bt, H+2, W+2, 8)   cdt padded-input scratch
    # ha/hb : (bt, H+2, W+2, ch)  cdt padded hidden-activation ping-pong scratch
    Hp, Wp = H + 2, W + 2
    M = bt * H * W

    # --- halo-only zeroing every step: scratch persists across grid steps and
    # --- each megacore TC owns its own grid subrange, so never rely on step 0.
    def zero_halo(buf, c):
        zrow = jnp.zeros((bt, 1, Wp, c), cdt)
        zcol = jnp.zeros((bt, Hp, 1, c), cdt)
        buf[:, 0:1, :, :] = zrow
        buf[:, Hp - 1:Hp, :, :] = zrow
        buf[:, :, 0:1, :] = zcol
        buf[:, :, Wp - 1:Wp, :] = zcol

    zero_halo(xpad, 8)
    zero_halo(ha, ch)
    zero_halo(hb, ch)

    # --- in-kernel "padding=1": write only the interior of the zero-haloed buf.
    xin = x_ref[...].reshape(bt, H, W, 8)                    # f32, chans 4:8 == 0
    xpad[:, 1:H + 1, 1:W + 1, :] = xin.astype(cdt)

    # --- one im2col matmul per layer (K = 9*cin), f32 accumulation.
    def conv3x3(src_ref, cin, w_ref, b_ref, relu):
        a = src_ref[...]                                     # (bt, Hp, Wp, cin) cdt
        # W-direction tap gather -> (bt, Hp, W, 3*cin)
        cols = jnp.concatenate([a[:, :, dx:dx + W, :] for dx in range(3)],
                               axis=-1)
        # H-direction tap gather -> (M, 9*cin); column order = dy*3*cin + dx*cin + c
        lhs = jnp.concatenate(
            [cols[:, dy:dy + H, :, :].reshape(M, 3 * cin) for dy in range(3)],
            axis=-1)
        acc = jnp.dot(lhs, w_ref[...], preferred_element_type=jnp.float32)
        out = acc + b_ref[...]                               # (M, cout) f32
        return jnp.maximum(out, 0.0) if relu else out

    h = conv3x3(xpad, 8, w1, b1, True)
    ha[:, 1:H + 1, 1:W + 1, :] = h.reshape(bt, H, W, ch).astype(cdt)
    h = conv3x3(ha, ch, w2, b2, True)
    hb[:, 1:H + 1, 1:W + 1, :] = h.reshape(bt, H, W, ch).astype(cdt)
    h = conv3x3(hb, ch, w3, b3, True)
    ha[:, 1:H + 1, 1:W + 1, :] = h.reshape(bt, H, W, ch).astype(cdt)
    h = conv3x3(ha, ch, w4, b4, True)
    hb[:, 1:H + 1, 1:W + 1, :] = h.reshape(bt, H, W, ch).astype(cdt)
    x5 = conv3x3(hb, ch, w5, b5, False)                      # (M, 8) f32, chans 3:8 == 0

    # --- head: p_new = 4*tanh((p_old + x5[...,0])/4), v_new likewise on chans 1:3.
    # xin chans 4:8 are zero and x5 chans 3:8 are zero, so the padded lanes are
    # harmless garbage/zeros and get sliced off in the wrapper.
    resid = xin + x5.reshape(bt, H, W, 8)
    o_ref[...] = (4.0 * jnp.tanh(0.25 * resid)).reshape(bt, H, W * 8)


# ----------------------------------------------------------------------------
# Batch-tile picker. Default keeps >=2 grid steps (safe for v7x's 2 TCs with
# dimension_semantics=("parallel",)); on single-TC v5e/v6e callers may pass
# min_steps=1 and a larger budget to grow the tile further.
# ----------------------------------------------------------------------------
def _pick_batch_tile(B, H, W, ch, vmem_budget_bytes=8 << 20, min_steps=2):
    hp, wp = H + 2, W + 2
    per_elem = (2 * hp * wp * (2 * ch + 8)      # bf16 padded scratch (xpad + ping/pong)
                + 4 * 4 * H * W * 8             # double-buffered f32 in/out blocks
                + 28 * H * W * ch)              # im2col LHS / cols / f32 acc temporaries
    cap = max(1, vmem_budget_bytes // per_elem)
    if B >= min_steps:
        cap = min(cap, B // min_steps)
    bt = 1
    for d in range(1, min(cap, B) + 1):         # largest divisor of B <= cap
        if B % d == 0:
            bt = d
    return bt


# ----------------------------------------------------------------------------
# pallas_call wrapper (lane-dense NHWC-flattened layout)
# ----------------------------------------------------------------------------
def _fused_forward(x_flat, ws, bs, *, ch, bt, cdt, H, W):
    B = x_flat.shape[0]
    assert B % bt == 0
    grid = (B // bt,)

    in_specs = [pl.BlockSpec((bt, H, W * 8), lambda i: (i, 0, 0))]
    operands = [x_flat]
    for wa, ba in zip(ws, bs):
        in_specs.append(pl.BlockSpec(wa.shape, lambda i: (0, 0)))   # VMEM-resident
        in_specs.append(pl.BlockSpec(ba.shape, lambda i: (0, 0)))   # VMEM-resident
        operands += [wa, ba]

    kernel = functools.partial(_fused_kernel, bt=bt, H=H, W=W, ch=ch, cdt=cdt)
    return pl.pallas_call(
        kernel,
        out_shape=jax.ShapeDtypeStruct((B, H, W * 8), jnp.float32),
        grid_spec=pltpu.PrefetchScalarGridSpec(
            num_scalar_prefetch=0,
            grid=grid,
            in_specs=in_specs,
            out_specs=pl.BlockSpec((bt, H, W * 8), lambda i: (i, 0, 0)),
            scratch_shapes=[
                pltpu.VMEM((bt, H + 2, W + 2, 8), cdt),    # padded input
                pltpu.VMEM((bt, H + 2, W + 2, ch), cdt),   # hidden ping
                pltpu.VMEM((bt, H + 2, W + 2, ch), cdt),   # hidden pong
            ]),
        compiler_params=pltpu.CompilerParams(
            dimension_semantics=("parallel",),
            vmem_limit_bytes=32 * 1024 * 1024),
    )(*operands)


# ----------------------------------------------------------------------------
# Public forward pass (PyTorch-facing NCHW interface, OIHW weights)
# ----------------------------------------------------------------------------
@functools.partial(jax.jit, static_argnames=("compute_dtype", "batch_tile"))
def conv2d_6layer_forward(params, p_old, v_old, field_masks, *,
                          compute_dtype=jnp.bfloat16, batch_tile=None):
    x = jnp.concatenate([p_old, v_old, field_masks], axis=1)   # (B, 4, H, W)
    B, _, H, W = x.shape
    x_nhwc = jnp.transpose(x, (0, 2, 3, 1))                    # tiny (4 channels)
    x8 = jnp.pad(x_nhwc, ((0, 0), (0, 0), (0, 0), (0, 4)))     # chans 4 -> 8
    x_flat = x8.reshape(B, H, W * 8)                           # lane-dense input

    ch = params["w1"].shape[0]
    cdt = compute_dtype

    def prep_w(w_oihw, cin_pad=None):
        # OIHW -> (Ky, Kx, I, O) -> (9*I, O); row index = ky*3*I + kx*I + i,
        # matching the im2col LHS column order inside the kernel.
        i = w_oihw.shape[1]
        if cin_pad is not None and cin_pad > i:
            w_oihw = jnp.pad(w_oihw, ((0, 0), (0, cin_pad - i), (0, 0), (0, 0)))
            i = cin_pad
        o = w_oihw.shape[0]
        return jnp.transpose(w_oihw, (2, 3, 1, 0)).reshape(9 * i, o).astype(cdt)

    ws = [prep_w(params["w1"], cin_pad=8)] + \
         [prep_w(params[f"w{k}"]) for k in range(2, 6)]
    bs = [params[f"b{k}"].reshape(1, -1).astype(jnp.float32) for k in range(1, 6)]
    # Pad conv5's ragged out-channel dim (3 -> 8) with zeros for aligned tiles.
    ws[4] = jnp.pad(ws[4], ((0, 0), (0, 8 - ws[4].shape[-1])))
    bs[4] = jnp.pad(bs[4], ((0, 0), (0, 8 - bs[4].shape[-1])))

    bt = batch_tile if batch_tile is not None else _pick_batch_tile(B, H, W, ch)

    y = _fused_forward(x_flat, ws, bs, ch=ch, bt=bt, cdt=cdt, H=H, W=W)
    y = y.reshape(B, H, W, 8)[..., 0:3]                        # drop padded lanes
    y = jnp.transpose(y, (0, 3, 1, 2))                         # NCHW (tiny, 3 chans)
    return y[:, 0:1], y[:, 1:3]                                # p_new, v_new


# ----------------------------------------------------------------------------
# Pure-JAX reference (mirrors the PyTorch module exactly)
# ----------------------------------------------------------------------------
def _ref_conv(x, w_oihw, b, relu):
    y = lax.conv_general_dilated(
        x, w_oihw, window_strides=(1, 1), padding="SAME",
        dimension_numbers=("NCHW", "OIHW", "NCHW")) + b.reshape(1, -1, 1, 1)
    return jnp.maximum(y, 0.0) if relu else y


def reference_forward(params, p_old, v_old, field_masks):
    x = jnp.concatenate([p_old, v_old, field_masks], axis=1)
    h = _ref_conv(x, params["w1"], params["b1"], True)
    h = _ref_conv(h, params["w2"], params["b2"], True)
    h = _ref_conv(h, params["w3"], params["b3"], True)
    h = _ref_conv(h, params["w4"], params["b4"], True)
    x5 = _ref_conv(h, params["w5"], params["b5"], False)
    p_new = 4.0 * jnp.tanh(0.25 * (p_old + x5[:, 0:1]))
    v_new = 4.0 * jnp.tanh(0.25 * (v_old + x5[:, 1:3]))
    return p_new, v_new


if __name__ == "__main__":
    key = jax.random.PRNGKey(0)
    B, H, W, hidden = 2, 16, 16, 32            # small demo shapes
    ks = jax.random.split(key, 13)

    def mk_w(k, o, i):
        return 0.1 * jax.random.normal(k, (o, i, 3, 3), jnp.float32)   # OIHW

    def mk_b(k, o):
        return 0.1 * jax.random.normal(k, (o,), jnp.float32)

    params = {
        "w1": mk_w(ks[0], hidden, 4),      "b1": mk_b(ks[1], hidden),
        "w2": mk_w(ks[2], hidden, hidden), "b2": mk_b(ks[3], hidden),
        "w3": mk_w(ks[4], hidden, hidden), "b3": mk_b(ks[5], hidden),
        "w4": mk_w(ks[6], hidden, hidden), "b4": mk_b(ks[7], hidden),
        "w5": mk_w(ks[8], 3, hidden),      "b5": mk_b(ks[9], 3),
    }
    p_old = jax.random.normal(ks[10], (B, 1, H, W), jnp.float32)
    v_old = jax.random.normal(ks[11], (B, 2, H, W), jnp.float32)
    field_masks = (jax.random.uniform(ks[12], (B, 1, H, W)) > 0.5).astype(jnp.float32)

    p_ref, v_ref = reference_forward(params, p_old, v_old, field_masks)

    # Default path: bf16 MXU operands + bf16 activation scratch, f32 accumulation.
    p_new, v_new = conv2d_6layer_forward(params, p_old, v_old, field_masks)
    jax.block_until_ready((p_new, v_new))
    assert p_new.shape == (B, 1, H, W) and v_new.shape == (B, 2, H, W)
    assert jnp.allclose(p_new, p_ref, atol=1e-1, rtol=1e-1)
    assert jnp.allclose(v_new, v_ref, atol=1e-1, rtol=1e-1)

    # Full-f32 path for a tight numerical check.
    p32, v32 = conv2d_6layer_forward(params, p_old, v_old, field_masks,
                                     compute_dtype=jnp.float32)
    jax.block_until_ready((p32, v32))
    assert jnp.allclose(p32, p_ref, atol=5e-3, rtol=5e-3)
    assert jnp.allclose(v32, v_ref, atol=5e-3, rtol=5e-3)

    print("KERNEL_OK")
</pallas_src>

<mosaic_0001>
module attributes {stable_mosaic.version = 11 : i64} {
  func.func @_fused_kernel(%arg0: i32, %arg1: memref<1x16x128xf32, #tpu.memory_space<vmem>>, %arg2: memref<72x32xbf16, #tpu.memory_space<vmem>>, %arg3: memref<1x32xf32, #tpu.memory_space<vmem>>, %arg4: memref<288x32xbf16, #tpu.memory_space<vmem>>, %arg5: memref<1x32xf32, #tpu.memory_space<vmem>>, %arg6: memref<288x32xbf16, #tpu.memory_space<vmem>>, %arg7: memref<1x32xf32, #tpu.memory_space<vmem>>, %arg8: memref<288x32xbf16, #tpu.memory_space<vmem>>, %arg9: memref<1x32xf32, #tpu.memory_space<vmem>>, %arg10: memref<288x8xbf16, #tpu.memory_space<vmem>>, %arg11: memref<1x8xf32, #tpu.memory_space<vmem>>, %arg12: memref<1x16x128xf32, #tpu.memory_space<vmem>>, %arg13: memref<1x18x18x8xbf16, #tpu.memory_space<vmem>>, %arg14: memref<1x18x18x32xbf16, #tpu.memory_space<vmem>>, %arg15: memref<1x18x18x32xbf16, #tpu.memory_space<vmem>>) attributes {dimension_semantics = [#tpu.dimension_semantics<parallel>], iteration_bounds = array<i64: 2>, scalar_prefetch = 0 : i64, scratch_operands = 3 : i64, tpu.core_type = #tpu.core_type<tc>, window_params = [{transform_indices = @transform_0, window_bounds = array<i64: 1, 16, 128>}, {pipeline_mode = #tpu.pipeline_mode<synchronous>, transform_indices = @transform_1, window_bounds = array<i64: 72, 32>}, {pipeline_mode = #tpu.pipeline_mode<synchronous>, transform_indices = @transform_2, window_bounds = array<i64: 1, 32>}, {pipeline_mode = #tpu.pipeline_mode<synchronous>, transform_indices = @transform_3, window_bounds = array<i64: 288, 32>}, {pipeline_mode = #tpu.pipeline_mode<synchronous>, transform_indices = @transform_4, window_bounds = array<i64: 1, 32>}, {pipeline_mode = #tpu.pipeline_mode<synchronous>, transform_indices = @transform_5, window_bounds = array<i64: 288, 32>}, {pipeline_mode = #tpu.pipeline_mode<synchronous>, transform_indices = @transform_6, window_bounds = array<i64: 1, 32>}, {pipeline_mode = #tpu.pipeline_mode<synchronous>, transform_indices = @transform_7, window_bounds = array<i64: 288, 32>}, {pipeline_mode = #tpu.pipeline_mode<synchronous>, transform_indices = @transform_8, window_bounds = array<i64: 1, 32>}, {pipeline_mode = #tpu.pipeline_mode<synchronous>, transform_indices = @transform_9, window_bounds = array<i64: 288, 8>}, {pipeline_mode = #tpu.pipeline_mode<synchronous>, transform_indices = @transform_10, window_bounds = array<i64: 1, 8>}, {transform_indices = @transform_11, window_bounds = array<i64: 1, 16, 128>}]} {
    %cst = arith.constant 0.000000e+00 : bf16
    %0 = vector.broadcast %cst : bf16 to vector<1x1x18x8xbf16>
    %cst_0 = arith.constant 0.000000e+00 : bf16
    %1 = vector.broadcast %cst_0 : bf16 to vector<1x18x1x8xbf16>
    %c0 = arith.constant 0 : index
    %c0_1 = arith.constant 0 : index
    %c0_2 = arith.constant 0 : index
    %c0_3 = arith.constant 0 : index
    %2 = vector.load %arg13[%c0, %c0_1, %c0_2, %c0_3] : memref<1x18x18x8xbf16, #tpu.memory_space<vmem>>, vector<1x1x18x8xbf16>
    tpu.vector_store %arg13[%c0, %c0_1, %c0_2, %c0_3], %0 {strides = array<i32>} : memref<1x18x18x8xbf16, #tpu.memory_space<vmem>>, vector<1x1x18x8xbf16>,
    %c0_4 = arith.constant 0 : index
    %c17 = arith.constant 17 : index
    %c0_5 = arith.constant 0 : index
    %c0_6 = arith.constant 0 : index
    %3 = vector.load %arg13[%c0_4, %c17, %c0_5, %c0_6] : memref<1x18x18x8xbf16, #tpu.memory_space<vmem>>, vector<1x1x18x8xbf16>
    tpu.vector_store %arg13[%c0_4, %c17, %c0_5, %c0_6], %0 {strides = array<i32>} : memref<1x18x18x8xbf16, #tpu.memory_space<vmem>>, vector<1x1x18x8xbf16>,
    %c0_7 = arith.constant 0 : index
    %c0_8 = arith.constant 0 : index
    %c0_9 = arith.constant 0 : index
    %c0_10 = arith.constant 0 : index
    %4 = vector.load %arg13[%c0_7, %c0_8, %c0_9, %c0_10] : memref<1x18x18x8xbf16, #tpu.memory_space<vmem>>, vector<1x18x1x8xbf16>
    tpu.vector_store %arg13[%c0_7, %c0_8, %c0_9, %c0_10], %1 {strides = array<i32>} : memref<1x18x18x8xbf16, #tpu.memory_space<vmem>>, vector<1x18x1x8xbf16>,
    %c0_11 = arith.constant 0 : index
    %c0_12 = arith.constant 0 : index
    %c17_13 = arith.constant 17 : index
    %c0_14 = arith.constant 0 : index
    %5 = vector.load %arg13[%c0_11, %c0_12, %c17_13, %c0_14] : memref<1x18x18x8xbf16, #tpu.memory_space<vmem>>, vector<1x18x1x8xbf16>
    tpu.vector_store %arg13[%c0_11, %c0_12, %c17_13, %c0_14], %1 {strides = array<i32>} : memref<1x18x18x8xbf16, #tpu.memory_space<vmem>>, vector<1x18x1x8xbf16>,
    %cst_15 = arith.constant 0.000000e+00 : bf16
    %6 = vector.broadcast %cst_15 : bf16 to vector<1x1x18x32xbf16>
    %cst_16 = arith.constant 0.000000e+00 : bf16
    %7 = vector.broadcast %cst_16 : bf16 to vector<1x18x1x32xbf16>
    %c0_17 = arith.constant 0 : index
    %c0_18 = arith.constant 0 : index
    %c0_19 = arith.constant 0 : index
    %c0_20 = arith.constant 0 : index
    %8 = vector.load %arg14[%c0_17, %c0_18, %c0_19, %c0_20] : memref<1x18x18x32xbf16, #tpu.memory_space<vmem>>, vector<1x1x18x32xbf16>
    tpu.vector_store %arg14[%c0_17, %c0_18, %c0_19, %c0_20], %6 {strides = array<i32>} : memref<1x18x18x32xbf16, #tpu.memory_space<vmem>>, vector<1x1x18x32xbf16>,
    %c0_21 = arith.constant 0 : index
    %c17_22 = arith.constant 17 : index
    %c0_23 = arith.constant 0 : index
    %c0_24 = arith.constant 0 : index
    %9 = vector.load %arg14[%c0_21, %c17_22, %c0_23, %c0_24] : memref<1x18x18x32xbf16, #tpu.memory_space<vmem>>, vector<1x1x18x32xbf16>
    tpu.vector_store %arg14[%c0_21, %c17_22, %c0_23, %c0_24], %6 {strides = array<i32>} : memref<1x18x18x32xbf16, #tpu.memory_space<vmem>>, vector<1x1x18x32xbf16>,
    %c0_25 = arith.constant 0 : index
    %c0_26 = arith.constant 0 : index
    %c0_27 = arith.constant 0 : index
    %c0_28 = arith.constant 0 : index
    %10 = vector.load %arg14[%c0_25, %c0_26, %c0_27, %c0_28] : memref<1x18x18x32xbf16, #tpu.memory_space<vmem>>, vector<1x18x1x32xbf16>
    tpu.vector_store %arg14[%c0_25, %c0_26, %c0_27, %c0_28], %7 {strides = array<i32>} : memref<1x18x18x32xbf16, #tpu.memory_space<vmem>>, vector<1x18x1x32xbf16>,
    %c0_29 = arith.constant 0 : index
    %c0_30 = arith.constant 0 : index
    %c17_31 = arith.constant 17 : index
    %c0_32 = arith.constant 0 : index
    %11 = vector.load %arg14[%c0_29, %c0_30, %c17_31, %c0_32] : memref<1x18x18x32xbf16, #tpu.memory_space<vmem>>, vector<1x18x1x32xbf16>
    tpu.vector_store %arg14[%c0_29, %c0_30, %c17_31, %c0_32], %7 {strides = array<i32>} : memref<1x18x18x32xbf16, #tpu.memory_space<vmem>>, vector<1x18x1x32xbf16>,
    %cst_33 = arith.constant 0.000000e+00 : bf16
    %12 = vector.broadcast %cst_33 : bf16 to vector<1x1x18x32xbf16>
    %cst_34 = arith.constant 0.000000e+00 : bf16
    %13 = vector.broadcast %cst_34 : bf16 to vector<1x18x1x32xbf16>
    %c0_35 = arith.constant 0 : index
    %c0_36 = arith.constant 0 : index
    %c0_37 = arith.constant 0 : index
    %c0_38 = arith.constant 0 : index
    %14 = vector.load %arg15[%c0_35, %c0_36, %c0_37, %c0_38] : memref<1x18x18x32xbf16, #tpu.memory_space<vmem>>, vector<1x1x18x32xbf16>
    tpu.vector_store %arg15[%c0_35, %c0_36, %c0_37, %c0_38], %12 {strides = array<i32>} : memref<1x18x18x32xbf16, #tpu.memory_space<vmem>>, vector<1x1x18x32xbf16>,
    %c0_39 = arith.constant 0 : index
    %c17_40 = arith.constant 17 : index
    %c0_41 = arith.constant 0 : index
    %c0_42 = arith.constant 0 : index
    %15 = vector.load %arg15[%c0_39, %c17_40, %c0_41, %c0_42] : memref<1x18x18x32xbf16, #tpu.memory_space<vmem>>, vector<1x1x18x32xbf16>
    tpu.vector_store %arg15[%c0_39, %c17_40, %c0_41, %c0_42], %12 {strides = array<i32>} : memref<1x18x18x32xbf16, #tpu.memory_space<vmem>>, vector<1x1x18x32xbf16>,
    %c0_43 = arith.constant 0 : index
    %c0_44 = arith.constant 0 : index
    %c0_45 = arith.constant 0 : index
    %c0_46 = arith.constant 0 : index
    %16 = vector.load %arg15[%c0_43, %c0_44, %c0_45, %c0_46] : memref<1x18x18x32xbf16, #tpu.memory_space<vmem>>, vector<1x18x1x32xbf16>
    tpu.vector_store %arg15[%c0_43, %c0_44, %c0_45, %c0_46], %13 {strides = array<i32>} : memref<1x18x18x32xbf16, #tpu.memory_space<vmem>>, vector<1x18x1x32xbf16>,
    %c0_47 = arith.constant 0 : index
    %c0_48 = arith.constant 0 : index
    %c17_49 = arith.constant 17 : index
    %c0_50 = arith.constant 0 : index
    %17 = vector.load %arg15[%c0_47, %c0_48, %c17_49, %c0_50] : memref<1x18x18x32xbf16, #tpu.memory_space<vmem>>, vector<1x18x1x32xbf16>
    tpu.vector_store %arg15[%c0_47, %c0_48, %c17_49, %c0_50], %13 {strides = array<i32>} : memref<1x18x18x32xbf16, #tpu.memory_space<vmem>>, vector<1x18x1x32xbf16>,
    %c0_51 = arith.constant 0 : index
    %c0_52 = arith.constant 0 : index
    %c0_53 = arith.constant 0 : index
    %18 = vector.load %arg1[%c0_51, %c0_52, %c0_53] : memref<1x16x128xf32, #tpu.memory_space<vmem>>, vector<1x16x128xf32>
    %19 = vector.shape_cast %18 : vector<1x16x128xf32> to vector<1x16x16x8xf32>
    %20 = arith.truncf %19 : vector<1x16x16x8xf32> to vector<1x16x16x8xbf16>
    %c0_54 = arith.constant 0 : index
    %c1 = arith.constant 1 : index
    %c1_55 = arith.constant 1 : index
    %c0_56 = arith.constant 0 : index
    %21 = vector.load %arg13[%c0_54, %c1, %c1_55, %c0_56] : memref<1x18x18x8xbf16, #tpu.memory_space<vmem>>, vector<1x16x16x8xbf16>
    tpu.vector_store %arg13[%c0_54, %c1, %c1_55, %c0_56], %20 {strides = array<i32>} : memref<1x18x18x8xbf16, #tpu.memory_space<vmem>>, vector<1x16x16x8xbf16>,
    %c0_57 = arith.constant 0 : index
    %c0_58 = arith.constant 0 : index
    %c0_59 = arith.constant 0 : index
    %c0_60 = arith.constant 0 : index
    %22 = vector.load %arg13[%c0_57, %c0_58, %c0_59, %c0_60] : memref<1x18x18x8xbf16, #tpu.memory_space<vmem>>, vector<1x18x18x8xbf16>
    %23 = vector.extract_strided_slice %22 {offsets = [0, 0, 0, 0], sizes = [1, 18, 16, 8], strides = [1, 1, 1, 1]} : vector<1x18x18x8xbf16> to vector<1x18x16x8xbf16>
    %24 = vector.extract_strided_slice %22 {offsets = [0, 0, 1, 0], sizes = [1, 18, 16, 8], strides = [1, 1, 1, 1]} : vector<1x18x18x8xbf16> to vector<1x18x16x8xbf16>
    %25 = vector.extract_strided_slice %22 {offsets = [0, 0, 2, 0], sizes = [1, 18, 16, 8], strides = [1, 1, 1, 1]} : vector<1x18x18x8xbf16> to vector<1x18x16x8xbf16>
    %26 = tpu.concatenate %23, %24, %25 in 3 : vector<1x18x16x8xbf16>, vector<1x18x16x8xbf16>, vector<1x18x16x8xbf16> -> vector<1x18x16x24xbf16>
    %27 = vector.extract_strided_slice %26 {offsets = [0, 0, 0, 0], sizes = [1, 16, 16, 24], strides = [1, 1, 1, 1]} : vector<1x18x16x24xbf16> to vector<1x16x16x24xbf16>
    %28 = vector.shape_cast %27 : vector<1x16x16x24xbf16> to vector<256x24xbf16>
    %29 = vector.extract_strided_slice %26 {offsets = [0, 1, 0, 0], sizes = [1, 16, 16, 24], strides = [1, 1, 1, 1]} : vector<1x18x16x24xbf16> to vector<1x16x16x24xbf16>
    %30 = vector.shape_cast %29 : vector<1x16x16x24xbf16> to vector<256x24xbf16>
    %31 = vector.extract_strided_slice %26 {offsets = [0, 2, 0, 0], sizes = [1, 16, 16, 24], strides = [1, 1, 1, 1]} : vector<1x18x16x24xbf16> to vector<1x16x16x24xbf16>
    %32 = vector.shape_cast %31 : vector<1x16x16x24xbf16> to vector<256x24xbf16>
    %33 = tpu.concatenate %28, %30, %32 in 1 : vector<256x24xbf16>, vector<256x24xbf16>, vector<256x24xbf16> -> vector<256x72xbf16>
    %c0_61 = arith.constant 0 : index
    %c0_62 = arith.constant 0 : index
    %34 = vector.load %arg2[%c0_61, %c0_62] : memref<72x32xbf16, #tpu.memory_space<vmem>>, vector<72x32xbf16>
    %cst_63 = arith.constant dense<0.000000e+00> : vector<256x32xf32>
    %35 = tpu.matmul %33, %34, %cst_63 {dimension_numbers = #tpu.dot_dimension_numbers<[1], [0], [0], [1], [0, 0, 1, 1], [], []>} : vector<256x72xbf16>, vector<72x32xbf16>, vector<256x32xf32> -> vector<256x32xf32>
    %c0_64 = arith.constant 0 : index
    %c0_65 = arith.constant 0 : index
    %36 = vector.load %arg3[%c0_64, %c0_65] : memref<1x32xf32, #tpu.memory_space<vmem>>, vector<1x32xf32>
    %37 = vector.broadcast %36 : vector<1x32xf32> to vector<256x32xf32>
    %38 = arith.addf %35, %37 : vector<256x32xf32>
    %cst_66 = arith.constant 0.000000e+00 : f32
    %39 = vector.broadcast %cst_66 : f32 to vector<256x32xf32>
    %40 = arith.maximumf %38, %39 : vector<256x32xf32>
    %41 = vector.shape_cast %40 : vector<256x32xf32> to vector<1x16x16x32xf32>
    %42 = arith.truncf %41 : vector<1x16x16x32xf32> to vector<1x16x16x32xbf16>
    %c0_67 = arith.constant 0 : index
    %c1_68 = arith.constant 1 : index
    %c1_69 = arith.constant 1 : index
    %c0_70 = arith.constant 0 : index
    %43 = vector.load %arg14[%c0_67, %c1_68, %c1_69, %c0_70] : memref<1x18x18x32xbf16, #tpu.memory_space<vmem>>, vector<1x16x16x32xbf16>
    tpu.vector_store %arg14[%c0_67, %c1_68, %c1_69, %c0_70], %42 {strides = array<i32>} : memref<1x18x18x32xbf16, #tpu.memory_space<vmem>>, vector<1x16x16x32xbf16>,
    %c0_71 = arith.constant 0 : index
    %c0_72 = arith.constant 0 : index
    %c0_73 = arith.constant 0 : index
    %c0_74 = arith.constant 0 : index
    %44 = vector.load %arg14[%c0_71, %c0_72, %c0_73, %c0_74] : memref<1x18x18x32xbf16, #tpu.memory_space<vmem>>, vector<1x18x18x32xbf16>
    %45 = vector.extract_strided_slice %44 {offsets = [0, 0, 0, 0], sizes = [1, 18, 16, 32], strides = [1, 1, 1, 1]} : vector<1x18x18x32xbf16> to vector<1x18x16x32xbf16>
    %46 = vector.extract_strided_slice %44 {offsets = [0, 0, 1, 0], sizes = [1, 18, 16, 32], strides = [1, 1, 1, 1]} : vector<1x18x18x32xbf16> to vector<1x18x16x32xbf16>
    %47 = vector.extract_strided_slice %44 {offsets = [0, 0, 2, 0], sizes = [1, 18, 16, 32], strides = [1, 1, 1, 1]} : vector<1x18x18x32xbf16> to vector<1x18x16x32xbf16>
    %48 = tpu.concatenate %45, %46, %47 in 3 : vector<1x18x16x32xbf16>, vector<1x18x16x32xbf16>, vector<1x18x16x32xbf16> -> vector<1x18x16x96xbf16>
    %49 = vector.extract_strided_slice %48 {offsets = [0, 0, 0, 0], sizes = [1, 16, 16, 96], strides = [1, 1, 1, 1]} : vector<1x18x16x96xbf16> to vector<1x16x16x96xbf16>
    %50 = vector.shape_cast %49 : vector<1x16x16x96xbf16> to vector<256x96xbf16>
    %51 = vector.extract_strided_slice %48 {offsets = [0, 1, 0, 0], sizes = [1, 16, 16, 96], strides = [1, 1, 1, 1]} : vector<1x18x16x96xbf16> to vector<1x16x16x96xbf16>
    %52 = vector.shape_cast %51 : vector<1x16x16x96xbf16> to vector<256x96xbf16>
    %53 = vector.extract_strided_slice %48 {offsets = [0, 2, 0, 0], sizes = [1, 16, 16, 96], strides = [1, 1, 1, 1]} : vector<1x18x16x96xbf16> to vector<1x16x16x96xbf16>
    %54 = vector.shape_cast %53 : vector<1x16x16x96xbf16> to vector<256x96xbf16>
    %55 = tpu.concatenate %50, %52, %54 in 1 : vector<256x96xbf16>, vector<256x96xbf16>, vector<256x96xbf16> -> vector<256x288xbf16>
    %c0_75 = arith.constant 0 : index
    %c0_76 = arith.constant 0 : index
    %56 = vector.load %arg4[%c0_75, %c0_76] : memref<288x32xbf16, #tpu.memory_space<vmem>>, vector<288x32xbf16>
    %cst_77 = arith.constant dense<0.000000e+00> : vector<256x32xf32>
    %57 = tpu.matmul %55, %56, %cst_77 {dimension_numbers = #tpu.dot_dimension_numbers<[1], [0], [0], [1], [0, 0, 1, 1], [], []>} : vector<256x288xbf16>, vector<288x32xbf16>, vector<256x32xf32> -> vector<256x32xf32>
    %c0_78 = arith.constant 0 : index
    %c0_79 = arith.constant 0 : index
    %58 = vector.load %arg5[%c0_78, %c0_79] : memref<1x32xf32, #tpu.memory_space<vmem>>, vector<1x32xf32>
    %59 = vector.broadcast %58 : vector<1x32xf32> to vector<256x32xf32>
    %60 = arith.addf %57, %59 : vector<256x32xf32>
    %cst_80 = arith.constant 0.000000e+00 : f32
    %61 = vector.broadcast %cst_80 : f32 to vector<256x32xf32>
    %62 = arith.maximumf %60, %61 : vector<256x32xf32>
    %63 = vector.shape_cast %62 : vector<256x32xf32> to vector<1x16x16x32xf32>
    %64 = arith.truncf %63 : vector<1x16x16x32xf32> to vector<1x16x16x32xbf16>
    %c0_81 = arith.constant 0 : index
    %c1_82 = arith.constant 1 : index
    %c1_83 = arith.constant 1 : index
    %c0_84 = arith.constant 0 : index
    %65 = vector.load %arg15[%c0_81, %c1_82, %c1_83, %c0_84] : memref<1x18x18x32xbf16, #tpu.memory_space<vmem>>, vector<1x16x16x32xbf16>
    tpu.vector_store %arg15[%c0_81, %c1_82, %c1_83, %c0_84], %64 {strides = array<i32>} : memref<1x18x18x32xbf16, #tpu.memory_space<vmem>>, vector<1x16x16x32xbf16>,
    %c0_85 = arith.constant 0 : index
    %c0_86 = arith.constant 0 : index
    %c0_87 = arith.constant 0 : index
    %c0_88 = arith.constant 0 : index
    %66 = vector.load %arg15[%c0_85, %c0_86, %c0_87, %c0_88] : memref<1x18x18x32xbf16, #tpu.memory_space<vmem>>, vector<1x18x18x32xbf16>
    %67 = vector.extract_strided_slice %66 {offsets = [0, 0, 0, 0], sizes = [1, 18, 16, 32], strides = [1, 1, 1, 1]} : vector<1x18x18x32xbf16> to vector<1x18x16x32xbf16>
    %68 = vector.extract_strided_slice %66 {offsets = [0, 0, 1, 0], sizes = [1, 18, 16, 32], strides = [1, 1, 1, 1]} : vector<1x18x18x32xbf16> to vector<1x18x16x32xbf16>
    %69 = vector.extract_strided_slice %66 {offsets = [0, 0, 2, 0], sizes = [1, 18, 16, 32], strides = [1, 1, 1, 1]} : vector<1x18x18x32xbf16> to vector<1x18x16x32xbf16>
    %70 = tpu.concatenate %67, %68, %69 in 3 : vector<1x18x16x32xbf16>, vector<1x18x16x32xbf16>, vector<1x18x16x32xbf16> -> vector<1x18x16x96xbf16>
    %71 = vector.extract_strided_slice %70 {offsets = [0, 0, 0, 0], sizes = [1, 16, 16, 96], strides = [1, 1, 1, 1]} : vector<1x18x16x96xbf16> to vector<1x16x16x96xbf16>
    %72 = vector.shape_cast %71 : vector<1x16x16x96xbf16> to vector<256x96xbf16>
    %73 = vector.extract_strided_slice %70 {offsets = [0, 1, 0, 0], sizes = [1, 16, 16, 96], strides = [1, 1, 1, 1]} : vector<1x18x16x96xbf16> to vector<1x16x16x96xbf16>
    %74 = vector.shape_cast %73 : vector<1x16x16x96xbf16> to vector<256x96xbf16>
    %75 = vector.extract_strided_slice %70 {offsets = [0, 2, 0, 0], sizes = [1, 16, 16, 96], strides = [1, 1, 1, 1]} : vector<1x18x16x96xbf16> to vector<1x16x16x96xbf16>
    %76 = vector.shape_cast %75 : vector<1x16x16x96xbf16> to vector<256x96xbf16>
    %77 = tpu.concatenate %72, %74, %76 in 1 : vector<256x96xbf16>, vector<256x96xbf16>, vector<256x96xbf16> -> vector<256x288xbf16>
    %c0_89 = arith.constant 0 : index
    %c0_90 = arith.constant 0 : index
    %78 = vector.load %arg6[%c0_89, %c0_90] : memref<288x32xbf16, #tpu.memory_space<vmem>>, vector<288x32xbf16>
    %cst_91 = arith.constant dense<0.000000e+00> : vector<256x32xf32>
    %79 = tpu.matmul %77, %78, %cst_91 {dimension_numbers = #tpu.dot_dimension_numbers<[1], [0], [0], [1], [0, 0, 1, 1], [], []>} : vector<256x288xbf16>, vector<288x32xbf16>, vector<256x32xf32> -> vector<256x32xf32>
    %c0_92 = arith.constant 0 : index
    %c0_93 = arith.constant 0 : index
    %80 = vector.load %arg7[%c0_92, %c0_93] : memref<1x32xf32, #tpu.memory_space<vmem>>, vector<1x32xf32>
    %81 = vector.broadcast %80 : vector<1x32xf32> to vector<256x32xf32>
    %82 = arith.addf %79, %81 : vector<256x32xf32>
    %cst_94 = arith.constant 0.000000e+00 : f32
    %83 = vector.broadcast %cst_94 : f32 to vector<256x32xf32>
    %84 = arith.maximumf %82, %83 : vector<256x32xf32>
    %85 = vector.shape_cast %84 : vector<256x32xf32> to vector<1x16x16x32xf32>
    %86 = arith.truncf %85 : vector<1x16x16x32xf32> to vector<1x16x16x32xbf16>
    %c0_95 = arith.constant 0 : index
    %c1_96 = arith.constant 1 : index
    %c1_97 = arith.constant 1 : index
    %c0_98 = arith.constant 0 : index
    %87 = vector.load %arg14[%c0_95, %c1_96, %c1_97, %c0_98] : memref<1x18x18x32xbf16, #tpu.memory_space<vmem>>, vector<1x16x16x32xbf16>
    tpu.vector_store %arg14[%c0_95, %c1_96, %c1_97, %c0_98], %86 {strides = array<i32>} : memref<1x18x18x32xbf16, #tpu.memory_space<vmem>>, vector<1x16x16x32xbf16>,
    %c0_99 = arith.constant 0 : index
    %c0_100 = arith.constant 0 : index
    %c0_101 = arith.constant 0 : index
    %c0_102 = arith.constant 0 : index
    %88 = vector.load %arg14[%c0_99, %c0_100, %c0_101, %c0_102] : memref<1x18x18x32xbf16, #tpu.memory_space<vmem>>, vector<1x18x18x32xbf16>
    %89 = vector.extract_strided_slice %88 {offsets = [0, 0, 0, 0], sizes = [1, 18, 16, 32], strides = [1, 1, 1, 1]} : vector<1x18x18x32xbf16> to vector<1x18x16x32xbf16>
    %90 = vector.extract_strided_slice %88 {offsets = [0, 0, 1, 0], sizes = [1, 18, 16, 32], strides = [1, 1, 1, 1]} : vector<1x18x18x32xbf16> to vector<1x18x16x32xbf16>
    %91 = vector.extract_strided_slice %88 {offsets = [0, 0, 2, 0], sizes = [1, 18, 16, 32], strides = [1, 1, 1, 1]} : vector<1x18x18x32xbf16> to vector<1x18x16x32xbf16>
    %92 = tpu.concatenate %89, %90, %91 in 3 : vector<1x18x16x32xbf16>, vector<1x18x16x32xbf16>, vector<1x18x16x32xbf16> -> vector<1x18x16x96xbf16>
    %93 = vector.extract_strided_slice %92 {offsets = [0, 0, 0, 0], sizes = [1, 16, 16, 96], strides = [1, 1, 1, 1]} : vector<1x18x16x96xbf16> to vector<1x16x16x96xbf16>
    %94 = vector.shape_cast %93 : vector<1x16x16x96xbf16> to vector<256x96xbf16>
    %95 = vector.extract_strided_slice %92 {offsets = [0, 1, 0, 0], sizes = [1, 16, 16, 96], strides = [1, 1, 1, 1]} : vector<1x18x16x96xbf16> to vector<1x16x16x96xbf16>
    %96 = vector.shape_cast %95 : vector<1x16x16x96xbf16> to vector<256x96xbf16>
    %97 = vector.extract_strided_slice %92 {offsets = [0, 2, 0, 0], sizes = [1, 16, 16, 96], strides = [1, 1, 1, 1]} : vector<1x18x16x96xbf16> to vector<1x16x16x96xbf16>
    %98 = vector.shape_cast %97 : vector<1x16x16x96xbf16> to vector<256x96xbf16>
    %99 = tpu.concatenate %94, %96, %98 in 1 : vector<256x96xbf16>, vector<256x96xbf16>, vector<256x96xbf16> -> vector<256x288xbf16>
    %c0_103 = arith.constant 0 : index
    %c0_104 = arith.constant 0 : index
    %100 = vector.load %arg8[%c0_103, %c0_104] : memref<288x32xbf16, #tpu.memory_space<vmem>>, vector<288x32xbf16>
    %cst_105 = arith.constant dense<0.000000e+00> : vector<256x32xf32>
    %101 = tpu.matmul %99, %100, %cst_105 {dimension_numbers = #tpu.dot_dimension_numbers<[1], [0], [0], [1], [0, 0, 1, 1], [], []>} : vector<256x288xbf16>, vector<288x32xbf16>, vector<256x32xf32> -> vector<256x32xf32>
    %c0_106 = arith.constant 0 : index
    %c0_107 = arith.constant 0 : index
    %102 = vector.load %arg9[%c0_106, %c0_107] : memref<1x32xf32, #tpu.memory_space<vmem>>, vector<1x32xf32>
    %103 = vector.broadcast %102 : vector<1x32xf32> to vector<256x32xf32>
    %104 = arith.addf %101, %103 : vector<256x32xf32>
    %cst_108 = arith.constant 0.000000e+00 : f32
    %105 = vector.broadcast %cst_108 : f32 to vector<256x32xf32>
    %106 = arith.maximumf %104, %105 : vector<256x32xf32>
    %107 = vector.shape_cast %106 : vector<256x32xf32> to vector<1x16x16x32xf32>
    %108 = arith.truncf %107 : vector<1x16x16x32xf32> to vector<1x16x16x32xbf16>
    %c0_109 = arith.constant 0 : index
    %c1_110 = arith.constant 1 : index
    %c1_111 = arith.constant 1 : index
    %c0_112 = arith.constant 0 : index
    %109 = vector.load %arg15[%c0_109, %c1_110, %c1_111, %c0_112] : memref<1x18x18x32xbf16, #tpu.memory_space<vmem>>, vector<1x16x16x32xbf16>
    tpu.vector_store %arg15[%c0_109, %c1_110, %c1_111, %c0_112], %108 {strides = array<i32>} : memref<1x18x18x32xbf16, #tpu.memory_space<vmem>>, vector<1x16x16x32xbf16>,
    %c0_113 = arith.constant 0 : index
    %c0_114 = arith.constant 0 : index
    %c0_115 = arith.constant 0 : index
    %c0_116 = arith.constant 0 : index
    %110 = vector.load %arg15[%c0_113, %c0_114, %c0_115, %c0_116] : memref<1x18x18x32xbf16, #tpu.memory_space<vmem>>, vector<1x18x18x32xbf16>
    %111 = vector.extract_strided_slice %110 {offsets = [0, 0, 0, 0], sizes = [1, 18, 16, 32], strides = [1, 1, 1, 1]} : vector<1x18x18x32xbf16> to vector<1x18x16x32xbf16>
    %112 = vector.extract_strided_slice %110 {offsets = [0, 0, 1, 0], sizes = [1, 18, 16, 32], strides = [1, 1, 1, 1]} : vector<1x18x18x32xbf16> to vector<1x18x16x32xbf16>
    %113 = vector.extract_strided_slice %110 {offsets = [0, 0, 2, 0], sizes = [1, 18, 16, 32], strides = [1, 1, 1, 1]} : vector<1x18x18x32xbf16> to vector<1x18x16x32xbf16>
    %114 = tpu.concatenate %111, %112, %113 in 3 : vector<1x18x16x32xbf16>, vector<1x18x16x32xbf16>, vector<1x18x16x32xbf16> -> vector<1x18x16x96xbf16>
    %115 = vector.extract_strided_slice %114 {offsets = [0, 0, 0, 0], sizes = [1, 16, 16, 96], strides = [1, 1, 1, 1]} : vector<1x18x16x96xbf16> to vector<1x16x16x96xbf16>
    %116 = vector.shape_cast %115 : vector<1x16x16x96xbf16> to vector<256x96xbf16>
    %117 = vector.extract_strided_slice %114 {offsets = [0, 1, 0, 0], sizes = [1, 16, 16, 96], strides = [1, 1, 1, 1]} : vector<1x18x16x96xbf16> to vector<1x16x16x96xbf16>
    %118 = vector.shape_cast %117 : vector<1x16x16x96xbf16> to vector<256x96xbf16>
    %119 = vector.extract_strided_slice %114 {offsets = [0, 2, 0, 0], sizes = [1, 16, 16, 96], strides = [1, 1, 1, 1]} : vector<1x18x16x96xbf16> to vector<1x16x16x96xbf16>
    %120 = vector.shape_cast %119 : vector<1x16x16x96xbf16> to vector<256x96xbf16>
    %121 = tpu.concatenate %116, %118, %120 in 1 : vector<256x96xbf16>, vector<256x96xbf16>, vector<256x96xbf16> -> vector<256x288xbf16>
    %c0_117 = arith.constant 0 : index
    %c0_118 = arith.constant 0 : index
    %122 = vector.load %arg10[%c0_117, %c0_118] : memref<288x8xbf16, #tpu.memory_space<vmem>>, vector<288x8xbf16>
    %cst_119 = arith.constant dense<0.000000e+00> : vector<256x8xf32>
    %123 = tpu.matmul %121, %122, %cst_119 {dimension_numbers = #tpu.dot_dimension_numbers<[1], [0], [0], [1], [0, 0, 1, 1], [], []>} : vector<256x288xbf16>, vector<288x8xbf16>, vector<256x8xf32> -> vector<256x8xf32>
    %c0_120 = arith.constant 0 : index
    %c0_121 = arith.constant 0 : index
    %124 = vector.load %arg11[%c0_120, %c0_121] : memref<1x8xf32, #tpu.memory_space<vmem>>, vector<1x8xf32>
    %125 = vector.broadcast %124 : vector<1x8xf32> to vector<256x8xf32>
    %126 = arith.addf %123, %125 : vector<256x8xf32>
    %127 = vector.shape_cast %126 : vector<256x8xf32> to vector<1x16x16x8xf32>
    %128 = arith.addf %19, %127 : vector<1x16x16x8xf32>
    %cst_122 = arith.constant 2.500000e-01 : f32
    %129 = vector.broadcast %cst_122 : f32 to vector<1x16x16x8xf32>
    %130 = arith.mulf %129, %128 : vector<1x16x16x8xf32>
    %131 = math.tanh %130 : vector<1x16x16x8xf32>
    %cst_123 = arith.constant 4.000000e+00 : f32
    %132 = vector.broadcast %cst_123 : f32 to vector<1x16x16x8xf32>
    %133 = arith.mulf %132, %131 : vector<1x16x16x8xf32>
    %134 = vector.shape_cast %133 : vector<1x16x16x8xf32> to vector<1x16x128xf32>
    %c0_124 = arith.constant 0 : index
    %c0_125 = arith.constant 0 : index
    %c0_126 = arith.constant 0 : index
    %135 = vector.load %arg12[%c0_124, %c0_125, %c0_126] : memref<1x16x128xf32, #tpu.memory_space<vmem>>, vector<1x16x128xf32>
    tpu.vector_store %arg12[%c0_124, %c0_125, %c0_126], %134 {strides = array<i32>} : memref<1x16x128xf32, #tpu.memory_space<vmem>>, vector<1x16x128xf32>,
    return
  }
  func.func @transform_0(%arg0: i32) -> (i32, i32, i32) {
    %c0_i32 = arith.constant 0 : i32
    %c0_i32_0 = arith.constant 0 : i32
    %c0_i32_1 = arith.constant 0 : i32
    return %arg0, %c0_i32, %c0_i32_0 : i32, i32, i32
  }
  func.func @transform_1(%arg0: i32) -> (i32, i32) {
    %c0_i32 = arith.constant 0 : i32
    %c0_i32_0 = arith.constant 0 : i32
    %c0_i32_1 = arith.constant 0 : i32
    return %c0_i32, %c0_i32_0 : i32, i32
  }
  func.func @transform_2(%arg0: i32) -> (i32, i32) {
    %c0_i32 = arith.constant 0 : i32
    %c0_i32_0 = arith.constant 0 : i32
    %c0_i32_1 = arith.constant 0 : i32
    return %c0_i32, %c0_i32_0 : i32, i32
  }
  func.func @transform_3(%arg0: i32) -> (i32, i32) {
    %c0_i32 = arith.constant 0 : i32
    %c0_i32_0 = arith.constant 0 : i32
    %c0_i32_1 = arith.constant 0 : i32
    return %c0_i32, %c0_i32_0 : i32, i32
  }
  func.func @transform_4(%arg0: i32) -> (i32, i32) {
    %c0_i32 = arith.constant 0 : i32
    %c0_i32_0 = arith.constant 0 : i32
    %c0_i32_1 = arith.constant 0 : i32
    return %c0_i32, %c0_i32_0 : i32, i32
  }
  func.func @transform_5(%arg0: i32) -> (i32, i32) {
    %c0_i32 = arith.constant 0 : i32
    %c0_i32_0 = arith.constant 0 : i32
    %c0_i32_1 = arith.constant 0 : i32
    return %c0_i32, %c0_i32_0 : i32, i32
  }
  func.func @transform_6(%arg0: i32) -> (i32, i32) {
    %c0_i32 = arith.constant 0 : i32
    %c0_i32_0 = arith.constant 0 : i32
    %c0_i32_1 = arith.constant 0 : i32
    return %c0_i32, %c0_i32_0 : i32, i32
  }
  func.func @transform_7(%arg0: i32) -> (i32, i32) {
    %c0_i32 = arith.constant 0 : i32
    %c0_i32_0 = arith.constant 0 : i32
    %c0_i32_1 = arith.constant 0 : i32
    return %c0_i32, %c0_i32_0 : i32, i32
  }
  func.func @transform_8(%arg0: i32) -> (i32, i32) {
    %c0_i32 = arith.constant 0 : i32
    %c0_i32_0 = arith.constant 0 : i32
    %c0_i32_1 = arith.constant 0 : i32
    return %c0_i32, %c0_i32_0 : i32, i32
  }
  func.func @transform_9(%arg0: i32) -> (i32, i32) {
    %c0_i32 = arith.constant 0 : i32
    %c0_i32_0 = arith.constant 0 : i32
    %c0_i32_1 = arith.constant 0 : i32
    return %c0_i32, %c0_i32_0 : i32, i32
  }
  func.func @transform_10(%arg0: i32) -> (i32, i32) {
    %c0_i32 = arith.constant 0 : i32
    %c0_i32_0 = arith.constant 0 : i32
    %c0_i32_1 = arith.constant 0 : i32
    return %c0_i32, %c0_i32_0 : i32, i32
  }
  func.func @transform_11(%arg0: i32) -> (i32, i32, i32) {
    %c0_i32 = arith.constant 0 : i32
    %c0_i32_0 = arith.constant 0 : i32
    %c0_i32_1 = arith.constant 0 : i32
    return %arg0, %c0_i32, %c0_i32_0 : i32, i32, i32
  }
}

</mosaic_0001>

<llo_original>
// kernel: conv2d_6layer_forward.1
$region0: #{conv2d_6layer_forward.1}
  #allocation0 [shape = 'u32[]', space=smem, size = 0x4, offset = 0x4, fixed_abs, tag = 'smem constant byte address 0x4 - core index']
  #allocation1 [shape = 'u32[144,128]{1,0:T(1,128)}', space=vmem, size = 0x12000, scoped, tag = 'internal scratch']
  #allocation2 [shape = 'bf16[1,18,18,8]{3,2,1,0:T(8,128)(2,1)}', space=vmem, size = 0x1b000, scoped, tag = 'scratch operand']
  #allocation3 [shape = 'bf16[1,18,18,32]{3,2,1,0:T(8,128)(2,1)}', space=vmem, size = 0x1b000, scoped, tag = 'scratch operand']
  #allocation4 [shape = 'bf16[1,18,18,32]{3,2,1,0:T(8,128)(2,1)}', space=vmem, size = 0x1b000, scoped, tag = 'scratch operand']
  %s0 = inlined_call_operand.vmem [shape: f32[2,16,128], index: 0, kind: input, shape index: {}]
  %s1 = inlined_call_operand.vmem [shape: bf16[72,32], index: 1, kind: input, shape index: {}]
  %s2 = inlined_call_operand.vmem [shape: f32[1,32], index: 2, kind: input, shape index: {}]
  %s3 = inlined_call_operand.vmem [shape: bf16[288,32], index: 3, kind: input, shape index: {}]
  %s4 = inlined_call_operand.vmem [shape: f32[1,32], index: 4, kind: input, shape index: {}]
  %s5 = inlined_call_operand.vmem [shape: bf16[288,32], index: 5, kind: input, shape index: {}]
  %s6 = inlined_call_operand.vmem [shape: f32[1,32], index: 6, kind: input, shape index: {}]
  %s7 = inlined_call_operand.vmem [shape: bf16[288,32], index: 7, kind: input, shape index: {}]
  %s8 = inlined_call_operand.vmem [shape: f32[1,32], index: 8, kind: input, shape index: {}]
  %s9 = inlined_call_operand.vmem [shape: bf16[288,8], index: 9, kind: input, shape index: {}]
  %s10 = inlined_call_operand.vmem [shape: f32[1,8], index: 10, kind: input, shape index: {}]
  %s11 = inlined_call_operand.vmem [shape: f32[2,16,128], index: 11, kind: output, shape index: {}]
  %s12 = sld [smem:[#allocation0]]
  $region77: #{conv2d_6layer_forward.1} parent=0
    _
  %s14 = ssub.s32 1, %s12
  %s15 = scalar_select 0, %s14, %s12
  loop: start=0, step=1, limit=4
  $region2: #{conv2d_6layer_forward.1} parent=0 // loop_pre_header
    _
  $region3: #{conv2d_6layer_forward.1} parent=0 // loop_header
    %s17 = sphi 0, %s21
    %p18 = scmp.ge.s32.totalorder %s17, 4
    %s27 = sphi 0, %s29
    %s30 = sphi 0, %s27
    %s31 = sphi 0, %s30
    %s47 = sphi 0, %s31
    %s51 = sphi 0, %s51
    %s53 = sphi 0, %s51
    %s54 = sphi 0, %s53
    %s68 = sphi 0, %s54
    %s72 = sphi 0, %s72
    %s74 = sphi 0, %s72
    %s75 = sphi 0, %s74
    %s89 = sphi 0, %s75
    %s93 = sphi 0, %s93
    %s95 = sphi 0, %s93
    %s96 = sphi 0, %s95
    %s110 = sphi 0, %s96
    %s114 = sphi 0, %s114
    %s116 = sphi 0, %s114
    %s117 = sphi 0, %s116
    %s131 = sphi 0, %s117
    %s135 = sphi 0, %s135
    %s137 = sphi 0, %s135
    %s138 = sphi 0, %s137
    %s152 = sphi 0, %s138
    %s156 = sphi 0, %s156
    %s158 = sphi 0, %s156
    %s159 = sphi 0, %s158
    %s173 = sphi 0, %s159
    %s177 = sphi 0, %s177
    %s179 = sphi 0, %s177
    %s180 = sphi 0, %s179
    %s194 = sphi 0, %s180
    %s198 = sphi 0, %s198
    %s200 = sphi 0, %s198
    %s201 = sphi 0, %s200
    %s215 = sphi 0, %s201
    %s219 = sphi 0, %s219
    %s221 = sphi 0, %s219
    %s222 = sphi 0, %s221
    %s236 = sphi 0, %s222
    %s240 = sphi 0, %s240
    %s242 = sphi 0, %s240
    %s243 = sphi 0, %s242
    %s257 = sphi 0, %s243
    %s263 = sphi 0, %s265
    %s266 = sphi 0, %s263
    %s267 = sphi 0, %s266
    %s283 = sphi 0, %s267
  $region4: #{conv2d_6layer_forward.1} parent=0 // loop_header_branch
    %20 = sbr.rel (%p18) target = $region8
  $region5: #{conv2d_6layer_forward.1} parent=0 // loop_body
    %s22 = ssub.s32 %s17, 1
    %s23 = ssub.s32 %s17, 2
    %s24 = sadd.s32 %s17, 1
    %s25 = ssub.s32 %s17, %s24
    %p26 = scmp.eq.s32.totalorder %s25, 0
    %s28 = sadd.s32 %s27, 1
    %s29 = scalar_select %p26, %s27, %s28
    %p32 = pneg %p26
    %p33 = scmp.eq.s32.totalorder %s17, 1
    %p34 = por %p32, %p33
    %p35 = scmp.ne.s32.totalorder %s27, %s30
    %p36 = scmp.eq.s32.totalorder %s17, 0
    %p37 = por %p35, %p36
    %p38 = scmp.ne.s32.totalorder %s27, %s30
    %p39 = scmp.eq.s32.totalorder %s22, 1
    %p40 = por %p38, %p39
    %p41 = scmp.ne.s32.totalorder %s30, %s31
    %p42 = scmp.eq.s32.totalorder %s22, 0
    %p43 = por %p41, %p42
    %p44 = scmp.ne.s32.totalorder %s30, %s31
    %p45 = scmp.eq.s32.totalorder %s23, 1
    %p46 = por %p44, %p45
    %p48 = scmp.ne.s32.totalorder %s31, %s47
    %p49 = scmp.eq.s32.totalorder %s23, 0
    %p50 = por %p48, %p49
    %s52 = sadd.s32 %s51, 1
    %p55 = scmp.eq.s32.totalorder %s17, 1
    %p56 = scmp.ne.s32.totalorder %s51, %s53
    %p57 = scmp.eq.s32.totalorder %s17, 0
    %p58 = por %p56, %p57
    %p59 = scmp.ne.s32.totalorder %s51, %s53
    %p60 = scmp.eq.s32.totalorder %s22, 1
    %p61 = por %p59, %p60
    %p62 = scmp.ne.s32.totalorder %s53, %s54
    %p63 = scmp.eq.s32.totalorder %s22, 0
    %p64 = por %p62, %p63
    %p65 = scmp.ne.s32.totalorder %s53, %s54
    %p66 = scmp.eq.s32.totalorder %s23, 1
    %p67 = por %p65, %p66
    %p69 = scmp.ne.s32.totalorder %s54, %s68
    %p70 = scmp.eq.s32.totalorder %s23, 0
    %p71 = por %p69, %p70
    %s73 = sadd.s32 %s72, 1
    %p76 = scmp.eq.s32.totalorder %s17, 1
    %p77 = scmp.ne.s32.totalorder %s72, %s74
    %p78 = scmp.eq.s32.totalorder %s17, 0
    %p79 = por %p77, %p78
    %p80 = scmp.ne.s32.totalorder %s72, %s74
    %p81 = scmp.eq.s32.totalorder %s22, 1
    %p82 = por %p80, %p81
    %p83 = scmp.ne.s32.totalorder %s74, %s75
    %p84 = scmp.eq.s32.totalorder %s22, 0
    %p85 = por %p83, %p84
    %p86 = scmp.ne.s32.totalorder %s74, %s75
    %p87 = scmp.eq.s32.totalorder %s23, 1
    %p88 = por %p86, %p87
    %p90 = scmp.ne.s32.totalorder %s75, %s89
    %p91 = scmp.eq.s32.totalorder %s23, 0
    %p92 = por %p90, %p91
    %s94 = sadd.s32 %s93, 1
    %p97 = scmp.eq.s32.totalorder %s17, 1
    %p98 = scmp.ne.s32.totalorder %s93, %s95
    %p99 = scmp.eq.s32.totalorder %s17, 0
    %p100 = por %p98, %p99
    %p101 = scmp.ne.s32.totalorder %s93, %s95
    %p102 = scmp.eq.s32.totalorder %s22, 1
    %p103 = por %p101, %p102
    %p104 = scmp.ne.s32.totalorder %s95, %s96
    %p105 = scmp.eq.s32.totalorder %s22, 0
    %p106 = por %p104, %p105
    %p107 = scmp.ne.s32.totalorder %s95, %s96
    %p108 = scmp.eq.s32.totalorder %s23, 1
    %p109 = por %p107, %p108
    %p111 = scmp.ne.s32.totalorder %s96, %s110
    %p112 = scmp.eq.s32.totalorder %s23, 0
    %p113 = por %p111, %p112
    %s115 = sadd.s32 %s114, 1
    %p118 = scmp.eq.s32.totalorder %s17, 1
    %p119 = scmp.ne.s32.totalorder %s114, %s116
    %p120 = scmp.eq.s32.totalorder %s17, 0
    %p121 = por %p119, %p120
    %p122 = scmp.ne.s32.totalorder %s114, %s116
    %p123 = scmp.eq.s32.totalorder %s22, 1
    %p124 = por %p122, %p123
    %p125 = scmp.ne.s32.totalorder %s116, %s117
    %p126 = scmp.eq.s32.totalorder %s22, 0
    %p127 = por %p125, %p126
    %p128 = scmp.ne.s32.totalorder %s116, %s117
    %p129 = scmp.eq.s32.totalorder %s23, 1
    %p130 = por %p128, %p129
    %p132 = scmp.ne.s32.totalorder %s117, %s131
    %p133 = scmp.eq.s32.totalorder %s23, 0
    %p134 = por %p132, %p133
    %s136 = sadd.s32 %s135, 1
    %p139 = scmp.eq.s32.totalorder %s17, 1
    %p140 = scmp.ne.s32.totalorder %s135, %s137
    %p141 = scmp.eq.s32.totalorder %s17, 0
    %p142 = por %p140, %p141
    %p143 = scmp.ne.s32.totalorder %s135, %s137
    %p144 = scmp.eq.s32.totalorder %s22, 1
    %p145 = por %p143, %p144
    %p146 = scmp.ne.s32.totalorder %s137, %s138
    %p147 = scmp.eq.s32.totalorder %s22, 0
    %p148 = por %p146, %p147
    %p149 = scmp.ne.s32.totalorder %s137, %s138
    %p150 = scmp.eq.s32.totalorder %s23, 1
    %p151 = por %p149, %p150
    %p153 = scmp.ne.s32.totalorder %s138, %s152
    %p154 = scmp.eq.s32.totalorder %s23, 0
    %p155 = por %p153, %p154
    %s157 = sadd.s32 %s156, 1
    %p160 = scmp.eq.s32.totalorder %s17, 1
    %p161 = scmp.ne.s32.totalorder %s156, %s158
    %p162 = scmp.eq.s32.totalorder %s17, 0
    %p163 = por %p161, %p162
    %p164 = scmp.ne.s32.totalorder %s156, %s158
    %p165 = scmp.eq.s32.totalorder %s22, 1
    %p166 = por %p164, %p165
    %p167 = scmp.ne.s32.totalorder %s158, %s159
    %p168 = scmp.eq.s32.totalorder %s22, 0
    %p169 = por %p167, %p168
    %p170 = scmp.ne.s32.totalorder %s158, %s159
    %p171 = scmp.eq.s32.totalorder %s23, 1
    %p172 = por %p170, %p171
    %p174 = scmp.ne.s32.totalorder %s159, %s173
    %p175 = scmp.eq.s32.totalorder %s23, 0
    %p176 = por %p174, %p175
    %s178 = sadd.s32 %s177, 1
    %p181 = scmp.eq.s32.totalorder %s17, 1
    %p182 = scmp.ne.s32.totalorder %s177, %s179
    %p183 = scmp.eq.s32.totalorder %s17, 0
    %p184 = por %p182, %p183
    %p185 = scmp.ne.s32.totalorder %s177, %s179
    %p186 = scmp.eq.s32.totalorder %s22, 1
    %p187 = por %p185, %p186
    %p188 = scmp.ne.s32.totalorder %s179, %s180
    %p189 = scmp.eq.s32.totalorder %s22, 0
    %p190 = por %p188, %p189
    %p191 = scmp.ne.s32.totalorder %s179, %s180
    %p192 = scmp.eq.s32.totalorder %s23, 1
    %p193 = por %p191, %p192
    %p195 = scmp.ne.s32.totalorder %s180, %s194
    %p196 = scmp.eq.s32.totalorder %s23, 0
    %p197 = por %p195, %p196
    %s199 = sadd.s32 %s198, 1
    %p202 = scmp.eq.s32.totalorder %s17, 1
    %p203 = scmp.ne.s32.totalorder %s198, %s200
    %p204 = scmp.eq.s32.totalorder %s17, 0
    %p205 = por %p203, %p204
    %p206 = scmp.ne.s32.totalorder %s198, %s200
    %p207 = scmp.eq.s32.totalorder %s22, 1
    %p208 = por %p206, %p207
    %p209 = scmp.ne.s32.totalorder %s200, %s201
    %p210 = scmp.eq.s32.totalorder %s22, 0
    %p211 = por %p209, %p210
    %p212 = scmp.ne.s32.totalorder %s200, %s201
    %p213 = scmp.eq.s32.totalorder %s23, 1
    %p214 = por %p212, %p213
    %p216 = scmp.ne.s32.totalorder %s201, %s215
    %p217 = scmp.eq.s32.totalorder %s23, 0
    %p218 = por %p216, %p217
    %s220 = sadd.s32 %s219, 1
    %p223 = scmp.eq.s32.totalorder %s17, 1
    %p224 = scmp.ne.s32.totalorder %s219, %s221
    %p225 = scmp.eq.s32.totalorder %s17, 0
    %p226 = por %p224, %p225
    %p227 = scmp.ne.s32.totalorder %s219, %s221
    %p228 = scmp.eq.s32.totalorder %s22, 1
    %p229 = por %p227, %p228
    %p230 = scmp.ne.s32.totalorder %s221, %s222
    %p231 = scmp.eq.s32.totalorder %s22, 0
    %p232 = por %p230, %p231
    %p233 = scmp.ne.s32.totalorder %s221, %s222
    %p234 = scmp.eq.s32.totalorder %s23, 1
    %p235 = por %p233, %p234
    %p237 = scmp.ne.s32.totalorder %s222, %s236
    %p238 = scmp.eq.s32.totalorder %s23, 0
    %p239 = por %p237, %p238
    %s241 = sadd.s32 %s240, 1
    %p244 = scmp.eq.s32.totalorder %s17, 1
    %p245 = scmp.ne.s32.totalorder %s240, %s242
    %p246 = scmp.eq.s32.totalorder %s17, 0
    %p247 = por %p245, %p246
    %p248 = scmp.ne.s32.totalorder %s240, %s242
    %p249 = scmp.eq.s32.totalorder %s22, 1
    %p250 = por %p248, %p249
    %p251 = scmp.ne.s32.totalorder %s242, %s243
    %p252 = scmp.eq.s32.totalorder %s22, 0
    %p253 = por %p251, %p252
    %p254 = scmp.ne.s32.totalorder %s242, %s243
    %p255 = scmp.eq.s32.totalorder %s23, 1
    %p256 = por %p254, %p255
    %p258 = scmp.ne.s32.totalorder %s243, %s257
    %p259 = scmp.eq.s32.totalorder %s23, 0
    %p260 = por %p258, %p259
    %s261 = ssub.s32 %s17, %s24
    %p262 = scmp.eq.s32.totalorder %s261, 0
    %s264 = sadd.s32 %s263, 1
    %s265 = scalar_select %p262, %s263, %s264
    %p268 = pneg %p262
    %p269 = scmp.eq.s32.totalorder %s17, 1
    %p270 = por %p268, %p269
    %p271 = scmp.ne.s32.totalorder %s263, %s266
    %p272 = scmp.eq.s32.totalorder %s17, 0
    %p273 = por %p271, %p272
    %p274 = scmp.ne.s32.totalorder %s263, %s266
    %p275 = scmp.eq.s32.totalorder %s22, 1
    %p276 = por %p274, %p275
    %p277 = scmp.ne.s32.totalorder %s266, %s267
    %p278 = scmp.eq.s32.totalorder %s22, 0
    %p279 = por %p277, %p278
    %p280 = scmp.ne.s32.totalorder %s266, %s267
    %p281 = scmp.eq.s32.totalorder %s23, 1
    %p282 = por %p280, %p281
    %p284 = scmp.ne.s32.totalorder %s267, %s283
    %p285 = scmp.eq.s32.totalorder %s23, 0
    %p286 = por %p284, %p285
    %p287 = scmp.le.s32.totalorder 1, %s17
    %p288 = scmp.lt.s32.totalorder %s17, 3
    %p289 = pnand %p287, %p288
    %p290 = pneg %p289
    // Predicated region
    $region9: #{conv2d_6layer_forward.1} parent=5 // pred_check
      _
    $region10: #{conv2d_6layer_forward.1} parent=5 // pred_check_branch
      %292 = sbr.rel (%p289) target = $region12
    $region11: #{conv2d_6layer_forward.1} parent=5 // pred_region
      %s293 = ssub.s32 %s17, 1
      // Predicated region
      $region13: #{conv2d_6layer_forward.1} parent=11 // pred_check
        %p294 = pneg %p64
      $region14: #{conv2d_6layer_forward.1} parent=11 // pred_check_branch
        %296 = sbr.rel (%p294) target = $region16
      $region15: #{conv2d_6layer_forward.1} parent=11 // pred_region
        _
      $region16: #{conv2d_6layer_forward.1} parent=11 // pred_fallthru
        _
      // Predicated region
      $region17: #{conv2d_6layer_forward.1} parent=11 // pred_check
        %p297 = pneg %p85
      $region18: #{conv2d_6layer_forward.1} parent=11 // pred_check_branch
        %299 = sbr.rel (%p297) target = $region20
      $region19: #{conv2d_6layer_forward.1} parent=11 // pred_region
        _
      $region20: #{conv2d_6layer_forward.1} parent=11 // pred_fallthru
        _
      // Predicated region
      $region21: #{conv2d_6layer_forward.1} parent=11 // pred_check
        %p300 = pneg %p106
      $region22: #{conv2d_6layer_forward.1} parent=11 // pred_check_branch
        %302 = sbr.rel (%p300) target = $region24
      $region23: #{conv2d_6layer_forward.1} parent=11 // pred_region
        _
      $region24: #{conv2d_6layer_forward.1} parent=11 // pred_fallthru
        _
      // Predicated region
      $region25: #{conv2d_6layer_forward.1} parent=11 // pred_check
        %p303 = pneg %p127
      $region26: #{conv2d_6layer_forward.1} parent=11 // pred_check_branch
        %305 = sbr.rel (%p303) target = $region28
      $region27: #{conv2d_6layer_forward.1} parent=11 // pred_region
        _
      $region28: #{conv2d_6layer_forward.1} parent=11 // pred_fallthru
        _
      // Predicated region
      $region29: #{conv2d_6layer_forward.1} parent=11 // pred_check
        %p306 = pneg %p148
      $region30: #{conv2d_6layer_forward.1} parent=11 // pred_check_branch
        %308 = sbr.rel (%p306) target = $region32
      $region31: #{conv2d_6layer_forward.1} parent=11 // pred_region
        _
      $region32: #{conv2d_6layer_forward.1} parent=11 // pred_fallthru
        _
      // Predicated region
      $region33: #{conv2d_6layer_forward.1} parent=11 // pred_check
        %p309 = pneg %p169
      $region34: #{conv2d_6layer_forward.1} parent=11 // pred_check_branch
        %311 = sbr.rel (%p309) target = $region36
      $region35: #{conv2d_6layer_forward.1} parent=11 // pred_region
        _
      $region36: #{conv2d_6layer_forward.1} parent=11 // pred_fallthru
        _
      // Predicated region
      $region37: #{conv2d_6layer_forward.1} parent=11 // pred_check
        %p312 = pneg %p190
      $region38: #{conv2d_6layer_forward.1} parent=11 // pred_check_branch
        %314 = sbr.rel (%p312) target = $region40
      $region39: #{conv2d_6layer_forward.1} parent=11 // pred_region
        _
      $region40: #{conv2d_6layer_forward.1} parent=11 // pred_fallthru
        _
      // Predicated region
      $region41: #{conv2d_6layer_forward.1} parent=11 // pred_check
        %p315 = pneg %p211
      $region42: #{conv2d_6layer_forward.1} parent=11 // pred_check_branch
        %317 = sbr.rel (%p315) target = $region44
      $region43: #{conv2d_6layer_forward.1} parent=11 // pred_region
        _
      $region44: #{conv2d_6layer_forward.1} parent=11 // pred_fallthru
        _
      // Predicated region
      $region45: #{conv2d_6layer_forward.1} parent=11 // pred_check
        %p318 = pneg %p232
      $region46: #{conv2d_6layer_forward.1} parent=11 // pred_check_branch
        %320 = sbr.rel (%p318) target = $region48
      $region47: #{conv2d_6layer_forward.1} parent=11 // pred_region
        _
      $region48: #{conv2d_6layer_forward.1} parent=11 // pred_fallthru
        _
      // Predicated region
      $region49: #{conv2d_6layer_forward.1} parent=11 // pred_check
        %p321 = pneg %p253
      $region50: #{conv2d_6layer_forward.1} parent=11 // pred_check_branch
        %323 = sbr.rel (%p321) target = $region52
      $region51: #{conv2d_6layer_forward.1} parent=11 // pred_region
        _
      $region52: #{conv2d_6layer_forward.1} parent=11 // pred_fallthru
        _
    $region12: #{conv2d_6layer_forward.1} parent=5 // pred_fallthru
      _
    %p324 = scmp.lt.s32.totalorder %s17, 2
    // Predicated region
    $region53: #{conv2d_6layer_forward.1} parent=5 // pred_check
      %p325 = pneg %p324
    $region54: #{conv2d_6layer_forward.1} parent=5 // pred_check_branch
      %327 = sbr.rel (%p325) target = $region56
    $region55: #{conv2d_6layer_forward.1} parent=5 // pred_region
      // Predicated region
      $region57: #{conv2d_6layer_forward.1} parent=55 // pred_check
        %p328 = pneg %p37
      $region58: #{conv2d_6layer_forward.1} parent=55 // pred_check_branch
        %330 = sbr.rel (%p328) target = $region60
      $region59: #{conv2d_6layer_forward.1} parent=55 // pred_region
        %p331 = scmp.lt.s32.totalorder %s17, 1
        %s332 = scalar_select %p331, %s17, 1
        %s333 = smul.addr %s332, 2
        %s334 = smul.addr %s333, 8
        %s335 = scalar_lea.vmem %s0, %s334
      $region60: #{conv2d_6layer_forward.1} parent=55 // pred_fallthru
        _
    $region56: #{conv2d_6layer_forward.1} parent=5 // pred_fallthru
      _
    %p336 = scmp.le.s32.totalorder 1, %s17
    %p337 = scmp.lt.s32.totalorder %s17, 3
    %p338 = pnand %p336, %p337
    %p339 = pneg %p338
    // Predicated region
    $region61: #{conv2d_6layer_forward.1} parent=5 // pred_check
      _
    $region62: #{conv2d_6layer_forward.1} parent=5 // pred_check_branch
      %341 = sbr.rel (%p338) target = $region64
    $region63: #{conv2d_6layer_forward.1} parent=5 // pred_region
      %s342 = ssub.s32 %s17, 1
      %p343 = scmp.lt.s32.totalorder %s22, 1
      %s344 = scalar_select %p343, %s22, 1
      %s345 = smul.addr %s344, 2
      %s346 = smul.addr %s345, 8
      %s347 = scalar_lea.vmem %s0, %s346
      %p348 = pneg %p43
      %p349 = pneg %p40
      %p350 = pneg %p64
      %p351 = pneg %p61
      %p352 = pneg %p85
      %p353 = pneg %p82
      %p354 = pneg %p106
      %p355 = pneg %p103
      %p356 = pneg %p127
      %p357 = pneg %p124
      %p358 = pneg %p148
      %p359 = pneg %p145
      %p360 = pneg %p169
      %p361 = pneg %p166
      %p362 = pneg %p190
      %p363 = pneg %p187
      %p364 = pneg %p211
      %p365 = pneg %p208
      %p366 = pneg %p232
      %p367 = pneg %p229
      %p368 = pneg %p253
      %p369 = pneg %p250
      %p370 = pneg %p279
      %p371 = pneg %p276
      %p372 = scmp.lt.s32.totalorder %s22, 1
      %s373 = scalar_select %p372, %s22, 1
      %s374 = smul.addr %s373, 2
      %s375 = smul.addr %s374, 8
      %s376 = scalar_lea.vmem %s11, %s375
      %p377 = scmp.lt.s32.totalorder %s22, 1
      %s378 = scalar_select %p377, %s22, 1
      %s379 = smul.addr %s378, 2
      %s380 = smul.addr %s379, 8
      %s381 = scalar_lea.vmem %s0, %s380
      %p382 = scmp.lt.s32.totalorder %s22, 1
      %s383 = scalar_select %p382, %s22, 1
      %s384 = smul.addr %s383, 2
      %s385 = smul.addr %s384, 8
      %s386 = scalar_lea.vmem %s11, %s385
      %vm388 = vcmask 60416
      %389 = vst.msk [vmem:[#allocation2] sm:$0xf] %vm388, 0
      %390 = vst.msk [vmem:[#allocation2 + $0x4] sm:$0xf] %vm388, 0
      %vm391 = vcmask 57344
      %392 = vst.msk [vmem:[#allocation2 + $0x8] sm:$0x1] %vm391, 0
      %s393 = scalar_lea.vmem [#allocation2], 204
      %394 = vst.msk [vmem:[%s393] sm:$0xf] %vm388, 0
      %395 = vst.msk [vmem:[%s393 + $0x4] sm:$0xf] %vm388, 0
      %396 = vst.msk [vmem:[%s393 + $0x8] sm:$0x1] %vm391, 0
      %vm397 = vcmask 57344
      %vm398 = vsmask.f32 256
      %vm399 = vmand %vm397, %vm398
      %v400 = vld [vmem:[#allocation2] sm:$0x1]
      %v401 = vsel %vm399, 0, %v400
      %402 = vst [vmem:[#allocation2] sm:$0x1] %v401
      %v403 = vld [vmem:[#allocation2 + $0xc] sm:$0x1]
      %v404 = vsel %vm399, 0, %v403
      %405 = vst [vmem:[#allocation2 + $0xc] sm:$0x1] %v404
      %v406 = vld [vmem:[#allocation2 + $0x18] sm:$0x1]
      %v407 = vsel %vm399, 0, %v406
      %408 = vst [vmem:[#allocation2 + $0x18] sm:$0x1] %v407
      %v409 = vld [vmem:[#allocation2 + $0x24] sm:$0x1]
      %v410 = vsel %vm399, 0, %v409
      %411 = vst [vmem:[#allocation2 + $0x24] sm:$0x1] %v410
      %v412 = vld [vmem:[#allocation2 + $0x30] sm:$0x1]
      %v413 = vsel %vm399, 0, %v412
      %414 = vst [vmem:[#allocation2 + $0x30] sm:$0x1] %v413
      %v415 = vld [vmem:[#allocation2 + $0x3c] sm:$0x1]
      %v416 = vsel %vm399, 0, %v415
      %417 = vst [vmem:[#allocation2 + $0x3c] sm:$0x1] %v416
      %v418 = vld [vmem:[#allocation2 + $0x48] sm:$0x1]
      %v419 = vsel %vm399, 0, %v418
      %420 = vst [vmem:[#allocation2 + $0x48] sm:$0x1] %v419
      %v421 = vld [vmem:[#allocation2 + $0x54] sm:$0x1]
      %v422 = vsel %vm399, 0, %v421
      %423 = vst [vmem:[#allocation2 + $0x54] sm:$0x1] %v422
      %v424 = vld [vmem:[#allocation2 + $0x60] sm:$0x1]
      %v425 = vsel %vm399, 0, %v424
      %426 = vst [vmem:[#allocation2 + $0x60] sm:$0x1] %v425
      %v427 = vld [vmem:[#allocation2 + $0x6c] sm:$0x1]
      %v428 = vsel %vm399, 0, %v427
      %429 = vst [vmem:[#allocation2 + $0x6c] sm:$0x1] %v428
      %v430 = vld [vmem:[#allocation2 + $0x78] sm:$0x1]
      %v431 = vsel %vm399, 0, %v430
      %432 = vst [vmem:[#allocation2 + $0x78] sm:$0x1] %v431
      %v433 = vld [vmem:[#allocation2 + $0x84] sm:$0x1]
      %v434 = vsel %vm399, 0, %v433
      %435 = vst [vmem:[#allocation2 + $0x84] sm:$0x1] %v434
      %v436 = vld [vmem:[#allocation2 + $0x90] sm:$0x1]
      %v437 = vsel %vm399, 0, %v436
      %438 = vst [vmem:[#allocation2 + $0x90] sm:$0x1] %v437
      %v439 = vld [vmem:[#allocation2 + $0x9c] sm:$0x1]
      %v440 = vsel %vm399, 0, %v439
      %441 = vst [vmem:[#allocation2 + $0x9c] sm:$0x1] %v440
      %v442 = vld [vmem:[#allocation2 + $0xa8] sm:$0x1]
      %v443 = vsel %vm399, 0, %v442
      %444 = vst [vmem:[#allocation2 + $0xa8] sm:$0x1] %v443
      %v445 = vld [vmem:[#allocation2 + $0xb4] sm:$0x1]
      %v446 = vsel %vm399, 0, %v445
      %447 = vst [vmem:[#allocation2 + $0xb4] sm:$0x1] %v446
      %v448 = vld [vmem:[#allocation2 + $0xc0] sm:$0x1]
      %v449 = vsel %vm399, 0, %v448
      %450 = vst [vmem:[#allocation2 + $0xc0] sm:$0x1] %v449
      %v451 = vld [vmem:[#allocation2 + $0xcc] sm:$0x1]
      %v452 = vsel %vm399, 0, %v451
      %453 = vst [vmem:[#allocation2 + $0xcc] sm:$0x1] %v452
      %vm454 = vsmask.f32 7938
      %vm455 = vmand %vm397, %vm454
      %v456 = vld [vmem:[#allocation2 + $0x8] sm:$0x1]
      %v457 = vsel %vm455, 0, %v456
      %458 = vst [vmem:[#allocation2 + $0x8] sm:$0x1] %v457
      %v459 = vld [vmem:[#allocation2 + $0x14] sm:$0x1]
      %v460 = vsel %vm455, 0, %v459
      %461 = vst [vmem:[#allocation2 + $0x14] sm:$0x1] %v460
      %v462 = vld [vmem:[#allocation2 + $0x20] sm:$0x1]
      %v463 = vsel %vm455, 0, %v462
      %464 = vst [vmem:[#allocation2 + $0x20] sm:$0x1] %v463
      %v465 = vld [vmem:[#allocation2 + $0x2c] sm:$0x1]
      %v466 = vsel %vm455, 0, %v465
      %467 = vst [vmem:[#allocation2 + $0x2c] sm:$0x1] %v466
      %v468 = vld [vmem:[#allocation2 + $0x38] sm:$0x1]
      %v469 = vsel %vm455, 0, %v468
      %470 = vst [vmem:[#allocation2 + $0x38] sm:$0x1] %v469
      %v471 = vld [vmem:[#allocation2 + $0x44] sm:$0x1]
      %v472 = vsel %vm455, 0, %v471
      %473 = vst [vmem:[#allocation2 + $0x44] sm:$0x1] %v472
      %v474 = vld [vmem:[#allocation2 + $0x50] sm:$0x1]
      %v475 = vsel %vm455, 0, %v474
      %476 = vst [vmem:[#allocation2 + $0x50] sm:$0x1] %v475
      %v477 = vld [vmem:[#allocation2 + $0x5c] sm:$0x1]
      %v478 = vsel %vm455, 0, %v477
      %479 = vst [vmem:[#allocation2 + $0x5c] sm:$0x1] %v478
      %v480 = vld [vmem:[#allocation2 + $0x68] sm:$0x1]
      %v481 = vsel %vm455, 0, %v480
      %482 = vst [vmem:[#allocation2 + $0x68] sm:$0x1] %v481
      %v483 = vld [vmem:[#allocation2 + $0x74] sm:$0x1]
      %v484 = vsel %vm455, 0, %v483
      %485 = vst [vmem:[#allocation2 + $0x74] sm:$0x1] %v484
      %v486 = vld [vmem:[#allocation2 + $0x80] sm:$0x1]
      %v487 = vsel %vm455, 0, %v486
      %488 = vst [vmem:[#allocation2 + $0x80] sm:$0x1] %v487
      %v489 = vld [vmem:[#allocation2 + $0x8c] sm:$0x1]
      %v490 = vsel %vm455, 0, %v489
      %491 = vst [vmem:[#allocation2 + $0x8c] sm:$0x1] %v490
      %v492 = vld [vmem:[#allocation2 + $0x98] sm:$0x1]
      %v493 = vsel %vm455, 0, %v492
      %494 = vst [vmem:[#allocation2 + $0x98] sm:$0x1] %v493
      %v495 = vld [vmem:[#allocation2 + $0xa4] sm:$0x1]
      %v496 = vsel %vm455, 0, %v495
      %497 = vst [vmem:[#allocation2 + $0xa4] sm:$0x1] %v496
      %v498 = vld [vmem:[#allocation2 + $0xb0] sm:$0x1]
      %v499 = vsel %vm455, 0, %v498
      %500 = vst [vmem:[#allocation2 + $0xb0] sm:$0x1] %v499
      %v501 = vld [vmem:[#allocation2 + $0xbc] sm:$0x1]
      %v502 = vsel %vm455, 0, %v501
      %503 = vst [vmem:[#allocation2 + $0xbc] sm:$0x1] %v502
      %v504 = vld [vmem:[#allocation2 + $0xc8] sm:$0x1]
      %v505 = vsel %vm455, 0, %v504
      %506 = vst [vmem:[#allocation2 + $0xc8] sm:$0x1] %v505
      %v507 = vld [vmem:[#allocation2 + $0xd4] sm:$0x1]
      %v508 = vsel %vm455, 0, %v507
      %509 = vst [vmem:[#allocation2 + $0xd4] sm:$0x1] %v508
      %vm510 = vcmask 257024
      %511 = vst.msk [vmem:[#allocation3] sm:$0xf] %vm510, 0
      %512 = vst.msk [vmem:[#allocation3 + $0x4] sm:$0xf] %vm510, 0
      %vm513 = vcmask 253952
      %514 = vst.msk [vmem:[#allocation3 + $0x8] sm:$0x1] %vm513, 0
      %s515 = scalar_lea.vmem [#allocation3], 204
      %516 = vst.msk [vmem:[%s515] sm:$0xf] %vm510, 0
      %517 = vst.msk [vmem:[%s515 + $0x4] sm:$0xf] %vm510, 0
      %518 = vst.msk [vmem:[%s515 + $0x8] sm:$0x1] %vm513, 0
      %vm519 = vcmask 253952
      %vm520 = vmand %vm519, %vm398
      %v521 = vld [vmem:[#allocation3] sm:$0x1]
      %v522 = vsel %vm520, 0, %v521
      %523 = vst [vmem:[#allocation3] sm:$0x1] %v522
      %v524 = vld [vmem:[#allocation3 + $0xc] sm:$0x1]
      %v525 = vsel %vm520, 0, %v524
      %526 = vst [vmem:[#allocation3 + $0xc] sm:$0x1] %v525
      %v527 = vld [vmem:[#allocation3 + $0x18] sm:$0x1]
      %v528 = vsel %vm520, 0, %v527
      %529 = vst [vmem:[#allocation3 + $0x18] sm:$0x1] %v528
      %v530 = vld [vmem:[#allocation3 + $0x24] sm:$0x1]
      %v531 = vsel %vm520, 0, %v530
      %532 = vst [vmem:[#allocation3 + $0x24] sm:$0x1] %v531
      %v533 = vld [vmem:[#allocation3 + $0x30] sm:$0x1]
      %v534 = vsel %vm520, 0, %v533
      %535 = vst [vmem:[#allocation3 + $0x30] sm:$0x1] %v534
      %v536 = vld [vmem:[#allocation3 + $0x3c] sm:$0x1]
      %v537 = vsel %vm520, 0, %v536
      %538 = vst [vmem:[#allocation3 + $0x3c] sm:$0x1] %v537
      %v539 = vld [vmem:[#allocation3 + $0x48] sm:$0x1]
      %v540 = vsel %vm520, 0, %v539
      %541 = vst [vmem:[#allocation3 + $0x48] sm:$0x1] %v540
      %v542 = vld [vmem:[#allocation3 + $0x54] sm:$0x1]
      %v543 = vsel %vm520, 0, %v542
      %544 = vst [vmem:[#allocation3 + $0x54] sm:$0x1] %v543
      %v545 = vld [vmem:[#allocation3 + $0x60] sm:$0x1]
      %v546 = vsel %vm520, 0, %v545
      %547 = vst [vmem:[#allocation3 + $0x60] sm:$0x1] %v546
      %v548 = vld [vmem:[#allocation3 + $0x6c] sm:$0x1]
      %v549 = vsel %vm520, 0, %v548
      %550 = vst [vmem:[#allocation3 + $0x6c] sm:$0x1] %v549
      %v551 = vld [vmem:[#allocation3 + $0x78] sm:$0x1]
      %v552 = vsel %vm520, 0, %v551
      %553 = vst [vmem:[#allocation3 + $0x78] sm:$0x1] %v552
      %v554 = vld [vmem:[#allocation3 + $0x84] sm:$0x1]
      %v555 = vsel %vm520, 0, %v554
      %556 = vst [vmem:[#allocation3 + $0x84] sm:$0x1] %v555
      %v557 = vld [vmem:[#allocation3 + $0x90] sm:$0x1]
      %v558 = vsel %vm520, 0, %v557
      %559 = vst [vmem:[#allocation3 + $0x90] sm:$0x1] %v558
      %v560 = vld [vmem:[#allocation3 + $0x9c] sm:$0x1]
      %v561 = vsel %vm520, 0, %v560
      %562 = vst [vmem:[#allocation3 + $0x9c] sm:$0x1] %v561
      %v563 = vld [vmem:[#allocation3 + $0xa8] sm:$0x1]
      %v564 = vsel %vm520, 0, %v563
      %565 = vst [vmem:[#allocation3 + $0xa8] sm:$0x1] %v564
      %v566 = vld [vmem:[#allocation3 + $0xb4] sm:$0x1]
      %v567 = vsel %vm520, 0, %v566
      %568 = vst [vmem:[#allocation3 + $0xb4] sm:$0x1] %v567
      %v569 = vld [vmem:[#allocation3 + $0xc0] sm:$0x1]
      %v570 = vsel %vm520, 0, %v569
      %571 = vst [vmem:[#allocation3 + $0xc0] sm:$0x1] %v570
      %v572 = vld [vmem:[#allocation3 + $0xcc] sm:$0x1]
      %v573 = vsel %vm520, 0, %v572
      %574 = vst [vmem:[#allocation3 + $0xcc] sm:$0x1] %v573
      %vm575 = vmand %vm519, %vm454
      %v576 = vld [vmem:[#allocation3 + $0x8] sm:$0x1]
      %v577 = vsel %vm575, 0, %v576
      %578 = vst [vmem:[#allocation3 + $0x8] sm:$0x1] %v577
      %v579 = vld [vmem:[#allocation3 + $0x14] sm:$0x1]
      %v580 = vsel %vm575, 0, %v579
      %581 = vst [vmem:[#allocation3 + $0x14] sm:$0x1] %v580
      %v582 = vld [vmem:[#allocation3 + $0x20] sm:$0x1]
      %v583 = vsel %vm575, 0, %v582
      %584 = vst [vmem:[#allocation3 + $0x20] sm:$0x1] %v583
      %v585 = vld [vmem:[#allocation3 + $0x2c] sm:$0x1]
      %v586 = vsel %vm575, 0, %v585
      %587 = vst [vmem:[#allocation3 + $0x2c] sm:$0x1] %v586
      %v588 = vld [vmem:[#allocation3 + $0x38] sm:$0x1]
      %v589 = vsel %vm575, 0, %v588
      %590 = vst [vmem:[#allocation3 + $0x38] sm:$0x1] %v589
      %v591 = vld [vmem:[#allocation3 + $0x44] sm:$0x1]
      %v592 = vsel %vm575, 0, %v591
      %593 = vst [vmem:[#allocation3 + $0x44] sm:$0x1] %v592
      %v594 = vld [vmem:[#allocation3 + $0x50] sm:$0x1]
      %v595 = vsel %vm575, 0, %v594
      %596 = vst [vmem:[#allocation3 + $0x50] sm:$0x1] %v595
      %v597 = vld [vmem:[#allocation3 + $0x5c] sm:$0x1]
      %v598 = vsel %vm575, 0, %v597
      %599 = vst [vmem:[#allocation3 + $0x5c] sm:$0x1] %v598
      %v600 = vld [vmem:[#allocation3 + $0x68] sm:$0x1]
      %v601 = vsel %vm575, 0, %v600
      %602 = vst [vmem:[#allocation3 + $0x68] sm:$0x1] %v601
      %v603 = vld [vmem:[#allocation3 + $0x74] sm:$0x1]
      %v604 = vsel %vm575, 0, %v603
      %605 = vst [vmem:[#allocation3 + $0x74] sm:$0x1] %v604
      %v606 = vld [vmem:[#allocation3 + $0x80] sm:$0x1]
      %v607 = vsel %vm575, 0, %v606
      %608 = vst [vmem:[#allocation3 + $0x80] sm:$0x1] %v607
      %v609 = vld [vmem:[#allocation3 + $0x8c] sm:$0x1]
      %v610 = vsel %vm575, 0, %v609
      %611 = vst [vmem:[#allocation3 + $0x8c] sm:$0x1] %v610
      %v612 = vld [vmem:[#allocation3 + $0x98] sm:$0x1]
      %v613 = vsel %vm575, 0, %v612
      %614 = vst [vmem:[#allocation3 + $0x98] sm:$0x1] %v613
      %v615 = vld [vmem:[#allocation3 + $0xa4] sm:$0x1]
      %v616 = vsel %vm575, 0, %v615
      %617 = vst [vmem:[#allocation3 + $0xa4] sm:$0x1] %v616
      %v618 = vld [vmem:[#allocation3 + $0xb0] sm:$0x1]
      %v619 = vsel %vm575, 0, %v618
      %620 = vst [vmem:[#allocation3 + $0xb0] sm:$0x1] %v619
      %v621 = vld [vmem:[#allocation3 + $0xbc] sm:$0x1]
      %v622 = vsel %vm575, 0, %v621
      %623 = vst [vmem:[#allocation3 + $0xbc] sm:$0x1] %v622
      %v624 = vld [vmem:[#allocation3 + $0xc8] sm:$0x1]
      %v625 = vsel %vm575, 0, %v624
      %626 = vst [vmem:[#allocation3 + $0xc8] sm:$0x1] %v625
      %v627 = vld [vmem:[#allocation3 + $0xd4] sm:$0x1]
      %v628 = vsel %vm575, 0, %v627
      %629 = vst [vmem:[#allocation3 + $0xd4] sm:$0x1] %v628
      %630 = vst.msk [vmem:[#allocation4] sm:$0xf] %vm510, 0
      %631 = vst.msk [vmem:[#allocation4 + $0x4] sm:$0xf] %vm510, 0
      %632 = vst.msk [vmem:[#allocation4 + $0x8] sm:$0x1] %vm513, 0
      %s633 = scalar_lea.vmem [#allocation4], 204
      %634 = vst.msk [vmem:[%s633] sm:$0xf] %vm510, 0
      %635 = vst.msk [vmem:[%s633 + $0x4] sm:$0xf] %vm510, 0
      %636 = vst.msk [vmem:[%s633 + $0x8] sm:$0x1] %vm513, 0
      %v637 = vld [vmem:[#allocation4] sm:$0x1]
      %v638 = vsel %vm520, 0, %v637
      %639 = vst [vmem:[#allocation4] sm:$0x1] %v638
      %v640 = vld [vmem:[#allocation4 + $0xc] sm:$0x1]
      %v641 = vsel %vm520, 0, %v640
      %642 = vst [vmem:[#allocation4 + $0xc] sm:$0x1] %v641
      %v643 = vld [vmem:[#allocation4 + $0x18] sm:$0x1]
      %v644 = vsel %vm520, 0, %v643
      %645 = vst [vmem:[#allocation4 + $0x18] sm:$0x1] %v644
      %v646 = vld [vmem:[#allocation4 + $0x24] sm:$0x1]
      %v647 = vsel %vm520, 0, %v646
      %648 = vst [vmem:[#allocation4 + $0x24] sm:$0x1] %v647
      %v649 = vld [vmem:[#allocation4 + $0x30] sm:$0x1]
      %v650 = vsel %vm520, 0, %v649
      %651 = vst [vmem:[#allocation4 + $0x30] sm:$0x1] %v650
      %v652 = vld [vmem:[#allocation4 + $0x3c] sm:$0x1]
      %v653 = vsel %vm520, 0, %v652
      %654 = vst [vmem:[#allocation4 + $0x3c] sm:$0x1] %v653
      %v655 = vld [vmem:[#allocation4 + $0x48] sm:$0x1]
      %v656 = vsel %vm520, 0, %v655
      %657 = vst [vmem:[#allocation4 + $0x48] sm:$0x1] %v656
      %v658 = vld [vmem:[#allocation4 + $0x54] sm:$0x1]
      %v659 = vsel %vm520, 0, %v658
      %660 = vst [vmem:[#allocation4 + $0x54] sm:$0x1] %v659
      %v661 = vld [vmem:[#allocation4 + $0x60] sm:$0x1]
      %v662 = vsel %vm520, 0, %v661
      %663 = vst [vmem:[#allocation4 + $0x60] sm:$0x1] %v662
      %v664 = vld [vmem:[#allocation4 + $0x6c] sm:$0x1]
      %v665 = vsel %vm520, 0, %v664
      %666 = vst [vmem:[#allocation4 + $0x6c] sm:$0x1] %v665
      %v667 = vld [vmem:[#allocation4 + $0x78] sm:$0x1]
      %v668 = vsel %vm520, 0, %v667
      %669 = vst [vmem:[#allocation4 + $0x78] sm:$0x1] %v668
      %v670 = vld [vmem:[#allocation4 + $0x84] sm:$0x1]
      %v671 = vsel %vm520, 0, %v670
      %672 = vst [vmem:[#allocation4 + $0x84] sm:$0x1] %v671
      %v673 = vld [vmem:[#allocation4 + $0x90] sm:$0x1]
      %v674 = vsel %vm520, 0, %v673
      %675 = vst [vmem:[#allocation4 + $0x90] sm:$0x1] %v674
      %v676 = vld [vmem:[#allocation4 + $0x9c] sm:$0x1]
      %v677 = vsel %vm520, 0, %v676
      %678 = vst [vmem:[#allocation4 + $0x9c] sm:$0x1] %v677
      %v679 = vld [vmem:[#allocation4 + $0xa8] sm:$0x1]
      %v680 = vsel %vm520, 0, %v679
      %681 = vst [vmem:[#allocation4 + $0xa8] sm:$0x1] %v680
      %v682 = vld [vmem:[#allocation4 + $0xb4] sm:$0x1]
      %v683 = vsel %vm520, 0, %v682
      %684 = vst [vmem:[#allocation4 + $0xb4] sm:$0x1] %v683
      %v685 = vld [vmem:[#allocation4 + $0xc0] sm:$0x1]
      %v686 = vsel %vm520, 0, %v685
      %687 = vst [vmem:[#allocation4 + $0xc0] sm:$0x1] %v686
      %v688 = vld [vmem:[#allocation4 + $0xcc] sm:$0x1]
      %v689 = vsel %vm520, 0, %v688
      %690 = vst [vmem:[#allocation4 + $0xcc] sm:$0x1] %v689
      %v691 = vld [vmem:[#allocation4 + $0x8] sm:$0x1]
      %v692 = vsel %vm575, 0, %v691
      %693 = vst [vmem:[#allocation4 + $0x8] sm:$0x1] %v692
      %v694 = vld [vmem:[#allocation4 + $0x14] sm:$0x1]
      %v695 = vsel %vm575, 0, %v694
      %696 = vst [vmem:[#allocation4 + $0x14] sm:$0x1] %v695
      %v697 = vld [vmem:[#allocation4 + $0x20] sm:$0x1]
      %v698 = vsel %vm575, 0, %v697
      %699 = vst [vmem:[#allocation4 + $0x20] sm:$0x1] %v698
      %v700 = vld [vmem:[#allocation4 + $0x2c] sm:$0x1]
      %v701 = vsel %vm575, 0, %v700
      %702 = vst [vmem:[#allocation4 + $0x2c] sm:$0x1] %v701
      %v703 = vld [vmem:[#allocation4 + $0x38] sm:$0x1]
      %v704 = vsel %vm575, 0, %v703
      %705 = vst [vmem:[#allocation4 + $0x38] sm:$0x1] %v704
      %v706 = vld [vmem:[#allocation4 + $0x44] sm:$0x1]
      %v707 = vsel %vm575, 0, %v706
      %708 = vst [vmem:[#allocation4 + $0x44] sm:$0x1] %v707
      %v709 = vld [vmem:[#allocation4 + $0x50] sm:$0x1]
      %v710 = vsel %vm575, 0, %v709
      %711 = vst [vmem:[#allocation4 + $0x50] sm:$0x1] %v710
      %v712 = vld [vmem:[#allocation4 + $0x5c] sm:$0x1]
      %v713 = vsel %vm575, 0, %v712
      %714 = vst [vmem:[#allocation4 + $0x5c] sm:$0x1] %v713
      %v715 = vld [vmem:[#allocation4 + $0x68] sm:$0x1]
      %v716 = vsel %vm575, 0, %v715
      %717 = vst [vmem:[#allocation4 + $0x68] sm:$0x1] %v716
      %v718 = vld [vmem:[#allocation4 + $0x74] sm:$0x1]
      %v719 = vsel %vm575, 0, %v718
      %720 = vst [vmem:[#allocation4 + $0x74] sm:$0x1] %v719
      %v721 = vld [vmem:[#allocation4 + $0x80] sm:$0x1]
      %v722 = vsel %vm575, 0, %v721
      %723 = vst [vmem:[#allocation4 + $0x80] sm:$0x1] %v722
      %v724 = vld [vmem:[#allocation4 + $0x8c] sm:$0x1]
      %v725 = vsel %vm575, 0, %v724
      %726 = vst [vmem:[#allocation4 + $0x8c] sm:$0x1] %v725
      %v727 = vld [vmem:[#allocation4 + $0x98] sm:$0x1]
      %v728 = vsel %vm575, 0, %v727
      %729 = vst [vmem:[#allocation4 + $0x98] sm:$0x1] %v728
      %v730 = vld [vmem:[#allocation4 + $0xa4] sm:$0x1]
      %v731 = vsel %vm575, 0, %v730
      %732 = vst [vmem:[#allocation4 + $0xa4] sm:$0x1] %v731
      %v733 = vld [vmem:[#allocation4 + $0xb0] sm:$0x1]
      %v734 = vsel %vm575, 0, %v733
      %735 = vst [vmem:[#allocation4 + $0xb0] sm:$0x1] %v734
      %v736 = vld [vmem:[#allocation4 + $0xbc] sm:$0x1]
      %v737 = vsel %vm575, 0, %v736
      %738 = vst [vmem:[#allocation4 + $0xbc] sm:$0x1] %v737
      %v739 = vld [vmem:[#allocation4 + $0xc8] sm:$0x1]
      %v740 = vsel %vm575, 0, %v739
      %741 = vst [vmem:[#allocation4 + $0xc8] sm:$0x1] %v740
      %v742 = vld [vmem:[#allocation4 + $0xd4] sm:$0x1]
      %v743 = vsel %vm575, 0, %v742
      %744 = vst [vmem:[#allocation4 + $0xd4] sm:$0x1] %v743
      %v745 = vld [vmem:[%s381] sm:$0xff]
      %v746 = vld [vmem:[%s381 + $0x8] sm:$0xff]
      %749 = vrot.lane.b32.xlu0 %v745, 120
      %v750 = vpop.permute.xlu0 %749
      %751 = vrot.lane.b32.xlu0 %v746, 120
      %v752 = vpop.permute.xlu0 %751
      %755 = vrot.lane.b32.xlu0 %v745, 112
      %v756 = vpop.permute.xlu0 %755
      %757 = vrot.lane.b32.xlu0 %v746, 112
      %v758 = vpop.permute.xlu0 %757
      %761 = vrot.lane.b32.xlu0 %v745, 104
      %v762 = vpop.permute.xlu0 %761
      %763 = vrot.lane.b32.xlu0 %v746, 104
      %v764 = vpop.permute.xlu0 %763
      %767 = vrot.lane.b32.xlu0 %v745, 96
      %v768 = vpop.permute.xlu0 %767
      %769 = vrot.lane.b32.xlu0 %v746, 96
      %v770 = vpop.permute.xlu0 %769
      %773 = vrot.lane.b32.xlu0 %v745, 88
      %v774 = vpop.permute.xlu0 %773
      %775 = vrot.lane.b32.xlu0 %v746, 88
      %v776 = vpop.permute.xlu0 %775
      %779 = vrot.lane.b32.xlu0 %v745, 80
      %v780 = vpop.permute.xlu0 %779
      %781 = vrot.lane.b32.xlu0 %v746, 80
      %v782 = vpop.permute.xlu0 %781
      %785 = vrot.lane.b32.xlu0 %v745, 72
      %v786 = vpop.permute.xlu0 %785
      %787 = vrot.lane.b32.xlu0 %v746, 72
      %v788 = vpop.permute.xlu0 %787
      %791 = vrot.lane.b32.xlu0 %v745, 64
      %v792 = vpop.permute.xlu0 %791
      %793 = vrot.lane.b32.xlu0 %v746, 64
      %v794 = vpop.permute.xlu0 %793
      %797 = vrot.lane.b32.xlu0 %v745, 56
      %v798 = vpop.permute.xlu0 %797
      %799 = vrot.lane.b32.xlu0 %v746, 56
      %v800 = vpop.permute.xlu0 %799
      %803 = vrot.lane.b32.xlu0 %v745, 48
      %v804 = vpop.permute.xlu0 %803
      %805 = vrot.lane.b32.xlu0 %v746, 48
      %v806 = vpop.permute.xlu0 %805
      %809 = vrot.lane.b32.xlu0 %v745, 40
      %v810 = vpop.permute.xlu0 %809
      %811 = vrot.lane.b32.xlu0 %v746, 40
      %v812 = vpop.permute.xlu0 %811
      %815 = vrot.lane.b32.xlu0 %v745, 32
      %v816 = vpop.permute.xlu0 %815
      %817 = vrot.lane.b32.xlu0 %v746, 32
      %v818 = vpop.permute.xlu0 %817
      %821 = vrot.lane.b32.xlu0 %v745, 24
      %v822 = vpop.permute.xlu0 %821
      %823 = vrot.lane.b32.xlu0 %v746, 24
      %v824 = vpop.permute.xlu0 %823
      %827 = vrot.lane.b32.xlu0 %v745, 16
      %v828 = vpop.permute.xlu0 %827
      %829 = vrot.lane.b32.xlu0 %v746, 16
      %v830 = vpop.permute.xlu0 %829
      %833 = vrot.lane.b32.xlu0 %v745, 8
      %v834 = vpop.permute.xlu0 %833
      %835 = vrot.lane.b32.xlu0 %v746, 8
      %v836 = vpop.permute.xlu0 %835
      %v839 = vcombine.low %v745, %v756
      %v840 = vcombine.high %v745, %v756
      %v842 = vunpack.c.l.s4 1983009808
      %v843 = vunpack.c.0.s8 %v842
      %v844 = vlaneseq
      %v845 = vshrl.u32 %v844, 7
      %v846 = vsub.s32 %v843, %v845
      %v847 = vrot.slane %v839, %v846
      %v849 = vunpack.c.l.s4 1983009808
      %v850 = vunpack.c.0.s8 %v849
      %v851 = vlaneseq
      %v852 = vshrl.u32 %v851, 7
      %v853 = vsub.s32 %v850, %v852
      %v854 = vrot.slane %v840, %v853
      %v855 = vcombine.low %v750, %v762
      %v856 = vcombine.high %v750, %v762
      %v858 = vunpack.c.l.s4 1983009808
      %v859 = vunpack.c.0.s8 %v858
      %v860 = vlaneseq
      %v861 = vshrl.u32 %v860, 7
      %v862 = vsub.s32 %v859, %v861
      %v863 = vrot.slane %v855, %v862
      %v865 = vunpack.c.l.s4 1983009808
      %v866 = vunpack.c.0.s8 %v865
      %v867 = vlaneseq
      %v868 = vshrl.u32 %v867, 7
      %v869 = vsub.s32 %v866, %v868
      %v870 = vrot.slane %v856, %v869
      %v871 = vcombine.low %v768, %v780
      %v872 = vcombine.high %v768, %v780
      %v874 = vunpack.c.l.s4 1983009808
      %v875 = vunpack.c.0.s8 %v874
      %v876 = vlaneseq
      %v877 = vshrl.u32 %v876, 7
      %v878 = vsub.s32 %v875, %v877
      %v879 = vrot.slane %v871, %v878
      %v881 = vunpack.c.l.s4 1983009808
      %v882 = vunpack.c.0.s8 %v881
      %v883 = vlaneseq
      %v884 = vshrl.u32 %v883, 7
      %v885 = vsub.s32 %v882, %v884
      %v886 = vrot.slane %v872, %v885
      %v887 = vcombine.low %v774, %v786
      %v888 = vcombine.high %v774, %v786
      %v890 = vunpack.c.l.s4 1983009808
      %v891 = vunpack.c.0.s8 %v890
      %v892 = vlaneseq
      %v893 = vshrl.u32 %v892, 7
      %v894 = vsub.s32 %v891, %v893
      %v895 = vrot.slane %v887, %v894
      %v897 = vunpack.c.l.s4 1983009808
      %v898 = vunpack.c.0.s8 %v897
      %v899 = vlaneseq
      %v900 = vshrl.u32 %v899, 7
      %v901 = vsub.s32 %v898, %v900
      %v902 = vrot.slane %v888, %v901
      %v903 = vcombine.low %v847, %v863
      %v904 = vcombine.high %v847, %v863
      %v906 = vunpack.c.l.s4 1934713408
      %v907 = vunpack.c.0.s8 %v906
      %v908 = vlaneseq
      %v909 = vshrl.u32 %v908, 7
      %v910 = vsub.s32 %v907, %v909
      %v911 = vrot.slane %v903, %v910
      %v913 = vunpack.c.l.s4 1934713408
      %v914 = vunpack.c.0.s8 %v913
      %v915 = vlaneseq
      %v916 = vshrl.u32 %v915, 7
      %v917 = vsub.s32 %v914, %v916
      %v918 = vrot.slane %v904, %v917
      %v919 = vcombine.low %v854, %v870
      %v920 = vcombine.high %v854, %v870
      %v922 = vunpack.c.l.s4 1934713408
      %v923 = vunpack.c.0.s8 %v922
      %v924 = vlaneseq
      %v925 = vshrl.u32 %v924, 7
      %v926 = vsub.s32 %v923, %v925
      %v927 = vrot.slane %v919, %v926
      %v929 = vunpack.c.l.s4 1934713408
      %v930 = vunpack.c.0.s8 %v929
      %v931 = vlaneseq
      %v932 = vshrl.u32 %v931, 7
      %v933 = vsub.s32 %v930, %v932
      %v934 = vrot.slane %v920, %v933
      %v935 = vcombine.low %v879, %v895
      %v936 = vcombine.high %v879, %v895
      %v938 = vunpack.c.l.s4 1934713408
      %v939 = vunpack.c.0.s8 %v938
      %v940 = vlaneseq
      %v941 = vshrl.u32 %v940, 7
      %v942 = vsub.s32 %v939, %v941
      %v943 = vrot.slane %v935, %v942
      %v945 = vunpack.c.l.s4 1934713408
      %v946 = vunpack.c.0.s8 %v945
      %v947 = vlaneseq
      %v948 = vshrl.u32 %v947, 7
      %v949 = vsub.s32 %v946, %v948
      %v950 = vrot.slane %v936, %v949
      %v951 = vcombine.low %v886, %v902
      %v952 = vcombine.high %v886, %v902
      %v954 = vunpack.c.l.s4 1934713408
      %v955 = vunpack.c.0.s8 %v954
      %v956 = vlaneseq
      %v957 = vshrl.u32 %v956, 7
      %v958 = vsub.s32 %v955, %v957
      %v959 = vrot.slane %v951, %v958
      %v961 = vunpack.c.l.s4 1934713408
      %v962 = vunpack.c.0.s8 %v961
      %v963 = vlaneseq
      %v964 = vshrl.u32 %v963, 7
      %v965 = vsub.s32 %v962, %v964
      %v966 = vrot.slane %v952, %v965
      %v967 = vcombine.low %v911, %v943
      %v968 = vcombine.high %v911, %v943
      %v969 = vcombine.low %v918, %v950
      %v970 = vcombine.high %v918, %v950
      %v971 = vcombine.low %v927, %v959
      %v972 = vcombine.high %v927, %v959
      %v973 = vcombine.low %v934, %v966
      %v974 = vcombine.high %v934, %v966
      %v975 = vcombine.low %v792, %v804
      %v976 = vcombine.high %v792, %v804
      %v978 = vunpack.c.l.s4 1983009808
      %v979 = vunpack.c.0.s8 %v978
      %v980 = vlaneseq
      %v981 = vshrl.u32 %v980, 7
      %v982 = vsub.s32 %v979, %v981
      %v983 = vrot.slane %v975, %v982
      %v985 = vunpack.c.l.s4 1983009808
      %v986 = vunpack.c.0.s8 %v985
      %v987 = vlaneseq
      %v988 = vshrl.u32 %v987, 7
      %v989 = vsub.s32 %v986, %v988
      %v990 = vrot.slane %v976, %v989
      %v991 = vcombine.low %v798, %v810
      %v992 = vcombine.high %v798, %v810
      %v994 = vunpack.c.l.s4 1983009808
      %v995 = vunpack.c.0.s8 %v994
      %v996 = vlaneseq
      %v997 = vshrl.u32 %v996, 7
      %v998 = vsub.s32 %v995, %v997
      %v999 = vrot.slane %v991, %v998
      %v1001 = vunpack.c.l.s4 1983009808
      %v1002 = vunpack.c.0.s8 %v1001
      %v1003 = vlaneseq
      %v1004 = vshrl.u32 %v1003, 7
      %v1005 = vsub.s32 %v1002, %v1004
      %v1006 = vrot.slane %v992, %v1005
      %v1007 = vcombine.low %v816, %v828
      %v1008 = vcombine.high %v816, %v828
      %v1010 = vunpack.c.l.s4 1983009808
      %v1011 = vunpack.c.0.s8 %v1010
      %v1012 = vlaneseq
      %v1013 = vshrl.u32 %v1012, 7
      %v1014 = vsub.s32 %v1011, %v1013
      %v1015 = vrot.slane %v1007, %v1014
      %v1017 = vunpack.c.l.s4 1983009808
      %v1018 = vunpack.c.0.s8 %v1017
      %v1019 = vlaneseq
      %v1020 = vshrl.u32 %v1019, 7
      %v1021 = vsub.s32 %v1018, %v1020
      %v1022 = vrot.slane %v1008, %v1021
      %v1023 = vcombine.low %v822, %v834
      %v1024 = vcombine.high %v822, %v834
      %v1026 = vunpack.c.l.s4 1983009808
      %v1027 = vunpack.c.0.s8 %v1026
      %v1028 = vlaneseq
      %v1029 = vshrl.u32 %v1028, 7
      %v1030 = vsub.s32 %v1027, %v1029
      %v1031 = vrot.slane %v1023, %v1030
      %v1033 = vunpack.c.l.s4 1983009808
      %v1034 = vunpack.c.0.s8 %v1033
      %v1035 = vlaneseq
      %v1036 = vshrl.u32 %v1035, 7
      %v1037 = vsub.s32 %v1034, %v1036
      %v1038 = vrot.slane %v1024, %v1037
      %v1039 = vcombine.low %v983, %v999
      %v1040 = vcombine.high %v983, %v999
      %v1042 = vunpack.c.l.s4 1934713408
      %v1043 = vunpack.c.0.s8 %v1042
      %v1044 = vlaneseq
      %v1045 = vshrl.u32 %v1044, 7
      %v1046 = vsub.s32 %v1043, %v1045
      %v1047 = vrot.slane %v1039, %v1046
      %v1049 = vunpack.c.l.s4 1934713408
      %v1050 = vunpack.c.0.s8 %v1049
      %v1051 = vlaneseq
      %v1052 = vshrl.u32 %v1051, 7
      %v1053 = vsub.s32 %v1050, %v1052
      %v1054 = vrot.slane %v1040, %v1053
      %v1055 = vcombine.low %v990, %v1006
      %v1056 = vcombine.high %v990, %v1006
      %v1058 = vunpack.c.l.s4 1934713408
      %v1059 = vunpack.c.0.s8 %v1058
      %v1060 = vlaneseq
      %v1061 = vshrl.u32 %v1060, 7
      %v1062 = vsub.s32 %v1059, %v1061
      %v1063 = vrot.slane %v1055, %v1062
      %v1065 = vunpack.c.l.s4 1934713408
      %v1066 = vunpack.c.0.s8 %v1065
      %v1067 = vlaneseq
      %v1068 = vshrl.u32 %v1067, 7
      %v1069 = vsub.s32 %v1066, %v1068
      %v1070 = vrot.slane %v1056, %v1069
      %v1071 = vcombine.low %v1015, %v1031
      %v1072 = vcombine.high %v1015, %v1031
      %v1074 = vunpack.c.l.s4 1934713408
      %v1075 = vunpack.c.0.s8 %v1074
      %v1076 = vlaneseq
      %v1077 = vshrl.u32 %v1076, 7
      %v1078 = vsub.s32 %v1075, %v1077
      %v1079 = vrot.slane %v1071, %v1078
      %v1081 = vunpack.c.l.s4 1934713408
      %v1082 = vunpack.c.0.s8 %v1081
      %v1083 = vlaneseq
      %v1084 = vshrl.u32 %v1083, 7
      %v1085 = vsub.s32 %v1082, %v1084
      %v1086 = vrot.slane %v1072, %v1085
      %v1087 = vcombine.low %v1022, %v1038
      %v1088 = vcombine.high %v1022, %v1038
      %v1090 = vunpack.c.l.s4 1934713408
      %v1091 = vunpack.c.0.s8 %v1090
      %v1092 = vlaneseq
      %v1093 = vshrl.u32 %v1092, 7
      %v1094 = vsub.s32 %v1091, %v1093
      %v1095 = vrot.slane %v1087, %v1094
      %v1097 = vunpack.c.l.s4 1934713408
      %v1098 = vunpack.c.0.s8 %v1097
      %v1099 = vlaneseq
      %v1100 = vshrl.u32 %v1099, 7
      %v1101 = vsub.s32 %v1098, %v1100
      %v1102 = vrot.slane %v1088, %v1101
      %v1103 = vcombine.low %v1047, %v1079
      %v1104 = vcombine.high %v1047, %v1079
      %v1105 = vcombine.low %v1054, %v1086
      %v1106 = vcombine.high %v1054, %v1086
      %v1107 = vcombine.low %v1063, %v1095
      %v1108 = vcombine.high %v1063, %v1095
      %v1109 = vcombine.low %v1070, %v1102
      %v1110 = vcombine.high %v1070, %v1102
      %v1111 = vcombine.low %v746, %v758
      %v1112 = vcombine.high %v746, %v758
      %v1114 = vunpack.c.l.s4 1983009808
      %v1115 = vunpack.c.0.s8 %v1114
      %v1116 = vlaneseq
      %v1117 = vshrl.u32 %v1116, 7
      %v1118 = vsub.s32 %v1115, %v1117
      %v1119 = vrot.slane %v1111, %v1118
      %v1121 = vunpack.c.l.s4 1983009808
      %v1122 = vunpack.c.0.s8 %v1121
      %v1123 = vlaneseq
      %v1124 = vshrl.u32 %v1123, 7
      %v1125 = vsub.s32 %v1122, %v1124
      %v1126 = vrot.slane %v1112, %v1125
      %v1127 = vcombine.low %v752, %v764
      %v1128 = vcombine.high %v752, %v764
      %v1130 = vunpack.c.l.s4 1983009808
      %v1131 = vunpack.c.0.s8 %v1130
      %v1132 = vlaneseq
      %v1133 = vshrl.u32 %v1132, 7
      %v1134 = vsub.s32 %v1131, %v1133
      %v1135 = vrot.slane %v1127, %v1134
      %v1137 = vunpack.c.l.s4 1983009808
      %v1138 = vunpack.c.0.s8 %v1137
      %v1139 = vlaneseq
      %v1140 = vshrl.u32 %v1139, 7
      %v1141 = vsub.s32 %v1138, %v1140
      %v1142 = vrot.slane %v1128, %v1141
      %v1143 = vcombine.low %v770, %v782
      %v1144 = vcombine.high %v770, %v782
      %v1146 = vunpack.c.l.s4 1983009808
      %v1147 = vunpack.c.0.s8 %v1146
      %v1148 = vlaneseq
      %v1149 = vshrl.u32 %v1148, 7
      %v1150 = vsub.s32 %v1147, %v1149
      %v1151 = vrot.slane %v1143, %v1150
      %v1153 = vunpack.c.l.s4 1983009808
      %v1154 = vunpack.c.0.s8 %v1153
      %v1155 = vlaneseq
      %v1156 = vshrl.u32 %v1155, 7
      %v1157 = vsub.s32 %v1154, %v1156
      %v1158 = vrot.slane %v1144, %v1157
      %v1159 = vcombine.low %v776, %v788
      %v1160 = vcombine.high %v776, %v788
      %v1162 = vunpack.c.l.s4 1983009808
      %v1163 = vunpack.c.0.s8 %v1162
      %v1164 = vlaneseq
      %v1165 = vshrl.u32 %v1164, 7
      %v1166 = vsub.s32 %v1163, %v1165
      %v1167 = vrot.slane %v1159, %v1166
      %v1169 = vunpack.c.l.s4 1983009808
      %v1170 = vunpack.c.0.s8 %v1169
      %v1171 = vlaneseq
      %v1172 = vshrl.u32 %v1171, 7
      %v1173 = vsub.s32 %v1170, %v1172
      %v1174 = vrot.slane %v1160, %v1173
      %v1175 = vcombine.low %v1119, %v1135
      %v1176 = vcombine.high %v1119, %v1135
      %v1178 = vunpack.c.l.s4 1934713408
      %v1179 = vunpack.c.0.s8 %v1178
      %v1180 = vlaneseq
      %v1181 = vshrl.u32 %v1180, 7
      %v1182 = vsub.s32 %v1179, %v1181
      %v1183 = vrot.slane %v1175, %v1182
      %v1185 = vunpack.c.l.s4 1934713408
      %v1186 = vunpack.c.0.s8 %v1185
      %v1187 = vlaneseq
      %v1188 = vshrl.u32 %v1187, 7
      %v1189 = vsub.s32 %v1186, %v1188
      %v1190 = vrot.slane %v1176, %v1189
      %v1191 = vcombine.low %v1126, %v1142
      %v1192 = vcombine.high %v1126, %v1142
      %v1194 = vunpack.c.l.s4 1934713408
      %v1195 = vunpack.c.0.s8 %v1194
      %v1196 = vlaneseq
      %v1197 = vshrl.u32 %v1196, 7
      %v1198 = vsub.s32 %v1195, %v1197
      %v1199 = vrot.slane %v1191, %v1198
      %v1201 = vunpack.c.l.s4 1934713408
      %v1202 = vunpack.c.0.s8 %v1201
      %v1203 = vlaneseq
      %v1204 = vshrl.u32 %v1203, 7
      %v1205 = vsub.s32 %v1202, %v1204
      %v1206 = vrot.slane %v1192, %v1205
      %v1207 = vcombine.low %v1151, %v1167
      %v1208 = vcombine.high %v1151, %v1167
      %v1210 = vunpack.c.l.s4 1934713408
      %v1211 = vunpack.c.0.s8 %v1210
      %v1212 = vlaneseq
      %v1213 = vshrl.u32 %v1212, 7
      %v1214 = vsub.s32 %v1211, %v1213
      %v1215 = vrot.slane %v1207, %v1214
      %v1217 = vunpack.c.l.s4 1934713408
      %v1218 = vunpack.c.0.s8 %v1217
      %v1219 = vlaneseq
      %v1220 = vshrl.u32 %v1219, 7
      %v1221 = vsub.s32 %v1218, %v1220
      %v1222 = vrot.slane %v1208, %v1221
      %v1223 = vcombine.low %v1158, %v1174
      %v1224 = vcombine.high %v1158, %v1174
      %v1226 = vunpack.c.l.s4 1934713408
      %v1227 = vunpack.c.0.s8 %v1226
      %v1228 = vlaneseq
      %v1229 = vshrl.u32 %v1228, 7
      %v1230 = vsub.s32 %v1227, %v1229
      %v1231 = vrot.slane %v1223, %v1230
      %v1233 = vunpack.c.l.s4 1934713408
      %v1234 = vunpack.c.0.s8 %v1233
      %v1235 = vlaneseq
      %v1236 = vshrl.u32 %v1235, 7
      %v1237 = vsub.s32 %v1234, %v1236
      %v1238 = vrot.slane %v1224, %v1237
      %v1239 = vcombine.low %v1183, %v1215
      %v1240 = vcombine.high %v1183, %v1215
      %v1241 = vcombine.low %v1190, %v1222
      %v1242 = vcombine.high %v1190, %v1222
      %v1243 = vcombine.low %v1199, %v1231
      %v1244 = vcombine.high %v1199, %v1231
      %v1245 = vcombine.low %v1206, %v1238
      %v1246 = vcombine.high %v1206, %v1238
      %v1247 = vcombine.low %v794, %v806
      %v1248 = vcombine.high %v794, %v806
      %v1250 = vunpack.c.l.s4 1983009808
      %v1251 = vunpack.c.0.s8 %v1250
      %v1252 = vlaneseq
      %v1253 = vshrl.u32 %v1252, 7
      %v1254 = vsub.s32 %v1251, %v1253
      %v1255 = vrot.slane %v1247, %v1254
      %v1257 = vunpack.c.l.s4 1983009808
      %v1258 = vunpack.c.0.s8 %v1257
      %v1259 = vlaneseq
      %v1260 = vshrl.u32 %v1259, 7
      %v1261 = vsub.s32 %v1258, %v1260
      %v1262 = vrot.slane %v1248, %v1261
      %v1263 = vcombine.low %v800, %v812
      %v1264 = vcombine.high %v800, %v812
      %v1266 = vunpack.c.l.s4 1983009808
      %v1267 = vunpack.c.0.s8 %v1266
      %v1268 = vlaneseq
      %v1269 = vshrl.u32 %v1268, 7
      %v1270 = vsub.s32 %v1267, %v1269
      %v1271 = vrot.slane %v1263, %v1270
      %v1273 = vunpack.c.l.s4 1983009808
      %v1274 = vunpack.c.0.s8 %v1273
      %v1275 = vlaneseq
      %v1276 = vshrl.u32 %v1275, 7
      %v1277 = vsub.s32 %v1274, %v1276
      %v1278 = vrot.slane %v1264, %v1277
      %v1279 = vcombine.low %v818, %v830
      %v1280 = vcombine.high %v818, %v830
      %v1282 = vunpack.c.l.s4 1983009808
      %v1283 = vunpack.c.0.s8 %v1282
      %v1284 = vlaneseq
      %v1285 = vshrl.u32 %v1284, 7
      %v1286 = vsub.s32 %v1283, %v1285
      %v1287 = vrot.slane %v1279, %v1286
      %v1289 = vunpack.c.l.s4 1983009808
      %v1290 = vunpack.c.0.s8 %v1289
      %v1291 = vlaneseq
      %v1292 = vshrl.u32 %v1291, 7
      %v1293 = vsub.s32 %v1290, %v1292
      %v1294 = vrot.slane %v1280, %v1293
      %v1295 = vcombine.low %v824, %v836
      %v1296 = vcombine.high %v824, %v836
      %v1298 = vunpack.c.l.s4 1983009808
      %v1299 = vunpack.c.0.s8 %v1298
      %v1300 = vlaneseq
      %v1301 = vshrl.u32 %v1300, 7
      %v1302 = vsub.s32 %v1299, %v1301
      %v1303 = vrot.slane %v1295, %v1302
      %v1305 = vunpack.c.l.s4 1983009808
      %v1306 = vunpack.c.0.s8 %v1305
      %v1307 = vlaneseq
      %v1308 = vshrl.u32 %v1307, 7
      %v1309 = vsub.s32 %v1306, %v1308
      %v1310 = vrot.slane %v1296, %v1309
      %v1311 = vcombine.low %v1255, %v1271
      %v1312 = vcombine.high %v1255, %v1271
      %v1314 = vunpack.c.l.s4 1934713408
      %v1315 = vunpack.c.0.s8 %v1314
      %v1316 = vlaneseq
      %v1317 = vshrl.u32 %v1316, 7
      %v1318 = vsub.s32 %v1315, %v1317
      %v1319 = vrot.slane %v1311, %v1318
      %v1321 = vunpack.c.l.s4 1934713408
      %v1322 = vunpack.c.0.s8 %v1321
      %v1323 = vlaneseq
      %v1324 = vshrl.u32 %v1323, 7
      %v1325 = vsub.s32 %v1322, %v1324
      %v1326 = vrot.slane %v1312, %v1325
      %v1327 = vcombine.low %v1262, %v1278
      %v1328 = vcombine.high %v1262, %v1278
      %v1330 = vunpack.c.l.s4 1934713408
      %v1331 = vunpack.c.0.s8 %v1330
      %v1332 = vlaneseq
      %v1333 = vshrl.u32 %v1332, 7
      %v1334 = vsub.s32 %v1331, %v1333
      %v1335 = vrot.slane %v1327, %v1334
      %v1337 = vunpack.c.l.s4 1934713408
      %v1338 = vunpack.c.0.s8 %v1337
      %v1339 = vlaneseq
      %v1340 = vshrl.u32 %v1339, 7
      %v1341 = vsub.s32 %v1338, %v1340
      %v1342 = vrot.slane %v1328, %v1341
      %v1343 = vcombine.low %v1287, %v1303
      %v1344 = vcombine.high %v1287, %v1303
      %v1346 = vunpack.c.l.s4 1934713408
      %v1347 = vunpack.c.0.s8 %v1346
      %v1348 = vlaneseq
      %v1349 = vshrl.u32 %v1348, 7
      %v1350 = vsub.s32 %v1347, %v1349
      %v1351 = vrot.slane %v1343, %v1350
      %v1353 = vunpack.c.l.s4 1934713408
      %v1354 = vunpack.c.0.s8 %v1353
      %v1355 = vlaneseq
      %v1356 = vshrl.u32 %v1355, 7
      %v1357 = vsub.s32 %v1354, %v1356
      %v1358 = vrot.slane %v1344, %v1357
      %v1359 = vcombine.low %v1294, %v1310
      %v1360 = vcombine.high %v1294, %v1310
      %v1362 = vunpack.c.l.s4 1934713408
      %v1363 = vunpack.c.0.s8 %v1362
      %v1364 = vlaneseq
      %v1365 = vshrl.u32 %v1364, 7
      %v1366 = vsub.s32 %v1363, %v1365
      %v1367 = vrot.slane %v1359, %v1366
      %v1369 = vunpack.c.l.s4 1934713408
      %v1370 = vunpack.c.0.s8 %v1369
      %v1371 = vlaneseq
      %v1372 = vshrl.u32 %v1371, 7
      %v1373 = vsub.s32 %v1370, %v1372
      %v1374 = vrot.slane %v1360, %v1373
      %v1375 = vcombine.low %v1319, %v1351
      %v1376 = vcombine.high %v1319, %v1351
      %v1377 = vcombine.low %v1326, %v1358
      %v1378 = vcombine.high %v1326, %v1358
      %v1379 = vcombine.low %v1335, %v1367
      %v1380 = vcombine.high %v1335, %v1367
      %v1381 = vcombine.low %v1342, %v1374
      %v1382 = vcombine.high %v1342, %v1374
      %v1383 = vpack.c.bf16 %v1103, %v967
      %v1384 = vpack.c.bf16 %v1104, %v968
      %v1385 = vpack.c.bf16 %v1105, %v969
      %v1386 = vpack.c.bf16 %v1106, %v970
      %v1387 = vpack.c.bf16 %v1107, %v971
      %v1388 = vpack.c.bf16 %v1108, %v972
      %v1389 = vpack.c.bf16 %v1109, %v973
      %v1390 = vpack.c.bf16 %v1110, %v974
      %v1391 = vpack.c.bf16 %v1375, %v1239
      %v1392 = vpack.c.bf16 %v1376, %v1240
      %v1393 = vpack.c.bf16 %v1377, %v1241
      %v1394 = vpack.c.bf16 %v1378, %v1242
      %v1395 = vpack.c.bf16 %v1379, %v1243
      %v1396 = vpack.c.bf16 %v1380, %v1244
      %v1397 = vpack.c.bf16 %v1381, %v1245
      %v1398 = vpack.c.bf16 %v1382, %v1246
      %v1415 = vunpack.c.l.b16 %v1383
      %v1416 = vunpack.c.h.b16 %v1383
      %v1417 = vunpack.c.l.b16 %v1384
      %v1418 = vunpack.c.h.b16 %v1384
      %v1419 = vunpack.c.l.b16 %v1385
      %v1420 = vunpack.c.h.b16 %v1385
      %v1421 = vunpack.c.l.b16 %v1386
      %v1422 = vunpack.c.h.b16 %v1386
      %v1423 = vunpack.c.l.b16 %v1387
      %v1424 = vunpack.c.h.b16 %v1387
      %v1425 = vunpack.c.l.b16 %v1388
      %v1426 = vunpack.c.h.b16 %v1388
      %v1427 = vunpack.c.l.b16 %v1389
      %v1428 = vunpack.c.h.b16 %v1389
      %v1429 = vunpack.c.l.b16 %v1390
      %v1430 = vunpack.c.h.b16 %v1390
      %v1431 = vunpack.c.l.b16 %v1391
      %v1432 = vunpack.c.h.b16 %v1391
      %v1433 = vunpack.c.l.b16 %v1392
      %v1434 = vunpack.c.h.b16 %v1392
      %v1435 = vunpack.c.l.b16 %v1393
      %v1436 = vunpack.c.h.b16 %v1393
      %v1437 = vunpack.c.l.b16 %v1394
      %v1438 = vunpack.c.h.b16 %v1394
      %v1439 = vunpack.c.l.b16 %v1395
      %v1440 = vunpack.c.h.b16 %v1395
      %v1441 = vunpack.c.l.b16 %v1396
      %v1442 = vunpack.c.h.b16 %v1396
      %v1443 = vunpack.c.l.b16 %v1397
      %v1444 = vunpack.c.h.b16 %v1397
      %v1445 = vunpack.c.l.b16 %v1398
      %v1446 = vunpack.c.h.b16 %v1398
      %v1447 = vpack.c.b16 %v1415, %v1415
      %v1448 = vpack.c.b16 %v1416, %v1416
      %v1449 = vpack.c.b16 %v1417, %v1417
      %v1450 = vpack.c.b16 %v1418, %v1418
      %v1451 = vpack.c.b16 %v1419, %v1419
      %v1452 = vpack.c.b16 %v1420, %v1420
      %v1453 = vpack.c.b16 %v1421, %v1421
      %v1454 = vpack.c.b16 %v1422, %v1422
      %v1455 = vpack.c.b16 %v1423, %v1423
      %v1456 = vpack.c.b16 %v1424, %v1424
      %v1457 = vpack.c.b16 %v1425, %v1425
      %v1458 = vpack.c.b16 %v1426, %v1426
      %v1459 = vpack.c.b16 %v1427, %v1427
      %v1460 = vpack.c.b16 %v1428, %v1428
      %v1461 = vpack.c.b16 %v1429, %v1429
      %v1462 = vpack.c.b16 %v1430, %v1430
      %v1463 = vpack.c.b16 %v1431, %v1431
      %v1464 = vpack.c.b16 %v1432, %v1432
      %v1465 = vpack.c.b16 %v1433, %v1433
      %v1466 = vpack.c.b16 %v1434, %v1434
      %v1467 = vpack.c.b16 %v1435, %v1435
      %v1468 = vpack.c.b16 %v1436, %v1436
      %v1469 = vpack.c.b16 %v1437, %v1437
      %v1470 = vpack.c.b16 %v1438, %v1438
      %v1471 = vpack.c.b16 %v1439, %v1439
      %v1472 = vpack.c.b16 %v1440, %v1440
      %v1473 = vpack.c.b16 %v1441, %v1441
      %v1474 = vpack.c.b16 %v1442, %v1442
      %v1475 = vpack.c.b16 %v1443, %v1443
      %v1476 = vpack.c.b16 %v1444, %v1444
      %v1477 = vpack.c.b16 %v1445, %v1445
      %v1478 = vpack.c.b16 %v1446, %v1446
      %vm1479 = vsmask.f32 4368
      %vm1480 = vmor %vm398, %vm1479
      %v1482 = vshrl.u32 %v1447, 16
      %v1484 = vrot.slane %v1482, 7
      %v1485 = vshll.u32 %v1447, 16
      %v1487 = vor.u32 %v1484, %v1485
      %v1488 = vrot.slane %v1484, 4
      %v1490 = vshrl.u32 %v1448, 16
      %v1492 = vrot.slane %v1490, 7
      %v1493 = vshll.u32 %v1448, 16
      %v1495 = vor.u32 %v1492, %v1493
      %v1496 = vsel %vm1480, %v1488, %v1495
      %v1497 = vrot.slane %v1492, 4
      %v1499 = vshrl.u32 %v1449, 16
      %v1501 = vrot.slane %v1499, 7
      %v1502 = vshll.u32 %v1449, 16
      %v1504 = vor.u32 %v1501, %v1502
      %v1505 = vrot.slane %v1501, 4
      %v1507 = vshrl.u32 %v1450, 16
      %v1509 = vrot.slane %v1507, 7
      %v1510 = vshll.u32 %v1450, 16
      %v1512 = vor.u32 %v1509, %v1510
      %v1513 = vsel %vm1480, %v1505, %v1512
      %v1514 = vrot.slane %v1509, 4
      %v1516 = vshrl.u32 %v1451, 16
      %v1518 = vrot.slane %v1516, 7
      %v1519 = vshll.u32 %v1451, 16
      %v1521 = vor.u32 %v1518, %v1519
      %v1522 = vrot.slane %v1518, 4
      %v1524 = vshrl.u32 %v1452, 16
      %v1526 = vrot.slane %v1524, 7
      %v1527 = vshll.u32 %v1452, 16
      %v1529 = vor.u32 %v1526, %v1527
      %v1530 = vsel %vm1480, %v1522, %v1529
      %v1531 = vrot.slane %v1526, 4
      %v1533 = vshrl.u32 %v1453, 16
      %v1535 = vrot.slane %v1533, 7
      %v1536 = vshll.u32 %v1453, 16
      %v1538 = vor.u32 %v1535, %v1536
      %v1539 = vrot.slane %v1535, 4
      %v1541 = vshrl.u32 %v1454, 16
      %v1543 = vrot.slane %v1541, 7
      %v1544 = vshll.u32 %v1454, 16
      %v1546 = vor.u32 %v1543, %v1544
      %v1547 = vsel %vm1480, %v1539, %v1546
      %v1548 = vrot.slane %v1543, 4
      %v1550 = vshrl.u32 %v1455, 16
      %v1552 = vrot.slane %v1550, 7
      %v1553 = vshll.u32 %v1455, 16
      %v1555 = vor.u32 %v1552, %v1553
      %v1556 = vrot.slane %v1552, 4
      %v1558 = vshrl.u32 %v1456, 16
      %v1560 = vrot.slane %v1558, 7
      %v1561 = vshll.u32 %v1456, 16
      %v1563 = vor.u32 %v1560, %v1561
      %v1564 = vsel %vm1480, %v1556, %v1563
      %v1565 = vrot.slane %v1560, 4
      %v1567 = vshrl.u32 %v1457, 16
      %v1569 = vrot.slane %v1567, 7
      %v1570 = vshll.u32 %v1457, 16
      %v1572 = vor.u32 %v1569, %v1570
      %v1573 = vrot.slane %v1569, 4
      %v1575 = vshrl.u32 %v1458, 16
      %v1577 = vrot.slane %v1575, 7
      %v1578 = vshll.u32 %v1458, 16
      %v1580 = vor.u32 %v1577, %v1578
      %v1581 = vsel %vm1480, %v1573, %v1580
      %v1582 = vrot.slane %v1577, 4
      %v1584 = vshrl.u32 %v1459, 16
      %v1586 = vrot.slane %v1584, 7
      %v1587 = vshll.u32 %v1459, 16
      %v1589 = vor.u32 %v1586, %v1587
      %v1590 = vrot.slane %v1586, 4
      %v1592 = vshrl.u32 %v1460, 16
      %v1594 = vrot.slane %v1592, 7
      %v1595 = vshll.u32 %v1460, 16
      %v1597 = vor.u32 %v1594, %v1595
      %v1598 = vsel %vm1480, %v1590, %v1597
      %v1599 = vrot.slane %v1594, 4
      %v1601 = vshrl.u32 %v1461, 16
      %v1603 = vrot.slane %v1601, 7
      %v1604 = vshll.u32 %v1461, 16
      %v1606 = vor.u32 %v1603, %v1604
      %v1607 = vrot.slane %v1603, 4
      %v1609 = vshrl.u32 %v1462, 16
      %v1611 = vrot.slane %v1609, 7
      %v1612 = vshll.u32 %v1462, 16
      %v1614 = vor.u32 %v1611, %v1612
      %v1615 = vsel %vm1480, %v1607, %v1614
      %v1616 = vrot.slane %v1611, 4
      %v1618 = vshrl.u32 %v1463, 16
      %v1620 = vrot.slane %v1618, 7
      %v1621 = vshll.u32 %v1463, 16
      %v1623 = vor.u32 %v1620, %v1621
      %v1624 = vrot.slane %v1620, 4
      %v1626 = vshrl.u32 %v1464, 16
      %v1628 = vrot.slane %v1626, 7
      %v1629 = vshll.u32 %v1464, 16
      %v1631 = vor.u32 %v1628, %v1629
      %v1632 = vsel %vm1480, %v1624, %v1631
      %v1633 = vrot.slane %v1628, 4
      %v1635 = vshrl.u32 %v1465, 16
      %v1637 = vrot.slane %v1635, 7
      %v1638 = vshll.u32 %v1465, 16
      %v1640 = vor.u32 %v1637, %v1638
      %v1641 = vrot.slane %v1637, 4
      %v1643 = vshrl.u32 %v1466, 16
      %v1645 = vrot.slane %v1643, 7
      %v1646 = vshll.u32 %v1466, 16
      %v1648 = vor.u32 %v1645, %v1646
      %v1649 = vsel %vm1480, %v1641, %v1648
      %v1650 = vrot.slane %v1645, 4
      %v1652 = vshrl.u32 %v1467, 16
      %v1654 = vrot.slane %v1652, 7
      %v1655 = vshll.u32 %v1467, 16
      %v1657 = vor.u32 %v1654, %v1655
      %v1658 = vrot.slane %v1654, 4
      %v1660 = vshrl.u32 %v1468, 16
      %v1662 = vrot.slane %v1660, 7
      %v1663 = vshll.u32 %v1468, 16
      %v1665 = vor.u32 %v1662, %v1663
      %v1666 = vsel %vm1480, %v1658, %v1665
      %v1667 = vrot.slane %v1662, 4
      %v1669 = vshrl.u32 %v1469, 16
      %v1671 = vrot.slane %v1669, 7
      %v1672 = vshll.u32 %v1469, 16
      %v1674 = vor.u32 %v1671, %v1672
      %v1675 = vrot.slane %v1671, 4
      %v1677 = vshrl.u32 %v1470, 16
      %v1679 = vrot.slane %v1677, 7
      %v1680 = vshll.u32 %v1470, 16
      %v1682 = vor.u32 %v1679, %v1680
      %v1683 = vsel %vm1480, %v1675, %v1682
      %v1684 = vrot.slane %v1679, 4
      %v1686 = vshrl.u32 %v1471, 16
      %v1688 = vrot.slane %v1686, 7
      %v1689 = vshll.u32 %v1471, 16
      %v1691 = vor.u32 %v1688, %v1689
      %v1692 = vrot.slane %v1688, 4
      %v1694 = vshrl.u32 %v1472, 16
      %v1696 = vrot.slane %v1694, 7
      %v1697 = vshll.u32 %v1472, 16
      %v1699 = vor.u32 %v1696, %v1697
      %v1700 = vsel %vm1480, %v1692, %v1699
      %v1701 = vrot.slane %v1696, 4
      %v1703 = vshrl.u32 %v1473, 16
      %v1705 = vrot.slane %v1703, 7
      %v1706 = vshll.u32 %v1473, 16
      %v1708 = vor.u32 %v1705, %v1706
      %v1709 = vrot.slane %v1705, 4
      %v1711 = vshrl.u32 %v1474, 16
      %v1713 = vrot.slane %v1711, 7
      %v1714 = vshll.u32 %v1474, 16
      %v1716 = vor.u32 %v1713, %v1714
      %v1717 = vsel %vm1480, %v1709, %v1716
      %v1718 = vrot.slane %v1713, 4
      %v1720 = vshrl.u32 %v1475, 16
      %v1722 = vrot.slane %v1720, 7
      %v1723 = vshll.u32 %v1475, 16
      %v1725 = vor.u32 %v1722, %v1723
      %v1726 = vrot.slane %v1722, 4
      %v1728 = vshrl.u32 %v1476, 16
      %v1730 = vrot.slane %v1728, 7
      %v1731 = vshll.u32 %v1476, 16
      %v1733 = vor.u32 %v1730, %v1731
      %v1734 = vsel %vm1480, %v1726, %v1733
      %v1735 = vrot.slane %v1730, 4
      %v1737 = vshrl.u32 %v1477, 16
      %v1739 = vrot.slane %v1737, 7
      %v1740 = vshll.u32 %v1477, 16
      %v1742 = vor.u32 %v1739, %v1740
      %v1743 = vrot.slane %v1739, 4
      %v1745 = vshrl.u32 %v1478, 16
      %v1747 = vrot.slane %v1745, 7
      %v1748 = vshll.u32 %v1478, 16
      %v1750 = vor.u32 %v1747, %v1748
      %v1751 = vsel %vm1480, %v1743, %v1750
      %v1752 = vrot.slane %v1747, 4
      %s1801 = scalar_lea.vmem [#allocation2], 12
      %vm1802 = vcmask 60416
      %vm1803 = vmand %vm1802, %vm454
      %v1804 = vld [vmem:[%s1801] sm:$0xf]
      %v1805 = vsel %vm1803, %v1487, %v1804
      %1806 = vst [vmem:[%s1801] sm:$0xf] %v1805
      %1807 = vst.msk [vmem:[%s1801 + $0x4] sm:$0xf] %vm388, %v1496
      %v1808 = vld [vmem:[%s1801 + $0x8] sm:$0x1]
      %v1809 = vsel %vm399, %v1497, %v1808
      %1810 = vst [vmem:[%s1801 + $0x8] sm:$0x1] %v1809
      %v1811 = vld [vmem:[%s1801 + $0xc] sm:$0xf]
      %v1812 = vsel %vm1803, %v1504, %v1811
      %1813 = vst [vmem:[%s1801 + $0xc] sm:$0xf] %v1812
      %1814 = vst.msk [vmem:[%s1801 + $0x10] sm:$0xf] %vm388, %v1513
      %v1815 = vld [vmem:[%s1801 + $0x14] sm:$0x1]
      %v1816 = vsel %vm399, %v1514, %v1815
      %1817 = vst [vmem:[%s1801 + $0x14] sm:$0x1] %v1816
      %v1818 = vld [vmem:[%s1801 + $0x18] sm:$0xf]
      %v1819 = vsel %vm1803, %v1521, %v1818
      %1820 = vst [vmem:[%s1801 + $0x18] sm:$0xf] %v1819
      %1821 = vst.msk [vmem:[%s1801 + $0x1c] sm:$0xf] %vm388, %v1530
      %v1822 = vld [vmem:[%s1801 + $0x20] sm:$0x1]
      %v1823 = vsel %vm399, %v1531, %v1822
      %1824 = vst [vmem:[%s1801 + $0x20] sm:$0x1] %v1823
      %v1825 = vld [vmem:[%s1801 + $0x24] sm:$0xf]
      %v1826 = vsel %vm1803, %v1538, %v1825
      %1827 = vst [vmem:[%s1801 + $0x24] sm:$0xf] %v1826
      %1828 = vst.msk [vmem:[%s1801 + $0x28] sm:$0xf] %vm388, %v1547
      %v1829 = vld [vmem:[%s1801 + $0x2c] sm:$0x1]
      %v1830 = vsel %vm399, %v1548, %v1829
      %1831 = vst [vmem:[%s1801 + $0x2c] sm:$0x1] %v1830
      %v1832 = vld [vmem:[%s1801 + $0x30] sm:$0xf]
      %v1833 = vsel %vm1803, %v1555, %v1832
      %1834 = vst [vmem:[%s1801 + $0x30] sm:$0xf] %v1833
      %1835 = vst.msk [vmem:[%s1801 + $0x34] sm:$0xf] %vm388, %v1564
      %v1836 = vld [vmem:[%s1801 + $0x38] sm:$0x1]
      %v1837 = vsel %vm399, %v1565, %v1836
      %1838 = vst [vmem:[%s1801 + $0x38] sm:$0x1] %v1837
      %v1839 = vld [vmem:[%s1801 + $0x3c] sm:$0xf]
      %v1840 = vsel %vm1803, %v1572, %v1839
      %1841 = vst [vmem:[%s1801 + $0x3c] sm:$0xf] %v1840
      %1842 = vst.msk [vmem:[%s1801 + $0x40] sm:$0xf] %vm388, %v1581
      %v1843 = vld [vmem:[%s1801 + $0x44] sm:$0x1]
      %v1844 = vsel %vm399, %v1582, %v1843
      %1845 = vst [vmem:[%s1801 + $0x44] sm:$0x1] %v1844
      %v1846 = vld [vmem:[%s1801 + $0x48] sm:$0xf]
      %v1847 = vsel %vm1803, %v1589, %v1846
      %1848 = vst [vmem:[%s1801 + $0x48] sm:$0xf] %v1847
      %1849 = vst.msk [vmem:[%s1801 + $0x4c] sm:$0xf] %vm388, %v1598
      %v1850 = vld [vmem:[%s1801 + $0x50] sm:$0x1]
      %v1851 = vsel %vm399, %v1599, %v1850
      %1852 = vst [vmem:[%s1801 + $0x50] sm:$0x1] %v1851
      %v1853 = vld [vmem:[%s1801 + $0x54] sm:$0xf]
      %v1854 = vsel %vm1803, %v1606, %v1853
      %1855 = vst [vmem:[%s1801 + $0x54] sm:$0xf] %v1854
      %1856 = vst.msk [vmem:[%s1801 + $0x58] sm:$0xf] %vm388, %v1615
      %v1857 = vld [vmem:[%s1801 + $0x5c] sm:$0x1]
      %v1858 = vsel %vm399, %v1616, %v1857
      %1859 = vst [vmem:[%s1801 + $0x5c] sm:$0x1] %v1858
      %v1860 = vld [vmem:[%s1801 + $0x60] sm:$0xf]
      %v1861 = vsel %vm1803, %v1623, %v1860
      %1862 = vst [vmem:[%s1801 + $0x60] sm:$0xf] %v1861
      %1863 = vst.msk [vmem:[%s1801 + $0x64] sm:$0xf] %vm388, %v1632
      %v1864 = vld [vmem:[%s1801 + $0x68] sm:$0x1]
      %v1865 = vsel %vm399, %v1633, %v1864
      %1866 = vst [vmem:[%s1801 + $0x68] sm:$0x1] %v1865
      %v1867 = vld [vmem:[%s1801 + $0x6c] sm:$0xf]
      %v1868 = vsel %vm1803, %v1640, %v1867
      %1869 = vst [vmem:[%s1801 + $0x6c] sm:$0xf] %v1868
      %1870 = vst.msk [vmem:[%s1801 + $0x70] sm:$0xf] %vm388, %v1649
      %v1871 = vld [vmem:[%s1801 + $0x74] sm:$0x1]
      %v1872 = vsel %vm399, %v1650, %v1871
      %1873 = vst [vmem:[%s1801 + $0x74] sm:$0x1] %v1872
      %v1874 = vld [vmem:[%s1801 + $0x78] sm:$0xf]
      %v1875 = vsel %vm1803, %v1657, %v1874
      %1876 = vst [vmem:[%s1801 + $0x78] sm:$0xf] %v1875
      %1877 = vst.msk [vmem:[%s1801 + $0x7c] sm:$0xf] %vm388, %v1666
      %v1878 = vld [vmem:[%s1801 + $0x80] sm:$0x1]
      %v1879 = vsel %vm399, %v1667, %v1878
      %1880 = vst [vmem:[%s1801 + $0x80] sm:$0x1] %v1879
      %v1881 = vld [vmem:[%s1801 + $0x84] sm:$0xf]
      %v1882 = vsel %vm1803, %v1674, %v1881
      %1883 = vst [vmem:[%s1801 + $0x84] sm:$0xf] %v1882
      %1884 = vst.msk [vmem:[%s1801 + $0x88] sm:$0xf] %vm388, %v1683
      %v1885 = vld [vmem:[%s1801 + $0x8c] sm:$0x1]
      %v1886 = vsel %vm399, %v1684, %v1885
      %1887 = vst [vmem:[%s1801 + $0x8c] sm:$0x1] %v1886
      %v1888 = vld [vmem:[%s1801 + $0x90] sm:$0xf]
      %v1889 = vsel %vm1803, %v1691, %v1888
      %1890 = vst [vmem:[%s1801 + $0x90] sm:$0xf] %v1889
      %1891 = vst.msk [vmem:[%s1801 + $0x94] sm:$0xf] %vm388, %v1700
      %v1892 = vld [vmem:[%s1801 + $0x98] sm:$0x1]
      %v1893 = vsel %vm399, %v1701, %v1892
      %1894 = vst [vmem:[%s1801 + $0x98] sm:$0x1] %v1893
      %v1895 = vld [vmem:[%s1801 + $0x9c] sm:$0xf]
      %v1896 = vsel %vm1803, %v1708, %v1895
      %1897 = vst [vmem:[%s1801 + $0x9c] sm:$0xf] %v1896
      %1898 = vst.msk [vmem:[%s1801 + $0xa0] sm:$0xf] %vm388, %v1717
      %v1899 = vld [vmem:[%s1801 + $0xa4] sm:$0x1]
      %v1900 = vsel %vm399, %v1718, %v1899
      %1901 = vst [vmem:[%s1801 + $0xa4] sm:$0x1] %v1900
      %v1902 = vld [vmem:[%s1801 + $0xa8] sm:$0xf]
      %v1903 = vsel %vm1803, %v1725, %v1902
      %1904 = vst [vmem:[%s1801 + $0xa8] sm:$0xf] %v1903
      %1905 = vst.msk [vmem:[%s1801 + $0xac] sm:$0xf] %vm388, %v1734
      %v1906 = vld [vmem:[%s1801 + $0xb0] sm:$0x1]
      %v1907 = vsel %vm399, %v1735, %v1906
      %1908 = vst [vmem:[%s1801 + $0xb0] sm:$0x1] %v1907
      %v1909 = vld [vmem:[%s1801 + $0xb4] sm:$0xf]
      %v1910 = vsel %vm1803, %v1742, %v1909
      %1911 = vst [vmem:[%s1801 + $0xb4] sm:$0xf] %v1910
      %1912 = vst.msk [vmem:[%s1801 + $0xb8] sm:$0xf] %vm388, %v1751
      %v1913 = vld [vmem:[%s1801 + $0xbc] sm:$0x1]
      %v1914 = vsel %vm399, %v1752, %v1913
      %1915 = vst [vmem:[%s1801 + $0xbc] sm:$0x1] %v1914
      %v1916 = vld [vmem:[#allocation2] sm:$0xf]
      %v1917 = vld [vmem:[#allocation2 + $0x4] sm:$0xf]
      %v1918 = vld [vmem:[#allocation2 + $0x8] sm:$0x1]
      %v1919 = vld [vmem:[#allocation2 + $0xc] sm:$0xf]
      %v1920 = vld [vmem:[#allocation2 + $0x10] sm:$0xf]
      %v1921 = vld [vmem:[#allocation2 + $0x14] sm:$0x1]
      %v1922 = vld [vmem:[#allocation2 + $0x18] sm:$0xf]
      %v1923 = vld [vmem:[#allocation2 + $0x1c] sm:$0xf]
      %v1924 = vld [vmem:[#allocation2 + $0x20] sm:$0x1]
      %v1925 = vld [vmem:[#allocation2 + $0x24] sm:$0xf]
      %v1926 = vld [vmem:[#allocation2 + $0x28] sm:$0xf]
      %v1927 = vld [vmem:[#allocation2 + $0x2c] sm:$0x1]
      %v1928 = vld [vmem:[#allocation2 + $0x30] sm:$0xf]
      %v1929 = vld [vmem:[#allocation2 + $0x34] sm:$0xf]
      %v1930 = vld [vmem:[#allocation2 + $0x38] sm:$0x1]
      %v1931 = vld [vmem:[#allocation2 + $0x3c] sm:$0xf]
      %v1932 = vld [vmem:[#allocation2 + $0x40] sm:$0xf]
      %v1933 = vld [vmem:[#allocation2 + $0x44] sm:$0x1]
      %v1934 = vld [vmem:[#allocation2 + $0x48] sm:$0xf]
      %v1935 = vld [vmem:[#allocation2 + $0x4c] sm:$0xf]
      %v1936 = vld [vmem:[#allocation2 + $0x50] sm:$0x1]
      %v1937 = vld [vmem:[#allocation2 + $0x54] sm:$0xf]
      %v1938 = vld [vmem:[#allocation2 + $0x58] sm:$0xf]
      %v1939 = vld [vmem:[#allocation2 + $0x5c] sm:$0x1]
      %v1940 = vld [vmem:[#allocation2 + $0x60] sm:$0xf]
      %v1941 = vld [vmem:[#allocation2 + $0x64] sm:$0xf]
      %v1942 = vld [vmem:[#allocation2 + $0x68] sm:$0x1]
      %v1943 = vld [vmem:[#allocation2 + $0x6c] sm:$0xf]
      %v1944 = vld [vmem:[#allocation2 + $0x70] sm:$0xf]
      %v1945 = vld [vmem:[#allocation2 + $0x74] sm:$0x1]
      %v1946 = vld [vmem:[#allocation2 + $0x78] sm:$0xf]
      %v1947 = vld [vmem:[#allocation2 + $0x7c] sm:$0xf]
      %v1948 = vld [vmem:[#allocation2 + $0x80] sm:$0x1]
      %v1949 = vld [vmem:[#allocation2 + $0x84] sm:$0xf]
      %v1950 = vld [vmem:[#allocation2 + $0x88] sm:$0xf]
      %v1951 = vld [vmem:[#allocation2 + $0x8c] sm:$0x1]
      %v1952 = vld [vmem:[#allocation2 + $0x90] sm:$0xf]
      %v1953 = vld [vmem:[#allocation2 + $0x94] sm:$0xf]
      %v1954 = vld [vmem:[#allocation2 + $0x98] sm:$0x1]
      %v1955 = vld [vmem:[#allocation2 + $0x9c] sm:$0xf]
      %v1956 = vld [vmem:[#allocation2 + $0xa0] sm:$0xf]
      %v1957 = vld [vmem:[#allocation2 + $0xa4] sm:$0x1]
      %v1958 = vld [vmem:[#allocation2 + $0xa8] sm:$0xf]
      %v1959 = vld [vmem:[#allocation2 + $0xac] sm:$0xf]
      %v1960 = vld [vmem:[#allocation2 + $0xb0] sm:$0x1]
      %v1961 = vld [vmem:[#allocation2 + $0xb4] sm:$0xf]
      %v1962 = vld [vmem:[#allocation2 + $0xb8] sm:$0xf]
      %v1963 = vld [vmem:[#allocation2 + $0xbc] sm:$0x1]
      %v1964 = vld [vmem:[#allocation2 + $0xc0] sm:$0xf]
      %v1965 = vld [vmem:[#allocation2 + $0xc4] sm:$0xf]
      %v1966 = vld [vmem:[#allocation2 + $0xc8] sm:$0x1]
      %v1967 = vld [vmem:[#allocation2 + $0xcc] sm:$0xf]
      %v1968 = vld [vmem:[#allocation2 + $0xd0] sm:$0xf]
      %v1969 = vld [vmem:[#allocation2 + $0xd4] sm:$0x1]
      %v2006 = vunpack.c.l.b16 %v1916
      %v2007 = vunpack.c.l.b16 %v1917
      %v2008 = vunpack.c.l.b16 %v1919
      %v2009 = vunpack.c.l.b16 %v1920
      %v2010 = vunpack.c.l.b16 %v1922
      %v2011 = vunpack.c.l.b16 %v1923
      %v2012 = vunpack.c.l.b16 %v1925
      %v2013 = vunpack.c.l.b16 %v1926
      %v2014 = vunpack.c.l.b16 %v1928
      %v2015 = vunpack.c.l.b16 %v1929
      %v2016 = vunpack.c.l.b16 %v1931
      %v2017 = vunpack.c.l.b16 %v1932
      %v2018 = vunpack.c.l.b16 %v1934
      %v2019 = vunpack.c.l.b16 %v1935
      %v2020 = vunpack.c.l.b16 %v1937
      %v2021 = vunpack.c.l.b16 %v1938
      %v2022 = vunpack.c.l.b16 %v1940
      %v2023 = vunpack.c.l.b16 %v1941
      %v2024 = vunpack.c.l.b16 %v1943
      %v2025 = vunpack.c.l.b16 %v1944
      %v2026 = vunpack.c.l.b16 %v1946
      %v2027 = vunpack.c.l.b16 %v1947
      %v2028 = vunpack.c.l.b16 %v1949
      %v2029 = vunpack.c.l.b16 %v1950
      %v2030 = vunpack.c.l.b16 %v1952
      %v2031 = vunpack.c.l.b16 %v1953
      %v2032 = vunpack.c.l.b16 %v1955
      %v2033 = vunpack.c.l.b16 %v1956
      %v2034 = vunpack.c.l.b16 %v1958
      %v2035 = vunpack.c.l.b16 %v1959
      %v2036 = vunpack.c.l.b16 %v1961
      %v2037 = vunpack.c.l.b16 %v1962
      %v2038 = vunpack.c.l.b16 %v1964
      %v2039 = vunpack.c.l.b16 %v1965
      %v2040 = vunpack.c.l.b16 %v1967
      %v2041 = vunpack.c.l.b16 %v1968
      %v2042 = vpack.c.b16 %v2007, %v2006
      %v2043 = vpack.c.b16 %v2009, %v2008
      %v2044 = vpack.c.b16 %v2011, %v2010
      %v2045 = vpack.c.b16 %v2013, %v2012
      %v2046 = vpack.c.b16 %v2015, %v2014
      %v2047 = vpack.c.b16 %v2017, %v2016
      %v2048 = vpack.c.b16 %v2019, %v2018
      %v2049 = vpack.c.b16 %v2021, %v2020
      %v2050 = vpack.c.b16 %v2023, %v2022
      %v2051 = vpack.c.b16 %v2025, %v2024
      %v2052 = vpack.c.b16 %v2027, %v2026
      %v2053 = vpack.c.b16 %v2029, %v2028
      %v2054 = vpack.c.b16 %v2031, %v2030
      %v2055 = vpack.c.b16 %v2033, %v2032
      %v2056 = vpack.c.b16 %v2035, %v2034
      %v2057 = vpack.c.b16 %v2037, %v2036
      %v2058 = vpack.c.b16 %v2039, %v2038
      %v2059 = vpack.c.b16 %v2041, %v2040
      %v2078 = vunpack.c.l.b16 %v1918
      %v2079 = vunpack.c.l.b16 %v1921
      %v2080 = vunpack.c.l.b16 %v1924
      %v2081 = vunpack.c.l.b16 %v1927
      %v2082 = vunpack.c.l.b16 %v1930
      %v2083 = vunpack.c.l.b16 %v1933
      %v2084 = vunpack.c.l.b16 %v1936
      %v2085 = vunpack.c.l.b16 %v1939
      %v2086 = vunpack.c.l.b16 %v1942
      %v2087 = vunpack.c.l.b16 %v1945
      %v2088 = vunpack.c.l.b16 %v1948
      %v2089 = vunpack.c.l.b16 %v1951
      %v2090 = vunpack.c.l.b16 %v1954
      %v2091 = vunpack.c.l.b16 %v1957
      %v2092 = vunpack.c.l.b16 %v1960
      %v2093 = vunpack.c.l.b16 %v1963
      %v2094 = vunpack.c.l.b16 %v1966
      %v2095 = vunpack.c.l.b16 %v1969
      %v2096 = vpack.c.b16 %v2078, %v2078
      %v2097 = vpack.c.b16 %v2079, %v2079
      %v2098 = vpack.c.b16 %v2080, %v2080
      %v2099 = vpack.c.b16 %v2081, %v2081
      %v2100 = vpack.c.b16 %v2082, %v2082
      %v2101 = vpack.c.b16 %v2083, %v2083
      %v2102 = vpack.c.b16 %v2084, %v2084
      %v2103 = vpack.c.b16 %v2085, %v2085
      %v2104 = vpack.c.b16 %v2086, %v2086
      %v2105 = vpack.c.b16 %v2087, %v2087
      %v2106 = vpack.c.b16 %v2088, %v2088
      %v2107 = vpack.c.b16 %v2089, %v2089
      %v2108 = vpack.c.b16 %v2090, %v2090
      %v2109 = vpack.c.b16 %v2091, %v2091
      %v2110 = vpack.c.b16 %v2092, %v2092
      %v2111 = vpack.c.b16 %v2093, %v2093
      %v2112 = vpack.c.b16 %v2094, %v2094
      %v2113 = vpack.c.b16 %v2095, %v2095
      %vm2114 = vsmask.f32 7424
      %v2116 = vshrl.u32 %v2042, 16
      %v2118 = vshll.u32 %v2042, 16
      %v2120 = vrot.slane %v2118, 1
      %v2121 = vor.u32 %v2116, %v2120
      %v2123 = vshll.u32 %v2096, 16
      %v2125 = vrot.slane %v2123, 1
      %v2126 = vsel %vm2114, %v2121, %v2125
      %v2128 = vshrl.u32 %v2043, 16
      %v2130 = vshll.u32 %v2043, 16
      %v2132 = vrot.slane %v2130, 1
      %v2133 = vor.u32 %v2128, %v2132
      %v2135 = vshll.u32 %v2097, 16
      %v2137 = vrot.slane %v2135, 1
      %v2138 = vsel %vm2114, %v2133, %v2137
      %v2140 = vshrl.u32 %v2044, 16
      %v2142 = vshll.u32 %v2044, 16
      %v2144 = vrot.slane %v2142, 1
      %v2145 = vor.u32 %v2140, %v2144
      %v2147 = vshll.u32 %v2098, 16
      %v2149 = vrot.slane %v2147, 1
      %v2150 = vsel %vm2114, %v2145, %v2149
      %v2152 = vshrl.u32 %v2045, 16
      %v2154 = vshll.u32 %v2045, 16
      %v2156 = vrot.slane %v2154, 1
      %v2157 = vor.u32 %v2152, %v2156
      %v2159 = vshll.u32 %v2099, 16
      %v2161 = vrot.slane %v2159, 1
      %v2162 = vsel %vm2114, %v2157, %v2161
      %v2164 = vshrl.u32 %v2046, 16
      %v2166 = vshll.u32 %v2046, 16
      %v2168 = vrot.slane %v2166, 1
      %v2169 = vor.u32 %v2164, %v2168
      %v2171 = vshll.u32 %v2100, 16
      %v2173 = vrot.slane %v2171, 1
      %v2174 = vsel %vm2114, %v2169, %v2173
      %v2176 = vshrl.u32 %v2047, 16
      %v2178 = vshll.u32 %v2047, 16
      %v2180 = vrot.slane %v2178, 1
      %v2181 = vor.u32 %v2176, %v2180
      %v2183 = vshll.u32 %v2101, 16
      %v2185 = vrot.slane %v2183, 1
      %v2186 = vsel %vm2114, %v2181, %v2185
      %v2188 = vshrl.u32 %v2048, 16
      %v2190 = vshll.u32 %v2048, 16
      %v2192 = vrot.slane %v2190, 1
      %v2193 = vor.u32 %v2188, %v2192
      %v2195 = vshll.u32 %v2102, 16
      %v2197 = vrot.slane %v2195, 1
      %v2198 = vsel %vm2114, %v2193, %v2197
      %v2200 = vshrl.u32 %v2049, 16
      %v2202 = vshll.u32 %v2049, 16
      %v2204 = vrot.slane %v2202, 1
      %v2205 = vor.u32 %v2200, %v2204
      %v2207 = vshll.u32 %v2103, 16
      %v2209 = vrot.slane %v2207, 1
      %v2210 = vsel %vm2114, %v2205, %v2209
      %v2212 = vshrl.u32 %v2050, 16
      %v2214 = vshll.u32 %v2050, 16
      %v2216 = vrot.slane %v2214, 1
      %v2217 = vor.u32 %v2212, %v2216
      %v2219 = vshll.u32 %v2104, 16
      %v2221 = vrot.slane %v2219, 1
      %v2222 = vsel %vm2114, %v2217, %v2221
      %v2224 = vshrl.u32 %v2051, 16
      %v2226 = vshll.u32 %v2051, 16
      %v2228 = vrot.slane %v2226, 1
      %v2229 = vor.u32 %v2224, %v2228
      %v2231 = vshll.u32 %v2105, 16
      %v2233 = vrot.slane %v2231, 1
      %v2234 = vsel %vm2114, %v2229, %v2233
      %v2236 = vshrl.u32 %v2052, 16
      %v2238 = vshll.u32 %v2052, 16
      %v2240 = vrot.slane %v2238, 1
      %v2241 = vor.u32 %v2236, %v2240
      %v2243 = vshll.u32 %v2106, 16
      %v2245 = vrot.slane %v2243, 1
      %v2246 = vsel %vm2114, %v2241, %v2245
      %v2248 = vshrl.u32 %v2053, 16
      %v2250 = vshll.u32 %v2053, 16
      %v2252 = vrot.slane %v2250, 1
      %v2253 = vor.u32 %v2248, %v2252
      %v2255 = vshll.u32 %v2107, 16
      %v2257 = vrot.slane %v2255, 1
      %v2258 = vsel %vm2114, %v2253, %v2257
      %v2260 = vshrl.u32 %v2054, 16
      %v2262 = vshll.u32 %v2054, 16
      %v2264 = vrot.slane %v2262, 1
      %v2265 = vor.u32 %v2260, %v2264
      %v2267 = vshll.u32 %v2108, 16
      %v2269 = vrot.slane %v2267, 1
      %v2270 = vsel %vm2114, %v2265, %v2269
      %v2272 = vshrl.u32 %v2055, 16
      %v2274 = vshll.u32 %v2055, 16
      %v2276 = vrot.slane %v2274, 1
      %v2277 = vor.u32 %v2272, %v2276
      %v2279 = vshll.u32 %v2109, 16
      %v2281 = vrot.slane %v2279, 1
      %v2282 = vsel %vm2114, %v2277, %v2281
      %v2284 = vshrl.u32 %v2056, 16
      %v2286 = vshll.u32 %v2056, 16
      %v2288 = vrot.slane %v2286, 1
      %v2289 = vor.u32 %v2284, %v2288
      %v2291 = vshll.u32 %v2110, 16
      %v2293 = vrot.slane %v2291, 1
      %v2294 = vsel %vm2114, %v2289, %v2293
      %v2296 = vshrl.u32 %v2057, 16
      %v2298 = vshll.u32 %v2057, 16
      %v2300 = vrot.slane %v2298, 1
      %v2301 = vor.u32 %v2296, %v2300
      %v2303 = vshll.u32 %v2111, 16
      %v2305 = vrot.slane %v2303, 1
      %v2306 = vsel %vm2114, %v2301, %v2305
      %v2308 = vshrl.u32 %v2058, 16
      %v2310 = vshll.u32 %v2058, 16
      %v2312 = vrot.slane %v2310, 1
      %v2313 = vor.u32 %v2308, %v2312
      %v2315 = vshll.u32 %v2112, 16
      %v2317 = vrot.slane %v2315, 1
      %v2318 = vsel %vm2114, %v2313, %v2317
      %v2320 = vshrl.u32 %v2059, 16
      %v2322 = vshll.u32 %v2059, 16
      %v2324 = vrot.slane %v2322, 1
      %v2325 = vor.u32 %v2320, %v2324
      %v2327 = vshll.u32 %v2113, 16
      %v2329 = vrot.slane %v2327, 1
      %v2330 = vsel %vm2114, %v2325, %v2329
      %2331 = vrot.lane.b32.xlu0 %v2126, 8
      %v2332 = vpop.permute.xlu0 %2331
      %2333 = vrot.lane.b32.xlu0 %v2138, 8
      %v2334 = vpop.permute.xlu0 %2333
      %2335 = vrot.lane.b32.xlu0 %v2150, 8
      %v2336 = vpop.permute.xlu0 %2335
      %2337 = vrot.lane.b32.xlu0 %v2162, 8
      %v2338 = vpop.permute.xlu0 %2337
      %2339 = vrot.lane.b32.xlu0 %v2174, 8
      %v2340 = vpop.permute.xlu0 %2339
      %2341 = vrot.lane.b32.xlu0 %v2186, 8
      %v2342 = vpop.permute.xlu0 %2341
      %2343 = vrot.lane.b32.xlu0 %v2198, 8
      %v2344 = vpop.permute.xlu0 %2343
      %2345 = vrot.lane.b32.xlu0 %v2210, 8
      %v2346 = vpop.permute.xlu0 %2345
      %2347 = vrot.lane.b32.xlu0 %v2222, 8
      %v2348 = vpop.permute.xlu0 %2347
      %2349 = vrot.lane.b32.xlu0 %v2234, 8
      %v2350 = vpop.permute.xlu0 %2349
      %2351 = vrot.lane.b32.xlu0 %v2246, 8
      %v2352 = vpop.permute.xlu0 %2351
      %2353 = vrot.lane.b32.xlu0 %v2258, 8
      %v2354 = vpop.permute.xlu0 %2353
      %2355 = vrot.lane.b32.xlu0 %v2270, 8
      %v2356 = vpop.permute.xlu0 %2355
      %2357 = vrot.lane.b32.xlu0 %v2282, 8
      %v2358 = vpop.permute.xlu0 %2357
      %2359 = vrot.lane.b32.xlu0 %v2294, 8
      %v2360 = vpop.permute.xlu0 %2359
      %2361 = vrot.lane.b32.xlu0 %v2306, 8
      %v2362 = vpop.permute.xlu0 %2361
      %2363 = vrot.lane.b32.xlu0 %v2318, 8
      %v2364 = vpop.permute.xlu0 %2363
      %2365 = vrot.lane.b32.xlu0 %v2330, 8
      %v2366 = vpop.permute.xlu0 %2365
      %vm2367 = vcmask 1046528
      %v2368 = vrot.slane %v2042, 1
      %v2369 = vrot.slane %v2096, 1
      %v2370 = vsel %vm2367, %v2368, %v2369
      %v2371 = vrot.slane %v2043, 1
      %v2372 = vrot.slane %v2097, 1
      %v2373 = vsel %vm2367, %v2371, %v2372
      %v2374 = vrot.slane %v2044, 1
      %v2375 = vrot.slane %v2098, 1
      %v2376 = vsel %vm2367, %v2374, %v2375
      %v2377 = vrot.slane %v2045, 1
      %v2378 = vrot.slane %v2099, 1
      %v2379 = vsel %vm2367, %v2377, %v2378
      %v2380 = vrot.slane %v2046, 1
      %v2381 = vrot.slane %v2100, 1
      %v2382 = vsel %vm2367, %v2380, %v2381
      %v2383 = vrot.slane %v2047, 1
      %v2384 = vrot.slane %v2101, 1
      %v2385 = vsel %vm2367, %v2383, %v2384
      %v2386 = vrot.slane %v2048, 1
      %v2387 = vrot.slane %v2102, 1
      %v2388 = vsel %vm2367, %v2386, %v2387
      %v2389 = vrot.slane %v2049, 1
      %v2390 = vrot.slane %v2103, 1
      %v2391 = vsel %vm2367, %v2389, %v2390
      %v2392 = vrot.slane %v2050, 1
      %v2393 = vrot.slane %v2104, 1
      %v2394 = vsel %vm2367, %v2392, %v2393
      %v2395 = vrot.slane %v2051, 1
      %v2396 = vrot.slane %v2105, 1
      %v2397 = vsel %vm2367, %v2395, %v2396
      %v2398 = vrot.slane %v2052, 1
      %v2399 = vrot.slane %v2106, 1
      %v2400 = vsel %vm2367, %v2398, %v2399
      %v2401 = vrot.slane %v2053, 1
      %v2402 = vrot.slane %v2107, 1
      %v2403 = vsel %vm2367, %v2401, %v2402
      %v2404 = vrot.slane %v2054, 1
      %v2405 = vrot.slane %v2108, 1
      %v2406 = vsel %vm2367, %v2404, %v2405
      %v2407 = vrot.slane %v2055, 1
      %v2408 = vrot.slane %v2109, 1
      %v2409 = vsel %vm2367, %v2407, %v2408
      %v2410 = vrot.slane %v2056, 1
      %v2411 = vrot.slane %v2110, 1
      %v2412 = vsel %vm2367, %v2410, %v2411
      %v2413 = vrot.slane %v2057, 1
      %v2414 = vrot.slane %v2111, 1
      %v2415 = vsel %vm2367, %v2413, %v2414
      %v2416 = vrot.slane %v2058, 1
      %v2417 = vrot.slane %v2112, 1
      %v2418 = vsel %vm2367, %v2416, %v2417
      %v2419 = vrot.slane %v2059, 1
      %v2420 = vrot.slane %v2113, 1
      %v2421 = vsel %vm2367, %v2419, %v2420
      %2422 = vrot.lane.b32.xlu0 %v2370, 16
      %v2423 = vpop.permute.xlu0 %2422
      %2424 = vrot.lane.b32.xlu0 %v2373, 16
      %v2425 = vpop.permute.xlu0 %2424
      %2426 = vrot.lane.b32.xlu0 %v2376, 16
      %v2427 = vpop.permute.xlu0 %2426
      %2428 = vrot.lane.b32.xlu0 %v2379, 16
      %v2429 = vpop.permute.xlu0 %2428
      %2430 = vrot.lane.b32.xlu0 %v2382, 16
      %v2431 = vpop.permute.xlu0 %2430
      %2432 = vrot.lane.b32.xlu0 %v2385, 16
      %v2433 = vpop.permute.xlu0 %2432
      %2434 = vrot.lane.b32.xlu0 %v2388, 16
      %v2435 = vpop.permute.xlu0 %2434
      %2436 = vrot.lane.b32.xlu0 %v2391, 16
      %v2437 = vpop.permute.xlu0 %2436
      %2438 = vrot.lane.b32.xlu0 %v2394, 16
      %v2439 = vpop.permute.xlu0 %2438
      %2440 = vrot.lane.b32.xlu0 %v2397, 16
      %v2441 = vpop.permute.xlu0 %2440
      %2442 = vrot.lane.b32.xlu0 %v2400, 16
      %v2443 = vpop.permute.xlu0 %2442
      %2444 = vrot.lane.b32.xlu0 %v2403, 16
      %v2445 = vpop.permute.xlu0 %2444
      %2446 = vrot.lane.b32.xlu0 %v2406, 16
      %v2447 = vpop.permute.xlu0 %2446
      %2448 = vrot.lane.b32.xlu0 %v2409, 16
      %v2449 = vpop.permute.xlu0 %2448
      %2450 = vrot.lane.b32.xlu0 %v2412, 16
      %v2451 = vpop.permute.xlu0 %2450
      %2452 = vrot.lane.b32.xlu0 %v2415, 16
      %v2453 = vpop.permute.xlu0 %2452
      %2454 = vrot.lane.b32.xlu0 %v2418, 16
      %v2455 = vpop.permute.xlu0 %2454
      %2456 = vrot.lane.b32.xlu0 %v2421, 16
      %v2457 = vpop.permute.xlu0 %2456
      %vm2458 = vcmask 64512
      %v2460 = vsel %vm2458, %v2042, %v2332
      %v2462 = vsel %vm2458, %v2043, %v2334
      %v2464 = vsel %vm2458, %v2044, %v2336
      %v2466 = vsel %vm2458, %v2045, %v2338
      %v2468 = vsel %vm2458, %v2046, %v2340
      %v2470 = vsel %vm2458, %v2047, %v2342
      %v2472 = vsel %vm2458, %v2048, %v2344
      %v2474 = vsel %vm2458, %v2049, %v2346
      %v2476 = vsel %vm2458, %v2050, %v2348
      %v2478 = vsel %vm2458, %v2051, %v2350
      %v2480 = vsel %vm2458, %v2052, %v2352
      %v2482 = vsel %vm2458, %v2053, %v2354
      %v2484 = vsel %vm2458, %v2054, %v2356
      %v2486 = vsel %vm2458, %v2055, %v2358
      %v2488 = vsel %vm2458, %v2056, %v2360
      %v2490 = vsel %vm2458, %v2057, %v2362
      %v2492 = vsel %vm2458, %v2058, %v2364
      %v2494 = vsel %vm2458, %v2059, %v2366
      %vm2495 = vcmask 130048
      %v2497 = vsel %vm2495, %v2460, %v2423
      %v2499 = vsel %vm2495, %v2462, %v2425
      %v2501 = vsel %vm2495, %v2464, %v2427
      %v2503 = vsel %vm2495, %v2466, %v2429
      %v2505 = vsel %vm2495, %v2468, %v2431
      %v2507 = vsel %vm2495, %v2470, %v2433
      %v2509 = vsel %vm2495, %v2472, %v2435
      %v2511 = vsel %vm2495, %v2474, %v2437
      %v2513 = vsel %vm2495, %v2476, %v2439
      %v2515 = vsel %vm2495, %v2478, %v2441
      %v2517 = vsel %vm2495, %v2480, %v2443
      %v2519 = vsel %vm2495, %v2482, %v2445
      %v2521 = vsel %vm2495, %v2484, %v2447
      %v2523 = vsel %vm2495, %v2486, %v2449
      %v2525 = vsel %vm2495, %v2488, %v2451
      %v2527 = vsel %vm2495, %v2490, %v2453
      %v2529 = vsel %vm2495, %v2492, %v2455
      %v2531 = vsel %vm2495, %v2494, %v2457
      %2548 = vrot.lane.b32.xlu0 %v2499, 24
      %v2549 = vpop.permute.xlu0 %2548
      %2550 = vrot.lane.b32.xlu0 %v2501, 24
      %v2551 = vpop.permute.xlu0 %2550
      %2552 = vrot.lane.b32.xlu0 %v2503, 24
      %v2553 = vpop.permute.xlu0 %2552
      %2554 = vrot.lane.b32.xlu0 %v2505, 24
      %v2555 = vpop.permute.xlu0 %2554
      %2556 = vrot.lane.b32.xlu0 %v2507, 24
      %v2557 = vpop.permute.xlu0 %2556
      %2558 = vrot.lane.b32.xlu0 %v2509, 24
      %v2559 = vpop.permute.xlu0 %2558
      %2560 = vrot.lane.b32.xlu0 %v2511, 24
      %v2561 = vpop.permute.xlu0 %2560
      %2562 = vrot.lane.b32.xlu0 %v2513, 24
      %v2563 = vpop.permute.xlu0 %2562
      %2564 = vrot.lane.b32.xlu0 %v2515, 24
      %v2565 = vpop.permute.xlu0 %2564
      %2566 = vrot.lane.b32.xlu0 %v2517, 24
      %v2567 = vpop.permute.xlu0 %2566
      %2568 = vrot.lane.b32.xlu0 %v2519, 24
      %v2569 = vpop.permute.xlu0 %2568
      %2570 = vrot.lane.b32.xlu0 %v2521, 24
      %v2571 = vpop.permute.xlu0 %2570
      %2572 = vrot.lane.b32.xlu0 %v2523, 24
      %v2573 = vpop.permute.xlu0 %2572
      %2574 = vrot.lane.b32.xlu0 %v2525, 24
      %v2575 = vpop.permute.xlu0 %2574
      %2576 = vrot.lane.b32.xlu0 %v2527, 24
      %v2577 = vpop.permute.xlu0 %2576
      %2578 = vrot.lane.b32.xlu0 %v2529, 24
      %v2579 = vpop.permute.xlu0 %2578
      %2581 = vrot.lane.b32.xlu0 %v2501, 48
      %v2582 = vpop.permute.xlu0 %2581
      %2583 = vrot.lane.b32.xlu0 %v2503, 48
      %v2584 = vpop.permute.xlu0 %2583
      %2585 = vrot.lane.b32.xlu0 %v2505, 48
      %v2586 = vpop.permute.xlu0 %2585
      %2587 = vrot.lane.b32.xlu0 %v2507, 48
      %v2588 = vpop.permute.xlu0 %2587
      %2589 = vrot.lane.b32.xlu0 %v2509, 48
      %v2590 = vpop.permute.xlu0 %2589
      %2591 = vrot.lane.b32.xlu0 %v2511, 48
      %v2592 = vpop.permute.xlu0 %2591
      %2593 = vrot.lane.b32.xlu0 %v2513, 48
      %v2594 = vpop.permute.xlu0 %2593
      %2595 = vrot.lane.b32.xlu0 %v2515, 48
      %v2596 = vpop.permute.xlu0 %2595
      %2597 = vrot.lane.b32.xlu0 %v2517, 48
      %v2598 = vpop.permute.xlu0 %2597
      %2599 = vrot.lane.b32.xlu0 %v2519, 48
      %v2600 = vpop.permute.xlu0 %2599
      %2601 = vrot.lane.b32.xlu0 %v2521, 48
      %v2602 = vpop.permute.xlu0 %2601
      %2603 = vrot.lane.b32.xlu0 %v2523, 48
      %v2604 = vpop.permute.xlu0 %2603
      %2605 = vrot.lane.b32.xlu0 %v2525, 48
      %v2606 = vpop.permute.xlu0 %2605
      %2607 = vrot.lane.b32.xlu0 %v2527, 48
      %v2608 = vpop.permute.xlu0 %2607
      %2609 = vrot.lane.b32.xlu0 %v2529, 48
      %v2610 = vpop.permute.xlu0 %2609
      %2611 = vrot.lane.b32.xlu0 %v2531, 48
      %v2612 = vpop.permute.xlu0 %2611
      %vm2613 = vcmask 195584
      %v2615 = vsel %vm2613, %v2497, %v2549
      %v2617 = vsel %vm2613, %v2499, %v2551
      %v2619 = vsel %vm2613, %v2501, %v2553
      %v2621 = vsel %vm2613, %v2503, %v2555
      %v2623 = vsel %vm2613, %v2505, %v2557
      %v2625 = vsel %vm2613, %v2507, %v2559
      %v2627 = vsel %vm2613, %v2509, %v2561
      %v2629 = vsel %vm2613, %v2511, %v2563
      %v2631 = vsel %vm2613, %v2513, %v2565
      %v2633 = vsel %vm2613, %v2515, %v2567
      %v2635 = vsel %vm2613, %v2517, %v2569
      %v2637 = vsel %vm2613, %v2519, %v2571
      %v2639 = vsel %vm2613, %v2521, %v2573
      %v2641 = vsel %vm2613, %v2523, %v2575
      %v2643 = vsel %vm2613, %v2525, %v2577
      %v2645 = vsel %vm2613, %v2527, %v2579
      %vm2646 = vcmask 392192
      %v2648 = vsel %vm2646, %v2615, %v2582
      %v2650 = vsel %vm2646, %v2617, %v2584
      %v2652 = vsel %vm2646, %v2619, %v2586
      %v2654 = vsel %vm2646, %v2621, %v2588
      %v2656 = vsel %vm2646, %v2623, %v2590
      %v2658 = vsel %vm2646, %v2625, %v2592
      %v2660 = vsel %vm2646, %v2627, %v2594
      %v2662 = vsel %vm2646, %v2629, %v2596
      %v2664 = vsel %vm2646, %v2631, %v2598
      %v2666 = vsel %vm2646, %v2633, %v2600
      %v2668 = vsel %vm2646, %v2635, %v2602
      %v2670 = vsel %vm2646, %v2637, %v2604
      %v2672 = vsel %vm2646, %v2639, %v2606
      %v2674 = vsel %vm2646, %v2641, %v2608
      %v2676 = vsel %vm2646, %v2643, %v2610
      %v2678 = vsel %vm2646, %v2645, %v2612
      %v2679 = vld [vmem:[%s1] sm:$0xf]
      %v2680 = vld [vmem:[%s1 + $0x4] sm:$0xf]
      %v2681 = vld [vmem:[%s1 + $0x8] sm:$0xf]
      %v2682 = vld [vmem:[%s1 + $0xc] sm:$0xf]
      %v2683 = vld [vmem:[%s1 + $0x10] sm:$0xf]
      %v2684 = vld [vmem:[%s1 + $0x14] sm:$0xf]
      %v2685 = vld [vmem:[%s1 + $0x18] sm:$0xf]
      %v2686 = vld [vmem:[%s1 + $0x1c] sm:$0xf]
      %v2687 = vld [vmem:[%s1 + $0x20] sm:$0xf]
      %v2688 = vld [vmem:[%s2] sm:$0x1]
      %v2690 = vlaneseq
      %v2691 = vshrl.u32 %v2690, 7
      %v2692 = vsub.s32 0, %v2691
      %v2693 = vrot.slane %v2688, %v2692
      %v2704 = vunpack.c.l.b16 %v2679
      %v2705 = vunpack.c.l.b16 %v2680
      %v2706 = vunpack.c.l.b16 %v2681
      %v2707 = vunpack.c.l.b16 %v2682
      %v2708 = vunpack.c.l.b16 %v2683
      %v2709 = vunpack.c.l.b16 %v2684
      %v2710 = vunpack.c.l.b16 %v2685
      %v2711 = vunpack.c.l.b16 %v2686
      %v2712 = vunpack.c.l.b16 %v2687
      %v2713 = vpack.c.b16 %v2705, %v2704
      %v2714 = vpack.c.b16 %v2707, %v2706
      %v2715 = vpack.c.b16 %v2709, %v2708
      %v2716 = vpack.c.b16 %v2711, %v2710
      %v2717 = vpack.c.b16 %v2712, %v2712
      %vm2722 = vcmask 588800
      %v2723 = vsel %vm2722, %v2648, 0
      %v2725 = vsel %vm2722, %v2650, 0
      %v2727 = vsel %vm2722, %v2652, 0
      %v2729 = vsel %vm2722, %v2654, 0
      %v2731 = vsel %vm2722, %v2656, 0
      %v2733 = vsel %vm2722, %v2658, 0
      %v2735 = vsel %vm2722, %v2660, 0
      %v2737 = vsel %vm2722, %v2662, 0
      %v2739 = vsel %vm2722, %v2664, 0
      %v2741 = vsel %vm2722, %v2666, 0
      %v2743 = vsel %vm2722, %v2668, 0
      %v2745 = vsel %vm2722, %v2670, 0
      %v2747 = vsel %vm2722, %v2672, 0
      %v2749 = vsel %vm2722, %v2674, 0
      %v2751 = vsel %vm2722, %v2676, 0
      %v2753 = vsel %vm2722, %v2678, 0
      %vm2755 = vcmask 1043456
      %v2757 = vsel %vm2755, %v2717, 0
      %2759 = vmatprep.subr.bf16.mxu0 0
      %2760 = vmatpush1.bf16.msra.mxu0 %v2713
      %2761 = vmatprep.subr.bf16.mxu0 0
      %2762 = vmatpush1.bf16.msra.mxu0 %v2714
      %2763 = vmatprep.subr.bf16.mxu0 0
      %2764 = vmatpush1.bf16.msra.mxu0 %v2715
      %2765 = vmatprep.subr.bf16.mxu0 0
      %2766 = vmatpush1.bf16.msra.mxu0 %v2716
      %2767 = vmatprep.subr.bf16.mxu0 0
      %2768 = vmatpush1.bf16.msra.mxu0 %v2757
      %2769 = vmatprep.subr.bf16.mxu0 0
      %2770 = vmatpush1.bf16.msra.mxu0 0
      %2771 = vmatprep.subr.bf16.mxu0 0
      %2772 = vmatpush1.bf16.msra.mxu0 0
      %2773 = vmatprep.subr.bf16.mxu0 0
      %2774 = vmatpush1.bf16.msra.mxu0 0
      %2775 = vmatprep.subr.bf16.mxu0 0
      %2776 = vmatpush1.bf16.msra.mxu0 0
      %2777 = vmatprep.subr.bf16.mxu0 0
      %2778 = vmatpush1.bf16.msra.mxu0 0
      %2779 = vmatprep.subr.bf16.mxu0 0
      %2780 = vmatpush1.bf16.msra.mxu0 0
      %2781 = vmatprep.subr.bf16.mxu0 0
      %2782 = vmatpush1.bf16.msra.mxu0 0
      %2783 = vmatprep.subr.bf16.mxu0 0
      %2784 = vmatpush1.bf16.msra.mxu0 0
      %2785 = vmatprep.subr.bf16.mxu0 0
      %2786 = vmatpush1.bf16.msra.mxu0 0
      %2787 = vmatprep.subr.bf16.mxu0 0
      %2788 = vmatpush1.bf16.msra.mxu0 0
      %2789 = vmatprep.subr.bf16.mxu0 0
      %2790 = vmatpush1.bf16.msra.mxu0 0
      %2791 = vmatprep.mubr.bf16.mxu0 0
      %2792 = vmatmul.mubr.bf16.gmra.mrb[0].mxu0 %v2723
      %v2793 = vpop.f32.mrb[0].mxu0
      %v2794 = vadd.f32 %v2693, %v2793
      %v2795 = vpop.f32.mrb[0].mxu0
      %v2796 = vpop.f32.mrb[0].mxu0
      %v2797 = vadd.f32 %v2693, %v2796
      %v2798 = vpop.f32.mrb[0].mxu0
      %2799 = vmatprep.mubr.bf16.mxu0 0
      %2800 = vmatmul.mubr.bf16.gmra.mrb[0].mxu0 %v2725
      %v2801 = vpop.f32.mrb[0].mxu0
      %v2802 = vadd.f32 %v2693, %v2801
      %v2803 = vpop.f32.mrb[0].mxu0
      %v2804 = vpop.f32.mrb[0].mxu0
      %v2805 = vadd.f32 %v2693, %v2804
      %v2806 = vpop.f32.mrb[0].mxu0
      %2807 = vmatprep.mubr.bf16.mxu0 0
      %2808 = vmatmul.mubr.bf16.gmra.mrb[0].mxu0 %v2727
      %v2809 = vpop.f32.mrb[0].mxu0
      %v2810 = vadd.f32 %v2693, %v2809
      %v2811 = vpop.f32.mrb[0].mxu0
      %v2812 = vpop.f32.mrb[0].mxu0
      %v2813 = vadd.f32 %v2693, %v2812
      %v2814 = vpop.f32.mrb[0].mxu0
      %2815 = vmatprep.mubr.bf16.mxu0 0
      %2816 = vmatmul.mubr.bf16.gmra.mrb[0].mxu0 %v2729
      %v2817 = vpop.f32.mrb[0].mxu0
      %v2818 = vadd.f32 %v2693, %v2817
      %v2819 = vpop.f32.mrb[0].mxu0
      %v2820 = vpop.f32.mrb[0].mxu0
      %v2821 = vadd.f32 %v2693, %v2820
      %v2822 = vpop.f32.mrb[0].mxu0
      %2823 = vmatprep.mubr.bf16.mxu0 0
      %2824 = vmatmul.mubr.bf16.gmra.mrb[0].mxu0 %v2731
      %v2825 = vpop.f32.mrb[0].mxu0
      %v2826 = vadd.f32 %v2693, %v2825
      %v2827 = vpop.f32.mrb[0].mxu0
      %v2828 = vpop.f32.mrb[0].mxu0
      %v2829 = vadd.f32 %v2693, %v2828
      %v2830 = vpop.f32.mrb[0].mxu0
      %2831 = vmatprep.mubr.bf16.mxu0 0
      %2832 = vmatmul.mubr.bf16.gmra.mrb[0].mxu0 %v2733
      %v2833 = vpop.f32.mrb[0].mxu0
      %v2834 = vadd.f32 %v2693, %v2833
      %v2835 = vpop.f32.mrb[0].mxu0
      %v2836 = vpop.f32.mrb[0].mxu0
      %v2837 = vadd.f32 %v2693, %v2836
      %v2838 = vpop.f32.mrb[0].mxu0
      %2839 = vmatprep.mubr.bf16.mxu0 0
      %2840 = vmatmul.mubr.bf16.gmra.mrb[0].mxu0 %v2735
      %v2841 = vpop.f32.mrb[0].mxu0
      %v2842 = vadd.f32 %v2693, %v2841
      %v2843 = vpop.f32.mrb[0].mxu0
      %v2844 = vpop.f32.mrb[0].mxu0
      %v2845 = vadd.f32 %v2693, %v2844
      %v2846 = vpop.f32.mrb[0].mxu0
      %2847 = vmatprep.mubr.bf16.mxu0 0
      %2848 = vmatmul.mubr.bf16.gmra.mrb[0].mxu0 %v2737
      %v2849 = vpop.f32.mrb[0].mxu0
      %v2850 = vadd.f32 %v2693, %v2849
      %v2851 = vpop.f32.mrb[0].mxu0
      %v2852 = vpop.f32.mrb[0].mxu0
      %v2853 = vadd.f32 %v2693, %v2852
      %v2854 = vpop.f32.mrb[0].mxu0
      %2855 = vmatprep.mubr.bf16.mxu0 0
      %2856 = vmatmul.mubr.bf16.gmra.mrb[0].mxu0 %v2739
      %v2857 = vpop.f32.mrb[0].mxu0
      %v2858 = vadd.f32 %v2693, %v2857
      %v2859 = vpop.f32.mrb[0].mxu0
      %v2860 = vpop.f32.mrb[0].mxu0
      %v2861 = vadd.f32 %v2693, %v2860
      %v2862 = vpop.f32.mrb[0].mxu0
      %2863 = vmatprep.mubr.bf16.mxu0 0
      %2864 = vmatmul.mubr.bf16.gmra.mrb[0].mxu0 %v2741
      %v2865 = vpop.f32.mrb[0].mxu0
      %v2866 = vadd.f32 %v2693, %v2865
      %v2867 = vpop.f32.mrb[0].mxu0
      %v2868 = vpop.f32.mrb[0].mxu0
      %v2869 = vadd.f32 %v2693, %v2868
      %v2870 = vpop.f32.mrb[0].mxu0
      %2871 = vmatprep.mubr.bf16.mxu0 0
      %2872 = vmatmul.mubr.bf16.gmra.mrb[0].mxu0 %v2743
      %v2873 = vpop.f32.mrb[0].mxu0
      %v2874 = vadd.f32 %v2693, %v2873
      %v2875 = vpop.f32.mrb[0].mxu0
      %v2876 = vpop.f32.mrb[0].mxu0
      %v2877 = vadd.f32 %v2693, %v2876
      %v2878 = vpop.f32.mrb[0].mxu0
      %2879 = vmatprep.mubr.bf16.mxu0 0
      %2880 = vmatmul.mubr.bf16.gmra.mrb[0].mxu0 %v2745
      %v2881 = vpop.f32.mrb[0].mxu0
      %v2882 = vadd.f32 %v2693, %v2881
      %v2883 = vpop.f32.mrb[0].mxu0
      %v2884 = vpop.f32.mrb[0].mxu0
      %v2885 = vadd.f32 %v2693, %v2884
      %v2886 = vpop.f32.mrb[0].mxu0
      %2887 = vmatprep.mubr.bf16.mxu0 0
      %2888 = vmatmul.mubr.bf16.gmra.mrb[0].mxu0 %v2747
      %v2889 = vpop.f32.mrb[0].mxu0
      %v2890 = vadd.f32 %v2693, %v2889
      %v2891 = vpop.f32.mrb[0].mxu0
      %v2892 = vpop.f32.mrb[0].mxu0
      %v2893 = vadd.f32 %v2693, %v2892
      %v2894 = vpop.f32.mrb[0].mxu0
      %2895 = vmatprep.mubr.bf16.mxu0 0
      %2896 = vmatmul.mubr.bf16.gmra.mrb[0].mxu0 %v2749
      %v2897 = vpop.f32.mrb[0].mxu0
      %v2898 = vadd.f32 %v2693, %v2897
      %v2899 = vpop.f32.mrb[0].mxu0
      %v2900 = vpop.f32.mrb[0].mxu0
      %v2901 = vadd.f32 %v2693, %v2900
      %v2902 = vpop.f32.mrb[0].mxu0
      %2903 = vmatprep.mubr.bf16.mxu0 0
      %2904 = vmatmul.mubr.bf16.gmra.mrb[0].mxu0 %v2751
      %v2905 = vpop.f32.mrb[0].mxu0
      %v2906 = vadd.f32 %v2693, %v2905
      %v2907 = vpop.f32.mrb[0].mxu0
      %v2908 = vpop.f32.mrb[0].mxu0
      %v2909 = vadd.f32 %v2693, %v2908
      %v2910 = vpop.f32.mrb[0].mxu0
      %2911 = vmatprep.mubr.bf16.mxu0 0
      %2912 = vmatmul.mubr.bf16.gmra.mrb[0].mxu0 %v2753
      %v2913 = vpop.f32.mrb[0].mxu0
      %v2914 = vadd.f32 %v2693, %v2913
      %v2915 = vpop.f32.mrb[0].mxu0
      %v2916 = vpop.f32.mrb[0].mxu0
      %v2917 = vadd.f32 %v2693, %v2916
      %v2918 = vpop.f32.mrb[0].mxu0
      %2919 = vdwg.mxu0
      %v2920 = vmax.f32 %v2794, 0.0
      %v2921 = vmax.f32 %v2797, 0.0
      %v2922 = vmax.f32 %v2802, 0.0
      %v2923 = vmax.f32 %v2805, 0.0
      %v2924 = vmax.f32 %v2810, 0.0
      %v2925 = vmax.f32 %v2813, 0.0
      %v2926 = vmax.f32 %v2818, 0.0
      %v2927 = vmax.f32 %v2821, 0.0
      %v2928 = vmax.f32 %v2826, 0.0
      %v2929 = vmax.f32 %v2829, 0.0
      %v2930 = vmax.f32 %v2834, 0.0
      %v2931 = vmax.f32 %v2837, 0.0
      %v2932 = vmax.f32 %v2842, 0.0
      %v2933 = vmax.f32 %v2845, 0.0
      %v2934 = vmax.f32 %v2850, 0.0
      %v2935 = vmax.f32 %v2853, 0.0
      %v2936 = vmax.f32 %v2858, 0.0
      %v2937 = vmax.f32 %v2861, 0.0
      %v2938 = vmax.f32 %v2866, 0.0
      %v2939 = vmax.f32 %v2869, 0.0
      %v2940 = vmax.f32 %v2874, 0.0
      %v2941 = vmax.f32 %v2877, 0.0
      %v2942 = vmax.f32 %v2882, 0.0
      %v2943 = vmax.f32 %v2885, 0.0
      %v2944 = vmax.f32 %v2890, 0.0
      %v2945 = vmax.f32 %v2893, 0.0
      %v2946 = vmax.f32 %v2898, 0.0
      %v2947 = vmax.f32 %v2901, 0.0
      %v2948 = vmax.f32 %v2906, 0.0
      %v2949 = vmax.f32 %v2909, 0.0
      %v2950 = vmax.f32 %v2914, 0.0
      %v2951 = vmax.f32 %v2917, 0.0
      %v2952 = vpack.c.bf16 %v2921, %v2920
      %v2953 = vpack.c.bf16 %v2923, %v2922
      %v2954 = vpack.c.bf16 %v2925, %v2924
      %v2955 = vpack.c.bf16 %v2927, %v2926
      %v2956 = vpack.c.bf16 %v2929, %v2928
      %v2957 = vpack.c.bf16 %v2931, %v2930
      %v2958 = vpack.c.bf16 %v2933, %v2932
      %v2959 = vpack.c.bf16 %v2935, %v2934
      %v2960 = vpack.c.bf16 %v2937, %v2936
      %v2961 = vpack.c.bf16 %v2939, %v2938
      %v2962 = vpack.c.bf16 %v2941, %v2940
      %v2963 = vpack.c.bf16 %v2943, %v2942
      %v2964 = vpack.c.bf16 %v2945, %v2944
      %v2965 = vpack.c.bf16 %v2947, %v2946
      %v2966 = vpack.c.bf16 %v2949, %v2948
      %v2967 = vpack.c.bf16 %v2951, %v2950
      %v2984 = vunpack.c.l.b16 %v2952
      %v2985 = vunpack.c.h.b16 %v2952
      %v2986 = vunpack.c.l.b16 %v2953
      %v2987 = vunpack.c.h.b16 %v2953
      %v2988 = vunpack.c.l.b16 %v2954
      %v2989 = vunpack.c.h.b16 %v2954
      %v2990 = vunpack.c.l.b16 %v2955
      %v2991 = vunpack.c.h.b16 %v2955
      %v2992 = vunpack.c.l.b16 %v2956
      %v2993 = vunpack.c.h.b16 %v2956
      %v2994 = vunpack.c.l.b16 %v2957
      %v2995 = vunpack.c.h.b16 %v2957
      %v2996 = vunpack.c.l.b16 %v2958
      %v2997 = vunpack.c.h.b16 %v2958
      %v2998 = vunpack.c.l.b16 %v2959
      %v2999 = vunpack.c.h.b16 %v2959
      %v3000 = vunpack.c.l.b16 %v2960
      %v3001 = vunpack.c.h.b16 %v2960
      %v3002 = vunpack.c.l.b16 %v2961
      %v3003 = vunpack.c.h.b16 %v2961
      %v3004 = vunpack.c.l.b16 %v2962
      %v3005 = vunpack.c.h.b16 %v2962
      %v3006 = vunpack.c.l.b16 %v2963
      %v3007 = vunpack.c.h.b16 %v2963
      %v3008 = vunpack.c.l.b16 %v2964
      %v3009 = vunpack.c.h.b16 %v2964
      %v3010 = vunpack.c.l.b16 %v2965
      %v3011 = vunpack.c.h.b16 %v2965
      %v3012 = vunpack.c.l.b16 %v2966
      %v3013 = vunpack.c.h.b16 %v2966
      %v3014 = vunpack.c.l.b16 %v2967
      %v3015 = vunpack.c.h.b16 %v2967
      %v3016 = vpack.c.b16 %v2984, %v2984
      %v3017 = vpack.c.b16 %v2985, %v2985
      %v3018 = vpack.c.b16 %v2986, %v2986
      %v3019 = vpack.c.b16 %v2987, %v2987
      %v3020 = vpack.c.b16 %v2988, %v2988
      %v3021 = vpack.c.b16 %v2989, %v2989
      %v3022 = vpack.c.b16 %v2990, %v2990
      %v3023 = vpack.c.b16 %v2991, %v2991
      %v3024 = vpack.c.b16 %v2992, %v2992
      %v3025 = vpack.c.b16 %v2993, %v2993
      %v3026 = vpack.c.b16 %v2994, %v2994
      %v3027 = vpack.c.b16 %v2995, %v2995
      %v3028 = vpack.c.b16 %v2996, %v2996
      %v3029 = vpack.c.b16 %v2997, %v2997
      %v3030 = vpack.c.b16 %v2998, %v2998
      %v3031 = vpack.c.b16 %v2999, %v2999
      %v3032 = vpack.c.b16 %v3000, %v3000
      %v3033 = vpack.c.b16 %v3001, %v3001
      %v3034 = vpack.c.b16 %v3002, %v3002
      %v3035 = vpack.c.b16 %v3003, %v3003
      %v3036 = vpack.c.b16 %v3004, %v3004
      %v3037 = vpack.c.b16 %v3005, %v3005
      %v3038 = vpack.c.b16 %v3006, %v3006
      %v3039 = vpack.c.b16 %v3007, %v3007
      %v3040 = vpack.c.b16 %v3008, %v3008
      %v3041 = vpack.c.b16 %v3009, %v3009
      %v3042 = vpack.c.b16 %v3010, %v3010
      %v3043 = vpack.c.b16 %v3011, %v3011
      %v3044 = vpack.c.b16 %v3012, %v3012
      %v3045 = vpack.c.b16 %v3013, %v3013
      %v3046 = vpack.c.b16 %v3014, %v3014
      %v3047 = vpack.c.b16 %v3015, %v3015
      %v3049 = vshrl.u32 %v3016, 16
      %v3051 = vrot.slane %v3049, 7
      %v3052 = vshll.u32 %v3016, 16
      %v3054 = vor.u32 %v3051, %v3052
      %v3055 = vrot.slane %v3051, 4
      %v3057 = vshrl.u32 %v3017, 16
      %v3059 = vrot.slane %v3057, 7
      %v3060 = vshll.u32 %v3017, 16
      %v3062 = vor.u32 %v3059, %v3060
      %v3063 = vsel %vm1480, %v3055, %v3062
      %v3064 = vrot.slane %v3059, 4
      %v3066 = vshrl.u32 %v3018, 16
      %v3068 = vrot.slane %v3066, 7
      %v3069 = vshll.u32 %v3018, 16
      %v3071 = vor.u32 %v3068, %v3069
      %v3072 = vrot.slane %v3068, 4
      %v3074 = vshrl.u32 %v3019, 16
      %v3076 = vrot.slane %v3074, 7
      %v3077 = vshll.u32 %v3019, 16
      %v3079 = vor.u32 %v3076, %v3077
      %v3080 = vsel %vm1480, %v3072, %v3079
      %v3081 = vrot.slane %v3076, 4
      %v3083 = vshrl.u32 %v3020, 16
      %v3085 = vrot.slane %v3083, 7
      %v3086 = vshll.u32 %v3020, 16
      %v3088 = vor.u32 %v3085, %v3086
      %v3089 = vrot.slane %v3085, 4
      %v3091 = vshrl.u32 %v3021, 16
      %v3093 = vrot.slane %v3091, 7
      %v3094 = vshll.u32 %v3021, 16
      %v3096 = vor.u32 %v3093, %v3094
      %v3097 = vsel %vm1480, %v3089, %v3096
      %v3098 = vrot.slane %v3093, 4
      %v3100 = vshrl.u32 %v3022, 16
      %v3102 = vrot.slane %v3100, 7
      %v3103 = vshll.u32 %v3022, 16
      %v3105 = vor.u32 %v3102, %v3103
      %v3106 = vrot.slane %v3102, 4
      %v3108 = vshrl.u32 %v3023, 16
      %v3110 = vrot.slane %v3108, 7
      %v3111 = vshll.u32 %v3023, 16
      %v3113 = vor.u32 %v3110, %v3111
      %v3114 = vsel %vm1480, %v3106, %v3113
      %v3115 = vrot.slane %v3110, 4
      %v3117 = vshrl.u32 %v3024, 16
      %v3119 = vrot.slane %v3117, 7
      %v3120 = vshll.u32 %v3024, 16
      %v3122 = vor.u32 %v3119, %v3120
      %v3123 = vrot.slane %v3119, 4
      %v3125 = vshrl.u32 %v3025, 16
      %v3127 = vrot.slane %v3125, 7
      %v3128 = vshll.u32 %v3025, 16
      %v3130 = vor.u32 %v3127, %v3128
      %v3131 = vsel %vm1480, %v3123, %v3130
      %v3132 = vrot.slane %v3127, 4
      %v3134 = vshrl.u32 %v3026, 16
      %v3136 = vrot.slane %v3134, 7
      %v3137 = vshll.u32 %v3026, 16
      %v3139 = vor.u32 %v3136, %v3137
      %v3140 = vrot.slane %v3136, 4
      %v3142 = vshrl.u32 %v3027, 16
      %v3144 = vrot.slane %v3142, 7
      %v3145 = vshll.u32 %v3027, 16
      %v3147 = vor.u32 %v3144, %v3145
      %v3148 = vsel %vm1480, %v3140, %v3147
      %v3149 = vrot.slane %v3144, 4
      %v3151 = vshrl.u32 %v3028, 16
      %v3153 = vrot.slane %v3151, 7
      %v3154 = vshll.u32 %v3028, 16
      %v3156 = vor.u32 %v3153, %v3154
      %v3157 = vrot.slane %v3153, 4
      %v3159 = vshrl.u32 %v3029, 16
      %v3161 = vrot.slane %v3159, 7
      %v3162 = vshll.u32 %v3029, 16
      %v3164 = vor.u32 %v3161, %v3162
      %v3165 = vsel %vm1480, %v3157, %v3164
      %v3166 = vrot.slane %v3161, 4
      %v3168 = vshrl.u32 %v3030, 16
      %v3170 = vrot.slane %v3168, 7
      %v3171 = vshll.u32 %v3030, 16
      %v3173 = vor.u32 %v3170, %v3171
      %v3174 = vrot.slane %v3170, 4
      %v3176 = vshrl.u32 %v3031, 16
      %v3178 = vrot.slane %v3176, 7
      %v3179 = vshll.u32 %v3031, 16
      %v3181 = vor.u32 %v3178, %v3179
      %v3182 = vsel %vm1480, %v3174, %v3181
      %v3183 = vrot.slane %v3178, 4
      %v3185 = vshrl.u32 %v3032, 16
      %v3187 = vrot.slane %v3185, 7
      %v3188 = vshll.u32 %v3032, 16
      %v3190 = vor.u32 %v3187, %v3188
      %v3191 = vrot.slane %v3187, 4
      %v3193 = vshrl.u32 %v3033, 16
      %v3195 = vrot.slane %v3193, 7
      %v3196 = vshll.u32 %v3033, 16
      %v3198 = vor.u32 %v3195, %v3196
      %v3199 = vsel %vm1480, %v3191, %v3198
      %v3200 = vrot.slane %v3195, 4
      %v3202 = vshrl.u32 %v3034, 16
      %v3204 = vrot.slane %v3202, 7
      %v3205 = vshll.u32 %v3034, 16
      %v3207 = vor.u32 %v3204, %v3205
      %v3208 = vrot.slane %v3204, 4
      %v3210 = vshrl.u32 %v3035, 16
      %v3212 = vrot.slane %v3210, 7
      %v3213 = vshll.u32 %v3035, 16
      %v3215 = vor.u32 %v3212, %v3213
      %v3216 = vsel %vm1480, %v3208, %v3215
      %v3217 = vrot.slane %v3212, 4
      %v3219 = vshrl.u32 %v3036, 16
      %v3221 = vrot.slane %v3219, 7
      %v3222 = vshll.u32 %v3036, 16
      %v3224 = vor.u32 %v3221, %v3222
      %v3225 = vrot.slane %v3221, 4
      %v3227 = vshrl.u32 %v3037, 16
      %v3229 = vrot.slane %v3227, 7
      %v3230 = vshll.u32 %v3037, 16
      %v3232 = vor.u32 %v3229, %v3230
      %v3233 = vsel %vm1480, %v3225, %v3232
      %v3234 = vrot.slane %v3229, 4
      %v3236 = vshrl.u32 %v3038, 16
      %v3238 = vrot.slane %v3236, 7
      %v3239 = vshll.u32 %v3038, 16
      %v3241 = vor.u32 %v3238, %v3239
      %v3242 = vrot.slane %v3238, 4
      %v3244 = vshrl.u32 %v3039, 16
      %v3246 = vrot.slane %v3244, 7
      %v3247 = vshll.u32 %v3039, 16
      %v3249 = vor.u32 %v3246, %v3247
      %v3250 = vsel %vm1480, %v3242, %v3249
      %v3251 = vrot.slane %v3246, 4
      %v3253 = vshrl.u32 %v3040, 16
      %v3255 = vrot.slane %v3253, 7
      %v3256 = vshll.u32 %v3040, 16
      %v3258 = vor.u32 %v3255, %v3256
      %v3259 = vrot.slane %v3255, 4
      %v3261 = vshrl.u32 %v3041, 16
      %v3263 = vrot.slane %v3261, 7
      %v3264 = vshll.u32 %v3041, 16
      %v3266 = vor.u32 %v3263, %v3264
      %v3267 = vsel %vm1480, %v3259, %v3266
      %v3268 = vrot.slane %v3263, 4
      %v3270 = vshrl.u32 %v3042, 16
      %v3272 = vrot.slane %v3270, 7
      %v3273 = vshll.u32 %v3042, 16
      %v3275 = vor.u32 %v3272, %v3273
      %v3276 = vrot.slane %v3272, 4
      %v3278 = vshrl.u32 %v3043, 16
      %v3280 = vrot.slane %v3278, 7
      %v3281 = vshll.u32 %v3043, 16
      %v3283 = vor.u32 %v3280, %v3281
      %v3284 = vsel %vm1480, %v3276, %v3283
      %v3285 = vrot.slane %v3280, 4
      %v3287 = vshrl.u32 %v3044, 16
      %v3289 = vrot.slane %v3287, 7
      %v3290 = vshll.u32 %v3044, 16
      %v3292 = vor.u32 %v3289, %v3290
      %v3293 = vrot.slane %v3289, 4
      %v3295 = vshrl.u32 %v3045, 16
      %v3297 = vrot.slane %v3295, 7
      %v3298 = vshll.u32 %v3045, 16
      %v3300 = vor.u32 %v3297, %v3298
      %v3301 = vsel %vm1480, %v3293, %v3300
      %v3302 = vrot.slane %v3297, 4
      %v3304 = vshrl.u32 %v3046, 16
      %v3306 = vrot.slane %v3304, 7
      %v3307 = vshll.u32 %v3046, 16
      %v3309 = vor.u32 %v3306, %v3307
      %v3310 = vrot.slane %v3306, 4
      %v3312 = vshrl.u32 %v3047, 16
      %v3314 = vrot.slane %v3312, 7
      %v3315 = vshll.u32 %v3047, 16
      %v3317 = vor.u32 %v3314, %v3315
      %v3318 = vsel %vm1480, %v3310, %v3317
      %v3319 = vrot.slane %v3314, 4
      %s3368 = scalar_lea.vmem [#allocation3], 12
      %vm3369 = vcmask 257024
      %vm3370 = vmand %vm3369, %vm454
      %v3371 = vld [vmem:[%s3368] sm:$0xf]
      %v3372 = vsel %vm3370, %v3054, %v3371
      %3373 = vst [vmem:[%s3368] sm:$0xf] %v3372
      %3374 = vst.msk [vmem:[%s3368 + $0x4] sm:$0xf] %vm510, %v3063
      %v3375 = vld [vmem:[%s3368 + $0x8] sm:$0x1]
      %v3376 = vsel %vm520, %v3064, %v3375
      %3377 = vst [vmem:[%s3368 + $0x8] sm:$0x1] %v3376
      %v3378 = vld [vmem:[%s3368 + $0xc] sm:$0xf]
      %v3379 = vsel %vm3370, %v3071, %v3378
      %3380 = vst [vmem:[%s3368 + $0xc] sm:$0xf] %v3379
      %3381 = vst.msk [vmem:[%s3368 + $0x10] sm:$0xf] %vm510, %v3080
      %v3382 = vld [vmem:[%s3368 + $0x14] sm:$0x1]
      %v3383 = vsel %vm520, %v3081, %v3382
      %3384 = vst [vmem:[%s3368 + $0x14] sm:$0x1] %v3383
      %v3385 = vld [vmem:[%s3368 + $0x18] sm:$0xf]
      %v3386 = vsel %vm3370, %v3088, %v3385
      %3387 = vst [vmem:[%s3368 + $0x18] sm:$0xf] %v3386
      %3388 = vst.msk [vmem:[%s3368 + $0x1c] sm:$0xf] %vm510, %v3097
      %v3389 = vld [vmem:[%s3368 + $0x20] sm:$0x1]
      %v3390 = vsel %vm520, %v3098, %v3389
      %3391 = vst [vmem:[%s3368 + $0x20] sm:$0x1] %v3390
      %v3392 = vld [vmem:[%s3368 + $0x24] sm:$0xf]
      %v3393 = vsel %vm3370, %v3105, %v3392
      %3394 = vst [vmem:[%s3368 + $0x24] sm:$0xf] %v3393
      %3395 = vst.msk [vmem:[%s3368 + $0x28] sm:$0xf] %vm510, %v3114
      %v3396 = vld [vmem:[%s3368 + $0x2c] sm:$0x1]
      %v3397 = vsel %vm520, %v3115, %v3396
      %3398 = vst [vmem:[%s3368 + $0x2c] sm:$0x1] %v3397
      %v3399 = vld [vmem:[%s3368 + $0x30] sm:$0xf]
      %v3400 = vsel %vm3370, %v3122, %v3399
      %3401 = vst [vmem:[%s3368 + $0x30] sm:$0xf] %v3400
      %3402 = vst.msk [vmem:[%s3368 + $0x34] sm:$0xf] %vm510, %v3131
      %v3403 = vld [vmem:[%s3368 + $0x38] sm:$0x1]
      %v3404 = vsel %vm520, %v3132, %v3403
      %3405 = vst [vmem:[%s3368 + $0x38] sm:$0x1] %v3404
      %v3406 = vld [vmem:[%s3368 + $0x3c] sm:$0xf]
      %v3407 = vsel %vm3370, %v3139, %v3406
      %3408 = vst [vmem:[%s3368 + $0x3c] sm:$0xf] %v3407
      %3409 = vst.msk [vmem:[%s3368 + $0x40] sm:$0xf] %vm510, %v3148
      %v3410 = vld [vmem:[%s3368 + $0x44] sm:$0x1]
      %v3411 = vsel %vm520, %v3149, %v3410
      %3412 = vst [vmem:[%s3368 + $0x44] sm:$0x1] %v3411
      %v3413 = vld [vmem:[%s3368 + $0x48] sm:$0xf]
      %v3414 = vsel %vm3370, %v3156, %v3413
      %3415 = vst [vmem:[%s3368 + $0x48] sm:$0xf] %v3414
      %3416 = vst.msk [vmem:[%s3368 + $0x4c] sm:$0xf] %vm510, %v3165
      %v3417 = vld [vmem:[%s3368 + $0x50] sm:$0x1]
      %v3418 = vsel %vm520, %v3166, %v3417
      %3419 = vst [vmem:[%s3368 + $0x50] sm:$0x1] %v3418
      %v3420 = vld [vmem:[%s3368 + $0x54] sm:$0xf]
      %v3421 = vsel %vm3370, %v3173, %v3420
      %3422 = vst [vmem:[%s3368 + $0x54] sm:$0xf] %v3421
      %3423 = vst.msk [vmem:[%s3368 + $0x58] sm:$0xf] %vm510, %v3182
      %v3424 = vld [vmem:[%s3368 + $0x5c] sm:$0x1]
      %v3425 = vsel %vm520, %v3183, %v3424
      %3426 = vst [vmem:[%s3368 + $0x5c] sm:$0x1] %v3425
      %v3427 = vld [vmem:[%s3368 + $0x60] sm:$0xf]
      %v3428 = vsel %vm3370, %v3190, %v3427
      %3429 = vst [vmem:[%s3368 + $0x60] sm:$0xf] %v3428
      %3430 = vst.msk [vmem:[%s3368 + $0x64] sm:$0xf] %vm510, %v3199
      %v3431 = vld [vmem:[%s3368 + $0x68] sm:$0x1]
      %v3432 = vsel %vm520, %v3200, %v3431
      %3433 = vst [vmem:[%s3368 + $0x68] sm:$0x1] %v3432
      %v3434 = vld [vmem:[%s3368 + $0x6c] sm:$0xf]
      %v3435 = vsel %vm3370, %v3207, %v3434
      %3436 = vst [vmem:[%s3368 + $0x6c] sm:$0xf] %v3435
      %3437 = vst.msk [vmem:[%s3368 + $0x70] sm:$0xf] %vm510, %v3216
      %v3438 = vld [vmem:[%s3368 + $0x74] sm:$0x1]
      %v3439 = vsel %vm520, %v3217, %v3438
      %3440 = vst [vmem:[%s3368 + $0x74] sm:$0x1] %v3439
      %v3441 = vld [vmem:[%s3368 + $0x78] sm:$0xf]
      %v3442 = vsel %vm3370, %v3224, %v3441
      %3443 = vst [vmem:[%s3368 + $0x78] sm:$0xf] %v3442
      %3444 = vst.msk [vmem:[%s3368 + $0x7c] sm:$0xf] %vm510, %v3233
      %v3445 = vld [vmem:[%s3368 + $0x80] sm:$0x1]
      %v3446 = vsel %vm520, %v3234, %v3445
      %3447 = vst [vmem:[%s3368 + $0x80] sm:$0x1] %v3446
      %v3448 = vld [vmem:[%s3368 + $0x84] sm:$0xf]
      %v3449 = vsel %vm3370, %v3241, %v3448
      %3450 = vst [vmem:[%s3368 + $0x84] sm:$0xf] %v3449
      %3451 = vst.msk [vmem:[%s3368 + $0x88] sm:$0xf] %vm510, %v3250
      %v3452 = vld [vmem:[%s3368 + $0x8c] sm:$0x1]
      %v3453 = vsel %vm520, %v3251, %v3452
      %3454 = vst [vmem:[%s3368 + $0x8c] sm:$0x1] %v3453
      %v3455 = vld [vmem:[%s3368 + $0x90] sm:$0xf]
      %v3456 = vsel %vm3370, %v3258, %v3455
      %3457 = vst [vmem:[%s3368 + $0x90] sm:$0xf] %v3456
      %3458 = vst.msk [vmem:[%s3368 + $0x94] sm:$0xf] %vm510, %v3267
      %v3459 = vld [vmem:[%s3368 + $0x98] sm:$0x1]
      %v3460 = vsel %vm520, %v3268, %v3459
      %3461 = vst [vmem:[%s3368 + $0x98] sm:$0x1] %v3460
      %v3462 = vld [vmem:[%s3368 + $0x9c] sm:$0xf]
      %v3463 = vsel %vm3370, %v3275, %v3462
      %3464 = vst [vmem:[%s3368 + $0x9c] sm:$0xf] %v3463
      %3465 = vst.msk [vmem:[%s3368 + $0xa0] sm:$0xf] %vm510, %v3284
      %v3466 = vld [vmem:[%s3368 + $0xa4] sm:$0x1]
      %v3467 = vsel %vm520, %v3285, %v3466
      %3468 = vst [vmem:[%s3368 + $0xa4] sm:$0x1] %v3467
      %v3469 = vld [vmem:[%s3368 + $0xa8] sm:$0xf]
      %v3470 = vsel %vm3370, %v3292, %v3469
      %3471 = vst [vmem:[%s3368 + $0xa8] sm:$0xf] %v3470
      %3472 = vst.msk [vmem:[%s3368 + $0xac] sm:$0xf] %vm510, %v3301
      %v3473 = vld [vmem:[%s3368 + $0xb0] sm:$0x1]
      %v3474 = vsel %vm520, %v3302, %v3473
      %3475 = vst [vmem:[%s3368 + $0xb0] sm:$0x1] %v3474
      %v3476 = vld [vmem:[%s3368 + $0xb4] sm:$0xf]
      %v3477 = vsel %vm3370, %v3309, %v3476
      %3478 = vst [vmem:[%s3368 + $0xb4] sm:$0xf] %v3477
      %3479 = vst.msk [vmem:[%s3368 + $0xb8] sm:$0xf] %vm510, %v3318
      %v3480 = vld [vmem:[%s3368 + $0xbc] sm:$0x1]
      %v3481 = vsel %vm520, %v3319, %v3480
      %3482 = vst [vmem:[%s3368 + $0xbc] sm:$0x1] %v3481
      %v3483 = vld [vmem:[#allocation3] sm:$0xf]
      %v3484 = vld [vmem:[#allocation3 + $0x4] sm:$0xf]
      %v3485 = vld [vmem:[#allocation3 + $0x8] sm:$0x1]
      %v3486 = vld [vmem:[#allocation3 + $0xc] sm:$0xf]
      %v3487 = vld [vmem:[#allocation3 + $0x10] sm:$0xf]
      %v3488 = vld [vmem:[#allocation3 + $0x14] sm:$0x1]
      %v3489 = vld [vmem:[#allocation3 + $0x18] sm:$0xf]
      %v3490 = vld [vmem:[#allocation3 + $0x1c] sm:$0xf]
      %v3491 = vld [vmem:[#allocation3 + $0x20] sm:$0x1]
      %v3492 = vld [vmem:[#allocation3 + $0x24] sm:$0xf]
      %v3493 = vld [vmem:[#allocation3 + $0x28] sm:$0xf]
      %v3494 = vld [vmem:[#allocation3 + $0x2c] sm:$0x1]
      %v3495 = vld [vmem:[#allocation3 + $0x30] sm:$0xf]
      %v3496 = vld [vmem:[#allocation3 + $0x34] sm:$0xf]
      %v3497 = vld [vmem:[#allocation3 + $0x38] sm:$0x1]
      %v3498 = vld [vmem:[#allocation3 + $0x3c] sm:$0xf]
      %v3499 = vld [vmem:[#allocation3 + $0x40] sm:$0xf]
      %v3500 = vld [vmem:[#allocation3 + $0x44] sm:$0x1]
      %v3501 = vld [vmem:[#allocation3 + $0x48] sm:$0xf]
      %v3502 = vld [vmem:[#allocation3 + $0x4c] sm:$0xf]
      %v3503 = vld [vmem:[#allocation3 + $0x50] sm:$0x1]
      %v3504 = vld [vmem:[#allocation3 + $0x54] sm:$0xf]
      %v3505 = vld [vmem:[#allocation3 + $0x58] sm:$0xf]
      %v3506 = vld [vmem:[#allocation3 + $0x5c] sm:$0x1]
      %v3507 = vld [vmem:[#allocation3 + $0x60] sm:$0xf]
      %v3508 = vld [vmem:[#allocation3 + $0x64] sm:$0xf]
      %v3509 = vld [vmem:[#allocation3 + $0x68] sm:$0x1]
      %v3510 = vld [vmem:[#allocation3 + $0x6c] sm:$0xf]
      %v3511 = vld [vmem:[#allocation3 + $0x70] sm:$0xf]
      %v3512 = vld [vmem:[#allocation3 + $0x74] sm:$0x1]
      %v3513 = vld [vmem:[#allocation3 + $0x78] sm:$0xf]
      %v3514 = vld [vmem:[#allocation3 + $0x7c] sm:$0xf]
      %v3515 = vld [vmem:[#allocation3 + $0x80] sm:$0x1]
      %v3516 = vld [vmem:[#allocation3 + $0x84] sm:$0xf]
      %v3517 = vld [vmem:[#allocation3 + $0x88] sm:$0xf]
      %v3518 = vld [vmem:[#allocation3 + $0x8c] sm:$0x1]
      %v3519 = vld [vmem:[#allocation3 + $0x90] sm:$0xf]
      %v3520 = vld [vmem:[#allocation3 + $0x94] sm:$0xf]
      %v3521 = vld [vmem:[#allocation3 + $0x98] sm:$0x1]
      %v3522 = vld [vmem:[#allocation3 + $0x9c] sm:$0xf]
      %v3523 = vld [vmem:[#allocation3 + $0xa0] sm:$0xf]
      %v3524 = vld [vmem:[#allocation3 + $0xa4] sm:$0x1]
      %v3525 = vld [vmem:[#allocation3 + $0xa8] sm:$0xf]
      %v3526 = vld [vmem:[#allocation3 + $0xac] sm:$0xf]
      %v3527 = vld [vmem:[#allocation3 + $0xb0] sm:$0x1]
      %v3528 = vld [vmem:[#allocation3 + $0xb4] sm:$0xf]
      %v3529 = vld [vmem:[#allocation3 + $0xb8] sm:$0xf]
      %v3530 = vld [vmem:[#allocation3 + $0xbc] sm:$0x1]
      %v3531 = vld [vmem:[#allocation3 + $0xc0] sm:$0xf]
      %v3532 = vld [vmem:[#allocation3 + $0xc4] sm:$0xf]
      %v3533 = vld [vmem:[#allocation3 + $0xc8] sm:$0x1]
      %v3534 = vld [vmem:[#allocation3 + $0xcc] sm:$0xf]
      %v3535 = vld [vmem:[#allocation3 + $0xd0] sm:$0xf]
      %v3536 = vld [vmem:[#allocation3 + $0xd4] sm:$0x1]
      %v3573 = vunpack.c.l.b16 %v3483
      %v3574 = vunpack.c.l.b16 %v3484
      %v3575 = vunpack.c.l.b16 %v3486
      %v3576 = vunpack.c.l.b16 %v3487
      %v3577 = vunpack.c.l.b16 %v3489
      %v3578 = vunpack.c.l.b16 %v3490
      %v3579 = vunpack.c.l.b16 %v3492
      %v3580 = vunpack.c.l.b16 %v3493
      %v3581 = vunpack.c.l.b16 %v3495
      %v3582 = vunpack.c.l.b16 %v3496
      %v3583 = vunpack.c.l.b16 %v3498
      %v3584 = vunpack.c.l.b16 %v3499
      %v3585 = vunpack.c.l.b16 %v3501
      %v3586 = vunpack.c.l.b16 %v3502
      %v3587 = vunpack.c.l.b16 %v3504
      %v3588 = vunpack.c.l.b16 %v3505
      %v3589 = vunpack.c.l.b16 %v3507
      %v3590 = vunpack.c.l.b16 %v3508
      %v3591 = vunpack.c.l.b16 %v3510
      %v3592 = vunpack.c.l.b16 %v3511
      %v3593 = vunpack.c.l.b16 %v3513
      %v3594 = vunpack.c.l.b16 %v3514
      %v3595 = vunpack.c.l.b16 %v3516
      %v3596 = vunpack.c.l.b16 %v3517
      %v3597 = vunpack.c.l.b16 %v3519
      %v3598 = vunpack.c.l.b16 %v3520
      %v3599 = vunpack.c.l.b16 %v3522
      %v3600 = vunpack.c.l.b16 %v3523
      %v3601 = vunpack.c.l.b16 %v3525
      %v3602 = vunpack.c.l.b16 %v3526
      %v3603 = vunpack.c.l.b16 %v3528
      %v3604 = vunpack.c.l.b16 %v3529
      %v3605 = vunpack.c.l.b16 %v3531
      %v3606 = vunpack.c.l.b16 %v3532
      %v3607 = vunpack.c.l.b16 %v3534
      %v3608 = vunpack.c.l.b16 %v3535
      %v3609 = vpack.c.b16 %v3574, %v3573
      %v3610 = vpack.c.b16 %v3576, %v3575
      %v3611 = vpack.c.b16 %v3578, %v3577
      %v3612 = vpack.c.b16 %v3580, %v3579
      %v3613 = vpack.c.b16 %v3582, %v3581
      %v3614 = vpack.c.b16 %v3584, %v3583
      %v3615 = vpack.c.b16 %v3586, %v3585
      %v3616 = vpack.c.b16 %v3588, %v3587
      %v3617 = vpack.c.b16 %v3590, %v3589
      %v3618 = vpack.c.b16 %v3592, %v3591
      %v3619 = vpack.c.b16 %v3594, %v3593
      %v3620 = vpack.c.b16 %v3596, %v3595
      %v3621 = vpack.c.b16 %v3598, %v3597
      %v3622 = vpack.c.b16 %v3600, %v3599
      %v3623 = vpack.c.b16 %v3602, %v3601
      %v3624 = vpack.c.b16 %v3604, %v3603
      %v3625 = vpack.c.b16 %v3606, %v3605
      %v3626 = vpack.c.b16 %v3608, %v3607
      %v3645 = vunpack.c.l.b16 %v3485
      %v3646 = vunpack.c.l.b16 %v3488
      %v3647 = vunpack.c.l.b16 %v3491
      %v3648 = vunpack.c.l.b16 %v3494
      %v3649 = vunpack.c.l.b16 %v3497
      %v3650 = vunpack.c.l.b16 %v3500
      %v3651 = vunpack.c.l.b16 %v3503
      %v3652 = vunpack.c.l.b16 %v3506
      %v3653 = vunpack.c.l.b16 %v3509
      %v3654 = vunpack.c.l.b16 %v3512
      %v3655 = vunpack.c.l.b16 %v3515
      %v3656 = vunpack.c.l.b16 %v3518
      %v3657 = vunpack.c.l.b16 %v3521
      %v3658 = vunpack.c.l.b16 %v3524
      %v3659 = vunpack.c.l.b16 %v3527
      %v3660 = vunpack.c.l.b16 %v3530
      %v3661 = vunpack.c.l.b16 %v3533
      %v3662 = vunpack.c.l.b16 %v3536
      %v3663 = vpack.c.b16 %v3645, %v3645
      %v3664 = vpack.c.b16 %v3646, %v3646
      %v3665 = vpack.c.b16 %v3647, %v3647
      %v3666 = vpack.c.b16 %v3648, %v3648
      %v3667 = vpack.c.b16 %v3649, %v3649
      %v3668 = vpack.c.b16 %v3650, %v3650
      %v3669 = vpack.c.b16 %v3651, %v3651
      %v3670 = vpack.c.b16 %v3652, %v3652
      %v3671 = vpack.c.b16 %v3653, %v3653
      %v3672 = vpack.c.b16 %v3654, %v3654
      %v3673 = vpack.c.b16 %v3655, %v3655
      %v3674 = vpack.c.b16 %v3656, %v3656
      %v3675 = vpack.c.b16 %v3657, %v3657
      %v3676 = vpack.c.b16 %v3658, %v3658
      %v3677 = vpack.c.b16 %v3659, %v3659
      %v3678 = vpack.c.b16 %v3660, %v3660
      %v3679 = vpack.c.b16 %v3661, %v3661
      %v3680 = vpack.c.b16 %v3662, %v3662
      %v3682 = vshrl.u32 %v3609, 16
      %v3684 = vshll.u32 %v3609, 16
      %v3686 = vrot.slane %v3684, 1
      %v3687 = vor.u32 %v3682, %v3686
      %v3689 = vshll.u32 %v3663, 16
      %v3691 = vrot.slane %v3689, 1
      %v3692 = vsel %vm2114, %v3687, %v3691
      %v3694 = vshrl.u32 %v3610, 16
      %v3696 = vshll.u32 %v3610, 16
      %v3698 = vrot.slane %v3696, 1
      %v3699 = vor.u32 %v3694, %v3698
      %v3701 = vshll.u32 %v3664, 16
      %v3703 = vrot.slane %v3701, 1
      %v3704 = vsel %vm2114, %v3699, %v3703
      %v3706 = vshrl.u32 %v3611, 16
      %v3708 = vshll.u32 %v3611, 16
      %v3710 = vrot.slane %v3708, 1
      %v3711 = vor.u32 %v3706, %v3710
      %v3713 = vshll.u32 %v3665, 16
      %v3715 = vrot.slane %v3713, 1
      %v3716 = vsel %vm2114, %v3711, %v3715
      %v3718 = vshrl.u32 %v3612, 16
      %v3720 = vshll.u32 %v3612, 16
      %v3722 = vrot.slane %v3720, 1
      %v3723 = vor.u32 %v3718, %v3722
      %v3725 = vshll.u32 %v3666, 16
      %v3727 = vrot.slane %v3725, 1
      %v3728 = vsel %vm2114, %v3723, %v3727
      %v3730 = vshrl.u32 %v3613, 16
      %v3732 = vshll.u32 %v3613, 16
      %v3734 = vrot.slane %v3732, 1
      %v3735 = vor.u32 %v3730, %v3734
      %v3737 = vshll.u32 %v3667, 16
      %v3739 = vrot.slane %v3737, 1
      %v3740 = vsel %vm2114, %v3735, %v3739
      %v3742 = vshrl.u32 %v3614, 16
      %v3744 = vshll.u32 %v3614, 16
      %v3746 = vrot.slane %v3744, 1
      %v3747 = vor.u32 %v3742, %v3746
      %v3749 = vshll.u32 %v3668, 16
      %v3751 = vrot.slane %v3749, 1
      %v3752 = vsel %vm2114, %v3747, %v3751
      %v3754 = vshrl.u32 %v3615, 16
      %v3756 = vshll.u32 %v3615, 16
      %v3758 = vrot.slane %v3756, 1
      %v3759 = vor.u32 %v3754, %v3758
      %v3761 = vshll.u32 %v3669, 16
      %v3763 = vrot.slane %v3761, 1
      %v3764 = vsel %vm2114, %v3759, %v3763
      %v3766 = vshrl.u32 %v3616, 16
      %v3768 = vshll.u32 %v3616, 16
      %v3770 = vrot.slane %v3768, 1
      %v3771 = vor.u32 %v3766, %v3770
      %v3773 = vshll.u32 %v3670, 16
      %v3775 = vrot.slane %v3773, 1
      %v3776 = vsel %vm2114, %v3771, %v3775
      %v3778 = vshrl.u32 %v3617, 16
      %v3780 = vshll.u32 %v3617, 16
      %v3782 = vrot.slane %v3780, 1
      %v3783 = vor.u32 %v3778, %v3782
      %v3785 = vshll.u32 %v3671, 16
      %v3787 = vrot.slane %v3785, 1
      %v3788 = vsel %vm2114, %v3783, %v3787
      %v3790 = vshrl.u32 %v3618, 16
      %v3792 = vshll.u32 %v3618, 16
      %v3794 = vrot.slane %v3792, 1
      %v3795 = vor.u32 %v3790, %v3794
      %v3797 = vshll.u32 %v3672, 16
      %v3799 = vrot.slane %v3797, 1
      %v3800 = vsel %vm2114, %v3795, %v3799
      %v3802 = vshrl.u32 %v3619, 16
      %v3804 = vshll.u32 %v3619, 16
      %v3806 = vrot.slane %v3804, 1
      %v3807 = vor.u32 %v3802, %v3806
      %v3809 = vshll.u32 %v3673, 16
      %v3811 = vrot.slane %v3809, 1
      %v3812 = vsel %vm2114, %v3807, %v3811
      %v3814 = vshrl.u32 %v3620, 16
      %v3816 = vshll.u32 %v3620, 16
      %v3818 = vrot.slane %v3816, 1
      %v3819 = vor.u32 %v3814, %v3818
      %v3821 = vshll.u32 %v3674, 16
      %v3823 = vrot.slane %v3821, 1
      %v3824 = vsel %vm2114, %v3819, %v3823
      %v3826 = vshrl.u32 %v3621, 16
      %v3828 = vshll.u32 %v3621, 16
      %v3830 = vrot.slane %v3828, 1
      %v3831 = vor.u32 %v3826, %v3830
      %v3833 = vshll.u32 %v3675, 16
      %v3835 = vrot.slane %v3833, 1
      %v3836 = vsel %vm2114, %v3831, %v3835
      %v3838 = vshrl.u32 %v3622, 16
      %v3840 = vshll.u32 %v3622, 16
      %v3842 = vrot.slane %v3840, 1
      %v3843 = vor.u32 %v3838, %v3842
      %v3845 = vshll.u32 %v3676, 16
      %v3847 = vrot.slane %v3845, 1
      %v3848 = vsel %vm2114, %v3843, %v3847
      %v3850 = vshrl.u32 %v3623, 16
      %v3852 = vshll.u32 %v3623, 16
      %v3854 = vrot.slane %v3852, 1
      %v3855 = vor.u32 %v3850, %v3854
      %v3857 = vshll.u32 %v3677, 16
      %v3859 = vrot.slane %v3857, 1
      %v3860 = vsel %vm2114, %v3855, %v3859
      %v3862 = vshrl.u32 %v3624, 16
      %v3864 = vshll.u32 %v3624, 16
      %v3866 = vrot.slane %v3864, 1
      %v3867 = vor.u32 %v3862, %v3866
      %v3869 = vshll.u32 %v3678, 16
      %v3871 = vrot.slane %v3869, 1
      %v3872 = vsel %vm2114, %v3867, %v3871
      %v3874 = vshrl.u32 %v3625, 16
      %v3876 = vshll.u32 %v3625, 16
      %v3878 = vrot.slane %v3876, 1
      %v3879 = vor.u32 %v3874, %v3878
      %v3881 = vshll.u32 %v3679, 16
      %v3883 = vrot.slane %v3881, 1
      %v3884 = vsel %vm2114, %v3879, %v3883
      %v3886 = vshrl.u32 %v3626, 16
      %v3888 = vshll.u32 %v3626, 16
      %v3890 = vrot.slane %v3888, 1
      %v3891 = vor.u32 %v3886, %v3890
      %v3893 = vshll.u32 %v3680, 16
      %v3895 = vrot.slane %v3893, 1
      %v3896 = vsel %vm2114, %v3891, %v3895
      %3897 = vrot.lane.b32.xlu0 %v3692, 32
      %v3898 = vpop.permute.xlu0 %3897
      %3899 = vrot.lane.b32.xlu0 %v3704, 32
      %v3900 = vpop.permute.xlu0 %3899
      %3901 = vrot.lane.b32.xlu0 %v3716, 32
      %v3902 = vpop.permute.xlu0 %3901
      %3903 = vrot.lane.b32.xlu0 %v3728, 32
      %v3904 = vpop.permute.xlu0 %3903
      %3905 = vrot.lane.b32.xlu0 %v3740, 32
      %v3906 = vpop.permute.xlu0 %3905
      %3907 = vrot.lane.b32.xlu0 %v3752, 32
      %v3908 = vpop.permute.xlu0 %3907
      %3909 = vrot.lane.b32.xlu0 %v3764, 32
      %v3910 = vpop.permute.xlu0 %3909
      %3911 = vrot.lane.b32.xlu0 %v3776, 32
      %v3912 = vpop.permute.xlu0 %3911
      %3913 = vrot.lane.b32.xlu0 %v3788, 32
      %v3914 = vpop.permute.xlu0 %3913
      %3915 = vrot.lane.b32.xlu0 %v3800, 32
      %v3916 = vpop.permute.xlu0 %3915
      %3917 = vrot.lane.b32.xlu0 %v3812, 32
      %v3918 = vpop.permute.xlu0 %3917
      %3919 = vrot.lane.b32.xlu0 %v3824, 32
      %v3920 = vpop.permute.xlu0 %3919
      %3921 = vrot.lane.b32.xlu0 %v3836, 32
      %v3922 = vpop.permute.xlu0 %3921
      %3923 = vrot.lane.b32.xlu0 %v3848, 32
      %v3924 = vpop.permute.xlu0 %3923
      %3925 = vrot.lane.b32.xlu0 %v3860, 32
      %v3926 = vpop.permute.xlu0 %3925
      %3927 = vrot.lane.b32.xlu0 %v3872, 32
      %v3928 = vpop.permute.xlu0 %3927
      %3929 = vrot.lane.b32.xlu0 %v3884, 32
      %v3930 = vpop.permute.xlu0 %3929
      %3931 = vrot.lane.b32.xlu0 %v3896, 32
      %v3932 = vpop.permute.xlu0 %3931
      %v3933 = vrot.slane %v3609, 1
      %v3934 = vrot.slane %v3663, 1
      %v3935 = vsel %vm2367, %v3933, %v3934
      %v3936 = vrot.slane %v3610, 1
      %v3937 = vrot.slane %v3664, 1
      %v3938 = vsel %vm2367, %v3936, %v3937
      %v3939 = vrot.slane %v3611, 1
      %v3940 = vrot.slane %v3665, 1
      %v3941 = vsel %vm2367, %v3939, %v3940
      %v3942 = vrot.slane %v3612, 1
      %v3943 = vrot.slane %v3666, 1
      %v3944 = vsel %vm2367, %v3942, %v3943
      %v3945 = vrot.slane %v3613, 1
      %v3946 = vrot.slane %v3667, 1
      %v3947 = vsel %vm2367, %v3945, %v3946
      %v3948 = vrot.slane %v3614, 1
      %v3949 = vrot.slane %v3668, 1
      %v3950 = vsel %vm2367, %v3948, %v3949
      %v3951 = vrot.slane %v3615, 1
      %v3952 = vrot.slane %v3669, 1
      %v3953 = vsel %vm2367, %v3951, %v3952
      %v3954 = vrot.slane %v3616, 1
      %v3955 = vrot.slane %v3670, 1
      %v3956 = vsel %vm2367, %v3954, %v3955
      %v3957 = vrot.slane %v3617, 1
      %v3958 = vrot.slane %v3671, 1
      %v3959 = vsel %vm2367, %v3957, %v3958
      %v3960 = vrot.slane %v3618, 1
      %v3961 = vrot.slane %v3672, 1
      %v3962 = vsel %vm2367, %v3960, %v3961
      %v3963 = vrot.slane %v3619, 1
      %v3964 = vrot.slane %v3673, 1
      %v3965 = vsel %vm2367, %v3963, %v3964
      %v3966 = vrot.slane %v3620, 1
      %v3967 = vrot.slane %v3674, 1
      %v3968 = vsel %vm2367, %v3966, %v3967
      %v3969 = vrot.slane %v3621, 1
      %v3970 = vrot.slane %v3675, 1
      %v3971 = vsel %vm2367, %v3969, %v3970
      %v3972 = vrot.slane %v3622, 1
      %v3973 = vrot.slane %v3676, 1
      %v3974 = vsel %vm2367, %v3972, %v3973
      %v3975 = vrot.slane %v3623, 1
      %v3976 = vrot.slane %v3677, 1
      %v3977 = vsel %vm2367, %v3975, %v3976
      %v3978 = vrot.slane %v3624, 1
      %v3979 = vrot.slane %v3678, 1
      %v3980 = vsel %vm2367, %v3978, %v3979
      %v3981 = vrot.slane %v3625, 1
      %v3982 = vrot.slane %v3679, 1
      %v3983 = vsel %vm2367, %v3981, %v3982
      %v3984 = vrot.slane %v3626, 1
      %v3985 = vrot.slane %v3680, 1
      %v3986 = vsel %vm2367, %v3984, %v3985
      %3987 = vrot.lane.b32.xlu0 %v3935, 64
      %v3988 = vpop.permute.xlu0 %3987
      %3989 = vrot.lane.b32.xlu0 %v3938, 64
      %v3990 = vpop.permute.xlu0 %3989
      %3991 = vrot.lane.b32.xlu0 %v3941, 64
      %v3992 = vpop.permute.xlu0 %3991
      %3993 = vrot.lane.b32.xlu0 %v3944, 64
      %v3994 = vpop.permute.xlu0 %3993
      %3995 = vrot.lane.b32.xlu0 %v3947, 64
      %v3996 = vpop.permute.xlu0 %3995
      %3997 = vrot.lane.b32.xlu0 %v3950, 64
      %v3998 = vpop.permute.xlu0 %3997
      %3999 = vrot.lane.b32.xlu0 %v3953, 64
      %v4000 = vpop.permute.xlu0 %3999
      %4001 = vrot.lane.b32.xlu0 %v3956, 64
      %v4002 = vpop.permute.xlu0 %4001
      %4003 = vrot.lane.b32.xlu0 %v3959, 64
      %v4004 = vpop.permute.xlu0 %4003
      %4005 = vrot.lane.b32.xlu0 %v3962, 64
      %v4006 = vpop.permute.xlu0 %4005
      %4007 = vrot.lane.b32.xlu0 %v3965, 64
      %v4008 = vpop.permute.xlu0 %4007
      %4009 = vrot.lane.b32.xlu0 %v3968, 64
      %v4010 = vpop.permute.xlu0 %4009
      %4011 = vrot.lane.b32.xlu0 %v3971, 64
      %v4012 = vpop.permute.xlu0 %4011
      %4013 = vrot.lane.b32.xlu0 %v3974, 64
      %v4014 = vpop.permute.xlu0 %4013
      %4015 = vrot.lane.b32.xlu0 %v3977, 64
      %v4016 = vpop.permute.xlu0 %4015
      %4017 = vrot.lane.b32.xlu0 %v3980, 64
      %v4018 = vpop.permute.xlu0 %4017
      %4019 = vrot.lane.b32.xlu0 %v3983, 64
      %v4020 = vpop.permute.xlu0 %4019
      %4021 = vrot.lane.b32.xlu0 %v3986, 64
      %v4022 = vpop.permute.xlu0 %4021
      %vm4023 = vcmask 261120
      %v4025 = vsel %vm4023, %v3609, %v3898
      %v4027 = vsel %vm4023, %v3610, %v3900
      %v4029 = vsel %vm4023, %v3611, %v3902
      %v4031 = vsel %vm4023, %v3612, %v3904
      %v4033 = vsel %vm4023, %v3613, %v3906
      %v4035 = vsel %vm4023, %v3614, %v3908
      %v4037 = vsel %vm4023, %v3615, %v3910
      %v4039 = vsel %vm4023, %v3616, %v3912
      %v4041 = vsel %vm4023, %v3617, %v3914
      %v4043 = vsel %vm4023, %v3618, %v3916
      %v4045 = vsel %vm4023, %v3619, %v3918
      %v4047 = vsel %vm4023, %v3620, %v3920
      %v4049 = vsel %vm4023, %v3621, %v3922
      %v4051 = vsel %vm4023, %v3622, %v3924
      %v4053 = vsel %vm4023, %v3623, %v3926
      %v4055 = vsel %vm4023, %v3624, %v3928
      %v4057 = vsel %vm4023, %v3625, %v3930
      %v4059 = vsel %vm4023, %v3626, %v3932
      %vm4060 = vcmask 523264
      %v4062 = vsel %vm4060, %v4025, %v3988
      %v4064 = vsel %vm4060, %v4027, %v3990
      %v4066 = vsel %vm4060, %v4029, %v3992
      %v4068 = vsel %vm4060, %v4031, %v3994
      %v4070 = vsel %vm4060, %v4033, %v3996
      %v4072 = vsel %vm4060, %v4035, %v3998
      %v4074 = vsel %vm4060, %v4037, %v4000
      %v4076 = vsel %vm4060, %v4039, %v4002
      %v4078 = vsel %vm4060, %v4041, %v4004
      %v4080 = vsel %vm4060, %v4043, %v4006
      %v4082 = vsel %vm4060, %v4045, %v4008
      %v4084 = vsel %vm4060, %v4047, %v4010
      %v4086 = vsel %vm4060, %v4049, %v4012
      %v4088 = vsel %vm4060, %v4051, %v4014
      %v4090 = vsel %vm4060, %v4053, %v4016
      %v4092 = vsel %vm4060, %v4055, %v4018
      %v4094 = vsel %vm4060, %v4057, %v4020
      %v4096 = vsel %vm4060, %v4059, %v4022
      %4113 = vrot.lane.b32.xlu0 %v4064, 96
      %v4114 = vpop.permute.xlu0 %4113
      %4115 = vrot.lane.b32.xlu0 %v4066, 96
      %v4116 = vpop.permute.xlu0 %4115
      %4117 = vrot.lane.b32.xlu0 %v4068, 96
      %v4118 = vpop.permute.xlu0 %4117
      %4119 = vrot.lane.b32.xlu0 %v4070, 96
      %v4120 = vpop.permute.xlu0 %4119
      %4121 = vrot.lane.b32.xlu0 %v4072, 96
      %v4122 = vpop.permute.xlu0 %4121
      %4123 = vrot.lane.b32.xlu0 %v4074, 96
      %v4124 = vpop.permute.xlu0 %4123
      %4125 = vrot.lane.b32.xlu0 %v4076, 96
      %v4126 = vpop.permute.xlu0 %4125
      %4127 = vrot.lane.b32.xlu0 %v4078, 96
      %v4128 = vpop.permute.xlu0 %4127
      %4129 = vrot.lane.b32.xlu0 %v4080, 96
      %v4130 = vpop.permute.xlu0 %4129
      %4131 = vrot.lane.b32.xlu0 %v4082, 96
      %v4132 = vpop.permute.xlu0 %4131
      %4133 = vrot.lane.b32.xlu0 %v4084, 96
      %v4134 = vpop.permute.xlu0 %4133
      %4135 = vrot.lane.b32.xlu0 %v4086, 96
      %v4136 = vpop.permute.xlu0 %4135
      %4137 = vrot.lane.b32.xlu0 %v4088, 96
      %v4138 = vpop.permute.xlu0 %4137
      %4139 = vrot.lane.b32.xlu0 %v4090, 96
      %v4140 = vpop.permute.xlu0 %4139
      %4141 = vrot.lane.b32.xlu0 %v4092, 96
      %v4142 = vpop.permute.xlu0 %4141
      %4143 = vrot.lane.b32.xlu0 %v4094, 96
      %v4144 = vpop.permute.xlu0 %4143
      %4146 = vrot.lane.b32.xlu0 %v4066, 64
      %v4147 = vpop.permute.xlu0 %4146
      %4148 = vrot.lane.b32.xlu0 %v4068, 64
      %v4149 = vpop.permute.xlu0 %4148
      %4150 = vrot.lane.b32.xlu0 %v4070, 64
      %v4151 = vpop.permute.xlu0 %4150
      %4152 = vrot.lane.b32.xlu0 %v4072, 64
      %v4153 = vpop.permute.xlu0 %4152
      %4154 = vrot.lane.b32.xlu0 %v4074, 64
      %v4155 = vpop.permute.xlu0 %4154
      %4156 = vrot.lane.b32.xlu0 %v4076, 64
      %v4157 = vpop.permute.xlu0 %4156
      %4158 = vrot.lane.b32.xlu0 %v4078, 64
      %v4159 = vpop.permute.xlu0 %4158
      %4160 = vrot.lane.b32.xlu0 %v4080, 64
      %v4161 = vpop.permute.xlu0 %4160
      %4162 = vrot.lane.b32.xlu0 %v4082, 64
      %v4163 = vpop.permute.xlu0 %4162
      %4164 = vrot.lane.b32.xlu0 %v4084, 64
      %v4165 = vpop.permute.xlu0 %4164
      %4166 = vrot.lane.b32.xlu0 %v4086, 64
      %v4167 = vpop.permute.xlu0 %4166
      %4168 = vrot.lane.b32.xlu0 %v4088, 64
      %v4169 = vpop.permute.xlu0 %4168
      %4170 = vrot.lane.b32.xlu0 %v4090, 64
      %v4171 = vpop.permute.xlu0 %4170
      %4172 = vrot.lane.b32.xlu0 %v4092, 64
      %v4173 = vpop.permute.xlu0 %4172
      %4174 = vrot.lane.b32.xlu0 %v4094, 64
      %v4175 = vpop.permute.xlu0 %4174
      %4176 = vrot.lane.b32.xlu0 %v4096, 64
      %v4177 = vpop.permute.xlu0 %4176
      %vm4178 = vcmask 785408
      %v4180 = vsel %vm4178, %v4062, %v4114
      %v4183 = vsel %vm4178, %v4064, %v4116
      %v4186 = vsel %vm4178, %v4066, %v4118
      %v4189 = vsel %vm4178, %v4068, %v4120
      %v4192 = vsel %vm4178, %v4070, %v4122
      %v4195 = vsel %vm4178, %v4072, %v4124
      %v4198 = vsel %vm4178, %v4074, %v4126
      %v4201 = vsel %vm4178, %v4076, %v4128
      %v4204 = vsel %vm4178, %v4078, %v4130
      %v4207 = vsel %vm4178, %v4080, %v4132
      %v4210 = vsel %vm4178, %v4082, %v4134
      %v4213 = vsel %vm4178, %v4084, %v4136
      %v4216 = vsel %vm4178, %v4086, %v4138
      %v4219 = vsel %vm4178, %v4088, %v4140
      %v4222 = vsel %vm4178, %v4090, %v4142
      %v4225 = vsel %vm4178, %v4092, %v4144
      %v4228 = vsel %vm4060, %v4114, %v4147
      %v4231 = vsel %vm4060, %v4116, %v4149
      %v4234 = vsel %vm4060, %v4118, %v4151
      %v4237 = vsel %vm4060, %v4120, %v4153
      %v4240 = vsel %vm4060, %v4122, %v4155
      %v4243 = vsel %vm4060, %v4124, %v4157
      %v4246 = vsel %vm4060, %v4126, %v4159
      %v4249 = vsel %vm4060, %v4128, %v4161
      %v4252 = vsel %vm4060, %v4130, %v4163
      %v4255 = vsel %vm4060, %v4132, %v4165
      %v4258 = vsel %vm4060, %v4134, %v4167
      %v4261 = vsel %vm4060, %v4136, %v4169
      %v4264 = vsel %vm4060, %v4138, %v4171
      %v4267 = vsel %vm4060, %v4140, %v4173
      %v4270 = vsel %vm4060, %v4142, %v4175
      %v4273 = vsel %vm4060, %v4144, %v4177
      %v4275 = vld [vmem:[%s3] sm:$0xf]
      %v4276 = vld [vmem:[%s3 + $0x4] sm:$0xf]
      %v4277 = vld [vmem:[%s3 + $0x8] sm:$0xf]
      %v4278 = vld [vmem:[%s3 + $0xc] sm:$0xf]
      %v4279 = vld [vmem:[%s3 + $0x10] sm:$0xf]
      %v4280 = vld [vmem:[%s3 + $0x14] sm:$0xf]
      %v4281 = vld [vmem:[%s3 + $0x18] sm:$0xf]
      %v4282 = vld [vmem:[%s3 + $0x1c] sm:$0xf]
      %v4283 = vld [vmem:[%s3 + $0x20] sm:$0xf]
      %v4284 = vld [vmem:[%s3 + $0x24] sm:$0xf]
      %v4285 = vld [vmem:[%s3 + $0x28] sm:$0xf]
      %v4286 = vld [vmem:[%s3 + $0x2c] sm:$0xf]
      %v4287 = vld [vmem:[%s3 + $0x30] sm:$0xf]
      %v4288 = vld [vmem:[%s3 + $0x34] sm:$0xf]
      %v4289 = vld [vmem:[%s3 + $0x38] sm:$0xf]
      %v4290 = vld [vmem:[%s3 + $0x3c] sm:$0xf]
      %v4291 = vld [vmem:[%s3 + $0x40] sm:$0xf]
      %v4292 = vld [vmem:[%s3 + $0x44] sm:$0xf]
      %v4293 = vld [vmem:[%s3 + $0x48] sm:$0xf]
      %v4294 = vld [vmem:[%s3 + $0x4c] sm:$0xf]
      %v4295 = vld [vmem:[%s3 + $0x50] sm:$0xf]
      %v4296 = vld [vmem:[%s3 + $0x54] sm:$0xf]
      %v4297 = vld [vmem:[%s3 + $0x58] sm:$0xf]
      %v4298 = vld [vmem:[%s3 + $0x5c] sm:$0xf]
      %v4299 = vld [vmem:[%s3 + $0x60] sm:$0xf]
      %v4300 = vld [vmem:[%s3 + $0x64] sm:$0xf]
      %v4301 = vld [vmem:[%s3 + $0x68] sm:$0xf]
      %v4302 = vld [vmem:[%s3 + $0x6c] sm:$0xf]
      %v4303 = vld [vmem:[%s3 + $0x70] sm:$0xf]
      %v4304 = vld [vmem:[%s3 + $0x74] sm:$0xf]
      %v4305 = vld [vmem:[%s3 + $0x78] sm:$0xf]
      %v4306 = vld [vmem:[%s3 + $0x7c] sm:$0xf]
      %v4307 = vld [vmem:[%s3 + $0x80] sm:$0xf]
      %v4308 = vld [vmem:[%s3 + $0x84] sm:$0xf]
      %v4309 = vld [vmem:[%s3 + $0x88] sm:$0xf]
      %v4310 = vld [vmem:[%s3 + $0x8c] sm:$0xf]
      %v4311 = vld [vmem:[%s4] sm:$0x1]
      %v4313 = vlaneseq
      %v4314 = vshrl.u32 %v4313, 7
      %v4315 = vsub.s32 0, %v4314
      %v4316 = vrot.slane %v4311, %v4315
      %v4354 = vunpack.c.l.b16 %v4275
      %v4355 = vunpack.c.l.b16 %v4276
      %v4356 = vunpack.c.l.b16 %v4277
      %v4357 = vunpack.c.l.b16 %v4278
      %v4358 = vunpack.c.l.b16 %v4279
      %v4359 = vunpack.c.l.b16 %v4280
      %v4360 = vunpack.c.l.b16 %v4281
      %v4361 = vunpack.c.l.b16 %v4282
      %v4362 = vunpack.c.l.b16 %v4283
      %v4363 = vunpack.c.l.b16 %v4284
      %v4364 = vunpack.c.l.b16 %v4285
      %v4365 = vunpack.c.l.b16 %v4286
      %v4366 = vunpack.c.l.b16 %v4287
      %v4367 = vunpack.c.l.b16 %v4288
      %v4368 = vunpack.c.l.b16 %v4289
      %v4369 = vunpack.c.l.b16 %v4290
      %v4370 = vunpack.c.l.b16 %v4291
      %v4371 = vunpack.c.l.b16 %v4292
      %v4372 = vunpack.c.l.b16 %v4293
      %v4373 = vunpack.c.l.b16 %v4294
      %v4374 = vunpack.c.l.b16 %v4295
      %v4375 = vunpack.c.l.b16 %v4296
      %v4376 = vunpack.c.l.b16 %v4297
      %v4377 = vunpack.c.l.b16 %v4298
      %v4378 = vunpack.c.l.b16 %v4299
      %v4379 = vunpack.c.l.b16 %v4300
      %v4380 = vunpack.c.l.b16 %v4301
      %v4381 = vunpack.c.l.b16 %v4302
      %v4382 = vunpack.c.l.b16 %v4303
      %v4383 = vunpack.c.l.b16 %v4304
      %v4384 = vunpack.c.l.b16 %v4305
      %v4385 = vunpack.c.l.b16 %v4306
      %v4386 = vunpack.c.l.b16 %v4307
      %v4387 = vunpack.c.l.b16 %v4308
      %v4388 = vunpack.c.l.b16 %v4309
      %v4389 = vunpack.c.l.b16 %v4310
      %v4390 = vpack.c.b16 %v4355, %v4354
      %v4391 = vpack.c.b16 %v4357, %v4356
      %v4392 = vpack.c.b16 %v4359, %v4358
      %v4393 = vpack.c.b16 %v4361, %v4360
      %v4394 = vpack.c.b16 %v4363, %v4362
      %v4395 = vpack.c.b16 %v4365, %v4364
      %v4396 = vpack.c.b16 %v4367, %v4366
      %v4397 = vpack.c.b16 %v4369, %v4368
      %v4398 = vpack.c.b16 %v4371, %v4370
      %v4399 = vpack.c.b16 %v4373, %v4372
      %v4400 = vpack.c.b16 %v4375, %v4374
      %v4401 = vpack.c.b16 %v4377, %v4376
      %v4402 = vpack.c.b16 %v4379, %v4378
      %v4403 = vpack.c.b16 %v4381, %v4380
      %v4404 = vpack.c.b16 %v4383, %v4382
      %v4405 = vpack.c.b16 %v4385, %v4384
      %v4406 = vpack.c.b16 %v4387, %v4386
      %v4407 = vpack.c.b16 %v4389, %v4388
      %v4426 = vsel %vm4023, %v4147, 0
      %v4428 = vsel %vm4023, %v4149, 0
      %v4430 = vsel %vm4023, %v4151, 0
      %v4432 = vsel %vm4023, %v4153, 0
      %v4434 = vsel %vm4023, %v4155, 0
      %v4436 = vsel %vm4023, %v4157, 0
      %v4438 = vsel %vm4023, %v4159, 0
      %v4440 = vsel %vm4023, %v4161, 0
      %v4442 = vsel %vm4023, %v4163, 0
      %v4444 = vsel %vm4023, %v4165, 0
      %v4446 = vsel %vm4023, %v4167, 0
      %v4448 = vsel %vm4023, %v4169, 0
      %v4450 = vsel %vm4023, %v4171, 0
      %v4452 = vsel %vm4023, %v4173, 0
      %v4454 = vsel %vm4023, %v4175, 0
      %v4456 = vsel %vm4023, %v4177, 0
      %4458 = vmatprep.subr.bf16.mxu0 0
      %4459 = vmatpush1.bf16.msra.mxu0 %v4390
      %4460 = vmatprep.subr.bf16.mxu0 0
      %4461 = vmatpush1.bf16.msra.mxu0 %v4391
      %4462 = vmatprep.subr.bf16.mxu0 0
      %4463 = vmatpush1.bf16.msra.mxu0 %v4392
      %4464 = vmatprep.subr.bf16.mxu0 0
      %4465 = vmatpush1.bf16.msra.mxu0 %v4393
      %4466 = vmatprep.subr.bf16.mxu0 0
      %4467 = vmatpush1.bf16.msra.mxu0 %v4394
      %4468 = vmatprep.subr.bf16.mxu0 0
      %4469 = vmatpush1.bf16.msra.mxu0 %v4395
      %4470 = vmatprep.subr.bf16.mxu0 0
      %4471 = vmatpush1.bf16.msra.mxu0 %v4396
      %4472 = vmatprep.subr.bf16.mxu0 0
      %4473 = vmatpush1.bf16.msra.mxu0 %v4397
      %4474 = vmatprep.subr.bf16.mxu0 0
      %4475 = vmatpush1.bf16.msra.mxu0 %v4398
      %4476 = vmatprep.subr.bf16.mxu0 0
      %4477 = vmatpush1.bf16.msra.mxu0 %v4399
      %4478 = vmatprep.subr.bf16.mxu0 0
      %4479 = vmatpush1.bf16.msra.mxu0 %v4400
      %4480 = vmatprep.subr.bf16.mxu0 0
      %4481 = vmatpush1.bf16.msra.mxu0 %v4401
      %4482 = vmatprep.subr.bf16.mxu0 0
      %4483 = vmatpush1.bf16.msra.mxu0 %v4402
      %4484 = vmatprep.subr.bf16.mxu0 0
      %4485 = vmatpush1.bf16.msra.mxu0 %v4403
      %4486 = vmatprep.subr.bf16.mxu0 0
      %4487 = vmatpush1.bf16.msra.mxu0 %v4404
      %4488 = vmatprep.subr.bf16.mxu0 0
      %4489 = vmatpush1.bf16.msra.mxu0 %v4405
      %4490 = vmatprep.mubr.bf16.mxu0 %v4228
      %4491 = vmatmul.mubr.bf16.gmra.mrb[0].mxu0 %v4180
      %v4492 = vpop.f32.mrb[0].mxu0
      %v4493 = vadd.f32 %v4316, %v4492
      %v4494 = vpop.f32.mrb[0].mxu0
      %v4495 = vpop.f32.mrb[0].mxu0
      %v4496 = vadd.f32 %v4316, %v4495
      %v4497 = vpop.f32.mrb[0].mxu0
      %4498 = vmatprep.mubr.bf16.mxu0 %v4231
      %4499 = vmatmul.mubr.bf16.gmra.mrb[0].mxu0 %v4183
      %v4500 = vpop.f32.mrb[0].mxu0
      %v4501 = vadd.f32 %v4316, %v4500
      %v4502 = vpop.f32.mrb[0].mxu0
      %v4503 = vpop.f32.mrb[0].mxu0
      %v4504 = vadd.f32 %v4316, %v4503
      %v4505 = vpop.f32.mrb[0].mxu0
      %4506 = vmatprep.mubr.bf16.mxu0 %v4234
      %4507 = vmatmul.mubr.bf16.gmra.mrb[0].mxu0 %v4186
      %v4508 = vpop.f32.mrb[0].mxu0
      %v4509 = vadd.f32 %v4316, %v4508
      %v4510 = vpop.f32.mrb[0].mxu0
      %v4511 = vpop.f32.mrb[0].mxu0
      %v4512 = vadd.f32 %v4316, %v4511
      %v4513 = vpop.f32.mrb[0].mxu0
      %4514 = vmatprep.mubr.bf16.mxu0 %v4237
      %4515 = vmatmul.mubr.bf16.gmra.mrb[0].mxu0 %v4189
      %v4516 = vpop.f32.mrb[0].mxu0
      %v4517 = vadd.f32 %v4316, %v4516
      %v4518 = vpop.f32.mrb[0].mxu0
      %v4519 = vpop.f32.mrb[0].mxu0
      %v4520 = vadd.f32 %v4316, %v4519
      %v4521 = vpop.f32.mrb[0].mxu0
      %4522 = vmatprep.mubr.bf16.mxu0 %v4240
      %4523 = vmatmul.mubr.bf16.gmra.mrb[0].mxu0 %v4192
      %v4524 = vpop.f32.mrb[0].mxu0
      %v4525 = vadd.f32 %v4316, %v4524
      %v4526 = vpop.f32.mrb[0].mxu0
      %v4527 = vpop.f32.mrb[0].mxu0
      %v4528 = vadd.f32 %v4316, %v4527
      %v4529 = vpop.f32.mrb[0].mxu0
      %4530 = vmatprep.mubr.bf16.mxu0 %v4243
      %4531 = vmatmul.mubr.bf16.gmra.mrb[0].mxu0 %v4195
      %v4532 = vpop.f32.mrb[0].mxu0
      %v4533 = vadd.f32 %v4316, %v4532
      %v4534 = vpop.f32.mrb[0].mxu0
      %v4535 = vpop.f32.mrb[0].mxu0
      %v4536 = vadd.f32 %v4316, %v4535
      %v4537 = vpop.f32.mrb[0].mxu0
      %4538 = vmatprep.mubr.bf16.mxu0 %v4246
      %4539 = vmatmul.mubr.bf16.gmra.mrb[0].mxu0 %v4198
      %v4540 = vpop.f32.mrb[0].mxu0
      %v4541 = vadd.f32 %v4316, %v4540
      %v4542 = vpop.f32.mrb[0].mxu0
      %v4543 = vpop.f32.mrb[0].mxu0
      %v4544 = vadd.f32 %v4316, %v4543
      %v4545 = vpop.f32.mrb[0].mxu0
      %4546 = vmatprep.mubr.bf16.mxu0 %v4249
      %4547 = vmatmul.mubr.bf16.gmra.mrb[0].mxu0 %v4201
      %v4548 = vpop.f32.mrb[0].mxu0
      %v4549 = vadd.f32 %v4316, %v4548
      %v4550 = vpop.f32.mrb[0].mxu0
      %v4551 = vpop.f32.mrb[0].mxu0
      %v4552 = vadd.f32 %v4316, %v4551
      %v4553 = vpop.f32.mrb[0].mxu0
      %4554 = vmatprep.mubr.bf16.mxu0 %v4252
      %4555 = vmatmul.mubr.bf16.gmra.mrb[0].mxu0 %v4204
      %v4556 = vpop.f32.mrb[0].mxu0
      %v4557 = vadd.f32 %v4316, %v4556
      %v4558 = vpop.f32.mrb[0].mxu0
      %v4559 = vpop.f32.mrb[0].mxu0
      %v4560 = vadd.f32 %v4316, %v4559
      %v4561 = vpop.f32.mrb[0].mxu0
      %4562 = vmatprep.mubr.bf16.mxu0 %v4255
      %4563 = vmatmul.mubr.bf16.gmra.mrb[0].mxu0 %v4207
      %v4564 = vpop.f32.mrb[0].mxu0
      %v4565 = vadd.f32 %v4316, %v4564
      %v4566 = vpop.f32.mrb[0].mxu0
      %v4567 = vpop.f32.mrb[0].mxu0
      %v4568 = vadd.f32 %v4316, %v4567
      %v4569 = vpop.f32.mrb[0].mxu0
      %4570 = vmatprep.mubr.bf16.mxu0 %v4258
      %4571 = vmatmul.mubr.bf16.gmra.mrb[0].mxu0 %v4210
      %v4572 = vpop.f32.mrb[0].mxu0
      %v4573 = vadd.f32 %v4316, %v4572
      %v4574 = vpop.f32.mrb[0].mxu0
      %v4575 = vpop.f32.mrb[0].mxu0
      %v4576 = vadd.f32 %v4316, %v4575
      %v4577 = vpop.f32.mrb[0].mxu0
      %4578 = vmatprep.mubr.bf16.mxu0 %v4261
      %4579 = vmatmul.mubr.bf16.gmra.mrb[0].mxu0 %v4213
      %v4580 = vpop.f32.mrb[0].mxu0
      %v4581 = vadd.f32 %v4316, %v4580
      %v4582 = vpop.f32.mrb[0].mxu0
      %v4583 = vpop.f32.mrb[0].mxu0
      %v4584 = vadd.f32 %v4316, %v4583
      %v4585 = vpop.f32.mrb[0].mxu0
      %4586 = vmatprep.mubr.bf16.mxu0 %v4264
      %4587 = vmatmul.mubr.bf16.gmra.mrb[0].mxu0 %v4216
      %v4588 = vpop.f32.mrb[0].mxu0
      %v4589 = vadd.f32 %v4316, %v4588
      %v4590 = vpop.f32.mrb[0].mxu0
      %v4591 = vpop.f32.mrb[0].mxu0
      %v4592 = vadd.f32 %v4316, %v4591
      %v4593 = vpop.f32.mrb[0].mxu0
      %4594 = vmatprep.mubr.bf16.mxu0 %v4267
      %4595 = vmatmul.mubr.bf16.gmra.mrb[0].mxu0 %v4219
      %v4596 = vpop.f32.mrb[0].mxu0
      %v4597 = vadd.f32 %v4316, %v4596
      %v4598 = vpop.f32.mrb[0].mxu0
      %v4599 = vpop.f32.mrb[0].mxu0
      %v4600 = vadd.f32 %v4316, %v4599
      %v4601 = vpop.f32.mrb[0].mxu0
      %4602 = vmatprep.mubr.bf16.mxu0 %v4270
      %4603 = vmatmul.mubr.bf16.gmra.mrb[0].mxu0 %v4222
      %v4604 = vpop.f32.mrb[0].mxu0
      %v4605 = vadd.f32 %v4316, %v4604
      %v4606 = vpop.f32.mrb[0].mxu0
      %v4607 = vpop.f32.mrb[0].mxu0
      %v4608 = vadd.f32 %v4316, %v4607
      %v4609 = vpop.f32.mrb[0].mxu0
      %4610 = vmatprep.mubr.bf16.mxu0 %v4273
      %4611 = vmatmul.mubr.bf16.gmra.mrb[0].mxu0 %v4225
      %v4612 = vpop.f32.mrb[0].mxu0
      %v4613 = vadd.f32 %v4316, %v4612
      %v4614 = vpop.f32.mrb[0].mxu0
      %v4615 = vpop.f32.mrb[0].mxu0
      %v4616 = vadd.f32 %v4316, %v4615
      %v4617 = vpop.f32.mrb[0].mxu0
      %4618 = vdwg.mxu0
      %4619 = vmatprep.subr.bf16.mxu0 0
      %4620 = vmatpush1.bf16.msra.mxu0 %v4406
      %4621 = vmatprep.subr.bf16.mxu0 0
      %4622 = vmatpush1.bf16.msra.mxu0 %v4407
      %4623 = vmatprep.subr.bf16.mxu0 0
      %4624 = vmatpush1.bf16.msra.mxu0 0
      %4625 = vmatprep.subr.bf16.mxu0 0
      %4626 = vmatpush1.bf16.msra.mxu0 0
      %4627 = vmatprep.subr.bf16.mxu0 0
      %4628 = vmatpush1.bf16.msra.mxu0 0
      %4629 = vmatprep.subr.bf16.mxu0 0
      %4630 = vmatpush1.bf16.msra.mxu0 0
      %4631 = vmatprep.subr.bf16.mxu0 0
      %4632 = vmatpush1.bf16.msra.mxu0 0
      %4633 = vmatprep.subr.bf16.mxu0 0
      %4634 = vmatpush1.bf16.msra.mxu0 0
      %4635 = vmatprep.subr.bf16.mxu0 0
      %4636 = vmatpush1.bf16.msra.mxu0 0
      %4637 = vmatprep.subr.bf16.mxu0 0
      %4638 = vmatpush1.bf16.msra.mxu0 0
      %4639 = vmatprep.subr.bf16.mxu0 0
      %4640 = vmatpush1.bf16.msra.mxu0 0
      %4641 = vmatprep.subr.bf16.mxu0 0
      %4642 = vmatpush1.bf16.msra.mxu0 0
      %4643 = vmatprep.subr.bf16.mxu0 0
      %4644 = vmatpush1.bf16.msra.mxu0 0
      %4645 = vmatprep.subr.bf16.mxu0 0
      %4646 = vmatpush1.bf16.msra.mxu0 0
      %4647 = vmatprep.subr.bf16.mxu0 0
      %4648 = vmatpush1.bf16.msra.mxu0 0
      %4649 = vmatprep.subr.bf16.mxu0 0
      %4650 = vmatpush1.bf16.msra.mxu0 0
      %4651 = vmatprep.mubr.bf16.mxu0 0
      %4652 = vmatmul.mubr.bf16.gmra.mrb[0].mxu0 %v4426
      %v4653 = vpop.f32.mrb[0].mxu0
      %v4654 = vadd.f32 %v4493, %v4653
      %v4655 = vpop.f32.mrb[0].mxu0
      %v4656 = vpop.f32.mrb[0].mxu0
      %v4657 = vadd.f32 %v4496, %v4656
      %v4658 = vpop.f32.mrb[0].mxu0
      %4659 = vmatprep.mubr.bf16.mxu0 0
      %4660 = vmatmul.mubr.bf16.gmra.mrb[0].mxu0 %v4428
      %v4661 = vpop.f32.mrb[0].mxu0
      %v4662 = vadd.f32 %v4501, %v4661
      %v4663 = vpop.f32.mrb[0].mxu0
      %v4664 = vpop.f32.mrb[0].mxu0
      %v4665 = vadd.f32 %v4504, %v4664
      %v4666 = vpop.f32.mrb[0].mxu0
      %4667 = vmatprep.mubr.bf16.mxu0 0
      %4668 = vmatmul.mubr.bf16.gmra.mrb[0].mxu0 %v4430
      %v4669 = vpop.f32.mrb[0].mxu0
      %v4670 = vadd.f32 %v4509, %v4669
      %v4671 = vpop.f32.mrb[0].mxu0
      %v4672 = vpop.f32.mrb[0].mxu0
      %v4673 = vadd.f32 %v4512, %v4672
      %v4674 = vpop.f32.mrb[0].mxu0
      %4675 = vmatprep.mubr.bf16.mxu0 0
      %4676 = vmatmul.mubr.bf16.gmra.mrb[0].mxu0 %v4432
      %v4677 = vpop.f32.mrb[0].mxu0
      %v4678 = vadd.f32 %v4517, %v4677
      %v4679 = vpop.f32.mrb[0].mxu0
      %v4680 = vpop.f32.mrb[0].mxu0
      %v4681 = vadd.f32 %v4520, %v4680
      %v4682 = vpop.f32.mrb[0].mxu0
      %4683 = vmatprep.mubr.bf16.mxu0 0
      %4684 = vmatmul.mubr.bf16.gmra.mrb[0].mxu0 %v4434
      %v4685 = vpop.f32.mrb[0].mxu0
      %v4686 = vadd.f32 %v4525, %v4685
      %v4687 = vpop.f32.mrb[0].mxu0
      %v4688 = vpop.f32.mrb[0].mxu0
      %v4689 = vadd.f32 %v4528, %v4688
      %v4690 = vpop.f32.mrb[0].mxu0
      %4691 = vmatprep.mubr.bf16.mxu0 0
      %4692 = vmatmul.mubr.bf16.gmra.mrb[0].mxu0 %v4436
      %v4693 = vpop.f32.mrb[0].mxu0
      %v4694 = vadd.f32 %v4533, %v4693
      %v4695 = vpop.f32.mrb[0].mxu0
      %v4696 = vpop.f32.mrb[0].mxu0
      %v4697 = vadd.f32 %v4536, %v4696
      %v4698 = vpop.f32.mrb[0].mxu0
      %4699 = vmatprep.mubr.bf16.mxu0 0
      %4700 = vmatmul.mubr.bf16.gmra.mrb[0].mxu0 %v4438
      %v4701 = vpop.f32.mrb[0].mxu0
      %v4702 = vadd.f32 %v4541, %v4701
      %v4703 = vpop.f32.mrb[0].mxu0
      %v4704 = vpop.f32.mrb[0].mxu0
      %v4705 = vadd.f32 %v4544, %v4704
      %v4706 = vpop.f32.mrb[0].mxu0
      %4707 = vmatprep.mubr.bf16.mxu0 0
      %4708 = vmatmul.mubr.bf16.gmra.mrb[0].mxu0 %v4440
      %v4709 = vpop.f32.mrb[0].mxu0
      %v4710 = vadd.f32 %v4549, %v4709
      %v4711 = vpop.f32.mrb[0].mxu0
      %v4712 = vpop.f32.mrb[0].mxu0
      %v4713 = vadd.f32 %v4552, %v4712
      %v4714 = vpop.f32.mrb[0].mxu0
      %4715 = vmatprep.mubr.bf16.mxu0 0
      %4716 = vmatmul.mubr.bf16.gmra.mrb[0].mxu0 %v4442
      %v4717 = vpop.f32.mrb[0].mxu0
      %v4718 = vadd.f32 %v4557, %v4717
      %v4719 = vpop.f32.mrb[0].mxu0
      %v4720 = vpop.f32.mrb[0].mxu0
      %v4721 = vadd.f32 %v4560, %v4720
      %v4722 = vpop.f32.mrb[0].mxu0
      %4723 = vmatprep.mubr.bf16.mxu0 0
      %4724 = vmatmul.mubr.bf16.gmra.mrb[0].mxu0 %v4444
      %v4725 = vpop.f32.mrb[0].mxu0
      %v4726 = vadd.f32 %v4565, %v4725
      %v4727 = vpop.f32.mrb[0].mxu0
      %v4728 = vpop.f32.mrb[0].mxu0
      %v4729 = vadd.f32 %v4568, %v4728
      %v4730 = vpop.f32.mrb[0].mxu0
      %4731 = vmatprep.mubr.bf16.mxu0 0
      %4732 = vmatmul.mubr.bf16.gmra.mrb[0].mxu0 %v4446
      %v4733 = vpop.f32.mrb[0].mxu0
      %v4734 = vadd.f32 %v4573, %v4733
      %v4735 = vpop.f32.mrb[0].mxu0
      %v4736 = vpop.f32.mrb[0].mxu0
      %v4737 = vadd.f32 %v4576, %v4736
      %v4738 = vpop.f32.mrb[0].mxu0
      %4739 = vmatprep.mubr.bf16.mxu0 0
      %4740 = vmatmul.mubr.bf16.gmra.mrb[0].mxu0 %v4448
      %v4741 = vpop.f32.mrb[0].mxu0
      %v4742 = vadd.f32 %v4581, %v4741
      %v4743 = vpop.f32.mrb[0].mxu0
      %v4744 = vpop.f32.mrb[0].mxu0
      %v4745 = vadd.f32 %v4584, %v4744
      %v4746 = vpop.f32.mrb[0].mxu0
      %4747 = vmatprep.mubr.bf16.mxu0 0
      %4748 = vmatmul.mubr.bf16.gmra.mrb[0].mxu0 %v4450
      %v4749 = vpop.f32.mrb[0].mxu0
      %v4750 = vadd.f32 %v4589, %v4749
      %v4751 = vpop.f32.mrb[0].mxu0
      %v4752 = vpop.f32.mrb[0].mxu0
      %v4753 = vadd.f32 %v4592, %v4752
      %v4754 = vpop.f32.mrb[0].mxu0
      %4755 = vmatprep.mubr.bf16.mxu0 0
      %4756 = vmatmul.mubr.bf16.gmra.mrb[0].mxu0 %v4452
      %v4757 = vpop.f32.mrb[0].mxu0
      %v4758 = vadd.f32 %v4597, %v4757
      %v4759 = vpop.f32.mrb[0].mxu0
      %v4760 = vpop.f32.mrb[0].mxu0
      %v4761 = vadd.f32 %v4600, %v4760
      %v4762 = vpop.f32.mrb[0].mxu0
      %4763 = vmatprep.mubr.bf16.mxu0 0
      %4764 = vmatmul.mubr.bf16.gmra.mrb[0].mxu0 %v4454
      %v4765 = vpop.f32.mrb[0].mxu0
      %v4766 = vadd.f32 %v4605, %v4765
      %v4767 = vpop.f32.mrb[0].mxu0
      %v4768 = vpop.f32.mrb[0].mxu0
      %v4769 = vadd.f32 %v4608, %v4768
      %v4770 = vpop.f32.mrb[0].mxu0
      %4771 = vmatprep.mubr.bf16.mxu0 0
      %4772 = vmatmul.mubr.bf16.gmra.mrb[0].mxu0 %v4456
      %v4773 = vpop.f32.mrb[0].mxu0
      %v4774 = vadd.f32 %v4613, %v4773
      %v4775 = vpop.f32.mrb[0].mxu0
      %v4776 = vpop.f32.mrb[0].mxu0
      %v4777 = vadd.f32 %v4616, %v4776
      %v4778 = vpop.f32.mrb[0].mxu0
      %4779 = vdwg.mxu0
      %v4780 = vmax.f32 %v4654, 0.0
      %v4781 = vmax.f32 %v4657, 0.0
      %v4782 = vmax.f32 %v4662, 0.0
      %v4783 = vmax.f32 %v4665, 0.0
      %v4784 = vmax.f32 %v4670, 0.0
      %v4785 = vmax.f32 %v4673, 0.0
      %v4786 = vmax.f32 %v4678, 0.0
      %v4787 = vmax.f32 %v4681, 0.0
      %v4788 = vmax.f32 %v4686, 0.0
      %v4789 = vmax.f32 %v4689, 0.0
      %v4790 = vmax.f32 %v4694, 0.0
      %v4791 = vmax.f32 %v4697, 0.0
      %v4792 = vmax.f32 %v4702, 0.0
      %v4793 = vmax.f32 %v4705, 0.0
      %v4794 = vmax.f32 %v4710, 0.0
      %v4795 = vmax.f32 %v4713, 0.0
      %v4796 = vmax.f32 %v4718, 0.0
      %v4797 = vmax.f32 %v4721, 0.0
      %v4798 = vmax.f32 %v4726, 0.0
      %v4799 = vmax.f32 %v4729, 0.0
      %v4800 = vmax.f32 %v4734, 0.0
      %v4801 = vmax.f32 %v4737, 0.0
      %v4802 = vmax.f32 %v4742, 0.0
      %v4803 = vmax.f32 %v4745, 0.0
      %v4804 = vmax.f32 %v4750, 0.0
      %v4805 = vmax.f32 %v4753, 0.0
      %v4806 = vmax.f32 %v4758, 0.0
      %v4807 = vmax.f32 %v4761, 0.0
      %v4808 = vmax.f32 %v4766, 0.0
      %v4809 = vmax.f32 %v4769, 0.0
      %v4810 = vmax.f32 %v4774, 0.0
      %v4811 = vmax.f32 %v4777, 0.0
      %v4812 = vpack.c.bf16 %v4781, %v4780
      %v4813 = vpack.c.bf16 %v4783, %v4782
      %v4814 = vpack.c.bf16 %v4785, %v4784
      %v4815 = vpack.c.bf16 %v4787, %v4786
      %v4816 = vpack.c.bf16 %v4789, %v4788
      %v4817 = vpack.c.bf16 %v4791, %v4790
      %v4818 = vpack.c.bf16 %v4793, %v4792
      %v4819 = vpack.c.bf16 %v4795, %v4794
      %v4820 = vpack.c.bf16 %v4797, %v4796
      %v4821 = vpack.c.bf16 %v4799, %v4798
      %v4822 = vpack.c.bf16 %v4801, %v4800
      %v4823 = vpack.c.bf16 %v4803, %v4802
      %v4824 = vpack.c.bf16 %v4805, %v4804
      %v4825 = vpack.c.bf16 %v4807, %v4806
      %v4826 = vpack.c.bf16 %v4809, %v4808
      %v4827 = vpack.c.bf16 %v4811, %v4810
      %v4844 = vunpack.c.l.b16 %v4812
      %v4845 = vunpack.c.h.b16 %v4812
      %v4846 = vunpack.c.l.b16 %v4813
      %v4847 = vunpack.c.h.b16 %v4813
      %v4848 = vunpack.c.l.b16 %v4814
      %v4849 = vunpack.c.h.b16 %v4814
      %v4850 = vunpack.c.l.b16 %v4815
      %v4851 = vunpack.c.h.b16 %v4815
      %v4852 = vunpack.c.l.b16 %v4816
      %v4853 = vunpack.c.h.b16 %v4816
      %v4854 = vunpack.c.l.b16 %v4817
      %v4855 = vunpack.c.h.b16 %v4817
      %v4856 = vunpack.c.l.b16 %v4818
      %v4857 = vunpack.c.h.b16 %v4818
      %v4858 = vunpack.c.l.b16 %v4819
      %v4859 = vunpack.c.h.b16 %v4819
      %v4860 = vunpack.c.l.b16 %v4820
      %v4861 = vunpack.c.h.b16 %v4820
      %v4862 = vunpack.c.l.b16 %v4821
      %v4863 = vunpack.c.h.b16 %v4821
      %v4864 = vunpack.c.l.b16 %v4822
      %v4865 = vunpack.c.h.b16 %v4822
      %v4866 = vunpack.c.l.b16 %v4823
      %v4867 = vunpack.c.h.b16 %v4823
      %v4868 = vunpack.c.l.b16 %v4824
      %v4869 = vunpack.c.h.b16 %v4824
      %v4870 = vunpack.c.l.b16 %v4825
      %v4871 = vunpack.c.h.b16 %v4825
      %v4872 = vunpack.c.l.b16 %v4826
      %v4873 = vunpack.c.h.b16 %v4826
      %v4874 = vunpack.c.l.b16 %v4827
      %v4875 = vunpack.c.h.b16 %v4827
      %v4876 = vpack.c.b16 %v4844, %v4844
      %v4877 = vpack.c.b16 %v4845, %v4845
      %v4878 = vpack.c.b16 %v4846, %v4846
      %v4879 = vpack.c.b16 %v4847, %v4847
      %v4880 = vpack.c.b16 %v4848, %v4848
      %v4881 = vpack.c.b16 %v4849, %v4849
      %v4882 = vpack.c.b16 %v4850, %v4850
      %v4883 = vpack.c.b16 %v4851, %v4851
      %v4884 = vpack.c.b16 %v4852, %v4852
      %v4885 = vpack.c.b16 %v4853, %v4853
      %v4886 = vpack.c.b16 %v4854, %v4854
      %v4887 = vpack.c.b16 %v4855, %v4855
      %v4888 = vpack.c.b16 %v4856, %v4856
      %v4889 = vpack.c.b16 %v4857, %v4857
      %v4890 = vpack.c.b16 %v4858, %v4858
      %v4891 = vpack.c.b16 %v4859, %v4859
      %v4892 = vpack.c.b16 %v4860, %v4860
      %v4893 = vpack.c.b16 %v4861, %v4861
      %v4894 = vpack.c.b16 %v4862, %v4862
      %v4895 = vpack.c.b16 %v4863, %v4863
      %v4896 = vpack.c.b16 %v4864, %v4864
      %v4897 = vpack.c.b16 %v4865, %v4865
      %v4898 = vpack.c.b16 %v4866, %v4866
      %v4899 = vpack.c.b16 %v4867, %v4867
      %v4900 = vpack.c.b16 %v4868, %v4868
      %v4901 = vpack.c.b16 %v4869, %v4869
      %v4902 = vpack.c.b16 %v4870, %v4870
      %v4903 = vpack.c.b16 %v4871, %v4871
      %v4904 = vpack.c.b16 %v4872, %v4872
      %v4905 = vpack.c.b16 %v4873, %v4873
      %v4906 = vpack.c.b16 %v4874, %v4874
      %v4907 = vpack.c.b16 %v4875, %v4875
      %v4909 = vshrl.u32 %v4876, 16
      %v4911 = vrot.slane %v4909, 7
      %v4912 = vshll.u32 %v4876, 16
      %v4914 = vor.u32 %v4911, %v4912
      %v4915 = vrot.slane %v4911, 4
      %v4917 = vshrl.u32 %v4877, 16
      %v4919 = vrot.slane %v4917, 7
      %v4920 = vshll.u32 %v4877, 16
      %v4922 = vor.u32 %v4919, %v4920
      %v4923 = vsel %vm1480, %v4915, %v4922
      %v4924 = vrot.slane %v4919, 4
      %v4926 = vshrl.u32 %v4878, 16
      %v4928 = vrot.slane %v4926, 7
      %v4929 = vshll.u32 %v4878, 16
      %v4931 = vor.u32 %v4928, %v4929
      %v4932 = vrot.slane %v4928, 4
      %v4934 = vshrl.u32 %v4879, 16
      %v4936 = vrot.slane %v4934, 7
      %v4937 = vshll.u32 %v4879, 16
      %v4939 = vor.u32 %v4936, %v4937
      %v4940 = vsel %vm1480, %v4932, %v4939
      %v4941 = vrot.slane %v4936, 4
      %v4943 = vshrl.u32 %v4880, 16
      %v4945 = vrot.slane %v4943, 7
      %v4946 = vshll.u32 %v4880, 16
      %v4948 = vor.u32 %v4945, %v4946
      %v4949 = vrot.slane %v4945, 4
      %v4951 = vshrl.u32 %v4881, 16
      %v4953 = vrot.slane %v4951, 7
      %v4954 = vshll.u32 %v4881, 16
      %v4956 = vor.u32 %v4953, %v4954
      %v4957 = vsel %vm1480, %v4949, %v4956
      %v4958 = vrot.slane %v4953, 4
      %v4960 = vshrl.u32 %v4882, 16
      %v4962 = vrot.slane %v4960, 7
      %v4963 = vshll.u32 %v4882, 16
      %v4965 = vor.u32 %v4962, %v4963
      %v4966 = vrot.slane %v4962, 4
      %v4968 = vshrl.u32 %v4883, 16
      %v4970 = vrot.slane %v4968, 7
      %v4971 = vshll.u32 %v4883, 16
      %v4973 = vor.u32 %v4970, %v4971
      %v4974 = vsel %vm1480, %v4966, %v4973
      %v4975 = vrot.slane %v4970, 4
      %v4977 = vshrl.u32 %v4884, 16
      %v4979 = vrot.slane %v4977, 7
      %v4980 = vshll.u32 %v4884, 16
      %v4982 = vor.u32 %v4979, %v4980
      %v4983 = vrot.slane %v4979, 4
      %v4985 = vshrl.u32 %v4885, 16
      %v4987 = vrot.slane %v4985, 7
      %v4988 = vshll.u32 %v4885, 16
      %v4990 = vor.u32 %v4987, %v4988
      %v4991 = vsel %vm1480, %v4983, %v4990
      %v4992 = vrot.slane %v4987, 4
      %v4994 = vshrl.u32 %v4886, 16
      %v4996 = vrot.slane %v4994, 7
      %v4997 = vshll.u32 %v4886, 16
      %v4999 = vor.u32 %v4996, %v4997
      %v5000 = vrot.slane %v4996, 4
      %v5002 = vshrl.u32 %v4887, 16
      %v5004 = vrot.slane %v5002, 7
      %v5005 = vshll.u32 %v4887, 16
      %v5007 = vor.u32 %v5004, %v5005
      %v5008 = vsel %vm1480, %v5000, %v5007
      %v5009 = vrot.slane %v5004, 4
      %v5011 = vshrl.u32 %v4888, 16
      %v5013 = vrot.slane %v5011, 7
      %v5014 = vshll.u32 %v4888, 16
      %v5016 = vor.u32 %v5013, %v5014
      %v5017 = vrot.slane %v5013, 4
      %v5019 = vshrl.u32 %v4889, 16
      %v5021 = vrot.slane %v5019, 7
      %v5022 = vshll.u32 %v4889, 16
      %v5024 = vor.u32 %v5021, %v5022
      %v5025 = vsel %vm1480, %v5017, %v5024
      %v5026 = vrot.slane %v5021, 4
      %v5028 = vshrl.u32 %v4890, 16
      %v5030 = vrot.slane %v5028, 7
      %v5031 = vshll.u32 %v4890, 16
      %v5033 = vor.u32 %v5030, %v5031
      %v5034 = vrot.slane %v5030, 4
      %v5036 = vshrl.u32 %v4891, 16
      %v5038 = vrot.slane %v5036, 7
      %v5039 = vshll.u32 %v4891, 16
      %v5041 = vor.u32 %v5038, %v5039
      %v5042 = vsel %vm1480, %v5034, %v5041
      %v5043 = vrot.slane %v5038, 4
      %v5045 = vshrl.u32 %v4892, 16
      %v5047 = vrot.slane %v5045, 7
      %v5048 = vshll.u32 %v4892, 16
      %v5050 = vor.u32 %v5047, %v5048
      %v5051 = vrot.slane %v5047, 4
      %v5053 = vshrl.u32 %v4893, 16
      %v5055 = vrot.slane %v5053, 7
      %v5056 = vshll.u32 %v4893, 16
      %v5058 = vor.u32 %v5055, %v5056
      %v5059 = vsel %vm1480, %v5051, %v5058
      %v5060 = vrot.slane %v5055, 4
      %v5062 = vshrl.u32 %v4894, 16
      %v5064 = vrot.slane %v5062, 7
      %v5065 = vshll.u32 %v4894, 16
      %v5067 = vor.u32 %v5064, %v5065
      %v5068 = vrot.slane %v5064, 4
      %v5070 = vshrl.u32 %v4895, 16
      %v5072 = vrot.slane %v5070, 7
      %v5073 = vshll.u32 %v4895, 16
      %v5075 = vor.u32 %v5072, %v5073
      %v5076 = vsel %vm1480, %v5068, %v5075
      %v5077 = vrot.slane %v5072, 4
      %v5079 = vshrl.u32 %v4896, 16
      %v5081 = vrot.slane %v5079, 7
      %v5082 = vshll.u32 %v4896, 16
      %v5084 = vor.u32 %v5081, %v5082
      %v5085 = vrot.slane %v5081, 4
      %v5087 = vshrl.u32 %v4897, 16
      %v5089 = vrot.slane %v5087, 7
      %v5090 = vshll.u32 %v4897, 16
      %v5092 = vor.u32 %v5089, %v5090
      %v5093 = vsel %vm1480, %v5085, %v5092
      %v5094 = vrot.slane %v5089, 4
      %v5096 = vshrl.u32 %v4898, 16
      %v5098 = vrot.slane %v5096, 7
      %v5099 = vshll.u32 %v4898, 16
      %v5101 = vor.u32 %v5098, %v5099
      %v5102 = vrot.slane %v5098, 4
      %v5104 = vshrl.u32 %v4899, 16
      %v5106 = vrot.slane %v5104, 7
      %v5107 = vshll.u32 %v4899, 16
      %v5109 = vor.u32 %v5106, %v5107
      %v5110 = vsel %vm1480, %v5102, %v5109
      %v5111 = vrot.slane %v5106, 4
      %v5113 = vshrl.u32 %v4900, 16
      %v5115 = vrot.slane %v5113, 7
      %v5116 = vshll.u32 %v4900, 16
      %v5118 = vor.u32 %v5115, %v5116
      %v5119 = vrot.slane %v5115, 4
      %v5121 = vshrl.u32 %v4901, 16
      %v5123 = vrot.slane %v5121, 7
      %v5124 = vshll.u32 %v4901, 16
      %v5126 = vor.u32 %v5123, %v5124
      %v5127 = vsel %vm1480, %v5119, %v5126
      %v5128 = vrot.slane %v5123, 4
      %v5130 = vshrl.u32 %v4902, 16
      %v5132 = vrot.slane %v5130, 7
      %v5133 = vshll.u32 %v4902, 16
      %v5135 = vor.u32 %v5132, %v5133
      %v5136 = vrot.slane %v5132, 4
      %v5138 = vshrl.u32 %v4903, 16
      %v5140 = vrot.slane %v5138, 7
      %v5141 = vshll.u32 %v4903, 16
      %v5143 = vor.u32 %v5140, %v5141
      %v5144 = vsel %vm1480, %v5136, %v5143
      %v5145 = vrot.slane %v5140, 4
      %v5147 = vshrl.u32 %v4904, 16
      %v5149 = vrot.slane %v5147, 7
      %v5150 = vshll.u32 %v4904, 16
      %v5152 = vor.u32 %v5149, %v5150
      %v5153 = vrot.slane %v5149, 4
      %v5155 = vshrl.u32 %v4905, 16
      %v5157 = vrot.slane %v5155, 7
      %v5158 = vshll.u32 %v4905, 16
      %v5160 = vor.u32 %v5157, %v5158
      %v5161 = vsel %vm1480, %v5153, %v5160
      %v5162 = vrot.slane %v5157, 4
      %v5164 = vshrl.u32 %v4906, 16
      %v5166 = vrot.slane %v5164, 7
      %v5167 = vshll.u32 %v4906, 16
      %v5169 = vor.u32 %v5166, %v5167
      %v5170 = vrot.slane %v5166, 4
      %v5172 = vshrl.u32 %v4907, 16
      %v5174 = vrot.slane %v5172, 7
      %v5175 = vshll.u32 %v4907, 16
      %v5177 = vor.u32 %v5174, %v5175
      %v5178 = vsel %vm1480, %v5170, %v5177
      %v5179 = vrot.slane %v5174, 4
      %s5228 = scalar_lea.vmem [#allocation4], 12
      %v5229 = vld [vmem:[%s5228] sm:$0xf]
      %v5230 = vsel %vm3370, %v4914, %v5229
      %5231 = vst [vmem:[%s5228] sm:$0xf] %v5230
      %5232 = vst.msk [vmem:[%s5228 + $0x4] sm:$0xf] %vm510, %v4923
      %v5233 = vld [vmem:[%s5228 + $0x8] sm:$0x1]
      %v5234 = vsel %vm520, %v4924, %v5233
      %5235 = vst [vmem:[%s5228 + $0x8] sm:$0x1] %v5234
      %v5236 = vld [vmem:[%s5228 + $0xc] sm:$0xf]
      %v5237 = vsel %vm3370, %v4931, %v5236
      %5238 = vst [vmem:[%s5228 + $0xc] sm:$0xf] %v5237
      %5239 = vst.msk [vmem:[%s5228 + $0x10] sm:$0xf] %vm510, %v4940
      %v5240 = vld [vmem:[%s5228 + $0x14] sm:$0x1]
      %v5241 = vsel %vm520, %v4941, %v5240
      %5242 = vst [vmem:[%s5228 + $0x14] sm:$0x1] %v5241
      %v5243 = vld [vmem:[%s5228 + $0x18] sm:$0xf]
      %v5244 = vsel %vm3370, %v4948, %v5243
      %5245 = vst [vmem:[%s5228 + $0x18] sm:$0xf] %v5244
      %5246 = vst.msk [vmem:[%s5228 + $0x1c] sm:$0xf] %vm510, %v4957
      %v5247 = vld [vmem:[%s5228 + $0x20] sm:$0x1]
      %v5248 = vsel %vm520, %v4958, %v5247
      %5249 = vst [vmem:[%s5228 + $0x20] sm:$0x1] %v5248
      %v5250 = vld [vmem:[%s5228 + $0x24] sm:$0xf]
      %v5251 = vsel %vm3370, %v4965, %v5250
      %5252 = vst [vmem:[%s5228 + $0x24] sm:$0xf] %v5251
      %5253 = vst.msk [vmem:[%s5228 + $0x28] sm:$0xf] %vm510, %v4974
      %v5254 = vld [vmem:[%s5228 + $0x2c] sm:$0x1]
      %v5255 = vsel %vm520, %v4975, %v5254
      %5256 = vst [vmem:[%s5228 + $0x2c] sm:$0x1] %v5255
      %v5257 = vld [vmem:[%s5228 + $0x30] sm:$0xf]
      %v5258 = vsel %vm3370, %v4982, %v5257
      %5259 = vst [vmem:[%s5228 + $0x30] sm:$0xf] %v5258
      %5260 = vst.msk [vmem:[%s5228 + $0x34] sm:$0xf] %vm510, %v4991
      %v5261 = vld [vmem:[%s5228 + $0x38] sm:$0x1]
      %v5262 = vsel %vm520, %v4992, %v5261
      %5263 = vst [vmem:[%s5228 + $0x38] sm:$0x1] %v5262
      %v5264 = vld [vmem:[%s5228 + $0x3c] sm:$0xf]
      %v5265 = vsel %vm3370, %v4999, %v5264
      %5266 = vst [vmem:[%s5228 + $0x3c] sm:$0xf] %v5265
      %5267 = vst.msk [vmem:[%s5228 + $0x40] sm:$0xf] %vm510, %v5008
      %v5268 = vld [vmem:[%s5228 + $0x44] sm:$0x1]
      %v5269 = vsel %vm520, %v5009, %v5268
      %5270 = vst [vmem:[%s5228 + $0x44] sm:$0x1] %v5269
      %v5271 = vld [vmem:[%s5228 + $0x48] sm:$0xf]
      %v5272 = vsel %vm3370, %v5016, %v5271
      %5273 = vst [vmem:[%s5228 + $0x48] sm:$0xf] %v5272
      %5274 = vst.msk [vmem:[%s5228 + $0x4c] sm:$0xf] %vm510, %v5025
      %v5275 = vld [vmem:[%s5228 + $0x50] sm:$0x1]
      %v5276 = vsel %vm520, %v5026, %v5275
      %5277 = vst [vmem:[%s5228 + $0x50] sm:$0x1] %v5276
      %v5278 = vld [vmem:[%s5228 + $0x54] sm:$0xf]
      %v5279 = vsel %vm3370, %v5033, %v5278
      %5280 = vst [vmem:[%s5228 + $0x54] sm:$0xf] %v5279
      %5281 = vst.msk [vmem:[%s5228 + $0x58] sm:$0xf] %vm510, %v5042
      %v5282 = vld [vmem:[%s5228 + $0x5c] sm:$0x1]
      %v5283 = vsel %vm520, %v5043, %v5282
      %5284 = vst [vmem:[%s5228 + $0x5c] sm:$0x1] %v5283
      %v5285 = vld [vmem:[%s5228 + $0x60] sm:$0xf]
      %v5286 = vsel %vm3370, %v5050, %v5285
      %5287 = vst [vmem:[%s5228 + $0x60] sm:$0xf] %v5286
      %5288 = vst.msk [vmem:[%s5228 + $0x64] sm:$0xf] %vm510, %v5059
      %v5289 = vld [vmem:[%s5228 + $0x68] sm:$0x1]
      %v5290 = vsel %vm520, %v5060, %v5289
      %5291 = vst [vmem:[%s5228 + $0x68] sm:$0x1] %v5290
      %v5292 = vld [vmem:[%s5228 + $0x6c] sm:$0xf]
      %v5293 = vsel %vm3370, %v5067, %v5292
      %5294 = vst [vmem:[%s5228 + $0x6c] sm:$0xf] %v5293
      %5295 = vst.msk [vmem:[%s5228 + $0x70] sm:$0xf] %vm510, %v5076
      %v5296 = vld [vmem:[%s5228 + $0x74] sm:$0x1]
      %v5297 = vsel %vm520, %v5077, %v5296
      %5298 = vst [vmem:[%s5228 + $0x74] sm:$0x1] %v5297
      %v5299 = vld [vmem:[%s5228 + $0x78] sm:$0xf]
      %v5300 = vsel %vm3370, %v5084, %v5299
      %5301 = vst [vmem:[%s5228 + $0x78] sm:$0xf] %v5300
      %5302 = vst.msk [vmem:[%s5228 + $0x7c] sm:$0xf] %vm510, %v5093
      %v5303 = vld [vmem:[%s5228 + $0x80] sm:$0x1]
      %v5304 = vsel %vm520, %v5094, %v5303
      %5305 = vst [vmem:[%s5228 + $0x80] sm:$0x1] %v5304
      %v5306 = vld [vmem:[%s5228 + $0x84] sm:$0xf]
      %v5307 = vsel %vm3370, %v5101, %v5306
      %5308 = vst [vmem:[%s5228 + $0x84] sm:$0xf] %v5307
      %5309 = vst.msk [vmem:[%s5228 + $0x88] sm:$0xf] %vm510, %v5110
      %v5310 = vld [vmem:[%s5228 + $0x8c] sm:$0x1]
      %v5311 = vsel %vm520, %v5111, %v5310
      %5312 = vst [vmem:[%s5228 + $0x8c] sm:$0x1] %v5311
      %v5313 = vld [vmem:[%s5228 + $0x90] sm:$0xf]
      %v5314 = vsel %vm3370, %v5118, %v5313
      %5315 = vst [vmem:[%s5228 + $0x90] sm:$0xf] %v5314
      %5316 = vst.msk [vmem:[%s5228 + $0x94] sm:$0xf] %vm510, %v5127
      %v5317 = vld [vmem:[%s5228 + $0x98] sm:$0x1]
      %v5318 = vsel %vm520, %v5128, %v5317
      %5319 = vst [vmem:[%s5228 + $0x98] sm:$0x1] %v5318
      %v5320 = vld [vmem:[%s5228 + $0x9c] sm:$0xf]
      %v5321 = vsel %vm3370, %v5135, %v5320
      %5322 = vst [vmem:[%s5228 + $0x9c] sm:$0xf] %v5321
      %5323 = vst.msk [vmem:[%s5228 + $0xa0] sm:$0xf] %vm510, %v5144
      %v5324 = vld [vmem:[%s5228 + $0xa4] sm:$0x1]
      %v5325 = vsel %vm520, %v5145, %v5324
      %5326 = vst [vmem:[%s5228 + $0xa4] sm:$0x1] %v5325
      %v5327 = vld [vmem:[%s5228 + $0xa8] sm:$0xf]
      %v5328 = vsel %vm3370, %v5152, %v5327
      %5329 = vst [vmem:[%s5228 + $0xa8] sm:$0xf] %v5328
      %5330 = vst.msk [vmem:[%s5228 + $0xac] sm:$0xf] %vm510, %v5161
      %v5331 = vld [vmem:[%s5228 + $0xb0] sm:$0x1]
      %v5332 = vsel %vm520, %v5162, %v5331
      %5333 = vst [vmem:[%s5228 + $0xb0] sm:$0x1] %v5332
      %v5334 = vld [vmem:[%s5228 + $0xb4] sm:$0xf]
      %v5335 = vsel %vm3370, %v5169, %v5334
      %5336 = vst [vmem:[%s5228 + $0xb4] sm:$0xf] %v5335
      %5337 = vst.msk [vmem:[%s5228 + $0xb8] sm:$0xf] %vm510, %v5178
      %v5338 = vld [vmem:[%s5228 + $0xbc] sm:$0x1]
      %v5339 = vsel %vm520, %v5179, %v5338
      %5340 = vst [vmem:[%s5228 + $0xbc] sm:$0x1] %v5339
      %v5341 = vld [vmem:[#allocation4] sm:$0xf]
      %v5342 = vld [vmem:[#allocation4 + $0x4] sm:$0xf]
      %v5343 = vld [vmem:[#allocation4 + $0x8] sm:$0x1]
      %v5344 = vld [vmem:[#allocation4 + $0xc] sm:$0xf]
      %v5345 = vld [vmem:[#allocation4 + $0x10] sm:$0xf]
      %v5346 = vld [vmem:[#allocation4 + $0x14] sm:$0x1]
      %v5347 = vld [vmem:[#allocation4 + $0x18] sm:$0xf]
      %v5348 = vld [vmem:[#allocation4 + $0x1c] sm:$0xf]
      %v5349 = vld [vmem:[#allocation4 + $0x20] sm:$0x1]
      %v5350 = vld [vmem:[#allocation4 + $0x24] sm:$0xf]
      %v5351 = vld [vmem:[#allocation4 + $0x28] sm:$0xf]
      %v5352 = vld [vmem:[#allocation4 + $0x2c] sm:$0x1]
      %v5353 = vld [vmem:[#allocation4 + $0x30] sm:$0xf]
      %v5354 = vld [vmem:[#allocation4 + $0x34] sm:$0xf]
      %v5355 = vld [vmem:[#allocation4 + $0x38] sm:$0x1]
      %v5356 = vld [vmem:[#allocation4 + $0x3c] sm:$0xf]
      %v5357 = vld [vmem:[#allocation4 + $0x40] sm:$0xf]
      %v5358 = vld [vmem:[#allocation4 + $0x44] sm:$0x1]
      %v5359 = vld [vmem:[#allocation4 + $0x48] sm:$0xf]
      %v5360 = vld [vmem:[#allocation4 + $0x4c] sm:$0xf]
      %v5361 = vld [vmem:[#allocation4 + $0x50] sm:$0x1]
      %v5362 = vld [vmem:[#allocation4 + $0x54] sm:$0xf]
      %v5363 = vld [vmem:[#allocation4 + $0x58] sm:$0xf]
      %v5364 = vld [vmem:[#allocation4 + $0x5c] sm:$0x1]
      %v5365 = vld [vmem:[#allocation4 + $0x60] sm:$0xf]
      %v5366 = vld [vmem:[#allocation4 + $0x64] sm:$0xf]
      %v5367 = vld [vmem:[#allocation4 + $0x68] sm:$0x1]
      %v5368 = vld [vmem:[#allocation4 + $0x6c] sm:$0xf]
      %v5369 = vld [vmem:[#allocation4 + $0x70] sm:$0xf]
      %v5370 = vld [vmem:[#allocation4 + $0x74] sm:$0x1]
      %v5371 = vld [vmem:[#allocation4 + $0x78] sm:$0xf]
      %v5372 = vld [vmem:[#allocation4 + $0x7c] sm:$0xf]
      %v5373 = vld [vmem:[#allocation4 + $0x80] sm:$0x1]
      %v5374 = vld [vmem:[#allocation4 + $0x84] sm:$0xf]
      %v5375 = vld [vmem:[#allocation4 + $0x88] sm:$0xf]
      %v5376 = vld [vmem:[#allocation4 + $0x8c] sm:$0x1]
      %v5377 = vld [vmem:[#allocation4 + $0x90] sm:$0xf]
      %v5378 = vld [vmem:[#allocation4 + $0x94] sm:$0xf]
      %v5379 = vld [vmem:[#allocation4 + $0x98] sm:$0x1]
      %v5380 = vld [vmem:[#allocation4 + $0x9c] sm:$0xf]
      %v5381 = vld [vmem:[#allocation4 + $0xa0] sm:$0xf]
      %v5382 = vld [vmem:[#allocation4 + $0xa4] sm:$0x1]
      %v5383 = vld [vmem:[#allocation4 + $0xa8] sm:$0xf]
      %v5384 = vld [vmem:[#allocation4 + $0xac] sm:$0xf]
      %v5385 = vld [vmem:[#allocation4 + $0xb0] sm:$0x1]
      %v5386 = vld [vmem:[#allocation4 + $0xb4] sm:$0xf]
      %v5387 = vld [vmem:[#allocation4 + $0xb8] sm:$0xf]
      %v5388 = vld [vmem:[#allocation4 + $0xbc] sm:$0x1]
      %v5389 = vld [vmem:[#allocation4 + $0xc0] sm:$0xf]
      %v5390 = vld [vmem:[#allocation4 + $0xc4] sm:$0xf]
      %v5391 = vld [vmem:[#allocation4 + $0xc8] sm:$0x1]
      %v5392 = vld [vmem:[#allocation4 + $0xcc] sm:$0xf]
      %v5393 = vld [vmem:[#allocation4 + $0xd0] sm:$0xf]
      %v5394 = vld [vmem:[#allocation4 + $0xd4] sm:$0x1]
      %v5431 = vunpack.c.l.b16 %v5341
      %v5432 = vunpack.c.l.b16 %v5342
      %v5433 = vunpack.c.l.b16 %v5344
      %v5434 = vunpack.c.l.b16 %v5345
      %v5435 = vunpack.c.l.b16 %v5347
      %v5436 = vunpack.c.l.b16 %v5348
      %v5437 = vunpack.c.l.b16 %v5350
      %v5438 = vunpack.c.l.b16 %v5351
      %v5439 = vunpack.c.l.b16 %v5353
      %v5440 = vunpack.c.l.b16 %v5354
      %v5441 = vunpack.c.l.b16 %v5356
      %v5442 = vunpack.c.l.b16 %v5357
      %v5443 = vunpack.c.l.b16 %v5359
      %v5444 = vunpack.c.l.b16 %v5360
      %v5445 = vunpack.c.l.b16 %v5362
      %v5446 = vunpack.c.l.b16 %v5363
      %v5447 = vunpack.c.l.b16 %v5365
      %v5448 = vunpack.c.l.b16 %v5366
      %v5449 = vunpack.c.l.b16 %v5368
      %v5450 = vunpack.c.l.b16 %v5369
      %v5451 = vunpack.c.l.b16 %v5371
      %v5452 = vunpack.c.l.b16 %v5372
      %v5453 = vunpack.c.l.b16 %v5374
      %v5454 = vunpack.c.l.b16 %v5375
      %v5455 = vunpack.c.l.b16 %v5377
      %v5456 = vunpack.c.l.b16 %v5378
      %v5457 = vunpack.c.l.b16 %v5380
      %v5458 = vunpack.c.l.b16 %v5381
      %v5459 = vunpack.c.l.b16 %v5383
      %v5460 = vunpack.c.l.b16 %v5384
      %v5461 = vunpack.c.l.b16 %v5386
      %v5462 = vunpack.c.l.b16 %v5387
      %v5463 = vunpack.c.l.b16 %v5389
      %v5464 = vunpack.c.l.b16 %v5390
      %v5465 = vunpack.c.l.b16 %v5392
      %v5466 = vunpack.c.l.b16 %v5393
      %v5467 = vpack.c.b16 %v5432, %v5431
      %v5468 = vpack.c.b16 %v5434, %v5433
      %v5469 = vpack.c.b16 %v5436, %v5435
      %v5470 = vpack.c.b16 %v5438, %v5437
      %v5471 = vpack.c.b16 %v5440, %v5439
      %v5472 = vpack.c.b16 %v5442, %v5441
      %v5473 = vpack.c.b16 %v5444, %v5443
      %v5474 = vpack.c.b16 %v5446, %v5445
      %v5475 = vpack.c.b16 %v5448, %v5447
      %v5476 = vpack.c.b16 %v5450, %v5449
      %v5477 = vpack.c.b16 %v5452, %v5451
      %v5478 = vpack.c.b16 %v5454, %v5453
      %v5479 = vpack.c.b16 %v5456, %v5455
      %v5480 = vpack.c.b16 %v5458, %v5457
      %v5481 = vpack.c.b16 %v5460, %v5459
      %v5482 = vpack.c.b16 %v5462, %v5461
      %v5483 = vpack.c.b16 %v5464, %v5463
      %v5484 = vpack.c.b16 %v5466, %v5465
      %v5503 = vunpack.c.l.b16 %v5343
      %v5504 = vunpack.c.l.b16 %v5346
      %v5505 = vunpack.c.l.b16 %v5349
      %v5506 = vunpack.c.l.b16 %v5352
      %v5507 = vunpack.c.l.b16 %v5355
      %v5508 = vunpack.c.l.b16 %v5358
      %v5509 = vunpack.c.l.b16 %v5361
      %v5510 = vunpack.c.l.b16 %v5364
      %v5511 = vunpack.c.l.b16 %v5367
      %v5512 = vunpack.c.l.b16 %v5370
      %v5513 = vunpack.c.l.b16 %v5373
      %v5514 = vunpack.c.l.b16 %v5376
      %v5515 = vunpack.c.l.b16 %v5379
      %v5516 = vunpack.c.l.b16 %v5382
      %v5517 = vunpack.c.l.b16 %v5385
      %v5518 = vunpack.c.l.b16 %v5388
      %v5519 = vunpack.c.l.b16 %v5391
      %v5520 = vunpack.c.l.b16 %v5394
      %v5521 = vpack.c.b16 %v5503, %v5503
      %v5522 = vpack.c.b16 %v5504, %v5504
      %v5523 = vpack.c.b16 %v5505, %v5505
      %v5524 = vpack.c.b16 %v5506, %v5506
      %v5525 = vpack.c.b16 %v5507, %v5507
      %v5526 = vpack.c.b16 %v5508, %v5508
      %v5527 = vpack.c.b16 %v5509, %v5509
      %v5528 = vpack.c.b16 %v5510, %v5510
      %v5529 = vpack.c.b16 %v5511, %v5511
      %v5530 = vpack.c.b16 %v5512, %v5512
      %v5531 = vpack.c.b16 %v5513, %v5513
      %v5532 = vpack.c.b16 %v5514, %v5514
      %v5533 = vpack.c.b16 %v5515, %v5515
      %v5534 = vpack.c.b16 %v5516, %v5516
      %v5535 = vpack.c.b16 %v5517, %v5517
      %v5536 = vpack.c.b16 %v5518, %v5518
      %v5537 = vpack.c.b16 %v5519, %v5519
      %v5538 = vpack.c.b16 %v5520, %v5520
      %v5540 = vshrl.u32 %v5467, 16
      %v5542 = vshll.u32 %v5467, 16
      %v5544 = vrot.slane %v5542, 1
      %v5545 = vor.u32 %v5540, %v5544
      %v5547 = vshll.u32 %v5521, 16
      %v5549 = vrot.slane %v5547, 1
      %v5550 = vsel %vm2114, %v5545, %v5549
      %v5552 = vshrl.u32 %v5468, 16
      %v5554 = vshll.u32 %v5468, 16
      %v5556 = vrot.slane %v5554, 1
      %v5557 = vor.u32 %v5552, %v5556
      %v5559 = vshll.u32 %v5522, 16
      %v5561 = vrot.slane %v5559, 1
      %v5562 = vsel %vm2114, %v5557, %v5561
      %v5564 = vshrl.u32 %v5469, 16
      %v5566 = vshll.u32 %v5469, 16
      %v5568 = vrot.slane %v5566, 1
      %v5569 = vor.u32 %v5564, %v5568
      %v5571 = vshll.u32 %v5523, 16
      %v5573 = vrot.slane %v5571, 1
      %v5574 = vsel %vm2114, %v5569, %v5573
      %v5576 = vshrl.u32 %v5470, 16
      %v5578 = vshll.u32 %v5470, 16
      %v5580 = vrot.slane %v5578, 1
      %v5581 = vor.u32 %v5576, %v5580
      %v5583 = vshll.u32 %v5524, 16
      %v5585 = vrot.slane %v5583, 1
      %v5586 = vsel %vm2114, %v5581, %v5585
      %v5588 = vshrl.u32 %v5471, 16
      %v5590 = vshll.u32 %v5471, 16
      %v5592 = vrot.slane %v5590, 1
      %v5593 = vor.u32 %v5588, %v5592
      %v5595 = vshll.u32 %v5525, 16
      %v5597 = vrot.slane %v5595, 1
      %v5598 = vsel %vm2114, %v5593, %v5597
      %v5600 = vshrl.u32 %v5472, 16
      %v5602 = vshll.u32 %v5472, 16
      %v5604 = vrot.slane %v5602, 1
      %v5605 = vor.u32 %v5600, %v5604
      %v5607 = vshll.u32 %v5526, 16
      %v5609 = vrot.slane %v5607, 1
      %v5610 = vsel %vm2114, %v5605, %v5609
      %v5612 = vshrl.u32 %v5473, 16
      %v5614 = vshll.u32 %v5473, 16
      %v5616 = vrot.slane %v5614, 1
      %v5617 = vor.u32 %v5612, %v5616
      %v5619 = vshll.u32 %v5527, 16
      %v5621 = vrot.slane %v5619, 1
      %v5622 = vsel %vm2114, %v5617, %v5621
      %v5624 = vshrl.u32 %v5474, 16
      %v5626 = vshll.u32 %v5474, 16
      %v5628 = vrot.slane %v5626, 1
      %v5629 = vor.u32 %v5624, %v5628
      %v5631 = vshll.u32 %v5528, 16
      %v5633 = vrot.slane %v5631, 1
      %v5634 = vsel %vm2114, %v5629, %v5633
      %v5636 = vshrl.u32 %v5475, 16
      %v5638 = vshll.u32 %v5475, 16
      %v5640 = vrot.slane %v5638, 1
      %v5641 = vor.u32 %v5636, %v5640
      %v5643 = vshll.u32 %v5529, 16
      %v5645 = vrot.slane %v5643, 1
      %v5646 = vsel %vm2114, %v5641, %v5645
      %v5648 = vshrl.u32 %v5476, 16
      %v5650 = vshll.u32 %v5476, 16
      %v5652 = vrot.slane %v5650, 1
      %v5653 = vor.u32 %v5648, %v5652
      %v5655 = vshll.u32 %v5530, 16
      %v5657 = vrot.slane %v5655, 1
      %v5658 = vsel %vm2114, %v5653, %v5657
      %v5660 = vshrl.u32 %v5477, 16
      %v5662 = vshll.u32 %v5477, 16
      %v5664 = vrot.slane %v5662, 1
      %v5665 = vor.u32 %v5660, %v5664
      %v5667 = vshll.u32 %v5531, 16
      %v5669 = vrot.slane %v5667, 1
      %v5670 = vsel %vm2114, %v5665, %v5669
      %v5672 = vshrl.u32 %v5478, 16
      %v5674 = vshll.u32 %v5478, 16
      %v5676 = vrot.slane %v5674, 1
      %v5677 = vor.u32 %v5672, %v5676
      %v5679 = vshll.u32 %v5532, 16
      %v5681 = vrot.slane %v5679, 1
      %v5682 = vsel %vm2114, %v5677, %v5681
      %v5684 = vshrl.u32 %v5479, 16
      %v5686 = vshll.u32 %v5479, 16
      %v5688 = vrot.slane %v5686, 1
      %v5689 = vor.u32 %v5684, %v5688
      %v5691 = vshll.u32 %v5533, 16
      %v5693 = vrot.slane %v5691, 1
      %v5694 = vsel %vm2114, %v5689, %v5693
      %v5696 = vshrl.u32 %v5480, 16
      %v5698 = vshll.u32 %v5480, 16
      %v5700 = vrot.slane %v5698, 1
      %v5701 = vor.u32 %v5696, %v5700
      %v5703 = vshll.u32 %v5534, 16
      %v5705 = vrot.slane %v5703, 1
      %v5706 = vsel %vm2114, %v5701, %v5705
      %v5708 = vshrl.u32 %v5481, 16
      %v5710 = vshll.u32 %v5481, 16
      %v5712 = vrot.slane %v5710, 1
      %v5713 = vor.u32 %v5708, %v5712
      %v5715 = vshll.u32 %v5535, 16
      %v5717 = vrot.slane %v5715, 1
      %v5718 = vsel %vm2114, %v5713, %v5717
      %v5720 = vshrl.u32 %v5482, 16
      %v5722 = vshll.u32 %v5482, 16
      %v5724 = vrot.slane %v5722, 1
      %v5725 = vor.u32 %v5720, %v5724
      %v5727 = vshll.u32 %v5536, 16
      %v5729 = vrot.slane %v5727, 1
      %v5730 = vsel %vm2114, %v5725, %v5729
      %v5732 = vshrl.u32 %v5483, 16
      %v5734 = vshll.u32 %v5483, 16
      %v5736 = vrot.slane %v5734, 1
      %v5737 = vor.u32 %v5732, %v5736
      %v5739 = vshll.u32 %v5537, 16
      %v5741 = vrot.slane %v5739, 1
      %v5742 = vsel %vm2114, %v5737, %v5741
      %v5744 = vshrl.u32 %v5484, 16
      %v5746 = vshll.u32 %v5484, 16
      %v5748 = vrot.slane %v5746, 1
      %v5749 = vor.u32 %v5744, %v5748
      %v5751 = vshll.u32 %v5538, 16
      %v5753 = vrot.slane %v5751, 1
      %v5754 = vsel %vm2114, %v5749, %v5753
      %5755 = vrot.lane.b32.xlu0 %v5550, 32
      %v5756 = vpop.permute.xlu0 %5755
      %5757 = vrot.lane.b32.xlu0 %v5562, 32
      %v5758 = vpop.permute.xlu0 %5757
      %5759 = vrot.lane.b32.xlu0 %v5574, 32
      %v5760 = vpop.permute.xlu0 %5759
      %5761 = vrot.lane.b32.xlu0 %v5586, 32
      %v5762 = vpop.permute.xlu0 %5761
      %5763 = vrot.lane.b32.xlu0 %v5598, 32
      %v5764 = vpop.permute.xlu0 %5763
      %5765 = vrot.lane.b32.xlu0 %v5610, 32
      %v5766 = vpop.permute.xlu0 %5765
      %5767 = vrot.lane.b32.xlu0 %v5622, 32
      %v5768 = vpop.permute.xlu0 %5767
      %5769 = vrot.lane.b32.xlu0 %v5634, 32
      %v5770 = vpop.permute.xlu0 %5769
      %5771 = vrot.lane.b32.xlu0 %v5646, 32
      %v5772 = vpop.permute.xlu0 %5771
      %5773 = vrot.lane.b32.xlu0 %v5658, 32
      %v5774 = vpop.permute.xlu0 %5773
      %5775 = vrot.lane.b32.xlu0 %v5670, 32
      %v5776 = vpop.permute.xlu0 %5775
      %5777 = vrot.lane.b32.xlu0 %v5682, 32
      %v5778 = vpop.permute.xlu0 %5777
      %5779 = vrot.lane.b32.xlu0 %v5694, 32
      %v5780 = vpop.permute.xlu0 %5779
      %5781 = vrot.lane.b32.xlu0 %v5706, 32
      %v5782 = vpop.permute.xlu0 %5781
      %5783 = vrot.lane.b32.xlu0 %v5718, 32
      %v5784 = vpop.permute.xlu0 %5783
      %5785 = vrot.lane.b32.xlu0 %v5730, 32
      %v5786 = vpop.permute.xlu0 %5785
      %5787 = vrot.lane.b32.xlu0 %v5742, 32
      %v5788 = vpop.permute.xlu0 %5787
      %5789 = vrot.lane.b32.xlu0 %v5754, 32
      %v5790 = vpop.permute.xlu0 %5789
      %v5791 = vrot.slane %v5467, 1
      %v5792 = vrot.slane %v5521, 1
      %v5793 = vsel %vm2367, %v5791, %v5792
      %v5794 = vrot.slane %v5468, 1
      %v5795 = vrot.slane %v5522, 1
      %v5796 = vsel %vm2367, %v5794, %v5795
      %v5797 = vrot.slane %v5469, 1
      %v5798 = vrot.slane %v5523, 1
      %v5799 = vsel %vm2367, %v5797, %v5798
      %v5800 = vrot.slane %v5470, 1
      %v5801 = vrot.slane %v5524, 1
      %v5802 = vsel %vm2367, %v5800, %v5801
      %v5803 = vrot.slane %v5471, 1
      %v5804 = vrot.slane %v5525, 1
      %v5805 = vsel %vm2367, %v5803, %v5804
      %v5806 = vrot.slane %v5472, 1
      %v5807 = vrot.slane %v5526, 1
      %v5808 = vsel %vm2367, %v5806, %v5807
      %v5809 = vrot.slane %v5473, 1
      %v5810 = vrot.slane %v5527, 1
      %v5811 = vsel %vm2367, %v5809, %v5810
      %v5812 = vrot.slane %v5474, 1
      %v5813 = vrot.slane %v5528, 1
      %v5814 = vsel %vm2367, %v5812, %v5813
      %v5815 = vrot.slane %v5475, 1
      %v5816 = vrot.slane %v5529, 1
      %v5817 = vsel %vm2367, %v5815, %v5816
      %v5818 = vrot.slane %v5476, 1
      %v5819 = vrot.slane %v5530, 1
      %v5820 = vsel %vm2367, %v5818, %v5819
      %v5821 = vrot.slane %v5477, 1
      %v5822 = vrot.slane %v5531, 1
      %v5823 = vsel %vm2367, %v5821, %v5822
      %v5824 = vrot.slane %v5478, 1
      %v5825 = vrot.slane %v5532, 1
      %v5826 = vsel %vm2367, %v5824, %v5825
      %v5827 = vrot.slane %v5479, 1
      %v5828 = vrot.slane %v5533, 1
      %v5829 = vsel %vm2367, %v5827, %v5828
      %v5830 = vrot.slane %v5480, 1
      %v5831 = vrot.slane %v5534, 1
      %v5832 = vsel %vm2367, %v5830, %v5831
      %v5833 = vrot.slane %v5481, 1
      %v5834 = vrot.slane %v5535, 1
      %v5835 = vsel %vm2367, %v5833, %v5834
      %v5836 = vrot.slane %v5482, 1
      %v5837 = vrot.slane %v5536, 1
      %v5838 = vsel %vm2367, %v5836, %v5837
      %v5839 = vrot.slane %v5483, 1
      %v5840 = vrot.slane %v5537, 1
      %v5841 = vsel %vm2367, %v5839, %v5840
      %v5842 = vrot.slane %v5484, 1
      %v5843 = vrot.slane %v5538, 1
      %v5844 = vsel %vm2367, %v5842, %v5843
      %5845 = vrot.lane.b32.xlu0 %v5793, 64
      %v5846 = vpop.permute.xlu0 %5845
      %5847 = vrot.lane.b32.xlu0 %v5796, 64
      %v5848 = vpop.permute.xlu0 %5847
      %5849 = vrot.lane.b32.xlu0 %v5799, 64
      %v5850 = vpop.permute.xlu0 %5849
      %5851 = vrot.lane.b32.xlu0 %v5802, 64
      %v5852 = vpop.permute.xlu0 %5851
      %5853 = vrot.lane.b32.xlu0 %v5805, 64
      %v5854 = vpop.permute.xlu0 %5853
      %5855 = vrot.lane.b32.xlu0 %v5808, 64
      %v5856 = vpop.permute.xlu0 %5855
      %5857 = vrot.lane.b32.xlu0 %v5811, 64
      %v5858 = vpop.permute.xlu0 %5857
      %5859 = vrot.lane.b32.xlu0 %v5814, 64
      %v5860 = vpop.permute.xlu0 %5859
      %5861 = vrot.lane.b32.xlu0 %v5817, 64
      %v5862 = vpop.permute.xlu0 %5861
      %5863 = vrot.lane.b32.xlu0 %v5820, 64
      %v5864 = vpop.permute.xlu0 %5863
      %5865 = vrot.lane.b32.xlu0 %v5823, 64
      %v5866 = vpop.permute.xlu0 %5865
      %5867 = vrot.lane.b32.xlu0 %v5826, 64
      %v5868 = vpop.permute.xlu0 %5867
      %5869 = vrot.lane.b32.xlu0 %v5829, 64
      %v5870 = vpop.permute.xlu0 %5869
      %5871 = vrot.lane.b32.xlu0 %v5832, 64
      %v5872 = vpop.permute.xlu0 %5871
      %5873 = vrot.lane.b32.xlu0 %v5835, 64
      %v5874 = vpop.permute.xlu0 %5873
      %5875 = vrot.lane.b32.xlu0 %v5838, 64
      %v5876 = vpop.permute.xlu0 %5875
      %5877 = vrot.lane.b32.xlu0 %v5841, 64
      %v5878 = vpop.permute.xlu0 %5877
      %5879 = vrot.lane.b32.xlu0 %v5844, 64
      %v5880 = vpop.permute.xlu0 %5879
      %v5882 = vsel %vm4023, %v5467, %v5756
      %v5884 = vsel %vm4023, %v5468, %v5758
      %v5886 = vsel %vm4023, %v5469, %v5760
      %v5888 = vsel %vm4023, %v5470, %v5762
      %v5890 = vsel %vm4023, %v5471, %v5764
      %v5892 = vsel %vm4023, %v5472, %v5766
      %v5894 = vsel %vm4023, %v5473, %v5768
      %v5896 = vsel %vm4023, %v5474, %v5770
      %v5898 = vsel %vm4023, %v5475, %v5772
      %v5900 = vsel %vm4023, %v5476, %v5774
      %v5902 = vsel %vm4023, %v5477, %v5776
      %v5904 = vsel %vm4023, %v5478, %v5778
      %v5906 = vsel %vm4023, %v5479, %v5780
      %v5908 = vsel %vm4023, %v5480, %v5782
      %v5910 = vsel %vm4023, %v5481, %v5784
      %v5912 = vsel %vm4023, %v5482, %v5786
      %v5914 = vsel %vm4023, %v5483, %v5788
      %v5916 = vsel %vm4023, %v5484, %v5790
      %v5918 = vsel %vm4060, %v5882, %v5846
      %v5920 = vsel %vm4060, %v5884, %v5848
      %v5922 = vsel %vm4060, %v5886, %v5850
      %v5924 = vsel %vm4060, %v5888, %v5852
      %v5926 = vsel %vm4060, %v5890, %v5854
      %v5928 = vsel %vm4060, %v5892, %v5856
      %v5930 = vsel %vm4060, %v5894, %v5858
      %v5932 = vsel %vm4060, %v5896, %v5860
      %v5934 = vsel %vm4060, %v5898, %v5862
      %v5936 = vsel %vm4060, %v5900, %v5864
      %v5938 = vsel %vm4060, %v5902, %v5866
      %v5940 = vsel %vm4060, %v5904, %v5868
      %v5942 = vsel %vm4060, %v5906, %v5870
      %v5944 = vsel %vm4060, %v5908, %v5872
      %v5946 = vsel %vm4060, %v5910, %v5874
      %v5948 = vsel %vm4060, %v5912, %v5876
      %v5950 = vsel %vm4060, %v5914, %v5878
      %v5952 = vsel %vm4060, %v5916, %v5880
      %5969 = vrot.lane.b32.xlu0 %v5920, 96
      %v5970 = vpop.permute.xlu0 %5969
      %5971 = vrot.lane.b32.xlu0 %v5922, 96
      %v5972 = vpop.permute.xlu0 %5971
      %5973 = vrot.lane.b32.xlu0 %v5924, 96
      %v5974 = vpop.permute.xlu0 %5973
      %5975 = vrot.lane.b32.xlu0 %v5926, 96
      %v5976 = vpop.permute.xlu0 %5975
      %5977 = vrot.lane.b32.xlu0 %v5928, 96
      %v5978 = vpop.permute.xlu0 %5977
      %5979 = vrot.lane.b32.xlu0 %v5930, 96
      %v5980 = vpop.permute.xlu0 %5979
      %5981 = vrot.lane.b32.xlu0 %v5932, 96
      %v5982 = vpop.permute.xlu0 %5981
      %5983 = vrot.lane.b32.xlu0 %v5934, 96
      %v5984 = vpop.permute.xlu0 %5983
      %5985 = vrot.lane.b32.xlu0 %v5936, 96
      %v5986 = vpop.permute.xlu0 %5985
      %5987 = vrot.lane.b32.xlu0 %v5938, 96
      %v5988 = vpop.permute.xlu0 %5987
      %5989 = vrot.lane.b32.xlu0 %v5940, 96
      %v5990 = vpop.permute.xlu0 %5989
      %5991 = vrot.lane.b32.xlu0 %v5942, 96
      %v5992 = vpop.permute.xlu0 %5991
      %5993 = vrot.lane.b32.xlu0 %v5944, 96
      %v5994 = vpop.permute.xlu0 %5993
      %5995 = vrot.lane.b32.xlu0 %v5946, 96
      %v5996 = vpop.permute.xlu0 %5995
      %5997 = vrot.lane.b32.xlu0 %v5948, 96
      %v5998 = vpop.permute.xlu0 %5997
      %5999 = vrot.lane.b32.xlu0 %v5950, 96
      %v6000 = vpop.permute.xlu0 %5999
      %6002 = vrot.lane.b32.xlu0 %v5922, 64
      %v6003 = vpop.permute.xlu0 %6002
      %6004 = vrot.lane.b32.xlu0 %v5924, 64
      %v6005 = vpop.permute.xlu0 %6004
      %6006 = vrot.lane.b32.xlu0 %v5926, 64
      %v6007 = vpop.permute.xlu0 %6006
      %6008 = vrot.lane.b32.xlu0 %v5928, 64
      %v6009 = vpop.permute.xlu0 %6008
      %6010 = vrot.lane.b32.xlu0 %v5930, 64
      %v6011 = vpop.permute.xlu0 %6010
      %6012 = vrot.lane.b32.xlu0 %v5932, 64
      %v6013 = vpop.permute.xlu0 %6012
      %6014 = vrot.lane.b32.xlu0 %v5934, 64
      %v6015 = vpop.permute.xlu0 %6014
      %6016 = vrot.lane.b32.xlu0 %v5936, 64
      %v6017 = vpop.permute.xlu0 %6016
      %6018 = vrot.lane.b32.xlu0 %v5938, 64
      %v6019 = vpop.permute.xlu0 %6018
      %6020 = vrot.lane.b32.xlu0 %v5940, 64
      %v6021 = vpop.permute.xlu0 %6020
      %6022 = vrot.lane.b32.xlu0 %v5942, 64
      %v6023 = vpop.permute.xlu0 %6022
      %6024 = vrot.lane.b32.xlu0 %v5944, 64
      %v6025 = vpop.permute.xlu0 %6024
      %6026 = vrot.lane.b32.xlu0 %v5946, 64
      %v6027 = vpop.permute.xlu0 %6026
      %6028 = vrot.lane.b32.xlu0 %v5948, 64
      %v6029 = vpop.permute.xlu0 %6028
      %6030 = vrot.lane.b32.xlu0 %v5950, 64
      %v6031 = vpop.permute.xlu0 %6030
      %6032 = vrot.lane.b32.xlu0 %v5952, 64
      %v6033 = vpop.permute.xlu0 %6032
      %v6035 = vsel %vm4178, %v5918, %v5970
      %v6038 = vsel %vm4178, %v5920, %v5972
      %v6041 = vsel %vm4178, %v5922, %v5974
      %v6044 = vsel %vm4178, %v5924, %v5976
      %v6047 = vsel %vm4178, %v5926, %v5978
      %v6050 = vsel %vm4178, %v5928, %v5980
      %v6053 = vsel %vm4178, %v5930, %v5982
      %v6056 = vsel %vm4178, %v5932, %v5984
      %v6059 = vsel %vm4178, %v5934, %v5986
      %v6062 = vsel %vm4178, %v5936, %v5988
      %v6065 = vsel %vm4178, %v5938, %v5990
      %v6068 = vsel %vm4178, %v5940, %v5992
      %v6071 = vsel %vm4178, %v5942, %v5994
      %v6074 = vsel %vm4178, %v5944, %v5996
      %v6077 = vsel %vm4178, %v5946, %v5998
      %v6080 = vsel %vm4178, %v5948, %v6000
      %v6083 = vsel %vm4060, %v5970, %v6003
      %v6086 = vsel %vm4060, %v5972, %v6005
      %v6089 = vsel %vm4060, %v5974, %v6007
      %v6092 = vsel %vm4060, %v5976, %v6009
      %v6095 = vsel %vm4060, %v5978, %v6011
      %v6098 = vsel %vm4060, %v5980, %v6013
      %v6101 = vsel %vm4060, %v5982, %v6015
      %v6104 = vsel %vm4060, %v5984, %v6017
      %v6107 = vsel %vm4060, %v5986, %v6019
      %v6110 = vsel %vm4060, %v5988, %v6021
      %v6113 = vsel %vm4060, %v5990, %v6023
      %v6116 = vsel %vm4060, %v5992, %v6025
      %v6119 = vsel %vm4060, %v5994, %v6027
      %v6122 = vsel %vm4060, %v5996, %v6029
      %v6125 = vsel %vm4060, %v5998, %v6031
      %v6128 = vsel %vm4060, %v6000, %v6033
      %v6130 = vld [vmem:[%s5] sm:$0xf]
      %v6131 = vld [vmem:[%s5 + $0x4] sm:$0xf]
      %v6132 = vld [vmem:[%s5 + $0x8] sm:$0xf]
      %v6133 = vld [vmem:[%s5 + $0xc] sm:$0xf]
      %v6134 = vld [vmem:[%s5 + $0x10] sm:$0xf]
      %v6135 = vld [vmem:[%s5 + $0x14] sm:$0xf]
      %v6136 = vld [vmem:[%s5 + $0x18] sm:$0xf]
      %v6137 = vld [vmem:[%s5 + $0x1c] sm:$0xf]
      %v6138 = vld [vmem:[%s5 + $0x20] sm:$0xf]
      %v6139 = vld [vmem:[%s5 + $0x24] sm:$0xf]
      %v6140 = vld [vmem:[%s5 + $0x28] sm:$0xf]
      %v6141 = vld [vmem:[%s5 + $0x2c] sm:$0xf]
      %v6142 = vld [vmem:[%s5 + $0x30] sm:$0xf]
      %v6143 = vld [vmem:[%s5 + $0x34] sm:$0xf]
      %v6144 = vld [vmem:[%s5 + $0x38] sm:$0xf]
      %v6145 = vld [vmem:[%s5 + $0x3c] sm:$0xf]
      %v6146 = vld [vmem:[%s5 + $0x40] sm:$0xf]
      %v6147 = vld [vmem:[%s5 + $0x44] sm:$0xf]
      %v6148 = vld [vmem:[%s5 + $0x48] sm:$0xf]
      %v6149 = vld [vmem:[%s5 + $0x4c] sm:$0xf]
      %v6150 = vld [vmem:[%s5 + $0x50] sm:$0xf]
      %v6151 = vld [vmem:[%s5 + $0x54] sm:$0xf]
      %v6152 = vld [vmem:[%s5 + $0x58] sm:$0xf]
      %v6153 = vld [vmem:[%s5 + $0x5c] sm:$0xf]
      %v6154 = vld [vmem:[%s5 + $0x60] sm:$0xf]
      %v6155 = vld [vmem:[%s5 + $0x64] sm:$0xf]
      %v6156 = vld [vmem:[%s5 + $0x68] sm:$0xf]
      %v6157 = vld [vmem:[%s5 + $0x6c] sm:$0xf]
      %v6158 = vld [vmem:[%s5 + $0x70] sm:$0xf]
      %v6159 = vld [vmem:[%s5 + $0x74] sm:$0xf]
      %v6160 = vld [vmem:[%s5 + $0x78] sm:$0xf]
      %v6161 = vld [vmem:[%s5 + $0x7c] sm:$0xf]
      %v6162 = vld [vmem:[%s5 + $0x80] sm:$0xf]
      %v6163 = vld [vmem:[%s5 + $0x84] sm:$0xf]
      %v6164 = vld [vmem:[%s5 + $0x88] sm:$0xf]
      %v6165 = vld [vmem:[%s5 + $0x8c] sm:$0xf]
      %v6166 = vld [vmem:[%s6] sm:$0x1]
      %v6168 = vlaneseq
      %v6169 = vshrl.u32 %v6168, 7
      %v6170 = vsub.s32 0, %v6169
      %v6171 = vrot.slane %v6166, %v6170
      %v6209 = vunpack.c.l.b16 %v6130
      %v6210 = vunpack.c.l.b16 %v6131
      %v6211 = vunpack.c.l.b16 %v6132
      %v6212 = vunpack.c.l.b16 %v6133
      %v6213 = vunpack.c.l.b16 %v6134
      %v6214 = vunpack.c.l.b16 %v6135
      %v6215 = vunpack.c.l.b16 %v6136
      %v6216 = vunpack.c.l.b16 %v6137
      %v6217 = vunpack.c.l.b16 %v6138
      %v6218 = vunpack.c.l.b16 %v6139
      %v6219 = vunpack.c.l.b16 %v6140
      %v6220 = vunpack.c.l.b16 %v6141
      %v6221 = vunpack.c.l.b16 %v6142
      %v6222 = vunpack.c.l.b16 %v6143
      %v6223 = vunpack.c.l.b16 %v6144
      %v6224 = vunpack.c.l.b16 %v6145
      %v6225 = vunpack.c.l.b16 %v6146
      %v6226 = vunpack.c.l.b16 %v6147
      %v6227 = vunpack.c.l.b16 %v6148
      %v6228 = vunpack.c.l.b16 %v6149
      %v6229 = vunpack.c.l.b16 %v6150
      %v6230 = vunpack.c.l.b16 %v6151
      %v6231 = vunpack.c.l.b16 %v6152
      %v6232 = vunpack.c.l.b16 %v6153
      %v6233 = vunpack.c.l.b16 %v6154
      %v6234 = vunpack.c.l.b16 %v6155
      %v6235 = vunpack.c.l.b16 %v6156
      %v6236 = vunpack.c.l.b16 %v6157
      %v6237 = vunpack.c.l.b16 %v6158
      %v6238 = vunpack.c.l.b16 %v6159
      %v6239 = vunpack.c.l.b16 %v6160
      %v6240 = vunpack.c.l.b16 %v6161
      %v6241 = vunpack.c.l.b16 %v6162
      %v6242 = vunpack.c.l.b16 %v6163
      %v6243 = vunpack.c.l.b16 %v6164
      %v6244 = vunpack.c.l.b16 %v6165
      %v6245 = vpack.c.b16 %v6210, %v6209
      %v6246 = vpack.c.b16 %v6212, %v6211
      %v6247 = vpack.c.b16 %v6214, %v6213
      %v6248 = vpack.c.b16 %v6216, %v6215
      %v6249 = vpack.c.b16 %v6218, %v6217
      %v6250 = vpack.c.b16 %v6220, %v6219
      %v6251 = vpack.c.b16 %v6222, %v6221
      %v6252 = vpack.c.b16 %v6224, %v6223
      %v6253 = vpack.c.b16 %v6226, %v6225
      %v6254 = vpack.c.b16 %v6228, %v6227
      %v6255 = vpack.c.b16 %v6230, %v6229
      %v6256 = vpack.c.b16 %v6232, %v6231
      %v6257 = vpack.c.b16 %v6234, %v6233
      %v6258 = vpack.c.b16 %v6236, %v6235
      %v6259 = vpack.c.b16 %v6238, %v6237
      %v6260 = vpack.c.b16 %v6240, %v6239
      %v6261 = vpack.c.b16 %v6242, %v6241
      %v6262 = vpack.c.b16 %v6244, %v6243
      %v6281 = vsel %vm4023, %v6003, 0
      %v6283 = vsel %vm4023, %v6005, 0
      %v6285 = vsel %vm4023, %v6007, 0
      %v6287 = vsel %vm4023, %v6009, 0
      %v6289 = vsel %vm4023, %v6011, 0
      %v6291 = vsel %vm4023, %v6013, 0
      %v6293 = vsel %vm4023, %v6015, 0
      %v6295 = vsel %vm4023, %v6017, 0
      %v6297 = vsel %vm4023, %v6019, 0
      %v6299 = vsel %vm4023, %v6021, 0
      %v6301 = vsel %vm4023, %v6023, 0
      %v6303 = vsel %vm4023, %v6025, 0
      %v6305 = vsel %vm4023, %v6027, 0
      %v6307 = vsel %vm4023, %v6029, 0
      %v6309 = vsel %vm4023, %v6031, 0
      %v6311 = vsel %vm4023, %v6033, 0
      %6313 = vmatprep.subr.bf16.mxu0 0
      %6314 = vmatpush1.bf16.msra.mxu0 %v6245
      %6315 = vmatprep.subr.bf16.mxu0 0
      %6316 = vmatpush1.bf16.msra.mxu0 %v6246
      %6317 = vmatprep.subr.bf16.mxu0 0
      %6318 = vmatpush1.bf16.msra.mxu0 %v6247
      %6319 = vmatprep.subr.bf16.mxu0 0
      %6320 = vmatpush1.bf16.msra.mxu0 %v6248
      %6321 = vmatprep.subr.bf16.mxu0 0
      %6322 = vmatpush1.bf16.msra.mxu0 %v6249
      %6323 = vmatprep.subr.bf16.mxu0 0
      %6324 = vmatpush1.bf16.msra.mxu0 %v6250
      %6325 = vmatprep.subr.bf16.mxu0 0
      %6326 = vmatpush1.bf16.msra.mxu0 %v6251
      %6327 = vmatprep.subr.bf16.mxu0 0
      %6328 = vmatpush1.bf16.msra.mxu0 %v6252
      %6329 = vmatprep.subr.bf16.mxu0 0
      %6330 = vmatpush1.bf16.msra.mxu0 %v6253
      %6331 = vmatprep.subr.bf16.mxu0 0
      %6332 = vmatpush1.bf16.msra.mxu0 %v6254
      %6333 = vmatprep.subr.bf16.mxu0 0
      %6334 = vmatpush1.bf16.msra.mxu0 %v6255
      %6335 = vmatprep.subr.bf16.mxu0 0
      %6336 = vmatpush1.bf16.msra.mxu0 %v6256
      %6337 = vmatprep.subr.bf16.mxu0 0
      %6338 = vmatpush1.bf16.msra.mxu0 %v6257
      %6339 = vmatprep.subr.bf16.mxu0 0
      %6340 = vmatpush1.bf16.msra.mxu0 %v6258
      %6341 = vmatprep.subr.bf16.mxu0 0
      %6342 = vmatpush1.bf16.msra.mxu0 %v6259
      %6343 = vmatprep.subr.bf16.mxu0 0
      %6344 = vmatpush1.bf16.msra.mxu0 %v6260
      %6345 = vmatprep.mubr.bf16.mxu0 %v6083
      %6346 = vmatmul.mubr.bf16.gmra.mrb[0].mxu0 %v6035
      %v6347 = vpop.f32.mrb[0].mxu0
      %v6348 = vadd.f32 %v6171, %v6347
      %v6349 = vpop.f32.mrb[0].mxu0
      %v6350 = vpop.f32.mrb[0].mxu0
      %v6351 = vadd.f32 %v6171, %v6350
      %v6352 = vpop.f32.mrb[0].mxu0
      %6353 = vmatprep.mubr.bf16.mxu0 %v6086
      %6354 = vmatmul.mubr.bf16.gmra.mrb[0].mxu0 %v6038
      %v6355 = vpop.f32.mrb[0].mxu0
      %v6356 = vadd.f32 %v6171, %v6355
      %v6357 = vpop.f32.mrb[0].mxu0
      %v6358 = vpop.f32.mrb[0].mxu0
      %v6359 = vadd.f32 %v6171, %v6358
      %v6360 = vpop.f32.mrb[0].mxu0
      %6361 = vmatprep.mubr.bf16.mxu0 %v6089
      %6362 = vmatmul.mubr.bf16.gmra.mrb[0].mxu0 %v6041
      %v6363 = vpop.f32.mrb[0].mxu0
      %v6364 = vadd.f32 %v6171, %v6363
      %v6365 = vpop.f32.mrb[0].mxu0
      %v6366 = vpop.f32.mrb[0].mxu0
      %v6367 = vadd.f32 %v6171, %v6366
      %v6368 = vpop.f32.mrb[0].mxu0
      %6369 = vmatprep.mubr.bf16.mxu0 %v6092
      %6370 = vmatmul.mubr.bf16.gmra.mrb[0].mxu0 %v6044
      %v6371 = vpop.f32.mrb[0].mxu0
      %v6372 = vadd.f32 %v6171, %v6371
      %v6373 = vpop.f32.mrb[0].mxu0
      %v6374 = vpop.f32.mrb[0].mxu0
      %v6375 = vadd.f32 %v6171, %v6374
      %v6376 = vpop.f32.mrb[0].mxu0
      %6377 = vmatprep.mubr.bf16.mxu0 %v6095
      %6378 = vmatmul.mubr.bf16.gmra.mrb[0].mxu0 %v6047
      %v6379 = vpop.f32.mrb[0].mxu0
      %v6380 = vadd.f32 %v6171, %v6379
      %v6381 = vpop.f32.mrb[0].mxu0
      %v6382 = vpop.f32.mrb[0].mxu0
      %v6383 = vadd.f32 %v6171, %v6382
      %v6384 = vpop.f32.mrb[0].mxu0
      %6385 = vmatprep.mubr.bf16.mxu0 %v6098
      %6386 = vmatmul.mubr.bf16.gmra.mrb[0].mxu0 %v6050
      %v6387 = vpop.f32.mrb[0].mxu0
      %v6388 = vadd.f32 %v6171, %v6387
      %v6389 = vpop.f32.mrb[0].mxu0
      %v6390 = vpop.f32.mrb[0].mxu0
      %v6391 = vadd.f32 %v6171, %v6390
      %v6392 = vpop.f32.mrb[0].mxu0
      %6393 = vmatprep.mubr.bf16.mxu0 %v6101
      %6394 = vmatmul.mubr.bf16.gmra.mrb[0].mxu0 %v6053
      %v6395 = vpop.f32.mrb[0].mxu0
      %v6396 = vadd.f32 %v6171, %v6395
      %v6397 = vpop.f32.mrb[0].mxu0
      %v6398 = vpop.f32.mrb[0].mxu0
      %v6399 = vadd.f32 %v6171, %v6398
      %v6400 = vpop.f32.mrb[0].mxu0
      %6401 = vmatprep.mubr.bf16.mxu0 %v6104
      %6402 = vmatmul.mubr.bf16.gmra.mrb[0].mxu0 %v6056
      %v6403 = vpop.f32.mrb[0].mxu0
      %v6404 = vadd.f32 %v6171, %v6403
      %v6405 = vpop.f32.mrb[0].mxu0
      %v6406 = vpop.f32.mrb[0].mxu0
      %v6407 = vadd.f32 %v6171, %v6406
      %v6408 = vpop.f32.mrb[0].mxu0
      %6409 = vmatprep.mubr.bf16.mxu0 %v6107
      %6410 = vmatmul.mubr.bf16.gmra.mrb[0].mxu0 %v6059
      %v6411 = vpop.f32.mrb[0].mxu0
      %v6412 = vadd.f32 %v6171, %v6411
      %v6413 = vpop.f32.mrb[0].mxu0
      %v6414 = vpop.f32.mrb[0].mxu0
      %v6415 = vadd.f32 %v6171, %v6414
      %v6416 = vpop.f32.mrb[0].mxu0
      %6417 = vmatprep.mubr.bf16.mxu0 %v6110
      %6418 = vmatmul.mubr.bf16.gmra.mrb[0].mxu0 %v6062
      %v6419 = vpop.f32.mrb[0].mxu0
      %v6420 = vadd.f32 %v6171, %v6419
      %v6421 = vpop.f32.mrb[0].mxu0
      %v6422 = vpop.f32.mrb[0].mxu0
      %v6423 = vadd.f32 %v6171, %v6422
      %v6424 = vpop.f32.mrb[0].mxu0
      %6425 = vmatprep.mubr.bf16.mxu0 %v6113
      %6426 = vmatmul.mubr.bf16.gmra.mrb[0].mxu0 %v6065
      %v6427 = vpop.f32.mrb[0].mxu0
      %v6428 = vadd.f32 %v6171, %v6427
      %v6429 = vpop.f32.mrb[0].mxu0
      %v6430 = vpop.f32.mrb[0].mxu0
      %v6431 = vadd.f32 %v6171, %v6430
      %v6432 = vpop.f32.mrb[0].mxu0
      %6433 = vmatprep.mubr.bf16.mxu0 %v6116
      %6434 = vmatmul.mubr.bf16.gmra.mrb[0].mxu0 %v6068
      %v6435 = vpop.f32.mrb[0].mxu0
      %v6436 = vadd.f32 %v6171, %v6435
      %v6437 = vpop.f32.mrb[0].mxu0
      %v6438 = vpop.f32.mrb[0].mxu0
      %v6439 = vadd.f32 %v6171, %v6438
      %v6440 = vpop.f32.mrb[0].mxu0
      %6441 = vmatprep.mubr.bf16.mxu0 %v6119
      %6442 = vmatmul.mubr.bf16.gmra.mrb[0].mxu0 %v6071
      %v6443 = vpop.f32.mrb[0].mxu0
      %v6444 = vadd.f32 %v6171, %v6443
      %v6445 = vpop.f32.mrb[0].mxu0
      %v6446 = vpop.f32.mrb[0].mxu0
      %v6447 = vadd.f32 %v6171, %v6446
      %v6448 = vpop.f32.mrb[0].mxu0
      %6449 = vmatprep.mubr.bf16.mxu0 %v6122
      %6450 = vmatmul.mubr.bf16.gmra.mrb[0].mxu0 %v6074
      %v6451 = vpop.f32.mrb[0].mxu0
      %v6452 = vadd.f32 %v6171, %v6451
      %v6453 = vpop.f32.mrb[0].mxu0
      %v6454 = vpop.f32.mrb[0].mxu0
      %v6455 = vadd.f32 %v6171, %v6454
      %v6456 = vpop.f32.mrb[0].mxu0
      %6457 = vmatprep.mubr.bf16.mxu0 %v6125
      %6458 = vmatmul.mubr.bf16.gmra.mrb[0].mxu0 %v6077
      %v6459 = vpop.f32.mrb[0].mxu0
      %v6460 = vadd.f32 %v6171, %v6459
      %v6461 = vpop.f32.mrb[0].mxu0
      %v6462 = vpop.f32.mrb[0].mxu0
      %v6463 = vadd.f32 %v6171, %v6462
      %v6464 = vpop.f32.mrb[0].mxu0
      %6465 = vmatprep.mubr.bf16.mxu0 %v6128
      %6466 = vmatmul.mubr.bf16.gmra.mrb[0].mxu0 %v6080
      %v6467 = vpop.f32.mrb[0].mxu0
      %v6468 = vadd.f32 %v6171, %v6467
      %v6469 = vpop.f32.mrb[0].mxu0
      %v6470 = vpop.f32.mrb[0].mxu0
      %v6471 = vadd.f32 %v6171, %v6470
      %v6472 = vpop.f32.mrb[0].mxu0
      %6473 = vdwg.mxu0
      %6474 = vmatprep.subr.bf16.mxu0 0
      %6475 = vmatpush1.bf16.msra.mxu0 %v6261
      %6476 = vmatprep.subr.bf16.mxu0 0
      %6477 = vmatpush1.bf16.msra.mxu0 %v6262
      %6478 = vmatprep.subr.bf16.mxu0 0
      %6479 = vmatpush1.bf16.msra.mxu0 0
      %6480 = vmatprep.subr.bf16.mxu0 0
      %6481 = vmatpush1.bf16.msra.mxu0 0
      %6482 = vmatprep.subr.bf16.mxu0 0
      %6483 = vmatpush1.bf16.msra.mxu0 0
      %6484 = vmatprep.subr.bf16.mxu0 0
      %6485 = vmatpush1.bf16.msra.mxu0 0
      %6486 = vmatprep.subr.bf16.mxu0 0
      %6487 = vmatpush1.bf16.msra.mxu0 0
      %6488 = vmatprep.subr.bf16.mxu0 0
      %6489 = vmatpush1.bf16.msra.mxu0 0
      %6490 = vmatprep.subr.bf16.mxu0 0
      %6491 = vmatpush1.bf16.msra.mxu0 0
      %6492 = vmatprep.subr.bf16.mxu0 0
      %6493 = vmatpush1.bf16.msra.mxu0 0
      %6494 = vmatprep.subr.bf16.mxu0 0
      %6495 = vmatpush1.bf16.msra.mxu0 0
      %6496 = vmatprep.subr.bf16.mxu0 0
      %6497 = vmatpush1.bf16.msra.mxu0 0
      %6498 = vmatprep.subr.bf16.mxu0 0
      %6499 = vmatpush1.bf16.msra.mxu0 0
      %6500 = vmatprep.subr.bf16.mxu0 0
      %6501 = vmatpush1.bf16.msra.mxu0 0
      %6502 = vmatprep.subr.bf16.mxu0 0
      %6503 = vmatpush1.bf16.msra.mxu0 0
      %6504 = vmatprep.subr.bf16.mxu0 0
      %6505 = vmatpush1.bf16.msra.mxu0 0
      %6506 = vmatprep.mubr.bf16.mxu0 0
      %6507 = vmatmul.mubr.bf16.gmra.mrb[0].mxu0 %v6281
      %v6508 = vpop.f32.mrb[0].mxu0
      %v6509 = vadd.f32 %v6348, %v6508
      %v6510 = vpop.f32.mrb[0].mxu0
      %v6511 = vpop.f32.mrb[0].mxu0
      %v6512 = vadd.f32 %v6351, %v6511
      %v6513 = vpop.f32.mrb[0].mxu0
      %6514 = vmatprep.mubr.bf16.mxu0 0
      %6515 = vmatmul.mubr.bf16.gmra.mrb[0].mxu0 %v6283
      %v6516 = vpop.f32.mrb[0].mxu0
      %v6517 = vadd.f32 %v6356, %v6516
      %v6518 = vpop.f32.mrb[0].mxu0
      %v6519 = vpop.f32.mrb[0].mxu0
      %v6520 = vadd.f32 %v6359, %v6519
      %v6521 = vpop.f32.mrb[0].mxu0
      %6522 = vmatprep.mubr.bf16.mxu0 0
      %6523 = vmatmul.mubr.bf16.gmra.mrb[0].mxu0 %v6285
      %v6524 = vpop.f32.mrb[0].mxu0
      %v6525 = vadd.f32 %v6364, %v6524
      %v6526 = vpop.f32.mrb[0].mxu0
      %v6527 = vpop.f32.mrb[0].mxu0
      %v6528 = vadd.f32 %v6367, %v6527
      %v6529 = vpop.f32.mrb[0].mxu0
      %6530 = vmatprep.mubr.bf16.mxu0 0
      %6531 = vmatmul.mubr.bf16.gmra.mrb[0].mxu0 %v6287
      %v6532 = vpop.f32.mrb[0].mxu0
      %v6533 = vadd.f32 %v6372, %v6532
      %v6534 = vpop.f32.mrb[0].mxu0
      %v6535 = vpop.f32.mrb[0].mxu0
      %v6536 = vadd.f32 %v6375, %v6535
      %v6537 = vpop.f32.mrb[0].mxu0
      %6538 = vmatprep.mubr.bf16.mxu0 0
      %6539 = vmatmul.mubr.bf16.gmra.mrb[0].mxu0 %v6289
      %v6540 = vpop.f32.mrb[0].mxu0
      %v6541 = vadd.f32 %v6380, %v6540
      %v6542 = vpop.f32.mrb[0].mxu0
      %v6543 = vpop.f32.mrb[0].mxu0
      %v6544 = vadd.f32 %v6383, %v6543
      %v6545 = vpop.f32.mrb[0].mxu0
      %6546 = vmatprep.mubr.bf16.mxu0 0
      %6547 = vmatmul.mubr.bf16.gmra.mrb[0].mxu0 %v6291
      %v6548 = vpop.f32.mrb[0].mxu0
      %v6549 = vadd.f32 %v6388, %v6548
      %v6550 = vpop.f32.mrb[0].mxu0
      %v6551 = vpop.f32.mrb[0].mxu0
      %v6552 = vadd.f32 %v6391, %v6551
      %v6553 = vpop.f32.mrb[0].mxu0
      %6554 = vmatprep.mubr.bf16.mxu0 0
      %6555 = vmatmul.mubr.bf16.gmra.mrb[0].mxu0 %v6293
      %v6556 = vpop.f32.mrb[0].mxu0
      %v6557 = vadd.f32 %v6396, %v6556
      %v6558 = vpop.f32.mrb[0].mxu0
      %v6559 = vpop.f32.mrb[0].mxu0
      %v6560 = vadd.f32 %v6399, %v6559
      %v6561 = vpop.f32.mrb[0].mxu0
      %6562 = vmatprep.mubr.bf16.mxu0 0
      %6563 = vmatmul.mubr.bf16.gmra.mrb[0].mxu0 %v6295
      %v6564 = vpop.f32.mrb[0].mxu0
      %v6565 = vadd.f32 %v6404, %v6564
      %v6566 = vpop.f32.mrb[0].mxu0
      %v6567 = vpop.f32.mrb[0].mxu0
      %v6568 = vadd.f32 %v6407, %v6567
      %v6569 = vpop.f32.mrb[0].mxu0
      %6570 = vmatprep.mubr.bf16.mxu0 0
      %6571 = vmatmul.mubr.bf16.gmra.mrb[0].mxu0 %v6297
      %v6572 = vpop.f32.mrb[0].mxu0
      %v6573 = vadd.f32 %v6412, %v6572
      %v6574 = vpop.f32.mrb[0].mxu0
      %v6575 = vpop.f32.mrb[0].mxu0
      %v6576 = vadd.f32 %v6415, %v6575
      %v6577 = vpop.f32.mrb[0].mxu0
      %6578 = vmatprep.mubr.bf16.mxu0 0
      %6579 = vmatmul.mubr.bf16.gmra.mrb[0].mxu0 %v6299
      %v6580 = vpop.f32.mrb[0].mxu0
      %v6581 = vadd.f32 %v6420, %v6580
      %v6582 = vpop.f32.mrb[0].mxu0
      %v6583 = vpop.f32.mrb[0].mxu0
      %v6584 = vadd.f32 %v6423, %v6583
      %v6585 = vpop.f32.mrb[0].mxu0
      %6586 = vmatprep.mubr.bf16.mxu0 0
      %6587 = vmatmul.mubr.bf16.gmra.mrb[0].mxu0 %v6301
      %v6588 = vpop.f32.mrb[0].mxu0
      %v6589 = vadd.f32 %v6428, %v6588
      %v6590 = vpop.f32.mrb[0].mxu0
      %v6591 = vpop.f32.mrb[0].mxu0
      %v6592 = vadd.f32 %v6431, %v6591
      %v6593 = vpop.f32.mrb[0].mxu0
      %6594 = vmatprep.mubr.bf16.mxu0 0
      %6595 = vmatmul.mubr.bf16.gmra.mrb[0].mxu0 %v6303
      %v6596 = vpop.f32.mrb[0].mxu0
      %v6597 = vadd.f32 %v6436, %v6596
      %v6598 = vpop.f32.mrb[0].mxu0
      %v6599 = vpop.f32.mrb[0].mxu0
      %v6600 = vadd.f32 %v6439, %v6599
      %v6601 = vpop.f32.mrb[0].mxu0
      %6602 = vmatprep.mubr.bf16.mxu0 0
      %6603 = vmatmul.mubr.bf16.gmra.mrb[0].mxu0 %v6305
      %v6604 = vpop.f32.mrb[0].mxu0
      %v6605 = vadd.f32 %v6444, %v6604
      %v6606 = vpop.f32.mrb[0].mxu0
      %v6607 = vpop.f32.mrb[0].mxu0
      %v6608 = vadd.f32 %v6447, %v6607
      %v6609 = vpop.f32.mrb[0].mxu0
      %6610 = vmatprep.mubr.bf16.mxu0 0
      %6611 = vmatmul.mubr.bf16.gmra.mrb[0].mxu0 %v6307
      %v6612 = vpop.f32.mrb[0].mxu0
      %v6613 = vadd.f32 %v6452, %v6612
      %v6614 = vpop.f32.mrb[0].mxu0
      %v6615 = vpop.f32.mrb[0].mxu0
      %v6616 = vadd.f32 %v6455, %v6615
      %v6617 = vpop.f32.mrb[0].mxu0
      %6618 = vmatprep.mubr.bf16.mxu0 0
      %6619 = vmatmul.mubr.bf16.gmra.mrb[0].mxu0 %v6309
      %v6620 = vpop.f32.mrb[0].mxu0
      %v6621 = vadd.f32 %v6460, %v6620
      %v6622 = vpop.f32.mrb[0].mxu0
      %v6623 = vpop.f32.mrb[0].mxu0
      %v6624 = vadd.f32 %v6463, %v6623
      %v6625 = vpop.f32.mrb[0].mxu0
      %6626 = vmatprep.mubr.bf16.mxu0 0
      %6627 = vmatmul.mubr.bf16.gmra.mrb[0].mxu0 %v6311
      %v6628 = vpop.f32.mrb[0].mxu0
      %v6629 = vadd.f32 %v6468, %v6628
      %v6630 = vpop.f32.mrb[0].mxu0
      %v6631 = vpop.f32.mrb[0].mxu0
      %v6632 = vadd.f32 %v6471, %v6631
      %v6633 = vpop.f32.mrb[0].mxu0
      %6634 = vdwg.mxu0
      %v6635 = vmax.f32 %v6509, 0.0
      %v6636 = vmax.f32 %v6512, 0.0
      %v6637 = vmax.f32 %v6517, 0.0
      %v6638 = vmax.f32 %v6520, 0.0
      %v6639 = vmax.f32 %v6525, 0.0
      %v6640 = vmax.f32 %v6528, 0.0
      %v6641 = vmax.f32 %v6533, 0.0
      %v6642 = vmax.f32 %v6536, 0.0
      %v6643 = vmax.f32 %v6541, 0.0
      %v6644 = vmax.f32 %v6544, 0.0
      %v6645 = vmax.f32 %v6549, 0.0
      %v6646 = vmax.f32 %v6552, 0.0
      %v6647 = vmax.f32 %v6557, 0.0
      %v6648 = vmax.f32 %v6560, 0.0
      %v6649 = vmax.f32 %v6565, 0.0
      %v6650 = vmax.f32 %v6568, 0.0
      %v6651 = vmax.f32 %v6573, 0.0
      %v6652 = vmax.f32 %v6576, 0.0
      %v6653 = vmax.f32 %v6581, 0.0
      %v6654 = vmax.f32 %v6584, 0.0
      %v6655 = vmax.f32 %v6589, 0.0
      %v6656 = vmax.f32 %v6592, 0.0
      %v6657 = vmax.f32 %v6597, 0.0
      %v6658 = vmax.f32 %v6600, 0.0
      %v6659 = vmax.f32 %v6605, 0.0
      %v6660 = vmax.f32 %v6608, 0.0
      %v6661 = vmax.f32 %v6613, 0.0
      %v6662 = vmax.f32 %v6616, 0.0
      %v6663 = vmax.f32 %v6621, 0.0
      %v6664 = vmax.f32 %v6624, 0.0
      %v6665 = vmax.f32 %v6629, 0.0
      %v6666 = vmax.f32 %v6632, 0.0
      %v6667 = vpack.c.bf16 %v6636, %v6635
      %v6668 = vpack.c.bf16 %v6638, %v6637
      %v6669 = vpack.c.bf16 %v6640, %v6639
      %v6670 = vpack.c.bf16 %v6642, %v6641
      %v6671 = vpack.c.bf16 %v6644, %v6643
      %v6672 = vpack.c.bf16 %v6646, %v6645
      %v6673 = vpack.c.bf16 %v6648, %v6647
      %v6674 = vpack.c.bf16 %v6650, %v6649
      %v6675 = vpack.c.bf16 %v6652, %v6651
      %v6676 = vpack.c.bf16 %v6654, %v6653
      %v6677 = vpack.c.bf16 %v6656, %v6655
      %v6678 = vpack.c.bf16 %v6658, %v6657
      %v6679 = vpack.c.bf16 %v6660, %v6659
      %v6680 = vpack.c.bf16 %v6662, %v6661
      %v6681 = vpack.c.bf16 %v6664, %v6663
      %v6682 = vpack.c.bf16 %v6666, %v6665
      %v6699 = vunpack.c.l.b16 %v6667
      %v6700 = vunpack.c.h.b16 %v6667
      %v6701 = vunpack.c.l.b16 %v6668
      %v6702 = vunpack.c.h.b16 %v6668
      %v6703 = vunpack.c.l.b16 %v6669
      %v6704 = vunpack.c.h.b16 %v6669
      %v6705 = vunpack.c.l.b16 %v6670
      %v6706 = vunpack.c.h.b16 %v6670
      %v6707 = vunpack.c.l.b16 %v6671
      %v6708 = vunpack.c.h.b16 %v6671
      %v6709 = vunpack.c.l.b16 %v6672
      %v6710 = vunpack.c.h.b16 %v6672
      %v6711 = vunpack.c.l.b16 %v6673
      %v6712 = vunpack.c.h.b16 %v6673
      %v6713 = vunpack.c.l.b16 %v6674
      %v6714 = vunpack.c.h.b16 %v6674
      %v6715 = vunpack.c.l.b16 %v6675
      %v6716 = vunpack.c.h.b16 %v6675
      %v6717 = vunpack.c.l.b16 %v6676
      %v6718 = vunpack.c.h.b16 %v6676
      %v6719 = vunpack.c.l.b16 %v6677
      %v6720 = vunpack.c.h.b16 %v6677
      %v6721 = vunpack.c.l.b16 %v6678
      %v6722 = vunpack.c.h.b16 %v6678
      %v6723 = vunpack.c.l.b16 %v6679
      %v6724 = vunpack.c.h.b16 %v6679
      %v6725 = vunpack.c.l.b16 %v6680
      %v6726 = vunpack.c.h.b16 %v6680
      %v6727 = vunpack.c.l.b16 %v6681
      %v6728 = vunpack.c.h.b16 %v6681
      %v6729 = vunpack.c.l.b16 %v6682
      %v6730 = vunpack.c.h.b16 %v6682
      %v6731 = vpack.c.b16 %v6699, %v6699
      %v6732 = vpack.c.b16 %v6700, %v6700
      %v6733 = vpack.c.b16 %v6701, %v6701
      %v6734 = vpack.c.b16 %v6702, %v6702
      %v6735 = vpack.c.b16 %v6703, %v6703
      %v6736 = vpack.c.b16 %v6704, %v6704
      %v6737 = vpack.c.b16 %v6705, %v6705
      %v6738 = vpack.c.b16 %v6706, %v6706
      %v6739 = vpack.c.b16 %v6707, %v6707
      %v6740 = vpack.c.b16 %v6708, %v6708
      %v6741 = vpack.c.b16 %v6709, %v6709
      %v6742 = vpack.c.b16 %v6710, %v6710
      %v6743 = vpack.c.b16 %v6711, %v6711
      %v6744 = vpack.c.b16 %v6712, %v6712
      %v6745 = vpack.c.b16 %v6713, %v6713
      %v6746 = vpack.c.b16 %v6714, %v6714
      %v6747 = vpack.c.b16 %v6715, %v6715
      %v6748 = vpack.c.b16 %v6716, %v6716
      %v6749 = vpack.c.b16 %v6717, %v6717
      %v6750 = vpack.c.b16 %v6718, %v6718
      %v6751 = vpack.c.b16 %v6719, %v6719
      %v6752 = vpack.c.b16 %v6720, %v6720
      %v6753 = vpack.c.b16 %v6721, %v6721
      %v6754 = vpack.c.b16 %v6722, %v6722
      %v6755 = vpack.c.b16 %v6723, %v6723
      %v6756 = vpack.c.b16 %v6724, %v6724
      %v6757 = vpack.c.b16 %v6725, %v6725
      %v6758 = vpack.c.b16 %v6726, %v6726
      %v6759 = vpack.c.b16 %v6727, %v6727
      %v6760 = vpack.c.b16 %v6728, %v6728
      %v6761 = vpack.c.b16 %v6729, %v6729
      %v6762 = vpack.c.b16 %v6730, %v6730
      %v6764 = vshrl.u32 %v6731, 16
      %v6766 = vrot.slane %v6764, 7
      %v6767 = vshll.u32 %v6731, 16
      %v6769 = vor.u32 %v6766, %v6767
      %v6770 = vrot.slane %v6766, 4
      %v6772 = vshrl.u32 %v6732, 16
      %v6774 = vrot.slane %v6772, 7
      %v6775 = vshll.u32 %v6732, 16
      %v6777 = vor.u32 %v6774, %v6775
      %v6778 = vsel %vm1480, %v6770, %v6777
      %v6779 = vrot.slane %v6774, 4
      %v6781 = vshrl.u32 %v6733, 16
      %v6783 = vrot.slane %v6781, 7
      %v6784 = vshll.u32 %v6733, 16
      %v6786 = vor.u32 %v6783, %v6784
      %v6787 = vrot.slane %v6783, 4
      %v6789 = vshrl.u32 %v6734, 16
      %v6791 = vrot.slane %v6789, 7
      %v6792 = vshll.u32 %v6734, 16
      %v6794 = vor.u32 %v6791, %v6792
      %v6795 = vsel %vm1480, %v6787, %v6794
      %v6796 = vrot.slane %v6791, 4
      %v6798 = vshrl.u32 %v6735, 16
      %v6800 = vrot.slane %v6798, 7
      %v6801 = vshll.u32 %v6735, 16
      %v6803 = vor.u32 %v6800, %v6801
      %v6804 = vrot.slane %v6800, 4
      %v6806 = vshrl.u32 %v6736, 16
      %v6808 = vrot.slane %v6806, 7
      %v6809 = vshll.u32 %v6736, 16
      %v6811 = vor.u32 %v6808, %v6809
      %v6812 = vsel %vm1480, %v6804, %v6811
      %v6813 = vrot.slane %v6808, 4
      %v6815 = vshrl.u32 %v6737, 16
      %v6817 = vrot.slane %v6815, 7
      %v6818 = vshll.u32 %v6737, 16
      %v6820 = vor.u32 %v6817, %v6818
      %v6821 = vrot.slane %v6817, 4
      %v6823 = vshrl.u32 %v6738, 16
      %v6825 = vrot.slane %v6823, 7
      %v6826 = vshll.u32 %v6738, 16
      %v6828 = vor.u32 %v6825, %v6826
      %v6829 = vsel %vm1480, %v6821, %v6828
      %v6830 = vrot.slane %v6825, 4
      %v6832 = vshrl.u32 %v6739, 16
      %v6834 = vrot.slane %v6832, 7
      %v6835 = vshll.u32 %v6739, 16
      %v6837 = vor.u32 %v6834, %v6835
      %v6838 = vrot.slane %v6834, 4
      %v6840 = vshrl.u32 %v6740, 16
      %v6842 = vrot.slane %v6840, 7
      %v6843 = vshll.u32 %v6740, 16
      %v6845 = vor.u32 %v6842, %v6843
      %v6846 = vsel %vm1480, %v6838, %v6845
      %v6847 = vrot.slane %v6842, 4
      %v6849 = vshrl.u32 %v6741, 16
      %v6851 = vrot.slane %v6849, 7
      %v6852 = vshll.u32 %v6741, 16
      %v6854 = vor.u32 %v6851, %v6852
      %v6855 = vrot.slane %v6851, 4
      %v6857 = vshrl.u32 %v6742, 16
      %v6859 = vrot.slane %v6857, 7
      %v6860 = vshll.u32 %v6742, 16
      %v6862 = vor.u32 %v6859, %v6860
      %v6863 = vsel %vm1480, %v6855, %v6862
      %v6864 = vrot.slane %v6859, 4
      %v6866 = vshrl.u32 %v6743, 16
      %v6868 = vrot.slane %v6866, 7
      %v6869 = vshll.u32 %v6743, 16
      %v6871 = vor.u32 %v6868, %v6869
      %v6872 = vrot.slane %v6868, 4
      %v6874 = vshrl.u32 %v6744, 16
      %v6876 = vrot.slane %v6874, 7
      %v6877 = vshll.u32 %v6744, 16
      %v6879 = vor.u32 %v6876, %v6877
      %v6880 = vsel %vm1480, %v6872, %v6879
      %v6881 = vrot.slane %v6876, 4
      %v6883 = vshrl.u32 %v6745, 16
      %v6885 = vrot.slane %v6883, 7
      %v6886 = vshll.u32 %v6745, 16
      %v6888 = vor.u32 %v6885, %v6886
      %v6889 = vrot.slane %v6885, 4
      %v6891 = vshrl.u32 %v6746, 16
      %v6893 = vrot.slane %v6891, 7
      %v6894 = vshll.u32 %v6746, 16
      %v6896 = vor.u32 %v6893, %v6894
      %v6897 = vsel %vm1480, %v6889, %v6896
      %v6898 = vrot.slane %v6893, 4
      %v6900 = vshrl.u32 %v6747, 16
      %v6902 = vrot.slane %v6900, 7
      %v6903 = vshll.u32 %v6747, 16
      %v6905 = vor.u32 %v6902, %v6903
      %v6906 = vrot.slane %v6902, 4
      %v6908 = vshrl.u32 %v6748, 16
      %v6910 = vrot.slane %v6908, 7
      %v6911 = vshll.u32 %v6748, 16
      %v6913 = vor.u32 %v6910, %v6911
      %v6914 = vsel %vm1480, %v6906, %v6913
      %v6915 = vrot.slane %v6910, 4
      %v6917 = vshrl.u32 %v6749, 16
      %v6919 = vrot.slane %v6917, 7
      %v6920 = vshll.u32 %v6749, 16
      %v6922 = vor.u32 %v6919, %v6920
      %v6923 = vrot.slane %v6919, 4
      %v6925 = vshrl.u32 %v6750, 16
      %v6927 = vrot.slane %v6925, 7
      %v6928 = vshll.u32 %v6750, 16
      %v6930 = vor.u32 %v6927, %v6928
      %v6931 = vsel %vm1480, %v6923, %v6930
      %v6932 = vrot.slane %v6927, 4
      %v6934 = vshrl.u32 %v6751, 16
      %v6936 = vrot.slane %v6934, 7
      %v6937 = vshll.u32 %v6751, 16
      %v6939 = vor.u32 %v6936, %v6937
      %v6940 = vrot.slane %v6936, 4
      %v6942 = vshrl.u32 %v6752, 16
      %v6944 = vrot.slane %v6942, 7
      %v6945 = vshll.u32 %v6752, 16
      %v6947 = vor.u32 %v6944, %v6945
      %v6948 = vsel %vm1480, %v6940, %v6947
      %v6949 = vrot.slane %v6944, 4
      %v6951 = vshrl.u32 %v6753, 16
      %v6953 = vrot.slane %v6951, 7
      %v6954 = vshll.u32 %v6753, 16
      %v6956 = vor.u32 %v6953, %v6954
      %v6957 = vrot.slane %v6953, 4
      %v6959 = vshrl.u32 %v6754, 16
      %v6961 = vrot.slane %v6959, 7
      %v6962 = vshll.u32 %v6754, 16
      %v6964 = vor.u32 %v6961, %v6962
      %v6965 = vsel %vm1480, %v6957, %v6964
      %v6966 = vrot.slane %v6961, 4
      %v6968 = vshrl.u32 %v6755, 16
      %v6970 = vrot.slane %v6968, 7
      %v6971 = vshll.u32 %v6755, 16
      %v6973 = vor.u32 %v6970, %v6971
      %v6974 = vrot.slane %v6970, 4
      %v6976 = vshrl.u32 %v6756, 16
      %v6978 = vrot.slane %v6976, 7
      %v6979 = vshll.u32 %v6756, 16
      %v6981 = vor.u32 %v6978, %v6979
      %v6982 = vsel %vm1480, %v6974, %v6981
      %v6983 = vrot.slane %v6978, 4
      %v6985 = vshrl.u32 %v6757, 16
      %v6987 = vrot.slane %v6985, 7
      %v6988 = vshll.u32 %v6757, 16
      %v6990 = vor.u32 %v6987, %v6988
      %v6991 = vrot.slane %v6987, 4
      %v6993 = vshrl.u32 %v6758, 16
      %v6995 = vrot.slane %v6993, 7
      %v6996 = vshll.u32 %v6758, 16
      %v6998 = vor.u32 %v6995, %v6996
      %v6999 = vsel %vm1480, %v6991, %v6998
      %v7000 = vrot.slane %v6995, 4
      %v7002 = vshrl.u32 %v6759, 16
      %v7004 = vrot.slane %v7002, 7
      %v7005 = vshll.u32 %v6759, 16
      %v7007 = vor.u32 %v7004, %v7005
      %v7008 = vrot.slane %v7004, 4
      %v7010 = vshrl.u32 %v6760, 16
      %v7012 = vrot.slane %v7010, 7
      %v7013 = vshll.u32 %v6760, 16
      %v7015 = vor.u32 %v7012, %v7013
      %v7016 = vsel %vm1480, %v7008, %v7015
      %v7017 = vrot.slane %v7012, 4
      %v7019 = vshrl.u32 %v6761, 16
      %v7021 = vrot.slane %v7019, 7
      %v7022 = vshll.u32 %v6761, 16
      %v7024 = vor.u32 %v7021, %v7022
      %v7025 = vrot.slane %v7021, 4
      %v7027 = vshrl.u32 %v6762, 16
      %v7029 = vrot.slane %v7027, 7
      %v7030 = vshll.u32 %v6762, 16
      %v7032 = vor.u32 %v7029, %v7030
      %v7033 = vsel %vm1480, %v7025, %v7032
      %v7034 = vrot.slane %v7029, 4
      %v7083 = vld [vmem:[%s3368] sm:$0xf]
      %v7084 = vsel %vm3370, %v6769, %v7083
      %7085 = vst [vmem:[%s3368] sm:$0xf] %v7084
      %7086 = vst.msk [vmem:[%s3368 + $0x4] sm:$0xf] %vm510, %v6778
      %v7087 = vld [vmem:[%s3368 + $0x8] sm:$0x1]
      %v7088 = vsel %vm520, %v6779, %v7087
      %7089 = vst [vmem:[%s3368 + $0x8] sm:$0x1] %v7088
      %v7090 = vld [vmem:[%s3368 + $0xc] sm:$0xf]
      %v7091 = vsel %vm3370, %v6786, %v7090
      %7092 = vst [vmem:[%s3368 + $0xc] sm:$0xf] %v7091
      %7093 = vst.msk [vmem:[%s3368 + $0x10] sm:$0xf] %vm510, %v6795
      %v7094 = vld [vmem:[%s3368 + $0x14] sm:$0x1]
      %v7095 = vsel %vm520, %v6796, %v7094
      %7096 = vst [vmem:[%s3368 + $0x14] sm:$0x1] %v7095
      %v7097 = vld [vmem:[%s3368 + $0x18] sm:$0xf]
      %v7098 = vsel %vm3370, %v6803, %v7097
      %7099 = vst [vmem:[%s3368 + $0x18] sm:$0xf] %v7098
      %7100 = vst.msk [vmem:[%s3368 + $0x1c] sm:$0xf] %vm510, %v6812
      %v7101 = vld [vmem:[%s3368 + $0x20] sm:$0x1]
      %v7102 = vsel %vm520, %v6813, %v7101
      %7103 = vst [vmem:[%s3368 + $0x20] sm:$0x1] %v7102
      %v7104 = vld [vmem:[%s3368 + $0x24] sm:$0xf]
      %v7105 = vsel %vm3370, %v6820, %v7104
      %7106 = vst [vmem:[%s3368 + $0x24] sm:$0xf] %v7105
      %7107 = vst.msk [vmem:[%s3368 + $0x28] sm:$0xf] %vm510, %v6829
      %v7108 = vld [vmem:[%s3368 + $0x2c] sm:$0x1]
      %v7109 = vsel %vm520, %v6830, %v7108
      %7110 = vst [vmem:[%s3368 + $0x2c] sm:$0x1] %v7109
      %v7111 = vld [vmem:[%s3368 + $0x30] sm:$0xf]
      %v7112 = vsel %vm3370, %v6837, %v7111
      %7113 = vst [vmem:[%s3368 + $0x30] sm:$0xf] %v7112
      %7114 = vst.msk [vmem:[%s3368 + $0x34] sm:$0xf] %vm510, %v6846
      %v7115 = vld [vmem:[%s3368 + $0x38] sm:$0x1]
      %v7116 = vsel %vm520, %v6847, %v7115
      %7117 = vst [vmem:[%s3368 + $0x38] sm:$0x1] %v7116
      %v7118 = vld [vmem:[%s3368 + $0x3c] sm:$0xf]
      %v7119 = vsel %vm3370, %v6854, %v7118
      %7120 = vst [vmem:[%s3368 + $0x3c] sm:$0xf] %v7119
      %7121 = vst.msk [vmem:[%s3368 + $0x40] sm:$0xf] %vm510, %v6863
      %v7122 = vld [vmem:[%s3368 + $0x44] sm:$0x1]
      %v7123 = vsel %vm520, %v6864, %v7122
      %7124 = vst [vmem:[%s3368 + $0x44] sm:$0x1] %v7123
      %v7125 = vld [vmem:[%s3368 + $0x48] sm:$0xf]
      %v7126 = vsel %vm3370, %v6871, %v7125
      %7127 = vst [vmem:[%s3368 + $0x48] sm:$0xf] %v7126
      %7128 = vst.msk [vmem:[%s3368 + $0x4c] sm:$0xf] %vm510, %v6880
      %v7129 = vld [vmem:[%s3368 + $0x50] sm:$0x1]
      %v7130 = vsel %vm520, %v6881, %v7129
      %7131 = vst [vmem:[%s3368 + $0x50] sm:$0x1] %v7130
      %v7132 = vld [vmem:[%s3368 + $0x54] sm:$0xf]
      %v7133 = vsel %vm3370, %v6888, %v7132
      %7134 = vst [vmem:[%s3368 + $0x54] sm:$0xf] %v7133
      %7135 = vst.msk [vmem:[%s3368 + $0x58] sm:$0xf] %vm510, %v6897
      %v7136 = vld [vmem:[%s3368 + $0x5c] sm:$0x1]
      %v7137 = vsel %vm520, %v6898, %v7136
      %7138 = vst [vmem:[%s3368 + $0x5c] sm:$0x1] %v7137
      %v7139 = vld [vmem:[%s3368 + $0x60] sm:$0xf]
      %v7140 = vsel %vm3370, %v6905, %v7139
      %7141 = vst [vmem:[%s3368 + $0x60] sm:$0xf] %v7140
      %7142 = vst.msk [vmem:[%s3368 + $0x64] sm:$0xf] %vm510, %v6914
      %v7143 = vld [vmem:[%s3368 + $0x68] sm:$0x1]
      %v7144 = vsel %vm520, %v6915, %v7143
      %7145 = vst [vmem:[%s3368 + $0x68] sm:$0x1] %v7144
      %v7146 = vld [vmem:[%s3368 + $0x6c] sm:$0xf]
      %v7147 = vsel %vm3370, %v6922, %v7146
      %7148 = vst [vmem:[%s3368 + $0x6c] sm:$0xf] %v7147
      %7149 = vst.msk [vmem:[%s3368 + $0x70] sm:$0xf] %vm510, %v6931
      %v7150 = vld [vmem:[%s3368 + $0x74] sm:$0x1]
      %v7151 = vsel %vm520, %v6932, %v7150
      %7152 = vst [vmem:[%s3368 + $0x74] sm:$0x1] %v7151
      %v7153 = vld [vmem:[%s3368 + $0x78] sm:$0xf]
      %v7154 = vsel %vm3370, %v6939, %v7153
      %7155 = vst [vmem:[%s3368 + $0x78] sm:$0xf] %v7154
      %7156 = vst.msk [vmem:[%s3368 + $0x7c] sm:$0xf] %vm510, %v6948
      %v7157 = vld [vmem:[%s3368 + $0x80] sm:$0x1]
      %v7158 = vsel %vm520, %v6949, %v7157
      %7159 = vst [vmem:[%s3368 + $0x80] sm:$0x1] %v7158
      %v7160 = vld [vmem:[%s3368 + $0x84] sm:$0xf]
      %v7161 = vsel %vm3370, %v6956, %v7160
      %7162 = vst [vmem:[%s3368 + $0x84] sm:$0xf] %v7161
      %7163 = vst.msk [vmem:[%s3368 + $0x88] sm:$0xf] %vm510, %v6965
      %v7164 = vld [vmem:[%s3368 + $0x8c] sm:$0x1]
      %v7165 = vsel %vm520, %v6966, %v7164
      %7166 = vst [vmem:[%s3368 + $0x8c] sm:$0x1] %v7165
      %v7167 = vld [vmem:[%s3368 + $0x90] sm:$0xf]
      %v7168 = vsel %vm3370, %v6973, %v7167
      %7169 = vst [vmem:[%s3368 + $0x90] sm:$0xf] %v7168
      %7170 = vst.msk [vmem:[%s3368 + $0x94] sm:$0xf] %vm510, %v6982
      %v7171 = vld [vmem:[%s3368 + $0x98] sm:$0x1]
      %v7172 = vsel %vm520, %v6983, %v7171
      %7173 = vst [vmem:[%s3368 + $0x98] sm:$0x1] %v7172
      %v7174 = vld [vmem:[%s3368 + $0x9c] sm:$0xf]
      %v7175 = vsel %vm3370, %v6990, %v7174
      %7176 = vst [vmem:[%s3368 + $0x9c] sm:$0xf] %v7175
      %7177 = vst.msk [vmem:[%s3368 + $0xa0] sm:$0xf] %vm510, %v6999
      %v7178 = vld [vmem:[%s3368 + $0xa4] sm:$0x1]
      %v7179 = vsel %vm520, %v7000, %v7178
      %7180 = vst [vmem:[%s3368 + $0xa4] sm:$0x1] %v7179
      %v7181 = vld [vmem:[%s3368 + $0xa8] sm:$0xf]
      %v7182 = vsel %vm3370, %v7007, %v7181
      %7183 = vst [vmem:[%s3368 + $0xa8] sm:$0xf] %v7182
      %7184 = vst.msk [vmem:[%s3368 + $0xac] sm:$0xf] %vm510, %v7016
      %v7185 = vld [vmem:[%s3368 + $0xb0] sm:$0x1]
      %v7186 = vsel %vm520, %v7017, %v7185
      %7187 = vst [vmem:[%s3368 + $0xb0] sm:$0x1] %v7186
      %v7188 = vld [vmem:[%s3368 + $0xb4] sm:$0xf]
      %v7189 = vsel %vm3370, %v7024, %v7188
      %7190 = vst [vmem:[%s3368 + $0xb4] sm:$0xf] %v7189
      %7191 = vst.msk [vmem:[%s3368 + $0xb8] sm:$0xf] %vm510, %v7033
      %v7192 = vld [vmem:[%s3368 + $0xbc] sm:$0x1]
      %v7193 = vsel %vm520, %v7034, %v7192
      %7194 = vst [vmem:[%s3368 + $0xbc] sm:$0x1] %v7193
      %v7195 = vld [vmem:[#allocation3] sm:$0xf]
      %v7196 = vld [vmem:[#allocation3 + $0x4] sm:$0xf]
      %v7197 = vld [vmem:[#allocation3 + $0x8] sm:$0x1]
      %v7198 = vld [vmem:[#allocation3 + $0xc] sm:$0xf]
      %v7199 = vld [vmem:[#allocation3 + $0x10] sm:$0xf]
      %v7200 = vld [vmem:[#allocation3 + $0x14] sm:$0x1]
      %v7201 = vld [vmem:[#allocation3 + $0x18] sm:$0xf]
      %v7202 = vld [vmem:[#allocation3 + $0x1c] sm:$0xf]
      %v7203 = vld [vmem:[#allocation3 + $0x20] sm:$0x1]
      %v7204 = vld [vmem:[#allocation3 + $0x24] sm:$0xf]
      %v7205 = vld [vmem:[#allocation3 + $0x28] sm:$0xf]
      %v7206 = vld [vmem:[#allocation3 + $0x2c] sm:$0x1]
      %v7207 = vld [vmem:[#allocation3 + $0x30] sm:$0xf]
      %v7208 = vld [vmem:[#allocation3 + $0x34] sm:$0xf]
      %v7209 = vld [vmem:[#allocation3 + $0x38] sm:$0x1]
      %v7210 = vld [vmem:[#allocation3 + $0x3c] sm:$0xf]
      %v7211 = vld [vmem:[#allocation3 + $0x40] sm:$0xf]
      %v7212 = vld [vmem:[#allocation3 + $0x44] sm:$0x1]
      %v7213 = vld [vmem:[#allocation3 + $0x48] sm:$0xf]
      %v7214 = vld [vmem:[#allocation3 + $0x4c] sm:$0xf]
      %v7215 = vld [vmem:[#allocation3 + $0x50] sm:$0x1]
      %v7216 = vld [vmem:[#allocation3 + $0x54] sm:$0xf]
      %v7217 = vld [vmem:[#allocation3 + $0x58] sm:$0xf]
      %v7218 = vld [vmem:[#allocation3 + $0x5c] sm:$0x1]
      %v7219 = vld [vmem:[#allocation3 + $0x60] sm:$0xf]
      %v7220 = vld [vmem:[#allocation3 + $0x64] sm:$0xf]
      %v7221 = vld [vmem:[#allocation3 + $0x68] sm:$0x1]
      %v7222 = vld [vmem:[#allocation3 + $0x6c] sm:$0xf]
      %v7223 = vld [vmem:[#allocation3 + $0x70] sm:$0xf]
      %v7224 = vld [vmem:[#allocation3 + $0x74] sm:$0x1]
      %v7225 = vld [vmem:[#allocation3 + $0x78] sm:$0xf]
      %v7226 = vld [vmem:[#allocation3 + $0x7c] sm:$0xf]
      %v7227 = vld [vmem:[#allocation3 + $0x80] sm:$0x1]
      %v7228 = vld [vmem:[#allocation3 + $0x84] sm:$0xf]
      %v7229 = vld [vmem:[#allocation3 + $0x88] sm:$0xf]
      %v7230 = vld [vmem:[#allocation3 + $0x8c] sm:$0x1]
      %v7231 = vld [vmem:[#allocation3 + $0x90] sm:$0xf]
      %v7232 = vld [vmem:[#allocation3 + $0x94] sm:$0xf]
      %v7233 = vld [vmem:[#allocation3 + $0x98] sm:$0x1]
      %v7234 = vld [vmem:[#allocation3 + $0x9c] sm:$0xf]
      %v7235 = vld [vmem:[#allocation3 + $0xa0] sm:$0xf]
      %v7236 = vld [vmem:[#allocation3 + $0xa4] sm:$0x1]
      %v7237 = vld [vmem:[#allocation3 + $0xa8] sm:$0xf]
      %v7238 = vld [vmem:[#allocation3 + $0xac] sm:$0xf]
      %v7239 = vld [vmem:[#allocation3 + $0xb0] sm:$0x1]
      %v7240 = vld [vmem:[#allocation3 + $0xb4] sm:$0xf]
      %v7241 = vld [vmem:[#allocation3 + $0xb8] sm:$0xf]
      %v7242 = vld [vmem:[#allocation3 + $0xbc] sm:$0x1]
      %v7243 = vld [vmem:[#allocation3 + $0xc0] sm:$0xf]
      %v7244 = vld [vmem:[#allocation3 + $0xc4] sm:$0xf]
      %v7245 = vld [vmem:[#allocation3 + $0xc8] sm:$0x1]
      %v7246 = vld [vmem:[#allocation3 + $0xcc] sm:$0xf]
      %v7247 = vld [vmem:[#allocation3 + $0xd0] sm:$0xf]
      %v7248 = vld [vmem:[#allocation3 + $0xd4] sm:$0x1]
      %v7285 = vunpack.c.l.b16 %v7195
      %v7286 = vunpack.c.l.b16 %v7196
      %v7287 = vunpack.c.l.b16 %v7198
      %v7288 = vunpack.c.l.b16 %v7199
      %v7289 = vunpack.c.l.b16 %v7201
      %v7290 = vunpack.c.l.b16 %v7202
      %v7291 = vunpack.c.l.b16 %v7204
      %v7292 = vunpack.c.l.b16 %v7205
      %v7293 = vunpack.c.l.b16 %v7207
      %v7294 = vunpack.c.l.b16 %v7208
      %v7295 = vunpack.c.l.b16 %v7210
      %v7296 = vunpack.c.l.b16 %v7211
      %v7297 = vunpack.c.l.b16 %v7213
      %v7298 = vunpack.c.l.b16 %v7214
      %v7299 = vunpack.c.l.b16 %v7216
      %v7300 = vunpack.c.l.b16 %v7217
      %v7301 = vunpack.c.l.b16 %v7219
      %v7302 = vunpack.c.l.b16 %v7220
      %v7303 = vunpack.c.l.b16 %v7222
      %v7304 = vunpack.c.l.b16 %v7223
      %v7305 = vunpack.c.l.b16 %v7225
      %v7306 = vunpack.c.l.b16 %v7226
      %v7307 = vunpack.c.l.b16 %v7228
      %v7308 = vunpack.c.l.b16 %v7229
      %v7309 = vunpack.c.l.b16 %v7231
      %v7310 = vunpack.c.l.b16 %v7232
      %v7311 = vunpack.c.l.b16 %v7234
      %v7312 = vunpack.c.l.b16 %v7235
      %v7313 = vunpack.c.l.b16 %v7237
      %v7314 = vunpack.c.l.b16 %v7238
      %v7315 = vunpack.c.l.b16 %v7240
      %v7316 = vunpack.c.l.b16 %v7241
      %v7317 = vunpack.c.l.b16 %v7243
      %v7318 = vunpack.c.l.b16 %v7244
      %v7319 = vunpack.c.l.b16 %v7246
      %v7320 = vunpack.c.l.b16 %v7247
      %v7321 = vpack.c.b16 %v7286, %v7285
      %v7322 = vpack.c.b16 %v7288, %v7287
      %v7323 = vpack.c.b16 %v7290, %v7289
      %v7324 = vpack.c.b16 %v7292, %v7291
      %v7325 = vpack.c.b16 %v7294, %v7293
      %v7326 = vpack.c.b16 %v7296, %v7295
      %v7327 = vpack.c.b16 %v7298, %v7297
      %v7328 = vpack.c.b16 %v7300, %v7299
      %v7329 = vpack.c.b16 %v7302, %v7301
      %v7330 = vpack.c.b16 %v7304, %v7303
      %v7331 = vpack.c.b16 %v7306, %v7305
      %v7332 = vpack.c.b16 %v7308, %v7307
      %v7333 = vpack.c.b16 %v7310, %v7309
      %v7334 = vpack.c.b16 %v7312, %v7311
      %v7335 = vpack.c.b16 %v7314, %v7313
      %v7336 = vpack.c.b16 %v7316, %v7315
      %v7337 = vpack.c.b16 %v7318, %v7317
      %v7338 = vpack.c.b16 %v7320, %v7319
      %v7357 = vunpack.c.l.b16 %v7197
      %v7358 = vunpack.c.l.b16 %v7200
      %v7359 = vunpack.c.l.b16 %v7203
      %v7360 = vunpack.c.l.b16 %v7206
      %v7361 = vunpack.c.l.b16 %v7209
      %v7362 = vunpack.c.l.b16 %v7212
      %v7363 = vunpack.c.l.b16 %v7215
      %v7364 = vunpack.c.l.b16 %v7218
      %v7365 = vunpack.c.l.b16 %v7221
      %v7366 = vunpack.c.l.b16 %v7224
      %v7367 = vunpack.c.l.b16 %v7227
      %v7368 = vunpack.c.l.b16 %v7230
      %v7369 = vunpack.c.l.b16 %v7233
      %v7370 = vunpack.c.l.b16 %v7236
      %v7371 = vunpack.c.l.b16 %v7239
      %v7372 = vunpack.c.l.b16 %v7242
      %v7373 = vunpack.c.l.b16 %v7245
      %v7374 = vunpack.c.l.b16 %v7248
      %v7375 = vpack.c.b16 %v7357, %v7357
      %v7376 = vpack.c.b16 %v7358, %v7358
      %v7377 = vpack.c.b16 %v7359, %v7359
      %v7378 = vpack.c.b16 %v7360, %v7360
      %v7379 = vpack.c.b16 %v7361, %v7361
      %v7380 = vpack.c.b16 %v7362, %v7362
      %v7381 = vpack.c.b16 %v7363, %v7363
      %v7382 = vpack.c.b16 %v7364, %v7364
      %v7383 = vpack.c.b16 %v7365, %v7365
      %v7384 = vpack.c.b16 %v7366, %v7366
      %v7385 = vpack.c.b16 %v7367, %v7367
      %v7386 = vpack.c.b16 %v7368, %v7368
      %v7387 = vpack.c.b16 %v7369, %v7369
      %v7388 = vpack.c.b16 %v7370, %v7370
      %v7389 = vpack.c.b16 %v7371, %v7371
      %v7390 = vpack.c.b16 %v7372, %v7372
      %v7391 = vpack.c.b16 %v7373, %v7373
      %v7392 = vpack.c.b16 %v7374, %v7374
      %v7394 = vshrl.u32 %v7321, 16
      %v7396 = vshll.u32 %v7321, 16
      %v7398 = vrot.slane %v7396, 1
      %v7399 = vor.u32 %v7394, %v7398
      %v7401 = vshll.u32 %v7375, 16
      %v7403 = vrot.slane %v7401, 1
      %v7404 = vsel %vm2114, %v7399, %v7403
      %v7406 = vshrl.u32 %v7322, 16
      %v7408 = vshll.u32 %v7322, 16
      %v7410 = vrot.slane %v7408, 1
      %v7411 = vor.u32 %v7406, %v7410
      %v7413 = vshll.u32 %v7376, 16
      %v7415 = vrot.slane %v7413, 1
      %v7416 = vsel %vm2114, %v7411, %v7415
      %v7418 = vshrl.u32 %v7323, 16
      %v7420 = vshll.u32 %v7323, 16
      %v7422 = vrot.slane %v7420, 1
      %v7423 = vor.u32 %v7418, %v7422
      %v7425 = vshll.u32 %v7377, 16
      %v7427 = vrot.slane %v7425, 1
      %v7428 = vsel %vm2114, %v7423, %v7427
      %v7430 = vshrl.u32 %v7324, 16
      %v7432 = vshll.u32 %v7324, 16
      %v7434 = vrot.slane %v7432, 1
      %v7435 = vor.u32 %v7430, %v7434
      %v7437 = vshll.u32 %v7378, 16
      %v7439 = vrot.slane %v7437, 1
      %v7440 = vsel %vm2114, %v7435, %v7439
      %v7442 = vshrl.u32 %v7325, 16
      %v7444 = vshll.u32 %v7325, 16
      %v7446 = vrot.slane %v7444, 1
      %v7447 = vor.u32 %v7442, %v7446
      %v7449 = vshll.u32 %v7379, 16
      %v7451 = vrot.slane %v7449, 1
      %v7452 = vsel %vm2114, %v7447, %v7451
      %v7454 = vshrl.u32 %v7326, 16
      %v7456 = vshll.u32 %v7326, 16
      %v7458 = vrot.slane %v7456, 1
      %v7459 = vor.u32 %v7454, %v7458
      %v7461 = vshll.u32 %v7380, 16
      %v7463 = vrot.slane %v7461, 1
      %v7464 = vsel %vm2114, %v7459, %v7463
      %v7466 = vshrl.u32 %v7327, 16
      %v7468 = vshll.u32 %v7327, 16
      %v7470 = vrot.slane %v7468, 1
      %v7471 = vor.u32 %v7466, %v7470
      %v7473 = vshll.u32 %v7381, 16
      %v7475 = vrot.slane %v7473, 1
      %v7476 = vsel %vm2114, %v7471, %v7475
      %v7478 = vshrl.u32 %v7328, 16
      %v7480 = vshll.u32 %v7328, 16
      %v7482 = vrot.slane %v7480, 1
      %v7483 = vor.u32 %v7478, %v7482
      %v7485 = vshll.u32 %v7382, 16
      %v7487 = vrot.slane %v7485, 1
      %v7488 = vsel %vm2114, %v7483, %v7487
      %v7490 = vshrl.u32 %v7329, 16
      %v7492 = vshll.u32 %v7329, 16
      %v7494 = vrot.slane %v7492, 1
      %v7495 = vor.u32 %v7490, %v7494
      %v7497 = vshll.u32 %v7383, 16
      %v7499 = vrot.slane %v7497, 1
      %v7500 = vsel %vm2114, %v7495, %v7499
      %v7502 = vshrl.u32 %v7330, 16
      %v7504 = vshll.u32 %v7330, 16
      %v7506 = vrot.slane %v7504, 1
      %v7507 = vor.u32 %v7502, %v7506
      %v7509 = vshll.u32 %v7384, 16
      %v7511 = vrot.slane %v7509, 1
      %v7512 = vsel %vm2114, %v7507, %v7511
      %v7514 = vshrl.u32 %v7331, 16
      %v7516 = vshll.u32 %v7331, 16
      %v7518 = vrot.slane %v7516, 1
      %v7519 = vor.u32 %v7514, %v7518
      %v7521 = vshll.u32 %v7385, 16
      %v7523 = vrot.slane %v7521, 1
      %v7524 = vsel %vm2114, %v7519, %v7523
      %v7526 = vshrl.u32 %v7332, 16
      %v7528 = vshll.u32 %v7332, 16
      %v7530 = vrot.slane %v7528, 1
      %v7531 = vor.u32 %v7526, %v7530
      %v7533 = vshll.u32 %v7386, 16
      %v7535 = vrot.slane %v7533, 1
      %v7536 = vsel %vm2114, %v7531, %v7535
      %v7538 = vshrl.u32 %v7333, 16
      %v7540 = vshll.u32 %v7333, 16
      %v7542 = vrot.slane %v7540, 1
      %v7543 = vor.u32 %v7538, %v7542
      %v7545 = vshll.u32 %v7387, 16
      %v7547 = vrot.slane %v7545, 1
      %v7548 = vsel %vm2114, %v7543, %v7547
      %v7550 = vshrl.u32 %v7334, 16
      %v7552 = vshll.u32 %v7334, 16
      %v7554 = vrot.slane %v7552, 1
      %v7555 = vor.u32 %v7550, %v7554
      %v7557 = vshll.u32 %v7388, 16
      %v7559 = vrot.slane %v7557, 1
      %v7560 = vsel %vm2114, %v7555, %v7559
      %v7562 = vshrl.u32 %v7335, 16
      %v7564 = vshll.u32 %v7335, 16
      %v7566 = vrot.slane %v7564, 1
      %v7567 = vor.u32 %v7562, %v7566
      %v7569 = vshll.u32 %v7389, 16
      %v7571 = vrot.slane %v7569, 1
      %v7572 = vsel %vm2114, %v7567, %v7571
      %v7574 = vshrl.u32 %v7336, 16
      %v7576 = vshll.u32 %v7336, 16
      %v7578 = vrot.slane %v7576, 1
      %v7579 = vor.u32 %v7574, %v7578
      %v7581 = vshll.u32 %v7390, 16
      %v7583 = vrot.slane %v7581, 1
      %v7584 = vsel %vm2114, %v7579, %v7583
      %v7586 = vshrl.u32 %v7337, 16
      %v7588 = vshll.u32 %v7337, 16
      %v7590 = vrot.slane %v7588, 1
      %v7591 = vor.u32 %v7586, %v7590
      %v7593 = vshll.u32 %v7391, 16
      %v7595 = vrot.slane %v7593, 1
      %v7596 = vsel %vm2114, %v7591, %v7595
      %v7598 = vshrl.u32 %v7338, 16
      %v7600 = vshll.u32 %v7338, 16
      %v7602 = vrot.slane %v7600, 1
      %v7603 = vor.u32 %v7598, %v7602
      %v7605 = vshll.u32 %v7392, 16
      %v7607 = vrot.slane %v7605, 1
      %v7608 = vsel %vm2114, %v7603, %v7607
      %7609 = vrot.lane.b32.xlu0 %v7404, 32
      %v7610 = vpop.permute.xlu0 %7609
      %7611 = vrot.lane.b32.xlu0 %v7416, 32
      %v7612 = vpop.permute.xlu0 %7611
      %7613 = vrot.lane.b32.xlu0 %v7428, 32
      %v7614 = vpop.permute.xlu0 %7613
      %7615 = vrot.lane.b32.xlu0 %v7440, 32
      %v7616 = vpop.permute.xlu0 %7615
      %7617 = vrot.lane.b32.xlu0 %v7452, 32
      %v7618 = vpop.permute.xlu0 %7617
      %7619 = vrot.lane.b32.xlu0 %v7464, 32
      %v7620 = vpop.permute.xlu0 %7619
      %7621 = vrot.lane.b32.xlu0 %v7476, 32
      %v7622 = vpop.permute.xlu0 %7621
      %7623 = vrot.lane.b32.xlu0 %v7488, 32
      %v7624 = vpop.permute.xlu0 %7623
      %7625 = vrot.lane.b32.xlu0 %v7500, 32
      %v7626 = vpop.permute.xlu0 %7625
      %7627 = vrot.lane.b32.xlu0 %v7512, 32
      %v7628 = vpop.permute.xlu0 %7627
      %7629 = vrot.lane.b32.xlu0 %v7524, 32
      %v7630 = vpop.permute.xlu0 %7629
      %7631 = vrot.lane.b32.xlu0 %v7536, 32
      %v7632 = vpop.permute.xlu0 %7631
      %7633 = vrot.lane.b32.xlu0 %v7548, 32
      %v7634 = vpop.permute.xlu0 %7633
      %7635 = vrot.lane.b32.xlu0 %v7560, 32
      %v7636 = vpop.permute.xlu0 %7635
      %7637 = vrot.lane.b32.xlu0 %v7572, 32
      %v7638 = vpop.permute.xlu0 %7637
      %7639 = vrot.lane.b32.xlu0 %v7584, 32
      %v7640 = vpop.permute.xlu0 %7639
      %7641 = vrot.lane.b32.xlu0 %v7596, 32
      %v7642 = vpop.permute.xlu0 %7641
      %7643 = vrot.lane.b32.xlu0 %v7608, 32
      %v7644 = vpop.permute.xlu0 %7643
      %v7645 = vrot.slane %v7321, 1
      %v7646 = vrot.slane %v7375, 1
      %v7647 = vsel %vm2367, %v7645, %v7646
      %v7648 = vrot.slane %v7322, 1
      %v7649 = vrot.slane %v7376, 1
      %v7650 = vsel %vm2367, %v7648, %v7649
      %v7651 = vrot.slane %v7323, 1
      %v7652 = vrot.slane %v7377, 1
      %v7653 = vsel %vm2367, %v7651, %v7652
      %v7654 = vrot.slane %v7324, 1
      %v7655 = vrot.slane %v7378, 1
      %v7656 = vsel %vm2367, %v7654, %v7655
      %v7657 = vrot.slane %v7325, 1
      %v7658 = vrot.slane %v7379, 1
      %v7659 = vsel %vm2367, %v7657, %v7658
      %v7660 = vrot.slane %v7326, 1
      %v7661 = vrot.slane %v7380, 1
      %v7662 = vsel %vm2367, %v7660, %v7661
      %v7663 = vrot.slane %v7327, 1
      %v7664 = vrot.slane %v7381, 1
      %v7665 = vsel %vm2367, %v7663, %v7664
      %v7666 = vrot.slane %v7328, 1
      %v7667 = vrot.slane %v7382, 1
      %v7668 = vsel %vm2367, %v7666, %v7667
      %v7669 = vrot.slane %v7329, 1
      %v7670 = vrot.slane %v7383, 1
      %v7671 = vsel %vm2367, %v7669, %v7670
      %v7672 = vrot.slane %v7330, 1
      %v7673 = vrot.slane %v7384, 1
      %v7674 = vsel %vm2367, %v7672, %v7673
      %v7675 = vrot.slane %v7331, 1
      %v7676 = vrot.slane %v7385, 1
      %v7677 = vsel %vm2367, %v7675, %v7676
      %v7678 = vrot.slane %v7332, 1
      %v7679 = vrot.slane %v7386, 1
      %v7680 = vsel %vm2367, %v7678, %v7679
      %v7681 = vrot.slane %v7333, 1
      %v7682 = vrot.slane %v7387, 1
      %v7683 = vsel %vm2367, %v7681, %v7682
      %v7684 = vrot.slane %v7334, 1
      %v7685 = vrot.slane %v7388, 1
      %v7686 = vsel %vm2367, %v7684, %v7685
      %v7687 = vrot.slane %v7335, 1
      %v7688 = vrot.slane %v7389, 1
      %v7689 = vsel %vm2367, %v7687, %v7688
      %v7690 = vrot.slane %v7336, 1
      %v7691 = vrot.slane %v7390, 1
      %v7692 = vsel %vm2367, %v7690, %v7691
      %v7693 = vrot.slane %v7337, 1
      %v7694 = vrot.slane %v7391, 1
      %v7695 = vsel %vm2367, %v7693, %v7694
      %v7696 = vrot.slane %v7338, 1
      %v7697 = vrot.slane %v7392, 1
      %v7698 = vsel %vm2367, %v7696, %v7697
      %7699 = vrot.lane.b32.xlu0 %v7647, 64
      %v7700 = vpop.permute.xlu0 %7699
      %7701 = vrot.lane.b32.xlu0 %v7650, 64
      %v7702 = vpop.permute.xlu0 %7701
      %7703 = vrot.lane.b32.xlu0 %v7653, 64
      %v7704 = vpop.permute.xlu0 %7703
      %7705 = vrot.lane.b32.xlu0 %v7656, 64
      %v7706 = vpop.permute.xlu0 %7705
      %7707 = vrot.lane.b32.xlu0 %v7659, 64
      %v7708 = vpop.permute.xlu0 %7707
      %7709 = vrot.lane.b32.xlu0 %v7662, 64
      %v7710 = vpop.permute.xlu0 %7709
      %7711 = vrot.lane.b32.xlu0 %v7665, 64
      %v7712 = vpop.permute.xlu0 %7711
      %7713 = vrot.lane.b32.xlu0 %v7668, 64
      %v7714 = vpop.permute.xlu0 %7713
      %7715 = vrot.lane.b32.xlu0 %v7671, 64
      %v7716 = vpop.permute.xlu0 %7715
      %7717 = vrot.lane.b32.xlu0 %v7674, 64
      %v7718 = vpop.permute.xlu0 %7717
      %7719 = vrot.lane.b32.xlu0 %v7677, 64
      %v7720 = vpop.permute.xlu0 %7719
      %7721 = vrot.lane.b32.xlu0 %v7680, 64
      %v7722 = vpop.permute.xlu0 %7721
      %7723 = vrot.lane.b32.xlu0 %v7683, 64
      %v7724 = vpop.permute.xlu0 %7723
      %7725 = vrot.lane.b32.xlu0 %v7686, 64
      %v7726 = vpop.permute.xlu0 %7725
      %7727 = vrot.lane.b32.xlu0 %v7689, 64
      %v7728 = vpop.permute.xlu0 %7727
      %7729 = vrot.lane.b32.xlu0 %v7692, 64
      %v7730 = vpop.permute.xlu0 %7729
      %7731 = vrot.lane.b32.xlu0 %v7695, 64
      %v7732 = vpop.permute.xlu0 %7731
      %7733 = vrot.lane.b32.xlu0 %v7698, 64
      %v7734 = vpop.permute.xlu0 %7733
      %v7736 = vsel %vm4023, %v7321, %v7610
      %v7738 = vsel %vm4023, %v7322, %v7612
      %v7740 = vsel %vm4023, %v7323, %v7614
      %v7742 = vsel %vm4023, %v7324, %v7616
      %v7744 = vsel %vm4023, %v7325, %v7618
      %v7746 = vsel %vm4023, %v7326, %v7620
      %v7748 = vsel %vm4023, %v7327, %v7622
      %v7750 = vsel %vm4023, %v7328, %v7624
      %v7752 = vsel %vm4023, %v7329, %v7626
      %v7754 = vsel %vm4023, %v7330, %v7628
      %v7756 = vsel %vm4023, %v7331, %v7630
      %v7758 = vsel %vm4023, %v7332, %v7632
      %v7760 = vsel %vm4023, %v7333, %v7634
      %v7762 = vsel %vm4023, %v7334, %v7636
      %v7764 = vsel %vm4023, %v7335, %v7638
      %v7766 = vsel %vm4023, %v7336, %v7640
      %v7768 = vsel %vm4023, %v7337, %v7642
      %v7770 = vsel %vm4023, %v7338, %v7644
      %v7772 = vsel %vm4060, %v7736, %v7700
      %v7774 = vsel %vm4060, %v7738, %v7702
      %v7776 = vsel %vm4060, %v7740, %v7704
      %v7778 = vsel %vm4060, %v7742, %v7706
      %v7780 = vsel %vm4060, %v7744, %v7708
      %v7782 = vsel %vm4060, %v7746, %v7710
      %v7784 = vsel %vm4060, %v7748, %v7712
      %v7786 = vsel %vm4060, %v7750, %v7714
      %v7788 = vsel %vm4060, %v7752, %v7716
      %v7790 = vsel %vm4060, %v7754, %v7718
      %v7792 = vsel %vm4060, %v7756, %v7720
      %v7794 = vsel %vm4060, %v7758, %v7722
      %v7796 = vsel %vm4060, %v7760, %v7724
      %v7798 = vsel %vm4060, %v7762, %v7726
      %v7800 = vsel %vm4060, %v7764, %v7728
      %v7802 = vsel %vm4060, %v7766, %v7730
      %v7804 = vsel %vm4060, %v7768, %v7732
      %v7806 = vsel %vm4060, %v7770, %v7734
      %7823 = vrot.lane.b32.xlu0 %v7774, 96
      %v7824 = vpop.permute.xlu0 %7823
      %7825 = vrot.lane.b32.xlu0 %v7776, 96
      %v7826 = vpop.permute.xlu0 %7825
      %7827 = vrot.lane.b32.xlu0 %v7778, 96
      %v7828 = vpop.permute.xlu0 %7827
      %7829 = vrot.lane.b32.xlu0 %v7780, 96
      %v7830 = vpop.permute.xlu0 %7829
      %7831 = vrot.lane.b32.xlu0 %v7782, 96
      %v7832 = vpop.permute.xlu0 %7831
      %7833 = vrot.lane.b32.xlu0 %v7784, 96
      %v7834 = vpop.permute.xlu0 %7833
      %7835 = vrot.lane.b32.xlu0 %v7786, 96
      %v7836 = vpop.permute.xlu0 %7835
      %7837 = vrot.lane.b32.xlu0 %v7788, 96
      %v7838 = vpop.permute.xlu0 %7837
      %7839 = vrot.lane.b32.xlu0 %v7790, 96
      %v7840 = vpop.permute.xlu0 %7839
      %7841 = vrot.lane.b32.xlu0 %v7792, 96
      %v7842 = vpop.permute.xlu0 %7841
      %7843 = vrot.lane.b32.xlu0 %v7794, 96
      %v7844 = vpop.permute.xlu0 %7843
      %7845 = vrot.lane.b32.xlu0 %v7796, 96
      %v7846 = vpop.permute.xlu0 %7845
      %7847 = vrot.lane.b32.xlu0 %v7798, 96
      %v7848 = vpop.permute.xlu0 %7847
      %7849 = vrot.lane.b32.xlu0 %v7800, 96
      %v7850 = vpop.permute.xlu0 %7849
      %7851 = vrot.lane.b32.xlu0 %v7802, 96
      %v7852 = vpop.permute.xlu0 %7851
      %7853 = vrot.lane.b32.xlu0 %v7804, 96
      %v7854 = vpop.permute.xlu0 %7853
      %7856 = vrot.lane.b32.xlu0 %v7776, 64
      %v7857 = vpop.permute.xlu0 %7856
      %7858 = vrot.lane.b32.xlu0 %v7778, 64
      %v7859 = vpop.permute.xlu0 %7858
      %7860 = vrot.lane.b32.xlu0 %v7780, 64
      %v7861 = vpop.permute.xlu0 %7860
      %7862 = vrot.lane.b32.xlu0 %v7782, 64
      %v7863 = vpop.permute.xlu0 %7862
      %7864 = vrot.lane.b32.xlu0 %v7784, 64
      %v7865 = vpop.permute.xlu0 %7864
      %7866 = vrot.lane.b32.xlu0 %v7786, 64
      %v7867 = vpop.permute.xlu0 %7866
      %7868 = vrot.lane.b32.xlu0 %v7788, 64
      %v7869 = vpop.permute.xlu0 %7868
      %7870 = vrot.lane.b32.xlu0 %v7790, 64
      %v7871 = vpop.permute.xlu0 %7870
      %7872 = vrot.lane.b32.xlu0 %v7792, 64
      %v7873 = vpop.permute.xlu0 %7872
      %7874 = vrot.lane.b32.xlu0 %v7794, 64
      %v7875 = vpop.permute.xlu0 %7874
      %7876 = vrot.lane.b32.xlu0 %v7796, 64
      %v7877 = vpop.permute.xlu0 %7876
      %7878 = vrot.lane.b32.xlu0 %v7798, 64
      %v7879 = vpop.permute.xlu0 %7878
      %7880 = vrot.lane.b32.xlu0 %v7800, 64
      %v7881 = vpop.permute.xlu0 %7880
      %7882 = vrot.lane.b32.xlu0 %v7802, 64
      %v7883 = vpop.permute.xlu0 %7882
      %7884 = vrot.lane.b32.xlu0 %v7804, 64
      %v7885 = vpop.permute.xlu0 %7884
      %7886 = vrot.lane.b32.xlu0 %v7806, 64
      %v7887 = vpop.permute.xlu0 %7886
      %v7889 = vsel %vm4178, %v7772, %v7824
      %v7892 = vsel %vm4178, %v7774, %v7826
      %v7895 = vsel %vm4178, %v7776, %v7828
      %v7898 = vsel %vm4178, %v7778, %v7830
      %v7901 = vsel %vm4178, %v7780, %v7832
      %v7904 = vsel %vm4178, %v7782, %v7834
      %v7907 = vsel %vm4178, %v7784, %v7836
      %v7910 = vsel %vm4178, %v7786, %v7838
      %v7913 = vsel %vm4178, %v7788, %v7840
      %v7916 = vsel %vm4178, %v7790, %v7842
      %v7919 = vsel %vm4178, %v7792, %v7844
      %v7922 = vsel %vm4178, %v7794, %v7846
      %v7925 = vsel %vm4178, %v7796, %v7848
      %v7928 = vsel %vm4178, %v7798, %v7850
      %v7931 = vsel %vm4178, %v7800, %v7852
      %v7934 = vsel %vm4178, %v7802, %v7854
      %v7937 = vsel %vm4060, %v7824, %v7857
      %v7940 = vsel %vm4060, %v7826, %v7859
      %v7943 = vsel %vm4060, %v7828, %v7861
      %v7946 = vsel %vm4060, %v7830, %v7863
      %v7949 = vsel %vm4060, %v7832, %v7865
      %v7952 = vsel %vm4060, %v7834, %v7867
      %v7955 = vsel %vm4060, %v7836, %v7869
      %v7958 = vsel %vm4060, %v7838, %v7871
      %v7961 = vsel %vm4060, %v7840, %v7873
      %v7964 = vsel %vm4060, %v7842, %v7875
      %v7967 = vsel %vm4060, %v7844, %v7877
      %v7970 = vsel %vm4060, %v7846, %v7879
      %v7973 = vsel %vm4060, %v7848, %v7881
      %v7976 = vsel %vm4060, %v7850, %v7883
      %v7979 = vsel %vm4060, %v7852, %v7885
      %v7982 = vsel %vm4060, %v7854, %v7887
      %v7984 = vld [vmem:[%s7] sm:$0xf]
      %v7985 = vld [vmem:[%s7 + $0x4] sm:$0xf]
      %v7986 = vld [vmem:[%s7 + $0x8] sm:$0xf]
      %v7987 = vld [vmem:[%s7 + $0xc] sm:$0xf]
      %v7988 = vld [vmem:[%s7 + $0x10] sm:$0xf]
      %v7989 = vld [vmem:[%s7 + $0x14] sm:$0xf]
      %v7990 = vld [vmem:[%s7 + $0x18] sm:$0xf]
      %v7991 = vld [vmem:[%s7 + $0x1c] sm:$0xf]
      %v7992 = vld [vmem:[%s7 + $0x20] sm:$0xf]
      %v7993 = vld [vmem:[%s7 + $0x24] sm:$0xf]
      %v7994 = vld [vmem:[%s7 + $0x28] sm:$0xf]
      %v7995 = vld [vmem:[%s7 + $0x2c] sm:$0xf]
      %v7996 = vld [vmem:[%s7 + $0x30] sm:$0xf]
      %v7997 = vld [vmem:[%s7 + $0x34] sm:$0xf]
      %v7998 = vld [vmem:[%s7 + $0x38] sm:$0xf]
      %v7999 = vld [vmem:[%s7 + $0x3c] sm:$0xf]
      %v8000 = vld [vmem:[%s7 + $0x40] sm:$0xf]
      %v8001 = vld [vmem:[%s7 + $0x44] sm:$0xf]
      %v8002 = vld [vmem:[%s7 + $0x48] sm:$0xf]
      %v8003 = vld [vmem:[%s7 + $0x4c] sm:$0xf]
      %v8004 = vld [vmem:[%s7 + $0x50] sm:$0xf]
      %v8005 = vld [vmem:[%s7 + $0x54] sm:$0xf]
      %v8006 = vld [vmem:[%s7 + $0x58] sm:$0xf]
      %v8007 = vld [vmem:[%s7 + $0x5c] sm:$0xf]
      %v8008 = vld [vmem:[%s7 + $0x60] sm:$0xf]
      %v8009 = vld [vmem:[%s7 + $0x64] sm:$0xf]
      %v8010 = vld [vmem:[%s7 + $0x68] sm:$0xf]
      %v8011 = vld [vmem:[%s7 + $0x6c] sm:$0xf]
      %v8012 = vld [vmem:[%s7 + $0x70] sm:$0xf]
      %v8013 = vld [vmem:[%s7 + $0x74] sm:$0xf]
      %v8014 = vld [vmem:[%s7 + $0x78] sm:$0xf]
      %v8015 = vld [vmem:[%s7 + $0x7c] sm:$0xf]
      %v8016 = vld [vmem:[%s7 + $0x80] sm:$0xf]
      %v8017 = vld [vmem:[%s7 + $0x84] sm:$0xf]
      %v8018 = vld [vmem:[%s7 + $0x88] sm:$0xf]
      %v8019 = vld [vmem:[%s7 + $0x8c] sm:$0xf]
      %v8020 = vld [vmem:[%s8] sm:$0x1]
      %v8022 = vlaneseq
      %v8023 = vshrl.u32 %v8022, 7
      %v8024 = vsub.s32 0, %v8023
      %v8025 = vrot.slane %v8020, %v8024
      %v8063 = vunpack.c.l.b16 %v7984
      %v8064 = vunpack.c.l.b16 %v7985
      %v8065 = vunpack.c.l.b16 %v7986
      %v8066 = vunpack.c.l.b16 %v7987
      %v8067 = vunpack.c.l.b16 %v7988
      %v8068 = vunpack.c.l.b16 %v7989
      %v8069 = vunpack.c.l.b16 %v7990
      %v8070 = vunpack.c.l.b16 %v7991
      %v8071 = vunpack.c.l.b16 %v7992
      %v8072 = vunpack.c.l.b16 %v7993
      %v8073 = vunpack.c.l.b16 %v7994
      %v8074 = vunpack.c.l.b16 %v7995
      %v8075 = vunpack.c.l.b16 %v7996
      %v8076 = vunpack.c.l.b16 %v7997
      %v8077 = vunpack.c.l.b16 %v7998
      %v8078 = vunpack.c.l.b16 %v7999
      %v8079 = vunpack.c.l.b16 %v8000
      %v8080 = vunpack.c.l.b16 %v8001
      %v8081 = vunpack.c.l.b16 %v8002
      %v8082 = vunpack.c.l.b16 %v8003
      %v8083 = vunpack.c.l.b16 %v8004
      %v8084 = vunpack.c.l.b16 %v8005
      %v8085 = vunpack.c.l.b16 %v8006
      %v8086 = vunpack.c.l.b16 %v8007
      %v8087 = vunpack.c.l.b16 %v8008
      %v8088 = vunpack.c.l.b16 %v8009
      %v8089 = vunpack.c.l.b16 %v8010
      %v8090 = vunpack.c.l.b16 %v8011
      %v8091 = vunpack.c.l.b16 %v8012
      %v8092 = vunpack.c.l.b16 %v8013
      %v8093 = vunpack.c.l.b16 %v8014
      %v8094 = vunpack.c.l.b16 %v8015
      %v8095 = vunpack.c.l.b16 %v8016
      %v8096 = vunpack.c.l.b16 %v8017
      %v8097 = vunpack.c.l.b16 %v8018
      %v8098 = vunpack.c.l.b16 %v8019
      %v8099 = vpack.c.b16 %v8064, %v8063
      %v8100 = vpack.c.b16 %v8066, %v8065
      %v8101 = vpack.c.b16 %v8068, %v8067
      %v8102 = vpack.c.b16 %v8070, %v8069
      %v8103 = vpack.c.b16 %v8072, %v8071
      %v8104 = vpack.c.b16 %v8074, %v8073
      %v8105 = vpack.c.b16 %v8076, %v8075
      %v8106 = vpack.c.b16 %v8078, %v8077
      %v8107 = vpack.c.b16 %v8080, %v8079
      %v8108 = vpack.c.b16 %v8082, %v8081
      %v8109 = vpack.c.b16 %v8084, %v8083
      %v8110 = vpack.c.b16 %v8086, %v8085
      %v8111 = vpack.c.b16 %v8088, %v8087
      %v8112 = vpack.c.b16 %v8090, %v8089
      %v8113 = vpack.c.b16 %v8092, %v8091
      %v8114 = vpack.c.b16 %v8094, %v8093
      %v8115 = vpack.c.b16 %v8096, %v8095
      %v8116 = vpack.c.b16 %v8098, %v8097
      %v8135 = vsel %vm4023, %v7857, 0
      %v8137 = vsel %vm4023, %v7859, 0
      %v8139 = vsel %vm4023, %v7861, 0
      %v8141 = vsel %vm4023, %v7863, 0
      %v8143 = vsel %vm4023, %v7865, 0
      %v8145 = vsel %vm4023, %v7867, 0
      %v8147 = vsel %vm4023, %v7869, 0
      %v8149 = vsel %vm4023, %v7871, 0
      %v8151 = vsel %vm4023, %v7873, 0
      %v8153 = vsel %vm4023, %v7875, 0
      %v8155 = vsel %vm4023, %v7877, 0
      %v8157 = vsel %vm4023, %v7879, 0
      %v8159 = vsel %vm4023, %v7881, 0
      %v8161 = vsel %vm4023, %v7883, 0
      %v8163 = vsel %vm4023, %v7885, 0
      %v8165 = vsel %vm4023, %v7887, 0
      %8167 = vmatprep.subr.bf16.mxu0 0
      %8168 = vmatpush1.bf16.msra.mxu0 %v8099
      %8169 = vmatprep.subr.bf16.mxu0 0
      %8170 = vmatpush1.bf16.msra.mxu0 %v8100
      %8171 = vmatprep.subr.bf16.mxu0 0
      %8172 = vmatpush1.bf16.msra.mxu0 %v8101
      %8173 = vmatprep.subr.bf16.mxu0 0
      %8174 = vmatpush1.bf16.msra.mxu0 %v8102
      %8175 = vmatprep.subr.bf16.mxu0 0
      %8176 = vmatpush1.bf16.msra.mxu0 %v8103
      %8177 = vmatprep.subr.bf16.mxu0 0
      %8178 = vmatpush1.bf16.msra.mxu0 %v8104
      %8179 = vmatprep.subr.bf16.mxu0 0
      %8180 = vmatpush1.bf16.msra.mxu0 %v8105
      %8181 = vmatprep.subr.bf16.mxu0 0
      %8182 = vmatpush1.bf16.msra.mxu0 %v8106
      %8183 = vmatprep.subr.bf16.mxu0 0
      %8184 = vmatpush1.bf16.msra.mxu0 %v8107
      %8185 = vmatprep.subr.bf16.mxu0 0
      %8186 = vmatpush1.bf16.msra.mxu0 %v8108
      %8187 = vmatprep.subr.bf16.mxu0 0
      %8188 = vmatpush1.bf16.msra.mxu0 %v8109
      %8189 = vmatprep.subr.bf16.mxu0 0
      %8190 = vmatpush1.bf16.msra.mxu0 %v8110
      %8191 = vmatprep.subr.bf16.mxu0 0
      %8192 = vmatpush1.bf16.msra.mxu0 %v8111
      %8193 = vmatprep.subr.bf16.mxu0 0
      %8194 = vmatpush1.bf16.msra.mxu0 %v8112
      %8195 = vmatprep.subr.bf16.mxu0 0
      %8196 = vmatpush1.bf16.msra.mxu0 %v8113
      %8197 = vmatprep.subr.bf16.mxu0 0
      %8198 = vmatpush1.bf16.msra.mxu0 %v8114
      %8199 = vmatprep.mubr.bf16.mxu0 %v7937
      %8200 = vmatmul.mubr.bf16.gmra.mrb[0].mxu0 %v7889
      %v8201 = vpop.f32.mrb[0].mxu0
      %v8202 = vadd.f32 %v8025, %v8201
      %v8203 = vpop.f32.mrb[0].mxu0
      %v8204 = vpop.f32.mrb[0].mxu0
      %v8205 = vadd.f32 %v8025, %v8204
      %v8206 = vpop.f32.mrb[0].mxu0
      %8207 = vmatprep.mubr.bf16.mxu0 %v7940
      %8208 = vmatmul.mubr.bf16.gmra.mrb[0].mxu0 %v7892
      %v8209 = vpop.f32.mrb[0].mxu0
      %v8210 = vadd.f32 %v8025, %v8209
      %v8211 = vpop.f32.mrb[0].mxu0
      %v8212 = vpop.f32.mrb[0].mxu0
      %v8213 = vadd.f32 %v8025, %v8212
      %v8214 = vpop.f32.mrb[0].mxu0
      %8215 = vmatprep.mubr.bf16.mxu0 %v7943
      %8216 = vmatmul.mubr.bf16.gmra.mrb[0].mxu0 %v7895
      %v8217 = vpop.f32.mrb[0].mxu0
      %v8218 = vadd.f32 %v8025, %v8217
      %v8219 = vpop.f32.mrb[0].mxu0
      %v8220 = vpop.f32.mrb[0].mxu0
      %v8221 = vadd.f32 %v8025, %v8220
      %v8222 = vpop.f32.mrb[0].mxu0
      %8223 = vmatprep.mubr.bf16.mxu0 %v7946
      %8224 = vmatmul.mubr.bf16.gmra.mrb[0].mxu0 %v7898
      %v8225 = vpop.f32.mrb[0].mxu0
      %v8226 = vadd.f32 %v8025, %v8225
      %v8227 = vpop.f32.mrb[0].mxu0
      %v8228 = vpop.f32.mrb[0].mxu0
      %v8229 = vadd.f32 %v8025, %v8228
      %v8230 = vpop.f32.mrb[0].mxu0
      %8231 = vmatprep.mubr.bf16.mxu0 %v7949
      %8232 = vmatmul.mubr.bf16.gmra.mrb[0].mxu0 %v7901
      %v8233 = vpop.f32.mrb[0].mxu0
      %v8234 = vadd.f32 %v8025, %v8233
      %v8235 = vpop.f32.mrb[0].mxu0
      %v8236 = vpop.f32.mrb[0].mxu0
      %v8237 = vadd.f32 %v8025, %v8236
      %v8238 = vpop.f32.mrb[0].mxu0
      %8239 = vmatprep.mubr.bf16.mxu0 %v7952
      %8240 = vmatmul.mubr.bf16.gmra.mrb[0].mxu0 %v7904
      %v8241 = vpop.f32.mrb[0].mxu0
      %v8242 = vadd.f32 %v8025, %v8241
      %v8243 = vpop.f32.mrb[0].mxu0
      %v8244 = vpop.f32.mrb[0].mxu0
      %v8245 = vadd.f32 %v8025, %v8244
      %v8246 = vpop.f32.mrb[0].mxu0
      %8247 = vmatprep.mubr.bf16.mxu0 %v7955
      %8248 = vmatmul.mubr.bf16.gmra.mrb[0].mxu0 %v7907
      %v8249 = vpop.f32.mrb[0].mxu0
      %v8250 = vadd.f32 %v8025, %v8249
      %v8251 = vpop.f32.mrb[0].mxu0
      %v8252 = vpop.f32.mrb[0].mxu0
      %v8253 = vadd.f32 %v8025, %v8252
      %v8254 = vpop.f32.mrb[0].mxu0
      %8255 = vmatprep.mubr.bf16.mxu0 %v7958
      %8256 = vmatmul.mubr.bf16.gmra.mrb[0].mxu0 %v7910
      %v8257 = vpop.f32.mrb[0].mxu0
      %v8258 = vadd.f32 %v8025, %v8257
      %v8259 = vpop.f32.mrb[0].mxu0
      %v8260 = vpop.f32.mrb[0].mxu0
      %v8261 = vadd.f32 %v8025, %v8260
      %v8262 = vpop.f32.mrb[0].mxu0
      %8263 = vmatprep.mubr.bf16.mxu0 %v7961
      %8264 = vmatmul.mubr.bf16.gmra.mrb[0].mxu0 %v7913
      %v8265 = vpop.f32.mrb[0].mxu0
      %v8266 = vadd.f32 %v8025, %v8265
      %v8267 = vpop.f32.mrb[0].mxu0
      %v8268 = vpop.f32.mrb[0].mxu0
      %v8269 = vadd.f32 %v8025, %v8268
      %v8270 = vpop.f32.mrb[0].mxu0
      %8271 = vmatprep.mubr.bf16.mxu0 %v7964
      %8272 = vmatmul.mubr.bf16.gmra.mrb[0].mxu0 %v7916
      %v8273 = vpop.f32.mrb[0].mxu0
      %v8274 = vadd.f32 %v8025, %v8273
      %v8275 = vpop.f32.mrb[0].mxu0
      %v8276 = vpop.f32.mrb[0].mxu0
      %v8277 = vadd.f32 %v8025, %v8276
      %v8278 = vpop.f32.mrb[0].mxu0
      %8279 = vmatprep.mubr.bf16.mxu0 %v7967
      %8280 = vmatmul.mubr.bf16.gmra.mrb[0].mxu0 %v7919
      %v8281 = vpop.f32.mrb[0].mxu0
      %v8282 = vadd.f32 %v8025, %v8281
      %v8283 = vpop.f32.mrb[0].mxu0
      %v8284 = vpop.f32.mrb[0].mxu0
      %v8285 = vadd.f32 %v8025, %v8284
      %v8286 = vpop.f32.mrb[0].mxu0
      %8287 = vmatprep.mubr.bf16.mxu0 %v7970
      %8288 = vmatmul.mubr.bf16.gmra.mrb[0].mxu0 %v7922
      %v8289 = vpop.f32.mrb[0].mxu0
      %v8290 = vadd.f32 %v8025, %v8289
      %v8291 = vpop.f32.mrb[0].mxu0
      %v8292 = vpop.f32.mrb[0].mxu0
      %v8293 = vadd.f32 %v8025, %v8292
      %v8294 = vpop.f32.mrb[0].mxu0
      %8295 = vmatprep.mubr.bf16.mxu0 %v7973
      %8296 = vmatmul.mubr.bf16.gmra.mrb[0].mxu0 %v7925
      %v8297 = vpop.f32.mrb[0].mxu0
      %v8298 = vadd.f32 %v8025, %v8297
      %v8299 = vpop.f32.mrb[0].mxu0
      %v8300 = vpop.f32.mrb[0].mxu0
      %v8301 = vadd.f32 %v8025, %v8300
      %v8302 = vpop.f32.mrb[0].mxu0
      %8303 = vmatprep.mubr.bf16.mxu0 %v7976
      %8304 = vmatmul.mubr.bf16.gmra.mrb[0].mxu0 %v7928
      %v8305 = vpop.f32.mrb[0].mxu0
      %v8306 = vadd.f32 %v8025, %v8305
      %v8307 = vpop.f32.mrb[0].mxu0
      %v8308 = vpop.f32.mrb[0].mxu0
      %v8309 = vadd.f32 %v8025, %v8308
      %v8310 = vpop.f32.mrb[0].mxu0
      %8311 = vmatprep.mubr.bf16.mxu0 %v7979
      %8312 = vmatmul.mubr.bf16.gmra.mrb[0].mxu0 %v7931
      %v8313 = vpop.f32.mrb[0].mxu0
      %v8314 = vadd.f32 %v8025, %v8313
      %v8315 = vpop.f32.mrb[0].mxu0
      %v8316 = vpop.f32.mrb[0].mxu0
      %v8317 = vadd.f32 %v8025, %v8316
      %v8318 = vpop.f32.mrb[0].mxu0
      %8319 = vmatprep.mubr.bf16.mxu0 %v7982
      %8320 = vmatmul.mubr.bf16.gmra.mrb[0].mxu0 %v7934
      %v8321 = vpop.f32.mrb[0].mxu0
      %v8322 = vadd.f32 %v8025, %v8321
      %v8323 = vpop.f32.mrb[0].mxu0
      %v8324 = vpop.f32.mrb[0].mxu0
      %v8325 = vadd.f32 %v8025, %v8324
      %v8326 = vpop.f32.mrb[0].mxu0
      %8327 = vdwg.mxu0
      %8328 = vmatprep.subr.bf16.mxu0 0
      %8329 = vmatpush1.bf16.msra.mxu0 %v8115
      %8330 = vmatprep.subr.bf16.mxu0 0
      %8331 = vmatpush1.bf16.msra.mxu0 %v8116
      %8332 = vmatprep.subr.bf16.mxu0 0
      %8333 = vmatpush1.bf16.msra.mxu0 0
      %8334 = vmatprep.subr.bf16.mxu0 0
      %8335 = vmatpush1.bf16.msra.mxu0 0
      %8336 = vmatprep.subr.bf16.mxu0 0
      %8337 = vmatpush1.bf16.msra.mxu0 0
      %8338 = vmatprep.subr.bf16.mxu0 0
      %8339 = vmatpush1.bf16.msra.mxu0 0
      %8340 = vmatprep.subr.bf16.mxu0 0
      %8341 = vmatpush1.bf16.msra.mxu0 0
      %8342 = vmatprep.subr.bf16.mxu0 0
      %8343 = vmatpush1.bf16.msra.mxu0 0
      %8344 = vmatprep.subr.bf16.mxu0 0
      %8345 = vmatpush1.bf16.msra.mxu0 0
      %8346 = vmatprep.subr.bf16.mxu0 0
      %8347 = vmatpush1.bf16.msra.mxu0 0
      %8348 = vmatprep.subr.bf16.mxu0 0
      %8349 = vmatpush1.bf16.msra.mxu0 0
      %8350 = vmatprep.subr.bf16.mxu0 0
      %8351 = vmatpush1.bf16.msra.mxu0 0
      %8352 = vmatprep.subr.bf16.mxu0 0
      %8353 = vmatpush1.bf16.msra.mxu0 0
      %8354 = vmatprep.subr.bf16.mxu0 0
      %8355 = vmatpush1.bf16.msra.mxu0 0
      %8356 = vmatprep.subr.bf16.mxu0 0
      %8357 = vmatpush1.bf16.msra.mxu0 0
      %8358 = vmatprep.subr.bf16.mxu0 0
      %8359 = vmatpush1.bf16.msra.mxu0 0
      %8360 = vmatprep.mubr.bf16.mxu0 0
      %8361 = vmatmul.mubr.bf16.gmra.mrb[0].mxu0 %v8135
      %v8362 = vpop.f32.mrb[0].mxu0
      %v8363 = vadd.f32 %v8202, %v8362
      %v8364 = vpop.f32.mrb[0].mxu0
      %v8365 = vpop.f32.mrb[0].mxu0
      %v8366 = vadd.f32 %v8205, %v8365
      %v8367 = vpop.f32.mrb[0].mxu0
      %8368 = vmatprep.mubr.bf16.mxu0 0
      %8369 = vmatmul.mubr.bf16.gmra.mrb[0].mxu0 %v8137
      %v8370 = vpop.f32.mrb[0].mxu0
      %v8371 = vadd.f32 %v8210, %v8370
      %v8372 = vpop.f32.mrb[0].mxu0
      %v8373 = vpop.f32.mrb[0].mxu0
      %v8374 = vadd.f32 %v8213, %v8373
      %v8375 = vpop.f32.mrb[0].mxu0
      %8376 = vmatprep.mubr.bf16.mxu0 0
      %8377 = vmatmul.mubr.bf16.gmra.mrb[0].mxu0 %v8139
      %v8378 = vpop.f32.mrb[0].mxu0
      %v8379 = vadd.f32 %v8218, %v8378
      %v8380 = vpop.f32.mrb[0].mxu0
      %v8381 = vpop.f32.mrb[0].mxu0
      %v8382 = vadd.f32 %v8221, %v8381
      %v8383 = vpop.f32.mrb[0].mxu0
      %8384 = vmatprep.mubr.bf16.mxu0 0
      %8385 = vmatmul.mubr.bf16.gmra.mrb[0].mxu0 %v8141
      %v8386 = vpop.f32.mrb[0].mxu0
      %v8387 = vadd.f32 %v8226, %v8386
      %v8388 = vpop.f32.mrb[0].mxu0
      %v8389 = vpop.f32.mrb[0].mxu0
      %v8390 = vadd.f32 %v8229, %v8389
      %v8391 = vpop.f32.mrb[0].mxu0
      %8392 = vmatprep.mubr.bf16.mxu0 0
      %8393 = vmatmul.mubr.bf16.gmra.mrb[0].mxu0 %v8143
      %v8394 = vpop.f32.mrb[0].mxu0
      %v8395 = vadd.f32 %v8234, %v8394
      %v8396 = vpop.f32.mrb[0].mxu0
      %v8397 = vpop.f32.mrb[0].mxu0
      %v8398 = vadd.f32 %v8237, %v8397
      %v8399 = vpop.f32.mrb[0].mxu0
      %8400 = vmatprep.mubr.bf16.mxu0 0
      %8401 = vmatmul.mubr.bf16.gmra.mrb[0].mxu0 %v8145
      %v8402 = vpop.f32.mrb[0].mxu0
      %v8403 = vadd.f32 %v8242, %v8402
      %v8404 = vpop.f32.mrb[0].mxu0
      %v8405 = vpop.f32.mrb[0].mxu0
      %v8406 = vadd.f32 %v8245, %v8405
      %v8407 = vpop.f32.mrb[0].mxu0
      %8408 = vmatprep.mubr.bf16.mxu0 0
      %8409 = vmatmul.mubr.bf16.gmra.mrb[0].mxu0 %v8147
      %v8410 = vpop.f32.mrb[0].mxu0
      %v8411 = vadd.f32 %v8250, %v8410
      %v8412 = vpop.f32.mrb[0].mxu0
      %v8413 = vpop.f32.mrb[0].mxu0
      %v8414 = vadd.f32 %v8253, %v8413
      %v8415 = vpop.f32.mrb[0].mxu0
      %8416 = vmatprep.mubr.bf16.mxu0 0
      %8417 = vmatmul.mubr.bf16.gmra.mrb[0].mxu0 %v8149
      %v8418 = vpop.f32.mrb[0].mxu0
      %v8419 = vadd.f32 %v8258, %v8418
      %v8420 = vpop.f32.mrb[0].mxu0
      %v8421 = vpop.f32.mrb[0].mxu0
      %v8422 = vadd.f32 %v8261, %v8421
      %v8423 = vpop.f32.mrb[0].mxu0
      %8424 = vmatprep.mubr.bf16.mxu0 0
      %8425 = vmatmul.mubr.bf16.gmra.mrb[0].mxu0 %v8151
      %v8426 = vpop.f32.mrb[0].mxu0
      %v8427 = vadd.f32 %v8266, %v8426
      %v8428 = vpop.f32.mrb[0].mxu0
      %v8429 = vpop.f32.mrb[0].mxu0
      %v8430 = vadd.f32 %v8269, %v8429
      %v8431 = vpop.f32.mrb[0].mxu0
      %8432 = vmatprep.mubr.bf16.mxu0 0
      %8433 = vmatmul.mubr.bf16.gmra.mrb[0].mxu0 %v8153
      %v8434 = vpop.f32.mrb[0].mxu0
      %v8435 = vadd.f32 %v8274, %v8434
      %v8436 = vpop.f32.mrb[0].mxu0
      %v8437 = vpop.f32.mrb[0].mxu0
      %v8438 = vadd.f32 %v8277, %v8437
      %v8439 = vpop.f32.mrb[0].mxu0
      %8440 = vmatprep.mubr.bf16.mxu0 0
      %8441 = vmatmul.mubr.bf16.gmra.mrb[0].mxu0 %v8155
      %v8442 = vpop.f32.mrb[0].mxu0
      %v8443 = vadd.f32 %v8282, %v8442
      %v8444 = vpop.f32.mrb[0].mxu0
      %v8445 = vpop.f32.mrb[0].mxu0
      %v8446 = vadd.f32 %v8285, %v8445
      %v8447 = vpop.f32.mrb[0].mxu0
      %8448 = vmatprep.mubr.bf16.mxu0 0
      %8449 = vmatmul.mubr.bf16.gmra.mrb[0].mxu0 %v8157
      %v8450 = vpop.f32.mrb[0].mxu0
      %v8451 = vadd.f32 %v8290, %v8450
      %v8452 = vpop.f32.mrb[0].mxu0
      %v8453 = vpop.f32.mrb[0].mxu0
      %v8454 = vadd.f32 %v8293, %v8453
      %v8455 = vpop.f32.mrb[0].mxu0
      %8456 = vmatprep.mubr.bf16.mxu0 0
      %8457 = vmatmul.mubr.bf16.gmra.mrb[0].mxu0 %v8159
      %v8458 = vpop.f32.mrb[0].mxu0
      %v8459 = vadd.f32 %v8298, %v8458
      %v8460 = vpop.f32.mrb[0].mxu0
      %v8461 = vpop.f32.mrb[0].mxu0
      %v8462 = vadd.f32 %v8301, %v8461
      %v8463 = vpop.f32.mrb[0].mxu0
      %8464 = vmatprep.mubr.bf16.mxu0 0
      %8465 = vmatmul.mubr.bf16.gmra.mrb[0].mxu0 %v8161
      %v8466 = vpop.f32.mrb[0].mxu0
      %v8467 = vadd.f32 %v8306, %v8466
      %v8468 = vpop.f32.mrb[0].mxu0
      %v8469 = vpop.f32.mrb[0].mxu0
      %v8470 = vadd.f32 %v8309, %v8469
      %v8471 = vpop.f32.mrb[0].mxu0
      %8472 = vmatprep.mubr.bf16.mxu0 0
      %8473 = vmatmul.mubr.bf16.gmra.mrb[0].mxu0 %v8163
      %v8474 = vpop.f32.mrb[0].mxu0
      %v8475 = vadd.f32 %v8314, %v8474
      %v8476 = vpop.f32.mrb[0].mxu0
      %v8477 = vpop.f32.mrb[0].mxu0
      %v8478 = vadd.f32 %v8317, %v8477
      %v8479 = vpop.f32.mrb[0].mxu0
      %8480 = vmatprep.mubr.bf16.mxu0 0
      %8481 = vmatmul.mubr.bf16.gmra.mrb[0].mxu0 %v8165
      %v8482 = vpop.f32.mrb[0].mxu0
      %v8483 = vadd.f32 %v8322, %v8482
      %v8484 = vpop.f32.mrb[0].mxu0
      %v8485 = vpop.f32.mrb[0].mxu0
      %v8486 = vadd.f32 %v8325, %v8485
      %v8487 = vpop.f32.mrb[0].mxu0
      %8488 = vdwg.mxu0
      %v8489 = vmax.f32 %v8363, 0.0
      %v8490 = vmax.f32 %v8366, 0.0
      %v8491 = vmax.f32 %v8371, 0.0
      %v8492 = vmax.f32 %v8374, 0.0
      %v8493 = vmax.f32 %v8379, 0.0
      %v8494 = vmax.f32 %v8382, 0.0
      %v8495 = vmax.f32 %v8387, 0.0
      %v8496 = vmax.f32 %v8390, 0.0
      %v8497 = vmax.f32 %v8395, 0.0
      %v8498 = vmax.f32 %v8398, 0.0
      %v8499 = vmax.f32 %v8403, 0.0
      %v8500 = vmax.f32 %v8406, 0.0
      %v8501 = vmax.f32 %v8411, 0.0
      %v8502 = vmax.f32 %v8414, 0.0
      %v8503 = vmax.f32 %v8419, 0.0
      %v8504 = vmax.f32 %v8422, 0.0
      %v8505 = vmax.f32 %v8427, 0.0
      %v8506 = vmax.f32 %v8430, 0.0
      %v8507 = vmax.f32 %v8435, 0.0
      %v8508 = vmax.f32 %v8438, 0.0
      %v8509 = vmax.f32 %v8443, 0.0
      %v8510 = vmax.f32 %v8446, 0.0
      %v8511 = vmax.f32 %v8451, 0.0
      %v8512 = vmax.f32 %v8454, 0.0
      %v8513 = vmax.f32 %v8459, 0.0
      %v8514 = vmax.f32 %v8462, 0.0
      %v8515 = vmax.f32 %v8467, 0.0
      %v8516 = vmax.f32 %v8470, 0.0
      %v8517 = vmax.f32 %v8475, 0.0
      %v8518 = vmax.f32 %v8478, 0.0
      %v8519 = vmax.f32 %v8483, 0.0
      %v8520 = vmax.f32 %v8486, 0.0
      %v8521 = vpack.c.bf16 %v8490, %v8489
      %v8522 = vpack.c.bf16 %v8492, %v8491
      %v8523 = vpack.c.bf16 %v8494, %v8493
      %v8524 = vpack.c.bf16 %v8496, %v8495
      %v8525 = vpack.c.bf16 %v8498, %v8497
      %v8526 = vpack.c.bf16 %v8500, %v8499
      %v8527 = vpack.c.bf16 %v8502, %v8501
      %v8528 = vpack.c.bf16 %v8504, %v8503
      %v8529 = vpack.c.bf16 %v8506, %v8505
      %v8530 = vpack.c.bf16 %v8508, %v8507
      %v8531 = vpack.c.bf16 %v8510, %v8509
      %v8532 = vpack.c.bf16 %v8512, %v8511
      %v8533 = vpack.c.bf16 %v8514, %v8513
      %v8534 = vpack.c.bf16 %v8516, %v8515
      %v8535 = vpack.c.bf16 %v8518, %v8517
      %v8536 = vpack.c.bf16 %v8520, %v8519
      %v8553 = vunpack.c.l.b16 %v8521
      %v8554 = vunpack.c.h.b16 %v8521
      %v8555 = vunpack.c.l.b16 %v8522
      %v8556 = vunpack.c.h.b16 %v8522
      %v8557 = vunpack.c.l.b16 %v8523
      %v8558 = vunpack.c.h.b16 %v8523
      %v8559 = vunpack.c.l.b16 %v8524
      %v8560 = vunpack.c.h.b16 %v8524
      %v8561 = vunpack.c.l.b16 %v8525
      %v8562 = vunpack.c.h.b16 %v8525
      %v8563 = vunpack.c.l.b16 %v8526
      %v8564 = vunpack.c.h.b16 %v8526
      %v8565 = vunpack.c.l.b16 %v8527
      %v8566 = vunpack.c.h.b16 %v8527
      %v8567 = vunpack.c.l.b16 %v8528
      %v8568 = vunpack.c.h.b16 %v8528
      %v8569 = vunpack.c.l.b16 %v8529
      %v8570 = vunpack.c.h.b16 %v8529
      %v8571 = vunpack.c.l.b16 %v8530
      %v8572 = vunpack.c.h.b16 %v8530
      %v8573 = vunpack.c.l.b16 %v8531
      %v8574 = vunpack.c.h.b16 %v8531
      %v8575 = vunpack.c.l.b16 %v8532
      %v8576 = vunpack.c.h.b16 %v8532
      %v8577 = vunpack.c.l.b16 %v8533
      %v8578 = vunpack.c.h.b16 %v8533
      %v8579 = vunpack.c.l.b16 %v8534
      %v8580 = vunpack.c.h.b16 %v8534
      %v8581 = vunpack.c.l.b16 %v8535
      %v8582 = vunpack.c.h.b16 %v8535
      %v8583 = vunpack.c.l.b16 %v8536
      %v8584 = vunpack.c.h.b16 %v8536
      %v8585 = vpack.c.b16 %v8553, %v8553
      %v8586 = vpack.c.b16 %v8554, %v8554
      %v8587 = vpack.c.b16 %v8555, %v8555
      %v8588 = vpack.c.b16 %v8556, %v8556
      %v8589 = vpack.c.b16 %v8557, %v8557
      %v8590 = vpack.c.b16 %v8558, %v8558
      %v8591 = vpack.c.b16 %v8559, %v8559
      %v8592 = vpack.c.b16 %v8560, %v8560
      %v8593 = vpack.c.b16 %v8561, %v8561
      %v8594 = vpack.c.b16 %v8562, %v8562
      %v8595 = vpack.c.b16 %v8563, %v8563
      %v8596 = vpack.c.b16 %v8564, %v8564
      %v8597 = vpack.c.b16 %v8565, %v8565
      %v8598 = vpack.c.b16 %v8566, %v8566
      %v8599 = vpack.c.b16 %v8567, %v8567
      %v8600 = vpack.c.b16 %v8568, %v8568
      %v8601 = vpack.c.b16 %v8569, %v8569
      %v8602 = vpack.c.b16 %v8570, %v8570
      %v8603 = vpack.c.b16 %v8571, %v8571
      %v8604 = vpack.c.b16 %v8572, %v8572
      %v8605 = vpack.c.b16 %v8573, %v8573
      %v8606 = vpack.c.b16 %v8574, %v8574
      %v8607 = vpack.c.b16 %v8575, %v8575
      %v8608 = vpack.c.b16 %v8576, %v8576
      %v8609 = vpack.c.b16 %v8577, %v8577
      %v8610 = vpack.c.b16 %v8578, %v8578
      %v8611 = vpack.c.b16 %v8579, %v8579
      %v8612 = vpack.c.b16 %v8580, %v8580
      %v8613 = vpack.c.b16 %v8581, %v8581
      %v8614 = vpack.c.b16 %v8582, %v8582
      %v8615 = vpack.c.b16 %v8583, %v8583
      %v8616 = vpack.c.b16 %v8584, %v8584
      %v8618 = vshrl.u32 %v8585, 16
      %v8620 = vrot.slane %v8618, 7
      %v8621 = vshll.u32 %v8585, 16
      %v8623 = vor.u32 %v8620, %v8621
      %v8624 = vrot.slane %v8620, 4
      %v8626 = vshrl.u32 %v8586, 16
      %v8628 = vrot.slane %v8626, 7
      %v8629 = vshll.u32 %v8586, 16
      %v8631 = vor.u32 %v8628, %v8629
      %v8632 = vsel %vm1480, %v8624, %v8631
      %v8633 = vrot.slane %v8628, 4
      %v8635 = vshrl.u32 %v8587, 16
      %v8637 = vrot.slane %v8635, 7
      %v8638 = vshll.u32 %v8587, 16
      %v8640 = vor.u32 %v8637, %v8638
      %v8641 = vrot.slane %v8637, 4
      %v8643 = vshrl.u32 %v8588, 16
      %v8645 = vrot.slane %v8643, 7
      %v8646 = vshll.u32 %v8588, 16
      %v8648 = vor.u32 %v8645, %v8646
      %v8649 = vsel %vm1480, %v8641, %v8648
      %v8650 = vrot.slane %v8645, 4
      %v8652 = vshrl.u32 %v8589, 16
      %v8654 = vrot.slane %v8652, 7
      %v8655 = vshll.u32 %v8589, 16
      %v8657 = vor.u32 %v8654, %v8655
      %v8658 = vrot.slane %v8654, 4
      %v8660 = vshrl.u32 %v8590, 16
      %v8662 = vrot.slane %v8660, 7
      %v8663 = vshll.u32 %v8590, 16
      %v8665 = vor.u32 %v8662, %v8663
      %v8666 = vsel %vm1480, %v8658, %v8665
      %v8667 = vrot.slane %v8662, 4
      %v8669 = vshrl.u32 %v8591, 16
      %v8671 = vrot.slane %v8669, 7
      %v8672 = vshll.u32 %v8591, 16
      %v8674 = vor.u32 %v8671, %v8672
      %v8675 = vrot.slane %v8671, 4
      %v8677 = vshrl.u32 %v8592, 16
      %v8679 = vrot.slane %v8677, 7
      %v8680 = vshll.u32 %v8592, 16
      %v8682 = vor.u32 %v8679, %v8680
      %v8683 = vsel %vm1480, %v8675, %v8682
      %v8684 = vrot.slane %v8679, 4
      %v8686 = vshrl.u32 %v8593, 16
      %v8688 = vrot.slane %v8686, 7
      %v8689 = vshll.u32 %v8593, 16
      %v8691 = vor.u32 %v8688, %v8689
      %v8692 = vrot.slane %v8688, 4
      %v8694 = vshrl.u32 %v8594, 16
      %v8696 = vrot.slane %v8694, 7
      %v8697 = vshll.u32 %v8594, 16
      %v8699 = vor.u32 %v8696, %v8697
      %v8700 = vsel %vm1480, %v8692, %v8699
      %v8701 = vrot.slane %v8696, 4
      %v8703 = vshrl.u32 %v8595, 16
      %v8705 = vrot.slane %v8703, 7
      %v8706 = vshll.u32 %v8595, 16
      %v8708 = vor.u32 %v8705, %v8706
      %v8709 = vrot.slane %v8705, 4
      %v8711 = vshrl.u32 %v8596, 16
      %v8713 = vrot.slane %v8711, 7
      %v8714 = vshll.u32 %v8596, 16
      %v8716 = vor.u32 %v8713, %v8714
      %v8717 = vsel %vm1480, %v8709, %v8716
      %v8718 = vrot.slane %v8713, 4
      %v8720 = vshrl.u32 %v8597, 16
      %v8722 = vrot.slane %v8720, 7
      %v8723 = vshll.u32 %v8597, 16
      %v8725 = vor.u32 %v8722, %v8723
      %v8726 = vrot.slane %v8722, 4
      %v8728 = vshrl.u32 %v8598, 16
      %v8730 = vrot.slane %v8728, 7
      %v8731 = vshll.u32 %v8598, 16
      %v8733 = vor.u32 %v8730, %v8731
      %v8734 = vsel %vm1480, %v8726, %v8733
      %v8735 = vrot.slane %v8730, 4
      %v8737 = vshrl.u32 %v8599, 16
      %v8739 = vrot.slane %v8737, 7
      %v8740 = vshll.u32 %v8599, 16
      %v8742 = vor.u32 %v8739, %v8740
      %v8743 = vrot.slane %v8739, 4
      %v8745 = vshrl.u32 %v8600, 16
      %v8747 = vrot.slane %v8745, 7
      %v8748 = vshll.u32 %v8600, 16
      %v8750 = vor.u32 %v8747, %v8748
      %v8751 = vsel %vm1480, %v8743, %v8750
      %v8752 = vrot.slane %v8747, 4
      %v8754 = vshrl.u32 %v8601, 16
      %v8756 = vrot.slane %v8754, 7
      %v8757 = vshll.u32 %v8601, 16
      %v8759 = vor.u32 %v8756, %v8757
      %v8760 = vrot.slane %v8756, 4
      %v8762 = vshrl.u32 %v8602, 16
      %v8764 = vrot.slane %v8762, 7
      %v8765 = vshll.u32 %v8602, 16
      %v8767 = vor.u32 %v8764, %v8765
      %v8768 = vsel %vm1480, %v8760, %v8767
      %v8769 = vrot.slane %v8764, 4
      %v8771 = vshrl.u32 %v8603, 16
      %v8773 = vrot.slane %v8771, 7
      %v8774 = vshll.u32 %v8603, 16
      %v8776 = vor.u32 %v8773, %v8774
      %v8777 = vrot.slane %v8773, 4
      %v8779 = vshrl.u32 %v8604, 16
      %v8781 = vrot.slane %v8779, 7
      %v8782 = vshll.u32 %v8604, 16
      %v8784 = vor.u32 %v8781, %v8782
      %v8785 = vsel %vm1480, %v8777, %v8784
      %v8786 = vrot.slane %v8781, 4
      %v8788 = vshrl.u32 %v8605, 16
      %v8790 = vrot.slane %v8788, 7
      %v8791 = vshll.u32 %v8605, 16
      %v8793 = vor.u32 %v8790, %v8791
      %v8794 = vrot.slane %v8790, 4
      %v8796 = vshrl.u32 %v8606, 16
      %v8798 = vrot.slane %v8796, 7
      %v8799 = vshll.u32 %v8606, 16
      %v8801 = vor.u32 %v8798, %v8799
      %v8802 = vsel %vm1480, %v8794, %v8801
      %v8803 = vrot.slane %v8798, 4
      %v8805 = vshrl.u32 %v8607, 16
      %v8807 = vrot.slane %v8805, 7
      %v8808 = vshll.u32 %v8607, 16
      %v8810 = vor.u32 %v8807, %v8808
      %v8811 = vrot.slane %v8807, 4
      %v8813 = vshrl.u32 %v8608, 16
      %v8815 = vrot.slane %v8813, 7
      %v8816 = vshll.u32 %v8608, 16
      %v8818 = vor.u32 %v8815, %v8816
      %v8819 = vsel %vm1480, %v8811, %v8818
      %v8820 = vrot.slane %v8815, 4
      %v8822 = vshrl.u32 %v8609, 16
      %v8824 = vrot.slane %v8822, 7
      %v8825 = vshll.u32 %v8609, 16
      %v8827 = vor.u32 %v8824, %v8825
      %v8828 = vrot.slane %v8824, 4
      %v8830 = vshrl.u32 %v8610, 16
      %v8832 = vrot.slane %v8830, 7
      %v8833 = vshll.u32 %v8610, 16
      %v8835 = vor.u32 %v8832, %v8833
      %v8836 = vsel %vm1480, %v8828, %v8835
      %v8837 = vrot.slane %v8832, 4
      %v8839 = vshrl.u32 %v8611, 16
      %v8841 = vrot.slane %v8839, 7
      %v8842 = vshll.u32 %v8611, 16
      %v8844 = vor.u32 %v8841, %v8842
      %v8845 = vrot.slane %v8841, 4
      %v8847 = vshrl.u32 %v8612, 16
      %v8849 = vrot.slane %v8847, 7
      %v8850 = vshll.u32 %v8612, 16
      %v8852 = vor.u32 %v8849, %v8850
      %v8853 = vsel %vm1480, %v8845, %v8852
      %v8854 = vrot.slane %v8849, 4
      %v8856 = vshrl.u32 %v8613, 16
      %v8858 = vrot.slane %v8856, 7
      %v8859 = vshll.u32 %v8613, 16
      %v8861 = vor.u32 %v8858, %v8859
      %v8862 = vrot.slane %v8858, 4
      %v8864 = vshrl.u32 %v8614, 16
      %v8866 = vrot.slane %v8864, 7
      %v8867 = vshll.u32 %v8614, 16
      %v8869 = vor.u32 %v8866, %v8867
      %v8870 = vsel %vm1480, %v8862, %v8869
      %v8871 = vrot.slane %v8866, 4
      %v8873 = vshrl.u32 %v8615, 16
      %v8875 = vrot.slane %v8873, 7
      %v8876 = vshll.u32 %v8615, 16
      %v8878 = vor.u32 %v8875, %v8876
      %v8879 = vrot.slane %v8875, 4
      %v8881 = vshrl.u32 %v8616, 16
      %v8883 = vrot.slane %v8881, 7
      %v8884 = vshll.u32 %v8616, 16
      %v8886 = vor.u32 %v8883, %v8884
      %v8887 = vsel %vm1480, %v8879, %v8886
      %v8888 = vrot.slane %v8883, 4
      %v8937 = vld [vmem:[%s5228] sm:$0xf]
      %v8938 = vsel %vm3370, %v8623, %v8937
      %8939 = vst [vmem:[%s5228] sm:$0xf] %v8938
      %8940 = vst.msk [vmem:[%s5228 + $0x4] sm:$0xf] %vm510, %v8632
      %v8941 = vld [vmem:[%s5228 + $0x8] sm:$0x1]
      %v8942 = vsel %vm520, %v8633, %v8941
      %8943 = vst [vmem:[%s5228 + $0x8] sm:$0x1] %v8942
      %v8944 = vld [vmem:[%s5228 + $0xc] sm:$0xf]
      %v8945 = vsel %vm3370, %v8640, %v8944
      %8946 = vst [vmem:[%s5228 + $0xc] sm:$0xf] %v8945
      %8947 = vst.msk [vmem:[%s5228 + $0x10] sm:$0xf] %vm510, %v8649
      %v8948 = vld [vmem:[%s5228 + $0x14] sm:$0x1]
      %v8949 = vsel %vm520, %v8650, %v8948
      %8950 = vst [vmem:[%s5228 + $0x14] sm:$0x1] %v8949
      %v8951 = vld [vmem:[%s5228 + $0x18] sm:$0xf]
      %v8952 = vsel %vm3370, %v8657, %v8951
      %8953 = vst [vmem:[%s5228 + $0x18] sm:$0xf] %v8952
      %8954 = vst.msk [vmem:[%s5228 + $0x1c] sm:$0xf] %vm510, %v8666
      %v8955 = vld [vmem:[%s5228 + $0x20] sm:$0x1]
      %v8956 = vsel %vm520, %v8667, %v8955
      %8957 = vst [vmem:[%s5228 + $0x20] sm:$0x1] %v8956
      %v8958 = vld [vmem:[%s5228 + $0x24] sm:$0xf]
      %v8959 = vsel %vm3370, %v8674, %v8958
      %8960 = vst [vmem:[%s5228 + $0x24] sm:$0xf] %v8959
      %8961 = vst.msk [vmem:[%s5228 + $0x28] sm:$0xf] %vm510, %v8683
      %v8962 = vld [vmem:[%s5228 + $0x2c] sm:$0x1]
      %v8963 = vsel %vm520, %v8684, %v8962
      %8964 = vst [vmem:[%s5228 + $0x2c] sm:$0x1] %v8963
      %v8965 = vld [vmem:[%s5228 + $0x30] sm:$0xf]
      %v8966 = vsel %vm3370, %v8691, %v8965
      %8967 = vst [vmem:[%s5228 + $0x30] sm:$0xf] %v8966
      %8968 = vst.msk [vmem:[%s5228 + $0x34] sm:$0xf] %vm510, %v8700
      %v8969 = vld [vmem:[%s5228 + $0x38] sm:$0x1]
      %v8970 = vsel %vm520, %v8701, %v8969
      %8971 = vst [vmem:[%s5228 + $0x38] sm:$0x1] %v8970
      %v8972 = vld [vmem:[%s5228 + $0x3c] sm:$0xf]
      %v8973 = vsel %vm3370, %v8708, %v8972
      %8974 = vst [vmem:[%s5228 + $0x3c] sm:$0xf] %v8973
      %8975 = vst.msk [vmem:[%s5228 + $0x40] sm:$0xf] %vm510, %v8717
      %v8976 = vld [vmem:[%s5228 + $0x44] sm:$0x1]
      %v8977 = vsel %vm520, %v8718, %v8976
      %8978 = vst [vmem:[%s5228 + $0x44] sm:$0x1] %v8977
      %v8979 = vld [vmem:[%s5228 + $0x48] sm:$0xf]
      %v8980 = vsel %vm3370, %v8725, %v8979
      %8981 = vst [vmem:[%s5228 + $0x48] sm:$0xf] %v8980
      %8982 = vst.msk [vmem:[%s5228 + $0x4c] sm:$0xf] %vm510, %v8734
      %v8983 = vld [vmem:[%s5228 + $0x50] sm:$0x1]
      %v8984 = vsel %vm520, %v8735, %v8983
      %8985 = vst [vmem:[%s5228 + $0x50] sm:$0x1] %v8984
      %v8986 = vld [vmem:[%s5228 + $0x54] sm:$0xf]
      %v8987 = vsel %vm3370, %v8742, %v8986
      %8988 = vst [vmem:[%s5228 + $0x54] sm:$0xf] %v8987
      %8989 = vst.msk [vmem:[%s5228 + $0x58] sm:$0xf] %vm510, %v8751
      %v8990 = vld [vmem:[%s5228 + $0x5c] sm:$0x1]
      %v8991 = vsel %vm520, %v8752, %v8990
      %8992 = vst [vmem:[%s5228 + $0x5c] sm:$0x1] %v8991
      %v8993 = vld [vmem:[%s5228 + $0x60] sm:$0xf]
      %v8994 = vsel %vm3370, %v8759, %v8993
      %8995 = vst [vmem:[%s5228 + $0x60] sm:$0xf] %v8994
      %8996 = vst.msk [vmem:[%s5228 + $0x64] sm:$0xf] %vm510, %v8768
      %v8997 = vld [vmem:[%s5228 + $0x68] sm:$0x1]
      %v8998 = vsel %vm520, %v8769, %v8997
      %8999 = vst [vmem:[%s5228 + $0x68] sm:$0x1] %v8998
      %v9000 = vld [vmem:[%s5228 + $0x6c] sm:$0xf]
      %v9001 = vsel %vm3370, %v8776, %v9000
      %9002 = vst [vmem:[%s5228 + $0x6c] sm:$0xf] %v9001
      %9003 = vst.msk [vmem:[%s5228 + $0x70] sm:$0xf] %vm510, %v8785
      %v9004 = vld [vmem:[%s5228 + $0x74] sm:$0x1]
      %v9005 = vsel %vm520, %v8786, %v9004
      %9006 = vst [vmem:[%s5228 + $0x74] sm:$0x1] %v9005
      %v9007 = vld [vmem:[%s5228 + $0x78] sm:$0xf]
      %v9008 = vsel %vm3370, %v8793, %v9007
      %9009 = vst [vmem:[%s5228 + $0x78] sm:$0xf] %v9008
      %9010 = vst.msk [vmem:[%s5228 + $0x7c] sm:$0xf] %vm510, %v8802
      %v9011 = vld [vmem:[%s5228 + $0x80] sm:$0x1]
      %v9012 = vsel %vm520, %v8803, %v9011
      %9013 = vst [vmem:[%s5228 + $0x80] sm:$0x1] %v9012
      %v9014 = vld [vmem:[%s5228 + $0x84] sm:$0xf]
      %v9015 = vsel %vm3370, %v8810, %v9014
      %9016 = vst [vmem:[%s5228 + $0x84] sm:$0xf] %v9015
      %9017 = vst.msk [vmem:[%s5228 + $0x88] sm:$0xf] %vm510, %v8819
      %v9018 = vld [vmem:[%s5228 + $0x8c] sm:$0x1]
      %v9019 = vsel %vm520, %v8820, %v9018
      %9020 = vst [vmem:[%s5228 + $0x8c] sm:$0x1] %v9019
      %v9021 = vld [vmem:[%s5228 + $0x90] sm:$0xf]
      %v9022 = vsel %vm3370, %v8827, %v9021
      %9023 = vst [vmem:[%s5228 + $0x90] sm:$0xf] %v9022
      %9024 = vst.msk [vmem:[%s5228 + $0x94] sm:$0xf] %vm510, %v8836
      %v9025 = vld [vmem:[%s5228 + $0x98] sm:$0x1]
      %v9026 = vsel %vm520, %v8837, %v9025
      %9027 = vst [vmem:[%s5228 + $0x98] sm:$0x1] %v9026
      %v9028 = vld [vmem:[%s5228 + $0x9c] sm:$0xf]
      %v9029 = vsel %vm3370, %v8844, %v9028
      %9030 = vst [vmem:[%s5228 + $0x9c] sm:$0xf] %v9029
      %9031 = vst.msk [vmem:[%s5228 + $0xa0] sm:$0xf] %vm510, %v8853
      %v9032 = vld [vmem:[%s5228 + $0xa4] sm:$0x1]
      %v9033 = vsel %vm520, %v8854, %v9032
      %9034 = vst [vmem:[%s5228 + $0xa4] sm:$0x1] %v9033
      %v9035 = vld [vmem:[%s5228 + $0xa8] sm:$0xf]
      %v9036 = vsel %vm3370, %v8861, %v9035
      %9037 = vst [vmem:[%s5228 + $0xa8] sm:$0xf] %v9036
      %9038 = vst.msk [vmem:[%s5228 + $0xac] sm:$0xf] %vm510, %v8870
      %v9039 = vld [vmem:[%s5228 + $0xb0] sm:$0x1]
      %v9040 = vsel %vm520, %v8871, %v9039
      %9041 = vst [vmem:[%s5228 + $0xb0] sm:$0x1] %v9040
      %v9042 = vld [vmem:[%s5228 + $0xb4] sm:$0xf]
      %v9043 = vsel %vm3370, %v8878, %v9042
      %9044 = vst [vmem:[%s5228 + $0xb4] sm:$0xf] %v9043
      %9045 = vst.msk [vmem:[%s5228 + $0xb8] sm:$0xf] %vm510, %v8887
      %v9046 = vld [vmem:[%s5228 + $0xbc] sm:$0x1]
      %v9047 = vsel %vm520, %v8888, %v9046
      %9048 = vst [vmem:[%s5228 + $0xbc] sm:$0x1] %v9047
      %v9049 = vld [vmem:[#allocation4] sm:$0xf]
      %v9050 = vld [vmem:[#allocation4 + $0x4] sm:$0xf]
      %v9051 = vld [vmem:[#allocation4 + $0x8] sm:$0x1]
      %v9052 = vld [vmem:[#allocation4 + $0xc] sm:$0xf]
      %v9053 = vld [vmem:[#allocation4 + $0x10] sm:$0xf]
      %v9054 = vld [vmem:[#allocation4 + $0x14] sm:$0x1]
      %v9055 = vld [vmem:[#allocation4 + $0x18] sm:$0xf]
      %v9056 = vld [vmem:[#allocation4 + $0x1c] sm:$0xf]
      %v9057 = vld [vmem:[#allocation4 + $0x20] sm:$0x1]
      %v9058 = vld [vmem:[#allocation4 + $0x24] sm:$0xf]
      %v9059 = vld [vmem:[#allocation4 + $0x28] sm:$0xf]
      %v9060 = vld [vmem:[#allocation4 + $0x2c] sm:$0x1]
      %v9061 = vld [vmem:[#allocation4 + $0x30] sm:$0xf]
      %v9062 = vld [vmem:[#allocation4 + $0x34] sm:$0xf]
      %v9063 = vld [vmem:[#allocation4 + $0x38] sm:$0x1]
      %v9064 = vld [vmem:[#allocation4 + $0x3c] sm:$0xf]
      %v9065 = vld [vmem:[#allocation4 + $0x40] sm:$0xf]
      %v9066 = vld [vmem:[#allocation4 + $0x44] sm:$0x1]
      %v9067 = vld [vmem:[#allocation4 + $0x48] sm:$0xf]
      %v9068 = vld [vmem:[#allocation4 + $0x4c] sm:$0xf]
      %v9069 = vld [vmem:[#allocation4 + $0x50] sm:$0x1]
      %v9070 = vld [vmem:[#allocation4 + $0x54] sm:$0xf]
      %v9071 = vld [vmem:[#allocation4 + $0x58] sm:$0xf]
      %v9072 = vld [vmem:[#allocation4 + $0x5c] sm:$0x1]
      %v9073 = vld [vmem:[#allocation4 + $0x60] sm:$0xf]
      %v9074 = vld [vmem:[#allocation4 + $0x64] sm:$0xf]
      %v9075 = vld [vmem:[#allocation4 + $0x68] sm:$0x1]
      %v9076 = vld [vmem:[#allocation4 + $0x6c] sm:$0xf]
      %v9077 = vld [vmem:[#allocation4 + $0x70] sm:$0xf]
      %v9078 = vld [vmem:[#allocation4 + $0x74] sm:$0x1]
      %v9079 = vld [vmem:[#allocation4 + $0x78] sm:$0xf]
      %v9080 = vld [vmem:[#allocation4 + $0x7c] sm:$0xf]
      %v9081 = vld [vmem:[#allocation4 + $0x80] sm:$0x1]
      %v9082 = vld [vmem:[#allocation4 + $0x84] sm:$0xf]
      %v9083 = vld [vmem:[#allocation4 + $0x88] sm:$0xf]
      %v9084 = vld [vmem:[#allocation4 + $0x8c] sm:$0x1]
      %v9085 = vld [vmem:[#allocation4 + $0x90] sm:$0xf]
      %v9086 = vld [vmem:[#allocation4 + $0x94] sm:$0xf]
      %v9087 = vld [vmem:[#allocation4 + $0x98] sm:$0x1]
      %v9088 = vld [vmem:[#allocation4 + $0x9c] sm:$0xf]
      %v9089 = vld [vmem:[#allocation4 + $0xa0] sm:$0xf]
      %v9090 = vld [vmem:[#allocation4 + $0xa4] sm:$0x1]
      %v9091 = vld [vmem:[#allocation4 + $0xa8] sm:$0xf]
      %v9092 = vld [vmem:[#allocation4 + $0xac] sm:$0xf]
      %v9093 = vld [vmem:[#allocation4 + $0xb0] sm:$0x1]
      %v9094 = vld [vmem:[#allocation4 + $0xb4] sm:$0xf]
      %v9095 = vld [vmem:[#allocation4 + $0xb8] sm:$0xf]
      %v9096 = vld [vmem:[#allocation4 + $0xbc] sm:$0x1]
      %v9097 = vld [vmem:[#allocation4 + $0xc0] sm:$0xf]
      %v9098 = vld [vmem:[#allocation4 + $0xc4] sm:$0xf]
      %v9099 = vld [vmem:[#allocation4 + $0xc8] sm:$0x1]
      %v9100 = vld [vmem:[#allocation4 + $0xcc] sm:$0xf]
      %v9101 = vld [vmem:[#allocation4 + $0xd0] sm:$0xf]
      %v9102 = vld [vmem:[#allocation4 + $0xd4] sm:$0x1]
      %v9139 = vunpack.c.l.b16 %v9049
      %v9140 = vunpack.c.l.b16 %v9050
      %v9141 = vunpack.c.l.b16 %v9052
      %v9142 = vunpack.c.l.b16 %v9053
      %v9143 = vunpack.c.l.b16 %v9055
      %v9144 = vunpack.c.l.b16 %v9056
      %v9145 = vunpack.c.l.b16 %v9058
      %v9146 = vunpack.c.l.b16 %v9059
      %v9147 = vunpack.c.l.b16 %v9061
      %v9148 = vunpack.c.l.b16 %v9062
      %v9149 = vunpack.c.l.b16 %v9064
      %v9150 = vunpack.c.l.b16 %v9065
      %v9151 = vunpack.c.l.b16 %v9067
      %v9152 = vunpack.c.l.b16 %v9068
      %v9153 = vunpack.c.l.b16 %v9070
      %v9154 = vunpack.c.l.b16 %v9071
      %v9155 = vunpack.c.l.b16 %v9073
      %v9156 = vunpack.c.l.b16 %v9074
      %v9157 = vunpack.c.l.b16 %v9076
      %v9158 = vunpack.c.l.b16 %v9077
      %v9159 = vunpack.c.l.b16 %v9079
      %v9160 = vunpack.c.l.b16 %v9080
      %v9161 = vunpack.c.l.b16 %v9082
      %v9162 = vunpack.c.l.b16 %v9083
      %v9163 = vunpack.c.l.b16 %v9085
      %v9164 = vunpack.c.l.b16 %v9086
      %v9165 = vunpack.c.l.b16 %v9088
      %v9166 = vunpack.c.l.b16 %v9089
      %v9167 = vunpack.c.l.b16 %v9091
      %v9168 = vunpack.c.l.b16 %v9092
      %v9169 = vunpack.c.l.b16 %v9094
      %v9170 = vunpack.c.l.b16 %v9095
      %v9171 = vunpack.c.l.b16 %v9097
      %v9172 = vunpack.c.l.b16 %v9098
      %v9173 = vunpack.c.l.b16 %v9100
      %v9174 = vunpack.c.l.b16 %v9101
      %v9175 = vpack.c.b16 %v9140, %v9139
      %v9176 = vpack.c.b16 %v9142, %v9141
      %v9177 = vpack.c.b16 %v9144, %v9143
      %v9178 = vpack.c.b16 %v9146, %v9145
      %v9179 = vpack.c.b16 %v9148, %v9147
      %v9180 = vpack.c.b16 %v9150, %v9149
      %v9181 = vpack.c.b16 %v9152, %v9151
      %v9182 = vpack.c.b16 %v9154, %v9153
      %v9183 = vpack.c.b16 %v9156, %v9155
      %v9184 = vpack.c.b16 %v9158, %v9157
      %v9185 = vpack.c.b16 %v9160, %v9159
      %v9186 = vpack.c.b16 %v9162, %v9161
      %v9187 = vpack.c.b16 %v9164, %v9163
      %v9188 = vpack.c.b16 %v9166, %v9165
      %v9189 = vpack.c.b16 %v9168, %v9167
      %v9190 = vpack.c.b16 %v9170, %v9169
      %v9191 = vpack.c.b16 %v9172, %v9171
      %v9192 = vpack.c.b16 %v9174, %v9173
      %v9211 = vunpack.c.l.b16 %v9051
      %v9212 = vunpack.c.l.b16 %v9054
      %v9213 = vunpack.c.l.b16 %v9057
      %v9214 = vunpack.c.l.b16 %v9060
      %v9215 = vunpack.c.l.b16 %v9063
      %v9216 = vunpack.c.l.b16 %v9066
      %v9217 = vunpack.c.l.b16 %v9069
      %v9218 = vunpack.c.l.b16 %v9072
      %v9219 = vunpack.c.l.b16 %v9075
      %v9220 = vunpack.c.l.b16 %v9078
      %v9221 = vunpack.c.l.b16 %v9081
      %v9222 = vunpack.c.l.b16 %v9084
      %v9223 = vunpack.c.l.b16 %v9087
      %v9224 = vunpack.c.l.b16 %v9090
      %v9225 = vunpack.c.l.b16 %v9093
      %v9226 = vunpack.c.l.b16 %v9096
      %v9227 = vunpack.c.l.b16 %v9099
      %v9228 = vunpack.c.l.b16 %v9102
      %v9229 = vpack.c.b16 %v9211, %v9211
      %v9230 = vpack.c.b16 %v9212, %v9212
      %v9231 = vpack.c.b16 %v9213, %v9213
      %v9232 = vpack.c.b16 %v9214, %v9214
      %v9233 = vpack.c.b16 %v9215, %v9215
      %v9234 = vpack.c.b16 %v9216, %v9216
      %v9235 = vpack.c.b16 %v9217, %v9217
      %v9236 = vpack.c.b16 %v9218, %v9218
      %v9237 = vpack.c.b16 %v9219, %v9219
      %v9238 = vpack.c.b16 %v9220, %v9220
      %v9239 = vpack.c.b16 %v9221, %v9221
      %v9240 = vpack.c.b16 %v9222, %v9222
      %v9241 = vpack.c.b16 %v9223, %v9223
      %v9242 = vpack.c.b16 %v9224, %v9224
      %v9243 = vpack.c.b16 %v9225, %v9225
      %v9244 = vpack.c.b16 %v9226, %v9226
      %v9245 = vpack.c.b16 %v9227, %v9227
      %v9246 = vpack.c.b16 %v9228, %v9228
      %v9248 = vshrl.u32 %v9175, 16
      %v9250 = vshll.u32 %v9175, 16
      %v9252 = vrot.slane %v9250, 1
      %v9253 = vor.u32 %v9248, %v9252
      %v9255 = vshll.u32 %v9229, 16
      %v9257 = vrot.slane %v9255, 1
      %v9258 = vsel %vm2114, %v9253, %v9257
      %v9260 = vshrl.u32 %v9176, 16
      %v9262 = vshll.u32 %v9176, 16
      %v9264 = vrot.slane %v9262, 1
      %v9265 = vor.u32 %v9260, %v9264
      %v9267 = vshll.u32 %v9230, 16
      %v9269 = vrot.slane %v9267, 1
      %v9270 = vsel %vm2114, %v9265, %v9269
      %v9272 = vshrl.u32 %v9177, 16
      %v9274 = vshll.u32 %v9177, 16
      %v9276 = vrot.slane %v9274, 1
      %v9277 = vor.u32 %v9272, %v9276
      %v9279 = vshll.u32 %v9231, 16
      %v9281 = vrot.slane %v9279, 1
      %v9282 = vsel %vm2114, %v9277, %v9281
      %v9284 = vshrl.u32 %v9178, 16
      %v9286 = vshll.u32 %v9178, 16
      %v9288 = vrot.slane %v9286, 1
      %v9289 = vor.u32 %v9284, %v9288
      %v9291 = vshll.u32 %v9232, 16
      %v9293 = vrot.slane %v9291, 1
      %v9294 = vsel %vm2114, %v9289, %v9293
      %v9296 = vshrl.u32 %v9179, 16
      %v9298 = vshll.u32 %v9179, 16
      %v9300 = vrot.slane %v9298, 1
      %v9301 = vor.u32 %v9296, %v9300
      %v9303 = vshll.u32 %v9233, 16
      %v9305 = vrot.slane %v9303, 1
      %v9306 = vsel %vm2114, %v9301, %v9305
      %v9308 = vshrl.u32 %v9180, 16
      %v9310 = vshll.u32 %v9180, 16
      %v9312 = vrot.slane %v9310, 1
      %v9313 = vor.u32 %v9308, %v9312
      %v9315 = vshll.u32 %v9234, 16
      %v9317 = vrot.slane %v9315, 1
      %v9318 = vsel %vm2114, %v9313, %v9317
      %v9320 = vshrl.u32 %v9181, 16
      %v9322 = vshll.u32 %v9181, 16
      %v9324 = vrot.slane %v9322, 1
      %v9325 = vor.u32 %v9320, %v9324
      %v9327 = vshll.u32 %v9235, 16
      %v9329 = vrot.slane %v9327, 1
      %v9330 = vsel %vm2114, %v9325, %v9329
      %v9332 = vshrl.u32 %v9182, 16
      %v9334 = vshll.u32 %v9182, 16
      %v9336 = vrot.slane %v9334, 1
      %v9337 = vor.u32 %v9332, %v9336
      %v9339 = vshll.u32 %v9236, 16
      %v9341 = vrot.slane %v9339, 1
      %v9342 = vsel %vm2114, %v9337, %v9341
      %v9344 = vshrl.u32 %v9183, 16
      %v9346 = vshll.u32 %v9183, 16
      %v9348 = vrot.slane %v9346, 1
      %v9349 = vor.u32 %v9344, %v9348
      %v9351 = vshll.u32 %v9237, 16
      %v9353 = vrot.slane %v9351, 1
      %v9354 = vsel %vm2114, %v9349, %v9353
      %v9356 = vshrl.u32 %v9184, 16
      %v9358 = vshll.u32 %v9184, 16
      %v9360 = vrot.slane %v9358, 1
      %v9361 = vor.u32 %v9356, %v9360
      %v9363 = vshll.u32 %v9238, 16
      %v9365 = vrot.slane %v9363, 1
      %v9366 = vsel %vm2114, %v9361, %v9365
      %v9368 = vshrl.u32 %v9185, 16
      %v9370 = vshll.u32 %v9185, 16
      %v9372 = vrot.slane %v9370, 1
      %v9373 = vor.u32 %v9368, %v9372
      %v9375 = vshll.u32 %v9239, 16
      %v9377 = vrot.slane %v9375, 1
      %v9378 = vsel %vm2114, %v9373, %v9377
      %v9380 = vshrl.u32 %v9186, 16
      %v9382 = vshll.u32 %v9186, 16
      %v9384 = vrot.slane %v9382, 1
      %v9385 = vor.u32 %v9380, %v9384
      %v9387 = vshll.u32 %v9240, 16
      %v9389 = vrot.slane %v9387, 1
      %v9390 = vsel %vm2114, %v9385, %v9389
      %v9392 = vshrl.u32 %v9187, 16
      %v9394 = vshll.u32 %v9187, 16
      %v9396 = vrot.slane %v9394, 1
      %v9397 = vor.u32 %v9392, %v9396
      %v9399 = vshll.u32 %v9241, 16
      %v9401 = vrot.slane %v9399, 1
      %v9402 = vsel %vm2114, %v9397, %v9401
      %v9404 = vshrl.u32 %v9188, 16
      %v9406 = vshll.u32 %v9188, 16
      %v9408 = vrot.slane %v9406, 1
      %v9409 = vor.u32 %v9404, %v9408
      %v9411 = vshll.u32 %v9242, 16
      %v9413 = vrot.slane %v9411, 1
      %v9414 = vsel %vm2114, %v9409, %v9413
      %v9416 = vshrl.u32 %v9189, 16
      %v9418 = vshll.u32 %v9189, 16
      %v9420 = vrot.slane %v9418, 1
      %v9421 = vor.u32 %v9416, %v9420
      %v9423 = vshll.u32 %v9243, 16
      %v9425 = vrot.slane %v9423, 1
      %v9426 = vsel %vm2114, %v9421, %v9425
      %v9428 = vshrl.u32 %v9190, 16
      %v9430 = vshll.u32 %v9190, 16
      %v9432 = vrot.slane %v9430, 1
      %v9433 = vor.u32 %v9428, %v9432
      %v9435 = vshll.u32 %v9244, 16
      %v9437 = vrot.slane %v9435, 1
      %v9438 = vsel %vm2114, %v9433, %v9437
      %v9440 = vshrl.u32 %v9191, 16
      %v9442 = vshll.u32 %v9191, 16
      %v9444 = vrot.slane %v9442, 1
      %v9445 = vor.u32 %v9440, %v9444
      %v9447 = vshll.u32 %v9245, 16
      %v9449 = vrot.slane %v9447, 1
      %v9450 = vsel %vm2114, %v9445, %v9449
      %v9452 = vshrl.u32 %v9192, 16
      %v9454 = vshll.u32 %v9192, 16
      %v9456 = vrot.slane %v9454, 1
      %v9457 = vor.u32 %v9452, %v9456
      %v9459 = vshll.u32 %v9246, 16
      %v9461 = vrot.slane %v9459, 1
      %v9462 = vsel %vm2114, %v9457, %v9461
      %9463 = vrot.lane.b32.xlu0 %v9258, 32
      %v9464 = vpop.permute.xlu0 %9463
      %9465 = vrot.lane.b32.xlu0 %v9270, 32
      %v9466 = vpop.permute.xlu0 %9465
      %9467 = vrot.lane.b32.xlu0 %v9282, 32
      %v9468 = vpop.permute.xlu0 %9467
      %9469 = vrot.lane.b32.xlu0 %v9294, 32
      %v9470 = vpop.permute.xlu0 %9469
      %9471 = vrot.lane.b32.xlu0 %v9306, 32
      %v9472 = vpop.permute.xlu0 %9471
      %9473 = vrot.lane.b32.xlu0 %v9318, 32
      %v9474 = vpop.permute.xlu0 %9473
      %9475 = vrot.lane.b32.xlu0 %v9330, 32
      %v9476 = vpop.permute.xlu0 %9475
      %9477 = vrot.lane.b32.xlu0 %v9342, 32
      %v9478 = vpop.permute.xlu0 %9477
      %9479 = vrot.lane.b32.xlu0 %v9354, 32
      %v9480 = vpop.permute.xlu0 %9479
      %9481 = vrot.lane.b32.xlu0 %v9366, 32
      %v9482 = vpop.permute.xlu0 %9481
      %9483 = vrot.lane.b32.xlu0 %v9378, 32
      %v9484 = vpop.permute.xlu0 %9483
      %9485 = vrot.lane.b32.xlu0 %v9390, 32
      %v9486 = vpop.permute.xlu0 %9485
      %9487 = vrot.lane.b32.xlu0 %v9402, 32
      %v9488 = vpop.permute.xlu0 %9487
      %9489 = vrot.lane.b32.xlu0 %v9414, 32
      %v9490 = vpop.permute.xlu0 %9489
      %9491 = vrot.lane.b32.xlu0 %v9426, 32
      %v9492 = vpop.permute.xlu0 %9491
      %9493 = vrot.lane.b32.xlu0 %v9438, 32
      %v9494 = vpop.permute.xlu0 %9493
      %9495 = vrot.lane.b32.xlu0 %v9450, 32
      %v9496 = vpop.permute.xlu0 %9495
      %9497 = vrot.lane.b32.xlu0 %v9462, 32
      %v9498 = vpop.permute.xlu0 %9497
      %v9499 = vrot.slane %v9175, 1
      %v9500 = vrot.slane %v9229, 1
      %v9501 = vsel %vm2367, %v9499, %v9500
      %v9502 = vrot.slane %v9176, 1
      %v9503 = vrot.slane %v9230, 1
      %v9504 = vsel %vm2367, %v9502, %v9503
      %v9505 = vrot.slane %v9177, 1
      %v9506 = vrot.slane %v9231, 1
      %v9507 = vsel %vm2367, %v9505, %v9506
      %v9508 = vrot.slane %v9178, 1
      %v9509 = vrot.slane %v9232, 1
      %v9510 = vsel %vm2367, %v9508, %v9509
      %v9511 = vrot.slane %v9179, 1
      %v9512 = vrot.slane %v9233, 1
      %v9513 = vsel %vm2367, %v9511, %v9512
      %v9514 = vrot.slane %v9180, 1
      %v9515 = vrot.slane %v9234, 1
      %v9516 = vsel %vm2367, %v9514, %v9515
      %v9517 = vrot.slane %v9181, 1
      %v9518 = vrot.slane %v9235, 1
      %v9519 = vsel %vm2367, %v9517, %v9518
      %v9520 = vrot.slane %v9182, 1
      %v9521 = vrot.slane %v9236, 1
      %v9522 = vsel %vm2367, %v9520, %v9521
      %v9523 = vrot.slane %v9183, 1
      %v9524 = vrot.slane %v9237, 1
      %v9525 = vsel %vm2367, %v9523, %v9524
      %v9526 = vrot.slane %v9184, 1
      %v9527 = vrot.slane %v9238, 1
      %v9528 = vsel %vm2367, %v9526, %v9527
      %v9529 = vrot.slane %v9185, 1
      %v9530 = vrot.slane %v9239, 1
      %v9531 = vsel %vm2367, %v9529, %v9530
      %v9532 = vrot.slane %v9186, 1
      %v9533 = vrot.slane %v9240, 1
      %v9534 = vsel %vm2367, %v9532, %v9533
      %v9535 = vrot.slane %v9187, 1
      %v9536 = vrot.slane %v9241, 1
      %v9537 = vsel %vm2367, %v9535, %v9536
      %v9538 = vrot.slane %v9188, 1
      %v9539 = vrot.slane %v9242, 1
      %v9540 = vsel %vm2367, %v9538, %v9539
      %v9541 = vrot.slane %v9189, 1
      %v9542 = vrot.slane %v9243, 1
      %v9543 = vsel %vm2367, %v9541, %v9542
      %v9544 = vrot.slane %v9190, 1
      %v9545 = vrot.slane %v9244, 1
      %v9546 = vsel %vm2367, %v9544, %v9545
      %v9547 = vrot.slane %v9191, 1
      %v9548 = vrot.slane %v9245, 1
      %v9549 = vsel %vm2367, %v9547, %v9548
      %v9550 = vrot.slane %v9192, 1
      %v9551 = vrot.slane %v9246, 1
      %v9552 = vsel %vm2367, %v9550, %v9551
      %9553 = vrot.lane.b32.xlu0 %v9501, 64
      %v9554 = vpop.permute.xlu0 %9553
      %9555 = vrot.lane.b32.xlu0 %v9504, 64
      %v9556 = vpop.permute.xlu0 %9555
      %9557 = vrot.lane.b32.xlu0 %v9507, 64
      %v9558 = vpop.permute.xlu0 %9557
      %9559 = vrot.lane.b32.xlu0 %v9510, 64
      %v9560 = vpop.permute.xlu0 %9559
      %9561 = vrot.lane.b32.xlu0 %v9513, 64
      %v9562 = vpop.permute.xlu0 %9561
      %9563 = vrot.lane.b32.xlu0 %v9516, 64
      %v9564 = vpop.permute.xlu0 %9563
      %9565 = vrot.lane.b32.xlu0 %v9519, 64
      %v9566 = vpop.permute.xlu0 %9565
      %9567 = vrot.lane.b32.xlu0 %v9522, 64
      %v9568 = vpop.permute.xlu0 %9567
      %9569 = vrot.lane.b32.xlu0 %v9525, 64
      %v9570 = vpop.permute.xlu0 %9569
      %9571 = vrot.lane.b32.xlu0 %v9528, 64
      %v9572 = vpop.permute.xlu0 %9571
      %9573 = vrot.lane.b32.xlu0 %v9531, 64
      %v9574 = vpop.permute.xlu0 %9573
      %9575 = vrot.lane.b32.xlu0 %v9534, 64
      %v9576 = vpop.permute.xlu0 %9575
      %9577 = vrot.lane.b32.xlu0 %v9537, 64
      %v9578 = vpop.permute.xlu0 %9577
      %9579 = vrot.lane.b32.xlu0 %v9540, 64
      %v9580 = vpop.permute.xlu0 %9579
      %9581 = vrot.lane.b32.xlu0 %v9543, 64
      %v9582 = vpop.permute.xlu0 %9581
      %9583 = vrot.lane.b32.xlu0 %v9546, 64
      %v9584 = vpop.permute.xlu0 %9583
      %9585 = vrot.lane.b32.xlu0 %v9549, 64
      %v9586 = vpop.permute.xlu0 %9585
      %9587 = vrot.lane.b32.xlu0 %v9552, 64
      %v9588 = vpop.permute.xlu0 %9587
      %v9590 = vsel %vm4023, %v9175, %v9464
      %v9592 = vsel %vm4023, %v9176, %v9466
      %v9594 = vsel %vm4023, %v9177, %v9468
      %v9596 = vsel %vm4023, %v9178, %v9470
      %v9598 = vsel %vm4023, %v9179, %v9472
      %v9600 = vsel %vm4023, %v9180, %v9474
      %v9602 = vsel %vm4023, %v9181, %v9476
      %v9604 = vsel %vm4023, %v9182, %v9478
      %v9606 = vsel %vm4023, %v9183, %v9480
      %v9608 = vsel %vm4023, %v9184, %v9482
      %v9610 = vsel %vm4023, %v9185, %v9484
      %v9612 = vsel %vm4023, %v9186, %v9486
      %v9614 = vsel %vm4023, %v9187, %v9488
      %v9616 = vsel %vm4023, %v9188, %v9490
      %v9618 = vsel %vm4023, %v9189, %v9492
      %v9620 = vsel %vm4023, %v9190, %v9494
      %v9622 = vsel %vm4023, %v9191, %v9496
      %v9624 = vsel %vm4023, %v9192, %v9498
      %v9626 = vsel %vm4060, %v9590, %v9554
      %v9628 = vsel %vm4060, %v9592, %v9556
      %v9630 = vsel %vm4060, %v9594, %v9558
      %v9632 = vsel %vm4060, %v9596, %v9560
      %v9634 = vsel %vm4060, %v9598, %v9562
      %v9636 = vsel %vm4060, %v9600, %v9564
      %v9638 = vsel %vm4060, %v9602, %v9566
      %v9640 = vsel %vm4060, %v9604, %v9568
      %v9642 = vsel %vm4060, %v9606, %v9570
      %v9644 = vsel %vm4060, %v9608, %v9572
      %v9646 = vsel %vm4060, %v9610, %v9574
      %v9648 = vsel %vm4060, %v9612, %v9576
      %v9650 = vsel %vm4060, %v9614, %v9578
      %v9652 = vsel %vm4060, %v9616, %v9580
      %v9654 = vsel %vm4060, %v9618, %v9582
      %v9656 = vsel %vm4060, %v9620, %v9584
      %v9658 = vsel %vm4060, %v9622, %v9586
      %v9660 = vsel %vm4060, %v9624, %v9588
      %9677 = vrot.lane.b32.xlu0 %v9628, 96
      %v9678 = vpop.permute.xlu0 %9677
      %9679 = vrot.lane.b32.xlu0 %v9630, 96
      %v9680 = vpop.permute.xlu0 %9679
      %9681 = vrot.lane.b32.xlu0 %v9632, 96
      %v9682 = vpop.permute.xlu0 %9681
      %9683 = vrot.lane.b32.xlu0 %v9634, 96
      %v9684 = vpop.permute.xlu0 %9683
      %9685 = vrot.lane.b32.xlu0 %v9636, 96
      %v9686 = vpop.permute.xlu0 %9685
      %9687 = vrot.lane.b32.xlu0 %v9638, 96
      %v9688 = vpop.permute.xlu0 %9687
      %9689 = vrot.lane.b32.xlu0 %v9640, 96
      %v9690 = vpop.permute.xlu0 %9689
      %9691 = vrot.lane.b32.xlu0 %v9642, 96
      %v9692 = vpop.permute.xlu0 %9691
      %9693 = vrot.lane.b32.xlu0 %v9644, 96
      %v9694 = vpop.permute.xlu0 %9693
      %9695 = vrot.lane.b32.xlu0 %v9646, 96
      %v9696 = vpop.permute.xlu0 %9695
      %9697 = vrot.lane.b32.xlu0 %v9648, 96
      %v9698 = vpop.permute.xlu0 %9697
      %9699 = vrot.lane.b32.xlu0 %v9650, 96
      %v9700 = vpop.permute.xlu0 %9699
      %9701 = vrot.lane.b32.xlu0 %v9652, 96
      %v9702 = vpop.permute.xlu0 %9701
      %9703 = vrot.lane.b32.xlu0 %v9654, 96
      %v9704 = vpop.permute.xlu0 %9703
      %9705 = vrot.lane.b32.xlu0 %v9656, 96
      %v9706 = vpop.permute.xlu0 %9705
      %9707 = vrot.lane.b32.xlu0 %v9658, 96
      %v9708 = vpop.permute.xlu0 %9707
      %9710 = vrot.lane.b32.xlu0 %v9630, 64
      %v9711 = vpop.permute.xlu0 %9710
      %9712 = vrot.lane.b32.xlu0 %v9632, 64
      %v9713 = vpop.permute.xlu0 %9712
      %9714 = vrot.lane.b32.xlu0 %v9634, 64
      %v9715 = vpop.permute.xlu0 %9714
      %9716 = vrot.lane.b32.xlu0 %v9636, 64
      %v9717 = vpop.permute.xlu0 %9716
      %9718 = vrot.lane.b32.xlu0 %v9638, 64
      %v9719 = vpop.permute.xlu0 %9718
      %9720 = vrot.lane.b32.xlu0 %v9640, 64
      %v9721 = vpop.permute.xlu0 %9720
      %9722 = vrot.lane.b32.xlu0 %v9642, 64
      %v9723 = vpop.permute.xlu0 %9722
      %9724 = vrot.lane.b32.xlu0 %v9644, 64
      %v9725 = vpop.permute.xlu0 %9724
      %9726 = vrot.lane.b32.xlu0 %v9646, 64
      %v9727 = vpop.permute.xlu0 %9726
      %9728 = vrot.lane.b32.xlu0 %v9648, 64
      %v9729 = vpop.permute.xlu0 %9728
      %9730 = vrot.lane.b32.xlu0 %v9650, 64
      %v9731 = vpop.permute.xlu0 %9730
      %9732 = vrot.lane.b32.xlu0 %v9652, 64
      %v9733 = vpop.permute.xlu0 %9732
      %9734 = vrot.lane.b32.xlu0 %v9654, 64
      %v9735 = vpop.permute.xlu0 %9734
      %9736 = vrot.lane.b32.xlu0 %v9656, 64
      %v9737 = vpop.permute.xlu0 %9736
      %9738 = vrot.lane.b32.xlu0 %v9658, 64
      %v9739 = vpop.permute.xlu0 %9738
      %9740 = vrot.lane.b32.xlu0 %v9660, 64
      %v9741 = vpop.permute.xlu0 %9740
      %v9743 = vsel %vm4178, %v9626, %v9678
      %v9746 = vsel %vm4178, %v9628, %v9680
      %v9749 = vsel %vm4178, %v9630, %v9682
      %v9752 = vsel %vm4178, %v9632, %v9684
      %v9755 = vsel %vm4178, %v9634, %v9686
      %v9758 = vsel %vm4178, %v9636, %v9688
      %v9761 = vsel %vm4178, %v9638, %v9690
      %v9764 = vsel %vm4178, %v9640, %v9692
      %v9767 = vsel %vm4178, %v9642, %v9694
      %v9770 = vsel %vm4178, %v9644, %v9696
      %v9773 = vsel %vm4178, %v9646, %v9698
      %v9776 = vsel %vm4178, %v9648, %v9700
      %v9779 = vsel %vm4178, %v9650, %v9702
      %v9782 = vsel %vm4178, %v9652, %v9704
      %v9785 = vsel %vm4178, %v9654, %v9706
      %v9788 = vsel %vm4178, %v9656, %v9708
      %v9791 = vsel %vm4060, %v9678, %v9711
      %v9794 = vsel %vm4060, %v9680, %v9713
      %v9797 = vsel %vm4060, %v9682, %v9715
      %v9800 = vsel %vm4060, %v9684, %v9717
      %v9803 = vsel %vm4060, %v9686, %v9719
      %v9806 = vsel %vm4060, %v9688, %v9721
      %v9809 = vsel %vm4060, %v9690, %v9723
      %v9812 = vsel %vm4060, %v9692, %v9725
      %v9815 = vsel %vm4060, %v9694, %v9727
      %v9818 = vsel %vm4060, %v9696, %v9729
      %v9821 = vsel %vm4060, %v9698, %v9731
      %v9824 = vsel %vm4060, %v9700, %v9733
      %v9827 = vsel %vm4060, %v9702, %v9735
      %v9830 = vsel %vm4060, %v9704, %v9737
      %v9833 = vsel %vm4060, %v9706, %v9739
      %v9836 = vsel %vm4060, %v9708, %v9741
      %v9838 = vld [vmem:[%s9] sm:$0xf]
      %v9839 = vld [vmem:[%s9 + $0x4] sm:$0xf]
      %v9840 = vld [vmem:[%s9 + $0x8] sm:$0xf]
      %v9841 = vld [vmem:[%s9 + $0xc] sm:$0xf]
      %v9842 = vld [vmem:[%s9 + $0x10] sm:$0xf]
      %v9843 = vld [vmem:[%s9 + $0x14] sm:$0xf]
      %v9844 = vld [vmem:[%s9 + $0x18] sm:$0xf]
      %v9845 = vld [vmem:[%s9 + $0x1c] sm:$0xf]
      %v9846 = vld [vmem:[%s9 + $0x20] sm:$0xf]
      %v9847 = vld [vmem:[%s9 + $0x24] sm:$0xf]
      %v9848 = vld [vmem:[%s9 + $0x28] sm:$0xf]
      %v9849 = vld [vmem:[%s9 + $0x2c] sm:$0xf]
      %v9850 = vld [vmem:[%s9 + $0x30] sm:$0xf]
      %v9851 = vld [vmem:[%s9 + $0x34] sm:$0xf]
      %v9852 = vld [vmem:[%s9 + $0x38] sm:$0xf]
      %v9853 = vld [vmem:[%s9 + $0x3c] sm:$0xf]
      %v9854 = vld [vmem:[%s9 + $0x40] sm:$0xf]
      %v9855 = vld [vmem:[%s9 + $0x44] sm:$0xf]
      %v9856 = vld [vmem:[%s9 + $0x48] sm:$0xf]
      %v9857 = vld [vmem:[%s9 + $0x4c] sm:$0xf]
      %v9858 = vld [vmem:[%s9 + $0x50] sm:$0xf]
      %v9859 = vld [vmem:[%s9 + $0x54] sm:$0xf]
      %v9860 = vld [vmem:[%s9 + $0x58] sm:$0xf]
      %v9861 = vld [vmem:[%s9 + $0x5c] sm:$0xf]
      %v9862 = vld [vmem:[%s9 + $0x60] sm:$0xf]
      %v9863 = vld [vmem:[%s9 + $0x64] sm:$0xf]
      %v9864 = vld [vmem:[%s9 + $0x68] sm:$0xf]
      %v9865 = vld [vmem:[%s9 + $0x6c] sm:$0xf]
      %v9866 = vld [vmem:[%s9 + $0x70] sm:$0xf]
      %v9867 = vld [vmem:[%s9 + $0x74] sm:$0xf]
      %v9868 = vld [vmem:[%s9 + $0x78] sm:$0xf]
      %v9869 = vld [vmem:[%s9 + $0x7c] sm:$0xf]
      %v9870 = vld [vmem:[%s9 + $0x80] sm:$0xf]
      %v9871 = vld [vmem:[%s9 + $0x84] sm:$0xf]
      %v9872 = vld [vmem:[%s9 + $0x88] sm:$0xf]
      %v9873 = vld [vmem:[%s9 + $0x8c] sm:$0xf]
      %v9874 = vld [vmem:[%s10] sm:$0x1]
      %v9876 = vlaneseq
      %v9877 = vshrl.u32 %v9876, 7
      %v9878 = vsub.s32 0, %v9877
      %v9879 = vrot.slane %v9874, %v9878
      %v9917 = vunpack.c.l.b16 %v9838
      %v9918 = vunpack.c.l.b16 %v9839
      %v9919 = vunpack.c.l.b16 %v9840
      %v9920 = vunpack.c.l.b16 %v9841
      %v9921 = vunpack.c.l.b16 %v9842
      %v9922 = vunpack.c.l.b16 %v9843
      %v9923 = vunpack.c.l.b16 %v9844
      %v9924 = vunpack.c.l.b16 %v9845
      %v9925 = vunpack.c.l.b16 %v9846
      %v9926 = vunpack.c.l.b16 %v9847
      %v9927 = vunpack.c.l.b16 %v9848
      %v9928 = vunpack.c.l.b16 %v9849
      %v9929 = vunpack.c.l.b16 %v9850
      %v9930 = vunpack.c.l.b16 %v9851
      %v9931 = vunpack.c.l.b16 %v9852
      %v9932 = vunpack.c.l.b16 %v9853
      %v9933 = vunpack.c.l.b16 %v9854
      %v9934 = vunpack.c.l.b16 %v9855
      %v9935 = vunpack.c.l.b16 %v9856
      %v9936 = vunpack.c.l.b16 %v9857
      %v9937 = vunpack.c.l.b16 %v9858
      %v9938 = vunpack.c.l.b16 %v9859
      %v9939 = vunpack.c.l.b16 %v9860
      %v9940 = vunpack.c.l.b16 %v9861
      %v9941 = vunpack.c.l.b16 %v9862
      %v9942 = vunpack.c.l.b16 %v9863
      %v9943 = vunpack.c.l.b16 %v9864
      %v9944 = vunpack.c.l.b16 %v9865
      %v9945 = vunpack.c.l.b16 %v9866
      %v9946 = vunpack.c.l.b16 %v9867
      %v9947 = vunpack.c.l.b16 %v9868
      %v9948 = vunpack.c.l.b16 %v9869
      %v9949 = vunpack.c.l.b16 %v9870
      %v9950 = vunpack.c.l.b16 %v9871
      %v9951 = vunpack.c.l.b16 %v9872
      %v9952 = vunpack.c.l.b16 %v9873
      %v9953 = vpack.c.b16 %v9918, %v9917
      %v9954 = vpack.c.b16 %v9920, %v9919
      %v9955 = vpack.c.b16 %v9922, %v9921
      %v9956 = vpack.c.b16 %v9924, %v9923
      %v9957 = vpack.c.b16 %v9926, %v9925
      %v9958 = vpack.c.b16 %v9928, %v9927
      %v9959 = vpack.c.b16 %v9930, %v9929
      %v9960 = vpack.c.b16 %v9932, %v9931
      %v9961 = vpack.c.b16 %v9934, %v9933
      %v9962 = vpack.c.b16 %v9936, %v9935
      %v9963 = vpack.c.b16 %v9938, %v9937
      %v9964 = vpack.c.b16 %v9940, %v9939
      %v9965 = vpack.c.b16 %v9942, %v9941
      %v9966 = vpack.c.b16 %v9944, %v9943
      %v9967 = vpack.c.b16 %v9946, %v9945
      %v9968 = vpack.c.b16 %v9948, %v9947
      %v9969 = vpack.c.b16 %v9950, %v9949
      %v9970 = vpack.c.b16 %v9952, %v9951
      %v9989 = vsel %vm4023, %v9711, 0
      %v9991 = vsel %vm4023, %v9713, 0
      %v9993 = vsel %vm4023, %v9715, 0
      %v9995 = vsel %vm4023, %v9717, 0
      %v9997 = vsel %vm4023, %v9719, 0
      %v9999 = vsel %vm4023, %v9721, 0
      %v10001 = vsel %vm4023, %v9723, 0
      %v10003 = vsel %vm4023, %v9725, 0
      %v10005 = vsel %vm4023, %v9727, 0
      %v10007 = vsel %vm4023, %v9729, 0
      %v10009 = vsel %vm4023, %v9731, 0
      %v10011 = vsel %vm4023, %v9733, 0
      %v10013 = vsel %vm4023, %v9735, 0
      %v10015 = vsel %vm4023, %v9737, 0
      %v10017 = vsel %vm4023, %v9739, 0
      %v10019 = vsel %vm4023, %v9741, 0
      %10021 = vmatprep.subr.bf16.mxu0 0
      %10022 = vmatpush1.bf16.msra.mxu0 %v9953
      %10023 = vmatprep.subr.bf16.mxu0 0
      %10024 = vmatpush1.bf16.msra.mxu0 %v9954
      %10025 = vmatprep.subr.bf16.mxu0 0
      %10026 = vmatpush1.bf16.msra.mxu0 %v9955
      %10027 = vmatprep.subr.bf16.mxu0 0
      %10028 = vmatpush1.bf16.msra.mxu0 %v9956
      %10029 = vmatprep.subr.bf16.mxu0 0
      %10030 = vmatpush1.bf16.msra.mxu0 %v9957
      %10031 = vmatprep.subr.bf16.mxu0 0
      %10032 = vmatpush1.bf16.msra.mxu0 %v9958
      %10033 = vmatprep.subr.bf16.mxu0 0
      %10034 = vmatpush1.bf16.msra.mxu0 %v9959
      %10035 = vmatprep.subr.bf16.mxu0 0
      %10036 = vmatpush1.bf16.msra.mxu0 %v9960
      %10037 = vmatprep.subr.bf16.mxu0 0
      %10038 = vmatpush1.bf16.msra.mxu0 %v9961
      %10039 = vmatprep.subr.bf16.mxu0 0
      %10040 = vmatpush1.bf16.msra.mxu0 %v9962
      %10041 = vmatprep.subr.bf16.mxu0 0
      %10042 = vmatpush1.bf16.msra.mxu0 %v9963
      %10043 = vmatprep.subr.bf16.mxu0 0
      %10044 = vmatpush1.bf16.msra.mxu0 %v9964
      %10045 = vmatprep.subr.bf16.mxu0 0
      %10046 = vmatpush1.bf16.msra.mxu0 %v9965
      %10047 = vmatprep.subr.bf16.mxu0 0
      %10048 = vmatpush1.bf16.msra.mxu0 %v9966
      %10049 = vmatprep.subr.bf16.mxu0 0
      %10050 = vmatpush1.bf16.msra.mxu0 %v9967
      %10051 = vmatprep.subr.bf16.mxu0 0
      %10052 = vmatpush1.bf16.msra.mxu0 %v9968
      %10053 = vmatprep.mubr.bf16.mxu0 %v9791
      %10054 = vmatmul.mubr.bf16.gmra.mrb[0].mxu0 %v9743
      %v10055 = vpop.f32.mrb[0].mxu0
      %v10056 = vadd.f32 %v9879, %v10055
      %v10057 = vpop.f32.mrb[0].mxu0
      %v10058 = vpop.f32.mrb[0].mxu0
      %v10059 = vadd.f32 %v9879, %v10058
      %v10060 = vpop.f32.mrb[0].mxu0
      %10061 = vmatprep.mubr.bf16.mxu0 %v9794
      %10062 = vmatmul.mubr.bf16.gmra.mrb[0].mxu0 %v9746
      %v10063 = vpop.f32.mrb[0].mxu0
      %v10064 = vadd.f32 %v9879, %v10063
      %v10065 = vpop.f32.mrb[0].mxu0
      %v10066 = vpop.f32.mrb[0].mxu0
      %v10067 = vadd.f32 %v9879, %v10066
      %v10068 = vpop.f32.mrb[0].mxu0
      %10069 = vmatprep.mubr.bf16.mxu0 %v9797
      %10070 = vmatmul.mubr.bf16.gmra.mrb[0].mxu0 %v9749
      %v10071 = vpop.f32.mrb[0].mxu0
      %v10072 = vadd.f32 %v9879, %v10071
      %v10073 = vpop.f32.mrb[0].mxu0
      %v10074 = vpop.f32.mrb[0].mxu0
      %v10075 = vadd.f32 %v9879, %v10074
      %v10076 = vpop.f32.mrb[0].mxu0
      %10077 = vmatprep.mubr.bf16.mxu0 %v9800
      %10078 = vmatmul.mubr.bf16.gmra.mrb[0].mxu0 %v9752
      %v10079 = vpop.f32.mrb[0].mxu0
      %v10080 = vadd.f32 %v9879, %v10079
      %v10081 = vpop.f32.mrb[0].mxu0
      %v10082 = vpop.f32.mrb[0].mxu0
      %v10083 = vadd.f32 %v9879, %v10082
      %v10084 = vpop.f32.mrb[0].mxu0
      %10085 = vmatprep.mubr.bf16.mxu0 %v9803
      %10086 = vmatmul.mubr.bf16.gmra.mrb[0].mxu0 %v9755
      %v10087 = vpop.f32.mrb[0].mxu0
      %v10088 = vadd.f32 %v9879, %v10087
      %v10089 = vpop.f32.mrb[0].mxu0
      %v10090 = vpop.f32.mrb[0].mxu0
      %v10091 = vadd.f32 %v9879, %v10090
      %v10092 = vpop.f32.mrb[0].mxu0
      %10093 = vmatprep.mubr.bf16.mxu0 %v9806
      %10094 = vmatmul.mubr.bf16.gmra.mrb[0].mxu0 %v9758
      %v10095 = vpop.f32.mrb[0].mxu0
      %v10096 = vadd.f32 %v9879, %v10095
      %v10097 = vpop.f32.mrb[0].mxu0
      %v10098 = vpop.f32.mrb[0].mxu0
      %v10099 = vadd.f32 %v9879, %v10098
      %v10100 = vpop.f32.mrb[0].mxu0
      %10101 = vmatprep.mubr.bf16.mxu0 %v9809
      %10102 = vmatmul.mubr.bf16.gmra.mrb[0].mxu0 %v9761
      %v10103 = vpop.f32.mrb[0].mxu0
      %v10104 = vadd.f32 %v9879, %v10103
      %v10105 = vpop.f32.mrb[0].mxu0
      %v10106 = vpop.f32.mrb[0].mxu0
      %v10107 = vadd.f32 %v9879, %v10106
      %v10108 = vpop.f32.mrb[0].mxu0
      %10109 = vmatprep.mubr.bf16.mxu0 %v9812
      %10110 = vmatmul.mubr.bf16.gmra.mrb[0].mxu0 %v9764
      %v10111 = vpop.f32.mrb[0].mxu0
      %v10112 = vadd.f32 %v9879, %v10111
      %v10113 = vpop.f32.mrb[0].mxu0
      %v10114 = vpop.f32.mrb[0].mxu0
      %v10115 = vadd.f32 %v9879, %v10114
      %v10116 = vpop.f32.mrb[0].mxu0
      %10117 = vmatprep.mubr.bf16.mxu0 %v9815
      %10118 = vmatmul.mubr.bf16.gmra.mrb[0].mxu0 %v9767
      %v10119 = vpop.f32.mrb[0].mxu0
      %v10120 = vadd.f32 %v9879, %v10119
      %v10121 = vpop.f32.mrb[0].mxu0
      %v10122 = vpop.f32.mrb[0].mxu0
      %v10123 = vadd.f32 %v9879, %v10122
      %v10124 = vpop.f32.mrb[0].mxu0
      %10125 = vmatprep.mubr.bf16.mxu0 %v9818
      %10126 = vmatmul.mubr.bf16.gmra.mrb[0].mxu0 %v9770
      %v10127 = vpop.f32.mrb[0].mxu0
      %v10128 = vadd.f32 %v9879, %v10127
      %v10129 = vpop.f32.mrb[0].mxu0
      %v10130 = vpop.f32.mrb[0].mxu0
      %v10131 = vadd.f32 %v9879, %v10130
      %v10132 = vpop.f32.mrb[0].mxu0
      %10133 = vmatprep.mubr.bf16.mxu0 %v9821
      %10134 = vmatmul.mubr.bf16.gmra.mrb[0].mxu0 %v9773
      %v10135 = vpop.f32.mrb[0].mxu0
      %v10136 = vadd.f32 %v9879, %v10135
      %v10137 = vpop.f32.mrb[0].mxu0
      %v10138 = vpop.f32.mrb[0].mxu0
      %v10139 = vadd.f32 %v9879, %v10138
      %v10140 = vpop.f32.mrb[0].mxu0
      %10141 = vmatprep.mubr.bf16.mxu0 %v9824
      %10142 = vmatmul.mubr.bf16.gmra.mrb[0].mxu0 %v9776
      %v10143 = vpop.f32.mrb[0].mxu0
      %v10144 = vadd.f32 %v9879, %v10143
      %v10145 = vpop.f32.mrb[0].mxu0
      %v10146 = vpop.f32.mrb[0].mxu0
      %v10147 = vadd.f32 %v9879, %v10146
      %v10148 = vpop.f32.mrb[0].mxu0
      %10149 = vmatprep.mubr.bf16.mxu0 %v9827
      %10150 = vmatmul.mubr.bf16.gmra.mrb[0].mxu0 %v9779
      %v10151 = vpop.f32.mrb[0].mxu0
      %v10152 = vadd.f32 %v9879, %v10151
      %v10153 = vpop.f32.mrb[0].mxu0
      %v10154 = vpop.f32.mrb[0].mxu0
      %v10155 = vadd.f32 %v9879, %v10154
      %v10156 = vpop.f32.mrb[0].mxu0
      %10157 = vmatprep.mubr.bf16.mxu0 %v9830
      %10158 = vmatmul.mubr.bf16.gmra.mrb[0].mxu0 %v9782
      %v10159 = vpop.f32.mrb[0].mxu0
      %v10160 = vadd.f32 %v9879, %v10159
      %v10161 = vpop.f32.mrb[0].mxu0
      %v10162 = vpop.f32.mrb[0].mxu0
      %v10163 = vadd.f32 %v9879, %v10162
      %v10164 = vpop.f32.mrb[0].mxu0
      %10165 = vmatprep.mubr.bf16.mxu0 %v9833
      %10166 = vmatmul.mubr.bf16.gmra.mrb[0].mxu0 %v9785
      %v10167 = vpop.f32.mrb[0].mxu0
      %v10168 = vadd.f32 %v9879, %v10167
      %v10169 = vpop.f32.mrb[0].mxu0
      %v10170 = vpop.f32.mrb[0].mxu0
      %v10171 = vadd.f32 %v9879, %v10170
      %v10172 = vpop.f32.mrb[0].mxu0
      %10173 = vmatprep.mubr.bf16.mxu0 %v9836
      %10174 = vmatmul.mubr.bf16.gmra.mrb[0].mxu0 %v9788
      %v10175 = vpop.f32.mrb[0].mxu0
      %v10176 = vadd.f32 %v9879, %v10175
      %v10177 = vpop.f32.mrb[0].mxu0
      %v10178 = vpop.f32.mrb[0].mxu0
      %v10179 = vadd.f32 %v9879, %v10178
      %v10180 = vpop.f32.mrb[0].mxu0
      %10181 = vdwg.mxu0
      %10182 = vmatprep.subr.bf16.mxu0 0
      %10183 = vmatpush1.bf16.msra.mxu0 %v9969
      %10184 = vmatprep.subr.bf16.mxu0 0
      %10185 = vmatpush1.bf16.msra.mxu0 %v9970
      %10186 = vmatprep.subr.bf16.mxu0 0
      %10187 = vmatpush1.bf16.msra.mxu0 0
      %10188 = vmatprep.subr.bf16.mxu0 0
      %10189 = vmatpush1.bf16.msra.mxu0 0
      %10190 = vmatprep.subr.bf16.mxu0 0
      %10191 = vmatpush1.bf16.msra.mxu0 0
      %10192 = vmatprep.subr.bf16.mxu0 0
      %10193 = vmatpush1.bf16.msra.mxu0 0
      %10194 = vmatprep.subr.bf16.mxu0 0
      %10195 = vmatpush1.bf16.msra.mxu0 0
      %10196 = vmatprep.subr.bf16.mxu0 0
      %10197 = vmatpush1.bf16.msra.mxu0 0
      %10198 = vmatprep.subr.bf16.mxu0 0
      %10199 = vmatpush1.bf16.msra.mxu0 0
      %10200 = vmatprep.subr.bf16.mxu0 0
      %10201 = vmatpush1.bf16.msra.mxu0 0
      %10202 = vmatprep.subr.bf16.mxu0 0
      %10203 = vmatpush1.bf16.msra.mxu0 0
      %10204 = vmatprep.subr.bf16.mxu0 0
      %10205 = vmatpush1.bf16.msra.mxu0 0
      %10206 = vmatprep.subr.bf16.mxu0 0
      %10207 = vmatpush1.bf16.msra.mxu0 0
      %10208 = vmatprep.subr.bf16.mxu0 0
      %10209 = vmatpush1.bf16.msra.mxu0 0
      %10210 = vmatprep.subr.bf16.mxu0 0
      %10211 = vmatpush1.bf16.msra.mxu0 0
      %10212 = vmatprep.subr.bf16.mxu0 0
      %10213 = vmatpush1.bf16.msra.mxu0 0
      %10214 = vmatprep.mubr.bf16.mxu0 0
      %10215 = vmatmul.mubr.bf16.gmra.mrb[0].mxu0 %v9989
      %v10216 = vpop.f32.mrb[0].mxu0
      %v10217 = vadd.f32 %v10056, %v10216
      %v10218 = vpop.f32.mrb[0].mxu0
      %v10219 = vpop.f32.mrb[0].mxu0
      %v10220 = vadd.f32 %v10059, %v10219
      %v10221 = vpop.f32.mrb[0].mxu0
      %10222 = vmatprep.mubr.bf16.mxu0 0
      %10223 = vmatmul.mubr.bf16.gmra.mrb[0].mxu0 %v9991
      %v10224 = vpop.f32.mrb[0].mxu0
      %v10225 = vadd.f32 %v10064, %v10224
      %v10226 = vpop.f32.mrb[0].mxu0
      %v10227 = vpop.f32.mrb[0].mxu0
      %v10228 = vadd.f32 %v10067, %v10227
      %v10229 = vpop.f32.mrb[0].mxu0
      %10230 = vmatprep.mubr.bf16.mxu0 0
      %10231 = vmatmul.mubr.bf16.gmra.mrb[0].mxu0 %v9993
      %v10232 = vpop.f32.mrb[0].mxu0
      %v10233 = vadd.f32 %v10072, %v10232
      %v10234 = vpop.f32.mrb[0].mxu0
      %v10235 = vpop.f32.mrb[0].mxu0
      %v10236 = vadd.f32 %v10075, %v10235
      %v10237 = vpop.f32.mrb[0].mxu0
      %10238 = vmatprep.mubr.bf16.mxu0 0
      %10239 = vmatmul.mubr.bf16.gmra.mrb[0].mxu0 %v9995
      %v10240 = vpop.f32.mrb[0].mxu0
      %v10241 = vadd.f32 %v10080, %v10240
      %v10242 = vpop.f32.mrb[0].mxu0
      %v10243 = vpop.f32.mrb[0].mxu0
      %v10244 = vadd.f32 %v10083, %v10243
      %v10245 = vpop.f32.mrb[0].mxu0
      %10246 = vmatprep.mubr.bf16.mxu0 0
      %10247 = vmatmul.mubr.bf16.gmra.mrb[0].mxu0 %v9997
      %v10248 = vpop.f32.mrb[0].mxu0
      %v10249 = vadd.f32 %v10088, %v10248
      %v10250 = vpop.f32.mrb[0].mxu0
      %v10251 = vpop.f32.mrb[0].mxu0
      %v10252 = vadd.f32 %v10091, %v10251
      %v10253 = vpop.f32.mrb[0].mxu0
      %10254 = vmatprep.mubr.bf16.mxu0 0
      %10255 = vmatmul.mubr.bf16.gmra.mrb[0].mxu0 %v9999
      %v10256 = vpop.f32.mrb[0].mxu0
      %v10257 = vadd.f32 %v10096, %v10256
      %v10258 = vpop.f32.mrb[0].mxu0
      %v10259 = vpop.f32.mrb[0].mxu0
      %v10260 = vadd.f32 %v10099, %v10259
      %v10261 = vpop.f32.mrb[0].mxu0
      %10262 = vmatprep.mubr.bf16.mxu0 0
      %10263 = vmatmul.mubr.bf16.gmra.mrb[0].mxu0 %v10001
      %v10264 = vpop.f32.mrb[0].mxu0
      %v10265 = vadd.f32 %v10104, %v10264
      %v10266 = vpop.f32.mrb[0].mxu0
      %v10267 = vpop.f32.mrb[0].mxu0
      %v10268 = vadd.f32 %v10107, %v10267
      %v10269 = vpop.f32.mrb[0].mxu0
      %10270 = vmatprep.mubr.bf16.mxu0 0
      %10271 = vmatmul.mubr.bf16.gmra.mrb[0].mxu0 %v10003
      %v10272 = vpop.f32.mrb[0].mxu0
      %v10273 = vadd.f32 %v10112, %v10272
      %v10274 = vpop.f32.mrb[0].mxu0
      %v10275 = vpop.f32.mrb[0].mxu0
      %v10276 = vadd.f32 %v10115, %v10275
      %v10277 = vpop.f32.mrb[0].mxu0
      %10278 = vmatprep.mubr.bf16.mxu0 0
      %10279 = vmatmul.mubr.bf16.gmra.mrb[0].mxu0 %v10005
      %v10280 = vpop.f32.mrb[0].mxu0
      %v10281 = vadd.f32 %v10120, %v10280
      %v10282 = vpop.f32.mrb[0].mxu0
      %v10283 = vpop.f32.mrb[0].mxu0
      %v10284 = vadd.f32 %v10123, %v10283
      %v10285 = vpop.f32.mrb[0].mxu0
      %10286 = vmatprep.mubr.bf16.mxu0 0
      %10287 = vmatmul.mubr.bf16.gmra.mrb[0].mxu0 %v10007
      %v10288 = vpop.f32.mrb[0].mxu0
      %v10289 = vadd.f32 %v10128, %v10288
      %v10290 = vpop.f32.mrb[0].mxu0
      %v10291 = vpop.f32.mrb[0].mxu0
      %v10292 = vadd.f32 %v10131, %v10291
      %v10293 = vpop.f32.mrb[0].mxu0
      %10294 = vmatprep.mubr.bf16.mxu0 0
      %10295 = vmatmul.mubr.bf16.gmra.mrb[0].mxu0 %v10009
      %v10296 = vpop.f32.mrb[0].mxu0
      %v10297 = vadd.f32 %v10136, %v10296
      %v10298 = vpop.f32.mrb[0].mxu0
      %v10299 = vpop.f32.mrb[0].mxu0
      %v10300 = vadd.f32 %v10139, %v10299
      %v10301 = vpop.f32.mrb[0].mxu0
      %10302 = vmatprep.mubr.bf16.mxu0 0
      %10303 = vmatmul.mubr.bf16.gmra.mrb[0].mxu0 %v10011
      %v10304 = vpop.f32.mrb[0].mxu0
      %v10305 = vadd.f32 %v10144, %v10304
      %v10306 = vpop.f32.mrb[0].mxu0
      %v10307 = vpop.f32.mrb[0].mxu0
      %v10308 = vadd.f32 %v10147, %v10307
      %v10309 = vpop.f32.mrb[0].mxu0
      %10310 = vmatprep.mubr.bf16.mxu0 0
      %10311 = vmatmul.mubr.bf16.gmra.mrb[0].mxu0 %v10013
      %v10312 = vpop.f32.mrb[0].mxu0
      %v10313 = vadd.f32 %v10152, %v10312
      %v10314 = vpop.f32.mrb[0].mxu0
      %v10315 = vpop.f32.mrb[0].mxu0
      %v10316 = vadd.f32 %v10155, %v10315
      %v10317 = vpop.f32.mrb[0].mxu0
      %10318 = vmatprep.mubr.bf16.mxu0 0
      %10319 = vmatmul.mubr.bf16.gmra.mrb[0].mxu0 %v10015
      %v10320 = vpop.f32.mrb[0].mxu0
      %v10321 = vadd.f32 %v10160, %v10320
      %v10322 = vpop.f32.mrb[0].mxu0
      %v10323 = vpop.f32.mrb[0].mxu0
      %v10324 = vadd.f32 %v10163, %v10323
      %v10325 = vpop.f32.mrb[0].mxu0
      %10326 = vmatprep.mubr.bf16.mxu0 0
      %10327 = vmatmul.mubr.bf16.gmra.mrb[0].mxu0 %v10017
      %v10328 = vpop.f32.mrb[0].mxu0
      %v10329 = vadd.f32 %v10168, %v10328
      %v10330 = vpop.f32.mrb[0].mxu0
      %v10331 = vpop.f32.mrb[0].mxu0
      %v10332 = vadd.f32 %v10171, %v10331
      %v10333 = vpop.f32.mrb[0].mxu0
      %10334 = vmatprep.mubr.bf16.mxu0 0
      %10335 = vmatmul.mubr.bf16.gmra.mrb[0].mxu0 %v10019
      %v10336 = vpop.f32.mrb[0].mxu0
      %v10337 = vadd.f32 %v10176, %v10336
      %v10338 = vpop.f32.mrb[0].mxu0
      %v10339 = vpop.f32.mrb[0].mxu0
      %v10340 = vadd.f32 %v10179, %v10339
      %v10341 = vpop.f32.mrb[0].mxu0
      %10342 = vdwg.mxu0
      %v10343 = vadd.f32 %v967, %v10217
      %v10344 = vadd.f32 %v1103, %v10220
      %v10345 = vadd.f32 %v968, %v10225
      %v10346 = vadd.f32 %v1104, %v10228
      %v10347 = vadd.f32 %v969, %v10233
      %v10348 = vadd.f32 %v1105, %v10236
      %v10349 = vadd.f32 %v970, %v10241
      %v10350 = vadd.f32 %v1106, %v10244
      %v10351 = vadd.f32 %v971, %v10249
      %v10352 = vadd.f32 %v1107, %v10252
      %v10353 = vadd.f32 %v972, %v10257
      %v10354 = vadd.f32 %v1108, %v10260
      %v10355 = vadd.f32 %v973, %v10265
      %v10356 = vadd.f32 %v1109, %v10268
      %v10357 = vadd.f32 %v974, %v10273
      %v10358 = vadd.f32 %v1110, %v10276
      %v10359 = vadd.f32 %v1239, %v10281
      %v10360 = vadd.f32 %v1375, %v10284
      %v10361 = vadd.f32 %v1240, %v10289
      %v10362 = vadd.f32 %v1376, %v10292
      %v10363 = vadd.f32 %v1241, %v10297
      %v10364 = vadd.f32 %v1377, %v10300
      %v10365 = vadd.f32 %v1242, %v10305
      %v10366 = vadd.f32 %v1378, %v10308
      %v10367 = vadd.f32 %v1243, %v10313
      %v10368 = vadd.f32 %v1379, %v10316
      %v10369 = vadd.f32 %v1244, %v10321
      %v10370 = vadd.f32 %v1380, %v10324
      %v10371 = vadd.f32 %v1245, %v10329
      %v10372 = vadd.f32 %v1381, %v10332
      %v10373 = vadd.f32 %v1246, %v10337
      %v10374 = vadd.f32 %v1382, %v10340
      %v10375 = vmul.f32 %v10343, 0.25
      %v10376 = vmul.f32 %v10344, 0.25
      %v10377 = vmul.f32 %v10345, 0.25
      %v10378 = vmul.f32 %v10346, 0.25
      %v10379 = vmul.f32 %v10347, 0.25
      %v10380 = vmul.f32 %v10348, 0.25
      %v10381 = vmul.f32 %v10349, 0.25
      %v10382 = vmul.f32 %v10350, 0.25
      %v10383 = vmul.f32 %v10351, 0.25
      %v10384 = vmul.f32 %v10352, 0.25
      %v10385 = vmul.f32 %v10353, 0.25
      %v10386 = vmul.f32 %v10354, 0.25
      %v10387 = vmul.f32 %v10355, 0.25
      %v10388 = vmul.f32 %v10356, 0.25
      %v10389 = vmul.f32 %v10357, 0.25
      %v10390 = vmul.f32 %v10358, 0.25
      %v10391 = vmul.f32 %v10359, 0.25
      %v10392 = vmul.f32 %v10360, 0.25
      %v10393 = vmul.f32 %v10361, 0.25
      %v10394 = vmul.f32 %v10362, 0.25
      %v10395 = vmul.f32 %v10363, 0.25
      %v10396 = vmul.f32 %v10364, 0.25
      %v10397 = vmul.f32 %v10365, 0.25
      %v10398 = vmul.f32 %v10366, 0.25
      %v10399 = vmul.f32 %v10367, 0.25
      %v10400 = vmul.f32 %v10368, 0.25
      %v10401 = vmul.f32 %v10369, 0.25
      %v10402 = vmul.f32 %v10370, 0.25
      %v10403 = vmul.f32 %v10371, 0.25
      %v10404 = vmul.f32 %v10372, 0.25
      %v10405 = vmul.f32 %v10373, 0.25
      %v10406 = vmul.f32 %v10374, 0.25
      %v10407 = vtanh.pop %v10375
      %v10408 = vtanh.pop %v10376
      %v10409 = vtanh.pop %v10377
      %v10410 = vtanh.pop %v10378
      %v10411 = vtanh.pop %v10379
      %v10412 = vtanh.pop %v10380
      %v10413 = vtanh.pop %v10381
      %v10414 = vtanh.pop %v10382
      %v10415 = vtanh.pop %v10383
      %v10416 = vtanh.pop %v10384
      %v10417 = vtanh.pop %v10385
      %v10418 = vtanh.pop %v10386
      %v10419 = vtanh.pop %v10387
      %v10420 = vtanh.pop %v10388
      %v10421 = vtanh.pop %v10389
      %v10422 = vtanh.pop %v10390
      %v10423 = vtanh.pop %v10391
      %v10424 = vtanh.pop %v10392
      %v10425 = vtanh.pop %v10393
      %v10426 = vtanh.pop %v10394
      %v10427 = vtanh.pop %v10395
      %v10428 = vtanh.pop %v10396
      %v10429 = vtanh.pop %v10397
      %v10430 = vtanh.pop %v10398
      %v10431 = vtanh.pop %v10399
      %v10432 = vtanh.pop %v10400
      %v10433 = vtanh.pop %v10401
      %v10434 = vtanh.pop %v10402
      %v10435 = vtanh.pop %v10403
      %v10436 = vtanh.pop %v10404
      %v10437 = vtanh.pop %v10405
      %v10438 = vtanh.pop %v10406
      %v10439 = vmul.f32 %v10407, 4.0
      %v10440 = vmul.f32 %v10408, 4.0
      %v10441 = vmul.f32 %v10409, 4.0
      %v10442 = vmul.f32 %v10410, 4.0
      %v10443 = vmul.f32 %v10411, 4.0
      %v10444 = vmul.f32 %v10412, 4.0
      %v10445 = vmul.f32 %v10413, 4.0
      %v10446 = vmul.f32 %v10414, 4.0
      %v10447 = vmul.f32 %v10415, 4.0
      %v10448 = vmul.f32 %v10416, 4.0
      %v10449 = vmul.f32 %v10417, 4.0
      %v10450 = vmul.f32 %v10418, 4.0
      %v10451 = vmul.f32 %v10419, 4.0
      %v10452 = vmul.f32 %v10420, 4.0
      %v10453 = vmul.f32 %v10421, 4.0
      %v10454 = vmul.f32 %v10422, 4.0
      %v10455 = vmul.f32 %v10423, 4.0
      %v10456 = vmul.f32 %v10424, 4.0
      %v10457 = vmul.f32 %v10425, 4.0
      %v10458 = vmul.f32 %v10426, 4.0
      %v10459 = vmul.f32 %v10427, 4.0
      %v10460 = vmul.f32 %v10428, 4.0
      %v10461 = vmul.f32 %v10429, 4.0
      %v10462 = vmul.f32 %v10430, 4.0
      %v10463 = vmul.f32 %v10431, 4.0
      %v10464 = vmul.f32 %v10432, 4.0
      %v10465 = vmul.f32 %v10433, 4.0
      %v10466 = vmul.f32 %v10434, 4.0
      %v10467 = vmul.f32 %v10435, 4.0
      %v10468 = vmul.f32 %v10436, 4.0
      %v10469 = vmul.f32 %v10437, 4.0
      %v10470 = vmul.f32 %v10438, 4.0
      %v10471 = vcombine.low %v10439, %v10443
      %v10472 = vcombine.high %v10439, %v10443
      %v10474 = vunpack.c.l.s4 1983009808
      %v10475 = vunpack.c.0.s8 %v10474
      %v10476 = vlaneseq
      %v10477 = vshrl.u32 %v10476, 7
      %v10478 = vsub.s32 %v10475, %v10477
      %v10479 = vrot.slane %v10471, %v10478
      %v10481 = vunpack.c.l.s4 1983009808
      %v10482 = vunpack.c.0.s8 %v10481
      %v10483 = vlaneseq
      %v10484 = vshrl.u32 %v10483, 7
      %v10485 = vsub.s32 %v10482, %v10484
      %v10486 = vrot.slane %v10472, %v10485
      %v10487 = vcombine.low %v10441, %v10445
      %v10488 = vcombine.high %v10441, %v10445
      %v10490 = vunpack.c.l.s4 1983009808
      %v10491 = vunpack.c.0.s8 %v10490
      %v10492 = vlaneseq
      %v10493 = vshrl.u32 %v10492, 7
      %v10494 = vsub.s32 %v10491, %v10493
      %v10495 = vrot.slane %v10487, %v10494
      %v10497 = vunpack.c.l.s4 1983009808
      %v10498 = vunpack.c.0.s8 %v10497
      %v10499 = vlaneseq
      %v10500 = vshrl.u32 %v10499, 7
      %v10501 = vsub.s32 %v10498, %v10500
      %v10502 = vrot.slane %v10488, %v10501
      %v10503 = vcombine.low %v10447, %v10451
      %v10504 = vcombine.high %v10447, %v10451
      %v10506 = vunpack.c.l.s4 1983009808
      %v10507 = vunpack.c.0.s8 %v10506
      %v10508 = vlaneseq
      %v10509 = vshrl.u32 %v10508, 7
      %v10510 = vsub.s32 %v10507, %v10509
      %v10511 = vrot.slane %v10503, %v10510
      %v10513 = vunpack.c.l.s4 1983009808
      %v10514 = vunpack.c.0.s8 %v10513
      %v10515 = vlaneseq
      %v10516 = vshrl.u32 %v10515, 7
      %v10517 = vsub.s32 %v10514, %v10516
      %v10518 = vrot.slane %v10504, %v10517
      %v10519 = vcombine.low %v10449, %v10453
      %v10520 = vcombine.high %v10449, %v10453
      %v10522 = vunpack.c.l.s4 1983009808
      %v10523 = vunpack.c.0.s8 %v10522
      %v10524 = vlaneseq
      %v10525 = vshrl.u32 %v10524, 7
      %v10526 = vsub.s32 %v10523, %v10525
      %v10527 = vrot.slane %v10519, %v10526
      %v10529 = vunpack.c.l.s4 1983009808
      %v10530 = vunpack.c.0.s8 %v10529
      %v10531 = vlaneseq
      %v10532 = vshrl.u32 %v10531, 7
      %v10533 = vsub.s32 %v10530, %v10532
      %v10534 = vrot.slane %v10520, %v10533
      %v10535 = vcombine.low %v10479, %v10495
      %v10536 = vcombine.high %v10479, %v10495
      %v10538 = vunpack.c.l.s4 1934713408
      %v10539 = vunpack.c.0.s8 %v10538
      %v10540 = vlaneseq
      %v10541 = vshrl.u32 %v10540, 7
      %v10542 = vsub.s32 %v10539, %v10541
      %v10543 = vrot.slane %v10535, %v10542
      %v10545 = vunpack.c.l.s4 1934713408
      %v10546 = vunpack.c.0.s8 %v10545
      %v10547 = vlaneseq
      %v10548 = vshrl.u32 %v10547, 7
      %v10549 = vsub.s32 %v10546, %v10548
      %v10550 = vrot.slane %v10536, %v10549
      %v10551 = vcombine.low %v10486, %v10502
      %v10552 = vcombine.high %v10486, %v10502
      %v10554 = vunpack.c.l.s4 1934713408
      %v10555 = vunpack.c.0.s8 %v10554
      %v10556 = vlaneseq
      %v10557 = vshrl.u32 %v10556, 7
      %v10558 = vsub.s32 %v10555, %v10557
      %v10559 = vrot.slane %v10551, %v10558
      %v10561 = vunpack.c.l.s4 1934713408
      %v10562 = vunpack.c.0.s8 %v10561
      %v10563 = vlaneseq
      %v10564 = vshrl.u32 %v10563, 7
      %v10565 = vsub.s32 %v10562, %v10564
      %v10566 = vrot.slane %v10552, %v10565
      %v10567 = vcombine.low %v10511, %v10527
      %v10568 = vcombine.high %v10511, %v10527
      %v10570 = vunpack.c.l.s4 1934713408
      %v10571 = vunpack.c.0.s8 %v10570
      %v10572 = vlaneseq
      %v10573 = vshrl.u32 %v10572, 7
      %v10574 = vsub.s32 %v10571, %v10573
      %v10575 = vrot.slane %v10567, %v10574
      %v10577 = vunpack.c.l.s4 1934713408
      %v10578 = vunpack.c.0.s8 %v10577
      %v10579 = vlaneseq
      %v10580 = vshrl.u32 %v10579, 7
      %v10581 = vsub.s32 %v10578, %v10580
      %v10582 = vrot.slane %v10568, %v10581
      %v10583 = vcombine.low %v10518, %v10534
      %v10584 = vcombine.high %v10518, %v10534
      %v10586 = vunpack.c.l.s4 1934713408
      %v10587 = vunpack.c.0.s8 %v10586
      %v10588 = vlaneseq
      %v10589 = vshrl.u32 %v10588, 7
      %v10590 = vsub.s32 %v10587, %v10589
      %v10591 = vrot.slane %v10583, %v10590
      %v10593 = vunpack.c.l.s4 1934713408
      %v10594 = vunpack.c.0.s8 %v10593
      %v10595 = vlaneseq
      %v10596 = vshrl.u32 %v10595, 7
      %v10597 = vsub.s32 %v10594, %v10596
      %v10598 = vrot.slane %v10584, %v10597
      %v10599 = vcombine.low %v10543, %v10575
      %v10600 = vcombine.high %v10543, %v10575
      %v10601 = vcombine.low %v10550, %v10582
      %v10602 = vcombine.high %v10550, %v10582
      %v10603 = vcombine.low %v10559, %v10591
      %v10604 = vcombine.high %v10559, %v10591
      %v10605 = vcombine.low %v10566, %v10598
      %v10606 = vcombine.high %v10566, %v10598
      %v10607 = vcombine.low %v10455, %v10459
      %v10608 = vcombine.high %v10455, %v10459
      %v10610 = vunpack.c.l.s4 1983009808
      %v10611 = vunpack.c.0.s8 %v10610
      %v10612 = vlaneseq
      %v10613 = vshrl.u32 %v10612, 7
      %v10614 = vsub.s32 %v10611, %v10613
      %v10615 = vrot.slane %v10607, %v10614
      %v10617 = vunpack.c.l.s4 1983009808
      %v10618 = vunpack.c.0.s8 %v10617
      %v10619 = vlaneseq
      %v10620 = vshrl.u32 %v10619, 7
      %v10621 = vsub.s32 %v10618, %v10620
      %v10622 = vrot.slane %v10608, %v10621
      %v10623 = vcombine.low %v10457, %v10461
      %v10624 = vcombine.high %v10457, %v10461
      %v10626 = vunpack.c.l.s4 1983009808
      %v10627 = vunpack.c.0.s8 %v10626
      %v10628 = vlaneseq
      %v10629 = vshrl.u32 %v10628, 7
      %v10630 = vsub.s32 %v10627, %v10629
      %v10631 = vrot.slane %v10623, %v10630
      %v10633 = vunpack.c.l.s4 1983009808
      %v10634 = vunpack.c.0.s8 %v10633
      %v10635 = vlaneseq
      %v10636 = vshrl.u32 %v10635, 7
      %v10637 = vsub.s32 %v10634, %v10636
      %v10638 = vrot.slane %v10624, %v10637
      %v10639 = vcombine.low %v10463, %v10467
      %v10640 = vcombine.high %v10463, %v10467
      %v10642 = vunpack.c.l.s4 1983009808
      %v10643 = vunpack.c.0.s8 %v10642
      %v10644 = vlaneseq
      %v10645 = vshrl.u32 %v10644, 7
      %v10646 = vsub.s32 %v10643, %v10645
      %v10647 = vrot.slane %v10639, %v10646
      %v10649 = vunpack.c.l.s4 1983009808
      %v10650 = vunpack.c.0.s8 %v10649
      %v10651 = vlaneseq
      %v10652 = vshrl.u32 %v10651, 7
      %v10653 = vsub.s32 %v10650, %v10652
      %v10654 = vrot.slane %v10640, %v10653
      %v10655 = vcombine.low %v10465, %v10469
      %v10656 = vcombine.high %v10465, %v10469
      %v10658 = vunpack.c.l.s4 1983009808
      %v10659 = vunpack.c.0.s8 %v10658
      %v10660 = vlaneseq
      %v10661 = vshrl.u32 %v10660, 7
      %v10662 = vsub.s32 %v10659, %v10661
      %v10663 = vrot.slane %v10655, %v10662
      %v10665 = vunpack.c.l.s4 1983009808
      %v10666 = vunpack.c.0.s8 %v10665
      %v10667 = vlaneseq
      %v10668 = vshrl.u32 %v10667, 7
      %v10669 = vsub.s32 %v10666, %v10668
      %v10670 = vrot.slane %v10656, %v10669
      %v10671 = vcombine.low %v10615, %v10631
      %v10672 = vcombine.high %v10615, %v10631
      %v10674 = vunpack.c.l.s4 1934713408
      %v10675 = vunpack.c.0.s8 %v10674
      %v10676 = vlaneseq
      %v10677 = vshrl.u32 %v10676, 7
      %v10678 = vsub.s32 %v10675, %v10677
      %v10679 = vrot.slane %v10671, %v10678
      %v10681 = vunpack.c.l.s4 1934713408
      %v10682 = vunpack.c.0.s8 %v10681
      %v10683 = vlaneseq
      %v10684 = vshrl.u32 %v10683, 7
      %v10685 = vsub.s32 %v10682, %v10684
      %v10686 = vrot.slane %v10672, %v10685
      %v10687 = vcombine.low %v10622, %v10638
      %v10688 = vcombine.high %v10622, %v10638
      %v10690 = vunpack.c.l.s4 1934713408
      %v10691 = vunpack.c.0.s8 %v10690
      %v10692 = vlaneseq
      %v10693 = vshrl.u32 %v10692, 7
      %v10694 = vsub.s32 %v10691, %v10693
      %v10695 = vrot.slane %v10687, %v10694
      %v10697 = vunpack.c.l.s4 1934713408
      %v10698 = vunpack.c.0.s8 %v10697
      %v10699 = vlaneseq
      %v10700 = vshrl.u32 %v10699, 7
      %v10701 = vsub.s32 %v10698, %v10700
      %v10702 = vrot.slane %v10688, %v10701
      %v10703 = vcombine.low %v10647, %v10663
      %v10704 = vcombine.high %v10647, %v10663
      %v10706 = vunpack.c.l.s4 1934713408
      %v10707 = vunpack.c.0.s8 %v10706
      %v10708 = vlaneseq
      %v10709 = vshrl.u32 %v10708, 7
      %v10710 = vsub.s32 %v10707, %v10709
      %v10711 = vrot.slane %v10703, %v10710
      %v10713 = vunpack.c.l.s4 1934713408
      %v10714 = vunpack.c.0.s8 %v10713
      %v10715 = vlaneseq
      %v10716 = vshrl.u32 %v10715, 7
      %v10717 = vsub.s32 %v10714, %v10716
      %v10718 = vrot.slane %v10704, %v10717
      %v10719 = vcombine.low %v10654, %v10670
      %v10720 = vcombine.high %v10654, %v10670
      %v10722 = vunpack.c.l.s4 1934713408
      %v10723 = vunpack.c.0.s8 %v10722
      %v10724 = vlaneseq
      %v10725 = vshrl.u32 %v10724, 7
      %v10726 = vsub.s32 %v10723, %v10725
      %v10727 = vrot.slane %v10719, %v10726
      %v10729 = vunpack.c.l.s4 1934713408
      %v10730 = vunpack.c.0.s8 %v10729
      %v10731 = vlaneseq
      %v10732 = vshrl.u32 %v10731, 7
      %v10733 = vsub.s32 %v10730, %v10732
      %v10734 = vrot.slane %v10720, %v10733
      %v10735 = vcombine.low %v10679, %v10711
      %v10736 = vcombine.high %v10679, %v10711
      %v10737 = vcombine.low %v10686, %v10718
      %v10738 = vcombine.high %v10686, %v10718
      %v10739 = vcombine.low %v10695, %v10727
      %v10740 = vcombine.high %v10695, %v10727
      %v10741 = vcombine.low %v10702, %v10734
      %v10742 = vcombine.high %v10702, %v10734
      %v10743 = vcombine.low %v10440, %v10444
      %v10744 = vcombine.high %v10440, %v10444
      %v10746 = vunpack.c.l.s4 1983009808
      %v10747 = vunpack.c.0.s8 %v10746
      %v10748 = vlaneseq
      %v10749 = vshrl.u32 %v10748, 7
      %v10750 = vsub.s32 %v10747, %v10749
      %v10751 = vrot.slane %v10743, %v10750
      %v10753 = vunpack.c.l.s4 1983009808
      %v10754 = vunpack.c.0.s8 %v10753
      %v10755 = vlaneseq
      %v10756 = vshrl.u32 %v10755, 7
      %v10757 = vsub.s32 %v10754, %v10756
      %v10758 = vrot.slane %v10744, %v10757
      %v10759 = vcombine.low %v10442, %v10446
      %v10760 = vcombine.high %v10442, %v10446
      %v10762 = vunpack.c.l.s4 1983009808
      %v10763 = vunpack.c.0.s8 %v10762
      %v10764 = vlaneseq
      %v10765 = vshrl.u32 %v10764, 7
      %v10766 = vsub.s32 %v10763, %v10765
      %v10767 = vrot.slane %v10759, %v10766
      %v10769 = vunpack.c.l.s4 1983009808
      %v10770 = vunpack.c.0.s8 %v10769
      %v10771 = vlaneseq
      %v10772 = vshrl.u32 %v10771, 7
      %v10773 = vsub.s32 %v10770, %v10772
      %v10774 = vrot.slane %v10760, %v10773
      %v10775 = vcombine.low %v10448, %v10452
      %v10776 = vcombine.high %v10448, %v10452
      %v10778 = vunpack.c.l.s4 1983009808
      %v10779 = vunpack.c.0.s8 %v10778
      %v10780 = vlaneseq
      %v10781 = vshrl.u32 %v10780, 7
      %v10782 = vsub.s32 %v10779, %v10781
      %v10783 = vrot.slane %v10775, %v10782
      %v10785 = vunpack.c.l.s4 1983009808
      %v10786 = vunpack.c.0.s8 %v10785
      %v10787 = vlaneseq
      %v10788 = vshrl.u32 %v10787, 7
      %v10789 = vsub.s32 %v10786, %v10788
      %v10790 = vrot.slane %v10776, %v10789
      %v10791 = vcombine.low %v10450, %v10454
      %v10792 = vcombine.high %v10450, %v10454
      %v10794 = vunpack.c.l.s4 1983009808
      %v10795 = vunpack.c.0.s8 %v10794
      %v10796 = vlaneseq
      %v10797 = vshrl.u32 %v10796, 7
      %v10798 = vsub.s32 %v10795, %v10797
      %v10799 = vrot.slane %v10791, %v10798
      %v10801 = vunpack.c.l.s4 1983009808
      %v10802 = vunpack.c.0.s8 %v10801
      %v10803 = vlaneseq
      %v10804 = vshrl.u32 %v10803, 7
      %v10805 = vsub.s32 %v10802, %v10804
      %v10806 = vrot.slane %v10792, %v10805
      %v10807 = vcombine.low %v10751, %v10767
      %v10808 = vcombine.high %v10751, %v10767
      %v10810 = vunpack.c.l.s4 1934713408
      %v10811 = vunpack.c.0.s8 %v10810
      %v10812 = vlaneseq
      %v10813 = vshrl.u32 %v10812, 7
      %v10814 = vsub.s32 %v10811, %v10813
      %v10815 = vrot.slane %v10807, %v10814
      %v10817 = vunpack.c.l.s4 1934713408
      %v10818 = vunpack.c.0.s8 %v10817
      %v10819 = vlaneseq
      %v10820 = vshrl.u32 %v10819, 7
      %v10821 = vsub.s32 %v10818, %v10820
      %v10822 = vrot.slane %v10808, %v10821
      %v10823 = vcombine.low %v10758, %v10774
      %v10824 = vcombine.high %v10758, %v10774
      %v10826 = vunpack.c.l.s4 1934713408
      %v10827 = vunpack.c.0.s8 %v10826
      %v10828 = vlaneseq
      %v10829 = vshrl.u32 %v10828, 7
      %v10830 = vsub.s32 %v10827, %v10829
      %v10831 = vrot.slane %v10823, %v10830
      %v10833 = vunpack.c.l.s4 1934713408
      %v10834 = vunpack.c.0.s8 %v10833
      %v10835 = vlaneseq
      %v10836 = vshrl.u32 %v10835, 7
      %v10837 = vsub.s32 %v10834, %v10836
      %v10838 = vrot.slane %v10824, %v10837
      %v10839 = vcombine.low %v10783, %v10799
      %v10840 = vcombine.high %v10783, %v10799
      %v10842 = vunpack.c.l.s4 1934713408
      %v10843 = vunpack.c.0.s8 %v10842
      %v10844 = vlaneseq
      %v10845 = vshrl.u32 %v10844, 7
      %v10846 = vsub.s32 %v10843, %v10845
      %v10847 = vrot.slane %v10839, %v10846
      %v10849 = vunpack.c.l.s4 1934713408
      %v10850 = vunpack.c.0.s8 %v10849
      %v10851 = vlaneseq
      %v10852 = vshrl.u32 %v10851, 7
      %v10853 = vsub.s32 %v10850, %v10852
      %v10854 = vrot.slane %v10840, %v10853
      %v10855 = vcombine.low %v10790, %v10806
      %v10856 = vcombine.high %v10790, %v10806
      %v10858 = vunpack.c.l.s4 1934713408
      %v10859 = vunpack.c.0.s8 %v10858
      %v10860 = vlaneseq
      %v10861 = vshrl.u32 %v10860, 7
      %v10862 = vsub.s32 %v10859, %v10861
      %v10863 = vrot.slane %v10855, %v10862
      %v10865 = vunpack.c.l.s4 1934713408
      %v10866 = vunpack.c.0.s8 %v10865
      %v10867 = vlaneseq
      %v10868 = vshrl.u32 %v10867, 7
      %v10869 = vsub.s32 %v10866, %v10868
      %v10870 = vrot.slane %v10856, %v10869
      %v10871 = vcombine.low %v10815, %v10847
      %v10872 = vcombine.high %v10815, %v10847
      %v10873 = vcombine.low %v10822, %v10854
      %v10874 = vcombine.high %v10822, %v10854
      %v10875 = vcombine.low %v10831, %v10863
      %v10876 = vcombine.high %v10831, %v10863
      %v10877 = vcombine.low %v10838, %v10870
      %v10878 = vcombine.high %v10838, %v10870
      %v10879 = vcombine.low %v10456, %v10460
      %v10880 = vcombine.high %v10456, %v10460
      %v10882 = vunpack.c.l.s4 1983009808
      %v10883 = vunpack.c.0.s8 %v10882
      %v10884 = vlaneseq
      %v10885 = vshrl.u32 %v10884, 7
      %v10886 = vsub.s32 %v10883, %v10885
      %v10887 = vrot.slane %v10879, %v10886
      %v10889 = vunpack.c.l.s4 1983009808
      %v10890 = vunpack.c.0.s8 %v10889
      %v10891 = vlaneseq
      %v10892 = vshrl.u32 %v10891, 7
      %v10893 = vsub.s32 %v10890, %v10892
      %v10894 = vrot.slane %v10880, %v10893
      %v10895 = vcombine.low %v10458, %v10462
      %v10896 = vcombine.high %v10458, %v10462
      %v10898 = vunpack.c.l.s4 1983009808
      %v10899 = vunpack.c.0.s8 %v10898
      %v10900 = vlaneseq
      %v10901 = vshrl.u32 %v10900, 7
      %v10902 = vsub.s32 %v10899, %v10901
      %v10903 = vrot.slane %v10895, %v10902
      %v10905 = vunpack.c.l.s4 1983009808
      %v10906 = vunpack.c.0.s8 %v10905
      %v10907 = vlaneseq
      %v10908 = vshrl.u32 %v10907, 7
      %v10909 = vsub.s32 %v10906, %v10908
      %v10910 = vrot.slane %v10896, %v10909
      %v10911 = vcombine.low %v10464, %v10468
      %v10912 = vcombine.high %v10464, %v10468
      %v10914 = vunpack.c.l.s4 1983009808
      %v10915 = vunpack.c.0.s8 %v10914
      %v10916 = vlaneseq
      %v10917 = vshrl.u32 %v10916, 7
      %v10918 = vsub.s32 %v10915, %v10917
      %v10919 = vrot.slane %v10911, %v10918
      %v10921 = vunpack.c.l.s4 1983009808
      %v10922 = vunpack.c.0.s8 %v10921
      %v10923 = vlaneseq
      %v10924 = vshrl.u32 %v10923, 7
      %v10925 = vsub.s32 %v10922, %v10924
      %v10926 = vrot.slane %v10912, %v10925
      %v10927 = vcombine.low %v10466, %v10470
      %v10928 = vcombine.high %v10466, %v10470
      %v10930 = vunpack.c.l.s4 1983009808
      %v10931 = vunpack.c.0.s8 %v10930
      %v10932 = vlaneseq
      %v10933 = vshrl.u32 %v10932, 7
      %v10934 = vsub.s32 %v10931, %v10933
      %v10935 = vrot.slane %v10927, %v10934
      %v10937 = vunpack.c.l.s4 1983009808
      %v10938 = vunpack.c.0.s8 %v10937
      %v10939 = vlaneseq
      %v10940 = vshrl.u32 %v10939, 7
      %v10941 = vsub.s32 %v10938, %v10940
      %v10942 = vrot.slane %v10928, %v10941
      %v10943 = vcombine.low %v10887, %v10903
      %v10944 = vcombine.high %v10887, %v10903
      %v10946 = vunpack.c.l.s4 1934713408
      %v10947 = vunpack.c.0.s8 %v10946
      %v10948 = vlaneseq
      %v10949 = vshrl.u32 %v10948, 7
      %v10950 = vsub.s32 %v10947, %v10949
      %v10951 = vrot.slane %v10943, %v10950
      %v10953 = vunpack.c.l.s4 1934713408
      %v10954 = vunpack.c.0.s8 %v10953
      %v10955 = vlaneseq
      %v10956 = vshrl.u32 %v10955, 7
      %v10957 = vsub.s32 %v10954, %v10956
      %v10958 = vrot.slane %v10944, %v10957
      %v10959 = vcombine.low %v10894, %v10910
      %v10960 = vcombine.high %v10894, %v10910
      %v10962 = vunpack.c.l.s4 1934713408
      %v10963 = vunpack.c.0.s8 %v10962
      %v10964 = vlaneseq
      %v10965 = vshrl.u32 %v10964, 7
      %v10966 = vsub.s32 %v10963, %v10965
      %v10967 = vrot.slane %v10959, %v10966
      %v10969 = vunpack.c.l.s4 1934713408
      %v10970 = vunpack.c.0.s8 %v10969
      %v10971 = vlaneseq
      %v10972 = vshrl.u32 %v10971, 7
      %v10973 = vsub.s32 %v10970, %v10972
      %v10974 = vrot.slane %v10960, %v10973
      %v10975 = vcombine.low %v10919, %v10935
      %v10976 = vcombine.high %v10919, %v10935
      %v10978 = vunpack.c.l.s4 1934713408
      %v10979 = vunpack.c.0.s8 %v10978
      %v10980 = vlaneseq
      %v10981 = vshrl.u32 %v10980, 7
      %v10982 = vsub.s32 %v10979, %v10981
      %v10983 = vrot.slane %v10975, %v10982
      %v10985 = vunpack.c.l.s4 1934713408
      %v10986 = vunpack.c.0.s8 %v10985
      %v10987 = vlaneseq
      %v10988 = vshrl.u32 %v10987, 7
      %v10989 = vsub.s32 %v10986, %v10988
      %v10990 = vrot.slane %v10976, %v10989
      %v10991 = vcombine.low %v10926, %v10942
      %v10992 = vcombine.high %v10926, %v10942
      %v10994 = vunpack.c.l.s4 1934713408
      %v10995 = vunpack.c.0.s8 %v10994
      %v10996 = vlaneseq
      %v10997 = vshrl.u32 %v10996, 7
      %v10998 = vsub.s32 %v10995, %v10997
      %v10999 = vrot.slane %v10991, %v10998
      %v11001 = vunpack.c.l.s4 1934713408
      %v11002 = vunpack.c.0.s8 %v11001
      %v11003 = vlaneseq
      %v11004 = vshrl.u32 %v11003, 7
      %v11005 = vsub.s32 %v11002, %v11004
      %v11006 = vrot.slane %v10992, %v11005
      %v11007 = vcombine.low %v10951, %v10983
      %v11008 = vcombine.high %v10951, %v10983
      %v11009 = vcombine.low %v10958, %v10990
      %v11010 = vcombine.high %v10958, %v10990
      %v11011 = vcombine.low %v10967, %v10999
      %v11012 = vcombine.high %v10967, %v10999
      %v11013 = vcombine.low %v10974, %v11006
      %v11014 = vcombine.high %v10974, %v11006
      %11017 = vrot.lane.b32.xlu0 %v10600, 8
      %v11018 = vpop.permute.xlu0 %11017
      %11019 = vrot.lane.b32.xlu0 %v10736, 8
      %v11020 = vpop.permute.xlu0 %11019
      %11025 = vrot.lane.b32.xlu0 %v10601, 16
      %v11026 = vpop.permute.xlu0 %11025
      %11027 = vrot.lane.b32.xlu0 %v10737, 16
      %v11028 = vpop.permute.xlu0 %11027
      %11033 = vrot.lane.b32.xlu0 %v10602, 24
      %v11034 = vpop.permute.xlu0 %11033
      %11035 = vrot.lane.b32.xlu0 %v10738, 24
      %v11036 = vpop.permute.xlu0 %11035
      %11041 = vrot.lane.b32.xlu0 %v10603, 32
      %v11042 = vpop.permute.xlu0 %11041
      %11043 = vrot.lane.b32.xlu0 %v10739, 32
      %v11044 = vpop.permute.xlu0 %11043
      %11049 = vrot.lane.b32.xlu0 %v10604, 40
      %v11050 = vpop.permute.xlu0 %11049
      %11051 = vrot.lane.b32.xlu0 %v10740, 40
      %v11052 = vpop.permute.xlu0 %11051
      %11057 = vrot.lane.b32.xlu0 %v10605, 48
      %v11058 = vpop.permute.xlu0 %11057
      %11059 = vrot.lane.b32.xlu0 %v10741, 48
      %v11060 = vpop.permute.xlu0 %11059
      %11065 = vrot.lane.b32.xlu0 %v10606, 56
      %v11066 = vpop.permute.xlu0 %11065
      %11067 = vrot.lane.b32.xlu0 %v10742, 56
      %v11068 = vpop.permute.xlu0 %11067
      %11073 = vrot.lane.b32.xlu0 %v10871, 64
      %v11074 = vpop.permute.xlu0 %11073
      %11075 = vrot.lane.b32.xlu0 %v11007, 64
      %v11076 = vpop.permute.xlu0 %11075
      %11081 = vrot.lane.b32.xlu0 %v10872, 72
      %v11082 = vpop.permute.xlu0 %11081
      %11083 = vrot.lane.b32.xlu0 %v11008, 72
      %v11084 = vpop.permute.xlu0 %11083
      %11089 = vrot.lane.b32.xlu0 %v10873, 80
      %v11090 = vpop.permute.xlu0 %11089
      %11091 = vrot.lane.b32.xlu0 %v11009, 80
      %v11092 = vpop.permute.xlu0 %11091
      %11097 = vrot.lane.b32.xlu0 %v10874, 88
      %v11098 = vpop.permute.xlu0 %11097
      %11099 = vrot.lane.b32.xlu0 %v11010, 88
      %v11100 = vpop.permute.xlu0 %11099
      %11105 = vrot.lane.b32.xlu0 %v10875, 96
      %v11106 = vpop.permute.xlu0 %11105
      %11107 = vrot.lane.b32.xlu0 %v11011, 96
      %v11108 = vpop.permute.xlu0 %11107
      %11113 = vrot.lane.b32.xlu0 %v10876, 104
      %v11114 = vpop.permute.xlu0 %11113
      %11115 = vrot.lane.b32.xlu0 %v11012, 104
      %v11116 = vpop.permute.xlu0 %11115
      %11121 = vrot.lane.b32.xlu0 %v10877, 112
      %v11122 = vpop.permute.xlu0 %11121
      %11123 = vrot.lane.b32.xlu0 %v11013, 112
      %v11124 = vpop.permute.xlu0 %11123
      %11129 = vrot.lane.b32.xlu0 %v10878, 120
      %v11130 = vpop.permute.xlu0 %11129
      %11131 = vrot.lane.b32.xlu0 %v11014, 120
      %v11132 = vpop.permute.xlu0 %11131
      %v11135 = vsel %vm2458, %v10599, %v11018
      %v11136 = vsel %vm2458, %v10735, %v11020
      %v11137 = vsel %vm2495, %v11135, %v11026
      %v11138 = vsel %vm2495, %v11136, %v11028
      %v11139 = vsel %vm2613, %v11137, %v11034
      %v11140 = vsel %vm2613, %v11138, %v11036
      %v11141 = vsel %vm4023, %v11139, %v11042
      %v11142 = vsel %vm4023, %v11140, %v11044
      %vm11143 = vcmask 326656
      %v11144 = vsel %vm11143, %v11141, %v11050
      %v11145 = vsel %vm11143, %v11142, %v11052
      %v11146 = vsel %vm2646, %v11144, %v11058
      %v11147 = vsel %vm2646, %v11145, %v11060
      %vm11148 = vcmask 457728
      %v11149 = vsel %vm11148, %v11146, %v11066
      %v11150 = vsel %vm11148, %v11147, %v11068
      %v11151 = vsel %vm4060, %v11149, %v11074
      %v11152 = vsel %vm4060, %v11150, %v11076
      %v11153 = vsel %vm2722, %v11151, %v11082
      %v11154 = vsel %vm2722, %v11152, %v11084
      %vm11155 = vcmask 654336
      %v11156 = vsel %vm11155, %v11153, %v11090
      %v11157 = vsel %vm11155, %v11154, %v11092
      %vm11158 = vcmask 719872
      %v11159 = vsel %vm11158, %v11156, %v11098
      %v11160 = vsel %vm11158, %v11157, %v11100
      %v11161 = vsel %vm4178, %v11159, %v11106
      %v11162 = vsel %vm4178, %v11160, %v11108
      %vm11163 = vcmask 850944
      %v11164 = vsel %vm11163, %v11161, %v11114
      %v11165 = vsel %vm11163, %v11162, %v11116
      %vm11166 = vcmask 916480
      %v11167 = vsel %vm11166, %v11164, %v11122
      %v11168 = vsel %vm11166, %v11165, %v11124
      %vm11169 = vcmask 982016
      %v11170 = vsel %vm11169, %v11167, %v11130
      %v11171 = vsel %vm11169, %v11168, %v11132
      %11172 = vst [vmem:[%s386] sm:$0xff] %v11170
      %11173 = vst [vmem:[%s386 + $0x8] sm:$0xff] %v11171
      %p11174 = scmp.lt.s32.totalorder %s22, 1
      %s11175 = scalar_select %p11174, %s22, 1
      %s11176 = smul.addr %s11175, 2
      %s11177 = smul.addr %s11176, 8
      %s11178 = scalar_lea.vmem %s11, %s11177
      // Predicated region
      $region65: #{conv2d_6layer_forward.1} parent=63 // pred_check
        %p11179 = pneg %p276
      $region66: #{conv2d_6layer_forward.1} parent=63 // pred_check_branch
        %11181 = sbr.rel (%p11179) target = $region68
      $region67: #{conv2d_6layer_forward.1} parent=63 // pred_region
        _
      $region68: #{conv2d_6layer_forward.1} parent=63 // pred_fallthru
        _
    $region64: #{conv2d_6layer_forward.1} parent=5 // pred_fallthru
      _
    %p11182 = scmp.le.s32.totalorder 2, %s17
    // Predicated region
    $region69: #{conv2d_6layer_forward.1} parent=5 // pred_check
      %p11183 = pneg %p11182
    $region70: #{conv2d_6layer_forward.1} parent=5 // pred_check_branch
      %11185 = sbr.rel (%p11183) target = $region72
    $region71: #{conv2d_6layer_forward.1} parent=5 // pred_region
      %s11186 = ssub.s32 %s17, 2
      // Predicated region
      $region73: #{conv2d_6layer_forward.1} parent=71 // pred_check
        %p11187 = pneg %p282
      $region74: #{conv2d_6layer_forward.1} parent=71 // pred_check_branch
        %11189 = sbr.rel (%p11187) target = $region76
      $region75: #{conv2d_6layer_forward.1} parent=71 // pred_region
        %p11190 = scmp.lt.s32.totalorder %s23, 1
        %s11191 = scalar_select %p11190, %s23, 1
        %s11192 = smul.addr %s11191, 2
        %s11193 = smul.addr %s11192, 8
        %s11194 = scalar_lea.vmem %s11, %s11193
      $region76: #{conv2d_6layer_forward.1} parent=71 // pred_fallthru
        _
    $region72: #{conv2d_6layer_forward.1} parent=5 // pred_fallthru
      _
  $region6: #{conv2d_6layer_forward.1} parent=0 // loop_footer
    %s21 = sadd.s32 1, %s17
  $region7: #{conv2d_6layer_forward.1} parent=0 // loop_footer_branch
    %16 = sbr.rel target = $region3
  $region8: #{conv2d_6layer_forward.1} parent=0 // loop_exit
    _

</llo_original>
